<compile_context>
chip_gen: v6e
topology: v6e:2x2x1
jax: 0.10.0
libtpu: 0.0.40
codegen_flags: <defaults>
</compile_context>

<pallas_src>
import math

import jax
import jax.numpy as jnp
from jax.experimental import pallas as pl
from jax.experimental.pallas import tpu as pltpu

# ----------------------------- model config ---------------------------------
VOCAB_SIZE = 50
HIDDEN_SIZE = 32
N_LAYERS = 4
N_DIRECTIONS = 2          # bidirectional
BATCH = 2
SEQ_LEN = 8

V_PAD = 128               # lane-dense padded vocab width used inside the kernel
NEG = -1e30               # pad-lane bias (keeps the in-kernel argmax correct)

H = HIDDEN_SIZE


# ----------------------------- kernel helpers --------------------------------
def _gate_update(gates, c):
    """gates: (B, 8H) f32 pre-activations, gate-major + direction-packed
    [i_f i_b | f_f f_b | o_f o_b | g_f g_b]; c: (B, 2H) packed [c_fwd | c_bwd]."""
    sig = jax.nn.sigmoid(gates[:, :6 * H])          # one contiguous 6H sigmoid
    i_g = sig[:, 0:2 * H]
    f_g = sig[:, 2 * H:4 * H]
    o_g = sig[:, 4 * H:6 * H]
    g_g = jnp.tanh(gates[:, 6 * H:8 * H])
    c_new = f_g * c + i_g * g_g
    h_new = o_g * jnp.tanh(c_new)
    return h_new, c_new                              # both (B, 2H), packed [fwd | bwd]


def _cell(x_parts, h, c, w_bf16, b_f32):
    """One LSTM cell (both directions) as a single bf16 GEMM + fused gate update.

    x_parts: tuple of f32 (B, *) input pieces (concatenated with packed h).
    w_bf16 : (K, 8H) fused [input | recurrent] weight, gate-major columns.
    b_f32  : (1, 8H) fused bias.
    """
    inp = jnp.concatenate(list(x_parts) + [h], axis=-1).astype(jnp.bfloat16)
    gates = jnp.dot(inp, w_bf16, preferred_element_type=jnp.float32) + b_f32
    return _gate_update(gates, c)


# ----------------------------- the fused kernel -------------------------------
def _tran_lstm_kernel(x_ref, emb_ref, enc_w0_ref, enc_w_ref, enc_b_ref,
                      dec_w0_ref, dec_w_ref, dec_b_ref, lin_w_ref, lin_b_ref,
                      out_ref, seq_a, seq_b):
    """Whole TranLSTM forward on-chip.

    x_ref    : (B, T) int32 token ids
    emb_ref  : (V_PAD, H) bf16 embedding table (zero pad rows)
    enc_w0   : (4H, 8H) bf16, enc_w: (L-1, 6H, 8H) bf16, enc_b: (L, 1, 8H) f32
    dec_w0   : (3H, 8H) bf16, dec_w: (L-1, 4H, 8H) bf16, dec_b: (L, 1, 8H) f32
    lin_w    : (2H, V_PAD) bf16 (zero pad cols), lin_b: (1, V_PAD) f32 (-1e30 pads)
    out_ref  : (T, B, V_PAD) f32 logits; row 0 is the SOS one-hot
    seq_a/b  : (T, 2, B, 2H) f32 VMEM scratch (per-layer sequence staging)
    """
    B, T = x_ref.shape
    tok = x_ref[...]                                           # (B, T) int32
    emb_tab = emb_ref[...]                                     # (V_PAD, H) bf16
    col = jax.lax.broadcasted_iota(jnp.int32, (B, V_PAD), 1)   # lane ids, hoisted

    # ---- prologue: embeddings via one-hot matmuls; SOS one-hot of x[0, 0] ----
    embs = []
    for t in range(T):
        oh = (col == tok[:, t:t + 1])                          # (B, V_PAD) bool
        if t == 0:
            # torch: sos[:, 0, x[0, 0]] = 1.0 for EVERY batch row.
            out_ref[0] = jnp.broadcast_to(oh[0:1, :].astype(jnp.float32), (B, V_PAD))
        embs.append(jnp.dot(oh.astype(jnp.bfloat16), emb_tab,
                            preferred_element_type=jnp.float32))   # (B, H) f32

    # ---- encoder: 4 bidirectional layers, fully unrolled, states in vregs ----
    zeros = jnp.zeros((B, 2 * H), jnp.float32)
    hs, cs = [], []
    for l in range(N_LAYERS):
        w = enc_w0_ref[...] if l == 0 else enc_w_ref[l - 1]
        b = enc_b_ref[l]
        wbuf = seq_b if l % 2 == 0 else seq_a                  # producer buffer
        rbuf = seq_a if l % 2 == 0 else seq_b                  # consumer buffer (l >= 1)
        h = zeros
        c = zeros
        for s in range(T):
            if l == 0:
                # fwd consumes emb[s], bwd consumes emb[T-1-s]  -> K = 4H
                x_parts = (embs[s], embs[T - 1 - s])
            else:
                # staged in the exact column order the fused weight expects -> K = 6H
                x_parts = (rbuf[s, 0], rbuf[s, 1])
            h, c = _cell(x_parts, h, c, w, b)
            if l < N_LAYERS - 1:
                # h = [f_out(s) | b_out(T-1-s)]: feed consumer step s (cols 0:2H)
                # and consumer step T-1-s (cols 2H:4H) with full-row stores.
                wbuf[s, 0] = h
                wbuf[T - 1 - s, 1] = h
        hs.append(h)            # final packed [h_fwd(T-1) | h_bwd(0)] per layer
        cs.append(c)

    # ---- greedy decoder: T-1 steps, logits/argmax/next-embedding on-chip ----
    dec_ws = [dec_w0_ref[...]] + [dec_w_ref[i] for i in range(N_LAYERS - 1)]
    dec_bs = [dec_b_ref[l] for l in range(N_LAYERS)]
    lin_w = lin_w_ref[...]
    lin_b = lin_b_ref[...]

    x_d = embs[0]                                              # torch: embedding[:, 0, :]
    for step in range(T - 1):
        layer_in = x_d
        for l in range(N_LAYERS):
            # seq_len == 1: both directions share the same input -> K = 3H / 4H.
            hs[l], cs[l] = _cell((layer_in,), hs[l], cs[l], dec_ws[l], dec_bs[l])
            layer_in = hs[l]                                   # packed (B, 2H), no concat
        logits = (jnp.dot(layer_in.astype(jnp.bfloat16), lin_w,
                          preferred_element_type=jnp.float32) + lin_b)   # (B, V_PAD) f32
        out_ref[step + 1] = logits                             # full 128-lane store

        # first-occurrence argmax (pad lanes hold -1e30 so they never win), then
        # next-token embedding as a one-hot matmul -- the index never leaves VMEM.
        maxv = jnp.max(logits, axis=-1, keepdims=True)
        idx = jnp.min(jnp.where(logits == maxv, col, V_PAD), axis=-1, keepdims=True)
        onehot = (col == idx).astype(jnp.bfloat16)             # (B, V_PAD)
        x_d = jnp.dot(onehot, emb_tab, preferred_element_type=jnp.float32)  # (B, H)


# ----------------------------- pallas_call wrapper -----------------------------
def _vmem_spec():
    return pl.BlockSpec(memory_space=pltpu.MemorySpace.VMEM)


@jax.jit
def tran_lstm_forward(x, params):
    """x: (B, T) int32 token ids -> (B, T, V) float32 logits (t=0 is the SOS one-hot)."""
    B, T = x.shape
    raw = pl.pallas_call(
        _tran_lstm_kernel,
        in_specs=[_vmem_spec() for _ in range(10)],
        out_specs=_vmem_spec(),
        out_shape=jax.ShapeDtypeStruct((T, B, V_PAD), jnp.float32),
        scratch_shapes=[pltpu.VMEM((T, 2, B, 2 * H), jnp.float32),
                        pltpu.VMEM((T, 2, B, 2 * H), jnp.float32)],
    )(x, params["emb_pad"], params["enc_w0"], params["enc_w"], params["enc_b"],
      params["dec_w0"], params["dec_w"], params["dec_b"],
      params["lin_w_pad"], params["lin_b_pad"])
    # Only remaining glue: (T, B, 128) -> (B, T, V); one small fused copy under jit.
    return jnp.transpose(raw, (1, 0, 2))[:, :, :VOCAB_SIZE]


# ----------------------------- parameters ------------------------------------
def _uniform(key, shape, k):
    return jax.random.uniform(key, shape, jnp.float32, -k, k)


def _place(dst, row0, blk, d):
    """Scatter a per-direction, gate-blocked ([i, f, o, g] along its 4H columns)
    block into direction d's gate-major columns of the fused (K, 8H) weight."""
    r = blk.shape[0]
    for g in range(4):
        dst = dst.at[row0:row0 + r,
                     g * 2 * H + d * H: g * 2 * H + (d + 1) * H].set(
                         blk[:, g * H:(g + 1) * H])
    return dst


def _build_fused_cell(key, K, ih_rows, hh_rows):
    """Build one fused cell weight (K, 8H) bf16 + bias (1, 8H) f32.

    ih_rows[d]: row offsets (H rows each) of direction d's input-weight blocks.
    hh_rows[d]: row offset of direction d's recurrent block.
    Weight values ~ U(-1/sqrt(H), 1/sqrt(H)); bias = b_ih + b_hh (PyTorch init).
    """
    k = 1.0 / math.sqrt(H)
    W = jnp.zeros((K, 8 * H), jnp.float32)
    bias = jnp.zeros((1, 8 * H), jnp.float32)
    for d in range(N_DIRECTIONS):
        for row0 in ih_rows[d]:
            key, kk = jax.random.split(key)
            W = _place(W, row0, _uniform(kk, (H, 4 * H), k), d)
        key, kk = jax.random.split(key)
        W = _place(W, hh_rows[d], _uniform(kk, (H, 4 * H), k), d)
        key, k1, k2 = jax.random.split(key, 3)
        b_d = _uniform(k1, (4 * H,), k) + _uniform(k2, (4 * H,), k)
        bias = _place(bias, 0, b_d[None, :], d)
    return key, W.astype(jnp.bfloat16), bias


def init_params(seed=0):
    key = jax.random.PRNGKey(seed)

    key, k_emb = jax.random.split(key)
    embedding = jax.random.normal(k_emb, (VOCAB_SIZE, H), jnp.float32)  # nn.Embedding init
    emb_pad = jnp.zeros((V_PAD, H), jnp.float32).at[:VOCAB_SIZE].set(embedding)

    # Encoder.  Layer 0 input cols: [emb(s) | emb(T-1-s) | h_f | h_b]            (K = 4H)
    key, enc_w0, b0 = _build_fused_cell(key, 4 * H,
                                        {0: [0], 1: [H]}, {0: 2 * H, 1: 3 * H})
    enc_w, enc_b = [], [b0]
    # Layers >0 input cols: [f(s) | b(T-1-s) | f(T-1-s) | b(s) | h_f | h_b]      (K = 6H)
    for _ in range(N_LAYERS - 1):
        key, w, b = _build_fused_cell(key, 6 * H,
                                      {0: [0, 3 * H], 1: [2 * H, H]},
                                      {0: 4 * H, 1: 5 * H})
        enc_w.append(w)
        enc_b.append(b)

    # Decoder (seq_len == 1: both directions share the input).
    # Layer 0 input cols: [emb | h_f | h_b]                                       (K = 3H)
    key, dec_w0, db0 = _build_fused_cell(key, 3 * H,
                                         {0: [0], 1: [0]}, {0: H, 1: 2 * H})
    dec_w, dec_b = [], [db0]
    # Layers >0 input cols: [prev_f | prev_b | h_f | h_b]                         (K = 4H)
    for _ in range(N_LAYERS - 1):
        key, w, b = _build_fused_cell(key, 4 * H,
                                      {0: [0, H], 1: [0, H]},
                                      {0: 2 * H, 1: 3 * H})
        dec_w.append(w)
        dec_b.append(b)

    # Output projection, padded lane-dense; pad lanes biased to -1e30 (f32!).
    kf = 1.0 / math.sqrt(2 * H)
    key, k_w, k_b = jax.random.split(key, 3)
    lin_w = _uniform(k_w, (2 * H, VOCAB_SIZE), kf)
    lin_b = _uniform(k_b, (VOCAB_SIZE,), kf)
    lin_w_pad = jnp.zeros((2 * H, V_PAD), jnp.float32).at[:, :VOCAB_SIZE].set(lin_w)
    lin_b_pad = jnp.full((1, V_PAD), NEG, jnp.float32).at[0, :VOCAB_SIZE].set(lin_b)

    return {
        "emb_pad": emb_pad.astype(jnp.bfloat16),
        "enc_w0": enc_w0, "enc_w": jnp.stack(enc_w), "enc_b": jnp.stack(enc_b),
        "dec_w0": dec_w0, "dec_w": jnp.stack(dec_w), "dec_b": jnp.stack(dec_b),
        "lin_w_pad": lin_w_pad.astype(jnp.bfloat16), "lin_b_pad": lin_b_pad,
    }


# ----------------------------- main -------------------------------------------
if __name__ == "__main__":
    params = init_params(seed=0)
    key = jax.random.PRNGKey(0)
    x = jax.random.randint(key, (BATCH, SEQ_LEN), 0, VOCAB_SIZE, dtype=jnp.int32)

    out = tran_lstm_forward(x, params)
    out = jax.block_until_ready(out)

    assert out.shape == (BATCH, SEQ_LEN, VOCAB_SIZE), out.shape
    assert out.dtype == jnp.float32
    assert bool(jnp.all(jnp.isfinite(out)))
    # t = 0 must be the one-hot SOS row built from x[0, 0] (torch semantics).
    assert bool(jnp.all(out[:, 0].sum(-1) == 1.0))
    assert bool(jnp.all(jnp.argmax(out[:, 0], -1) == x[0, 0]))
    print("KERNEL_OK")
</pallas_src>

<mosaic_0001>
module attributes {stable_mosaic.version = 11 : i64} {
  func.func @_tran_lstm_kernel(%arg0: memref<2x8xi32, #tpu.memory_space<vmem>>, %arg1: memref<128x32xbf16, #tpu.memory_space<vmem>>, %arg2: memref<128x256xbf16, #tpu.memory_space<vmem>>, %arg3: memref<3x192x256xbf16, #tpu.memory_space<vmem>>, %arg4: memref<4x1x256xf32, #tpu.memory_space<vmem>>, %arg5: memref<96x256xbf16, #tpu.memory_space<vmem>>, %arg6: memref<3x128x256xbf16, #tpu.memory_space<vmem>>, %arg7: memref<4x1x256xf32, #tpu.memory_space<vmem>>, %arg8: memref<64x128xbf16, #tpu.memory_space<vmem>>, %arg9: memref<1x128xf32, #tpu.memory_space<vmem>>, %arg10: memref<8x2x128xf32, #tpu.memory_space<vmem>>, %arg11: memref<8x2x2x64xf32, #tpu.memory_space<vmem>>, %arg12: memref<8x2x2x64xf32, #tpu.memory_space<vmem>>) attributes {dimension_semantics = [], scalar_prefetch = 0 : i64, scratch_operands = 2 : i64, tpu.core_type = #tpu.core_type<tc>} {
    %c0 = arith.constant 0 : index
    %c0_0 = arith.constant 0 : index
    %0 = vector.load %arg0[%c0, %c0_0] : memref<2x8xi32, #tpu.memory_space<vmem>>, vector<2x8xi32>
    %c0_1 = arith.constant 0 : index
    %c0_2 = arith.constant 0 : index
    %1 = vector.load %arg1[%c0_1, %c0_2] : memref<128x32xbf16, #tpu.memory_space<vmem>>, vector<128x32xbf16>
    %2 = tpu.iota {dimensions = array<i32: 1>} : vector<2x128xi32>
    %3 = vector.extract_strided_slice %0 {offsets = [0, 0], sizes = [2, 1], strides = [1, 1]} : vector<2x8xi32> to vector<2x1xi32>
    %4 = vector.broadcast %3 : vector<2x1xi32> to vector<2x128xi32>
    %5 = arith.cmpi eq, %2, %4 : vector<2x128xi32>
    %6 = vector.extract_strided_slice %5 {offsets = [0, 0], sizes = [1, 128], strides = [1, 1]} : vector<2x128xi1> to vector<1x128xi1>
    %7 = arith.extui %6 : vector<1x128xi1> to vector<1x128xi32>
    %8 = arith.sitofp %7 : vector<1x128xi32> to vector<1x128xf32>
    %9 = vector.shape_cast %8 : vector<1x128xf32> to vector<1x128xf32>
    %10 = vector.broadcast %9 : vector<1x128xf32> to vector<2x128xf32>
    %c0_3 = arith.constant 0 : index
    %c0_4 = arith.constant 0 : index
    %c0_5 = arith.constant 0 : index
    %11 = vector.load %arg10[%c0_3, %c0_4, %c0_5] : memref<8x2x128xf32, #tpu.memory_space<vmem>>, vector<1x2x128xf32>
    %12 = vector.shape_cast %11 : vector<1x2x128xf32> to vector<2x128xf32>
    %13 = vector.shape_cast %10 : vector<2x128xf32> to vector<1x2x128xf32>
    tpu.vector_store %arg10[%c0_3, %c0_4, %c0_5], %13 {strides = array<i32>} : memref<8x2x128xf32, #tpu.memory_space<vmem>>, vector<1x2x128xf32>,
    %14 = arith.extui %5 : vector<2x128xi1> to vector<2x128xi32>
    %15 = arith.sitofp %14 : vector<2x128xi32> to vector<2x128xf32>
    %16 = arith.truncf %15 : vector<2x128xf32> to vector<2x128xbf16>
    %cst = arith.constant dense<0.000000e+00> : vector<2x32xf32>
    %17 = tpu.matmul %16, %1, %cst {dimension_numbers = #tpu.dot_dimension_numbers<[1], [0], [0], [1], [0, 0, 1, 1], [], []>} : vector<2x128xbf16>, vector<128x32xbf16>, vector<2x32xf32> -> vector<2x32xf32>
    %18 = vector.extract_strided_slice %0 {offsets = [0, 1], sizes = [2, 1], strides = [1, 1]} : vector<2x8xi32> to vector<2x1xi32>
    %19 = vector.broadcast %18 : vector<2x1xi32> to vector<2x128xi32>
    %20 = arith.cmpi eq, %2, %19 : vector<2x128xi32>
    %21 = arith.extui %20 : vector<2x128xi1> to vector<2x128xi32>
    %22 = arith.sitofp %21 : vector<2x128xi32> to vector<2x128xf32>
    %23 = arith.truncf %22 : vector<2x128xf32> to vector<2x128xbf16>
    %cst_6 = arith.constant dense<0.000000e+00> : vector<2x32xf32>
    %24 = tpu.matmul %23, %1, %cst_6 {dimension_numbers = #tpu.dot_dimension_numbers<[1], [0], [0], [1], [0, 0, 1, 1], [], []>} : vector<2x128xbf16>, vector<128x32xbf16>, vector<2x32xf32> -> vector<2x32xf32>
    %25 = vector.extract_strided_slice %0 {offsets = [0, 2], sizes = [2, 1], strides = [1, 1]} : vector<2x8xi32> to vector<2x1xi32>
    %26 = vector.broadcast %25 : vector<2x1xi32> to vector<2x128xi32>
    %27 = arith.cmpi eq, %2, %26 : vector<2x128xi32>
    %28 = arith.extui %27 : vector<2x128xi1> to vector<2x128xi32>
    %29 = arith.sitofp %28 : vector<2x128xi32> to vector<2x128xf32>
    %30 = arith.truncf %29 : vector<2x128xf32> to vector<2x128xbf16>
    %cst_7 = arith.constant dense<0.000000e+00> : vector<2x32xf32>
    %31 = tpu.matmul %30, %1, %cst_7 {dimension_numbers = #tpu.dot_dimension_numbers<[1], [0], [0], [1], [0, 0, 1, 1], [], []>} : vector<2x128xbf16>, vector<128x32xbf16>, vector<2x32xf32> -> vector<2x32xf32>
    %32 = vector.extract_strided_slice %0 {offsets = [0, 3], sizes = [2, 1], strides = [1, 1]} : vector<2x8xi32> to vector<2x1xi32>
    %33 = vector.broadcast %32 : vector<2x1xi32> to vector<2x128xi32>
    %34 = arith.cmpi eq, %2, %33 : vector<2x128xi32>
    %35 = arith.extui %34 : vector<2x128xi1> to vector<2x128xi32>
    %36 = arith.sitofp %35 : vector<2x128xi32> to vector<2x128xf32>
    %37 = arith.truncf %36 : vector<2x128xf32> to vector<2x128xbf16>
    %cst_8 = arith.constant dense<0.000000e+00> : vector<2x32xf32>
    %38 = tpu.matmul %37, %1, %cst_8 {dimension_numbers = #tpu.dot_dimension_numbers<[1], [0], [0], [1], [0, 0, 1, 1], [], []>} : vector<2x128xbf16>, vector<128x32xbf16>, vector<2x32xf32> -> vector<2x32xf32>
    %39 = vector.extract_strided_slice %0 {offsets = [0, 4], sizes = [2, 1], strides = [1, 1]} : vector<2x8xi32> to vector<2x1xi32>
    %40 = vector.broadcast %39 : vector<2x1xi32> to vector<2x128xi32>
    %41 = arith.cmpi eq, %2, %40 : vector<2x128xi32>
    %42 = arith.extui %41 : vector<2x128xi1> to vector<2x128xi32>
    %43 = arith.sitofp %42 : vector<2x128xi32> to vector<2x128xf32>
    %44 = arith.truncf %43 : vector<2x128xf32> to vector<2x128xbf16>
    %cst_9 = arith.constant dense<0.000000e+00> : vector<2x32xf32>
    %45 = tpu.matmul %44, %1, %cst_9 {dimension_numbers = #tpu.dot_dimension_numbers<[1], [0], [0], [1], [0, 0, 1, 1], [], []>} : vector<2x128xbf16>, vector<128x32xbf16>, vector<2x32xf32> -> vector<2x32xf32>
    %46 = vector.extract_strided_slice %0 {offsets = [0, 5], sizes = [2, 1], strides = [1, 1]} : vector<2x8xi32> to vector<2x1xi32>
    %47 = vector.broadcast %46 : vector<2x1xi32> to vector<2x128xi32>
    %48 = arith.cmpi eq, %2, %47 : vector<2x128xi32>
    %49 = arith.extui %48 : vector<2x128xi1> to vector<2x128xi32>
    %50 = arith.sitofp %49 : vector<2x128xi32> to vector<2x128xf32>
    %51 = arith.truncf %50 : vector<2x128xf32> to vector<2x128xbf16>
    %cst_10 = arith.constant dense<0.000000e+00> : vector<2x32xf32>
    %52 = tpu.matmul %51, %1, %cst_10 {dimension_numbers = #tpu.dot_dimension_numbers<[1], [0], [0], [1], [0, 0, 1, 1], [], []>} : vector<2x128xbf16>, vector<128x32xbf16>, vector<2x32xf32> -> vector<2x32xf32>
    %53 = vector.extract_strided_slice %0 {offsets = [0, 6], sizes = [2, 1], strides = [1, 1]} : vector<2x8xi32> to vector<2x1xi32>
    %54 = vector.broadcast %53 : vector<2x1xi32> to vector<2x128xi32>
    %55 = arith.cmpi eq, %2, %54 : vector<2x128xi32>
    %56 = arith.extui %55 : vector<2x128xi1> to vector<2x128xi32>
    %57 = arith.sitofp %56 : vector<2x128xi32> to vector<2x128xf32>
    %58 = arith.truncf %57 : vector<2x128xf32> to vector<2x128xbf16>
    %cst_11 = arith.constant dense<0.000000e+00> : vector<2x32xf32>
    %59 = tpu.matmul %58, %1, %cst_11 {dimension_numbers = #tpu.dot_dimension_numbers<[1], [0], [0], [1], [0, 0, 1, 1], [], []>} : vector<2x128xbf16>, vector<128x32xbf16>, vector<2x32xf32> -> vector<2x32xf32>
    %60 = vector.extract_strided_slice %0 {offsets = [0, 7], sizes = [2, 1], strides = [1, 1]} : vector<2x8xi32> to vector<2x1xi32>
    %61 = vector.broadcast %60 : vector<2x1xi32> to vector<2x128xi32>
    %62 = arith.cmpi eq, %2, %61 : vector<2x128xi32>
    %63 = arith.extui %62 : vector<2x128xi1> to vector<2x128xi32>
    %64 = arith.sitofp %63 : vector<2x128xi32> to vector<2x128xf32>
    %65 = arith.truncf %64 : vector<2x128xf32> to vector<2x128xbf16>
    %cst_12 = arith.constant dense<0.000000e+00> : vector<2x32xf32>
    %66 = tpu.matmul %65, %1, %cst_12 {dimension_numbers = #tpu.dot_dimension_numbers<[1], [0], [0], [1], [0, 0, 1, 1], [], []>} : vector<2x128xbf16>, vector<128x32xbf16>, vector<2x32xf32> -> vector<2x32xf32>
    %cst_13 = arith.constant 0.000000e+00 : f32
    %67 = vector.broadcast %cst_13 : f32 to vector<2x64xf32>
    %c0_14 = arith.constant 0 : index
    %c0_15 = arith.constant 0 : index
    %68 = vector.load %arg2[%c0_14, %c0_15] : memref<128x256xbf16, #tpu.memory_space<vmem>>, vector<128x256xbf16>
    %c0_16 = arith.constant 0 : index
    %c0_17 = arith.constant 0 : index
    %c0_18 = arith.constant 0 : index
    %69 = vector.load %arg4[%c0_16, %c0_17, %c0_18] : memref<4x1x256xf32, #tpu.memory_space<vmem>>, vector<1x1x256xf32>
    %70 = vector.shape_cast %69 : vector<1x1x256xf32> to vector<1x256xf32>
    %71 = tpu.concatenate %17, %66, %67 in 1 : vector<2x32xf32>, vector<2x32xf32>, vector<2x64xf32> -> vector<2x128xf32>
    %72 = arith.truncf %71 : vector<2x128xf32> to vector<2x128xbf16>
    %cst_19 = arith.constant dense<0.000000e+00> : vector<2x256xf32>
    %73 = tpu.matmul %72, %68, %cst_19 {dimension_numbers = #tpu.dot_dimension_numbers<[1], [0], [0], [1], [0, 0, 1, 1], [], []>} : vector<2x128xbf16>, vector<128x256xbf16>, vector<2x256xf32> -> vector<2x256xf32>
    %74 = vector.broadcast %70 : vector<1x256xf32> to vector<2x256xf32>
    %75 = arith.addf %73, %74 : vector<2x256xf32>
    %76 = vector.extract_strided_slice %75 {offsets = [0, 0], sizes = [2, 192], strides = [1, 1]} : vector<2x256xf32> to vector<2x192xf32>
    %77 = arith.negf %76 : vector<2x192xf32>
    %78 = math.exp %77 : vector<2x192xf32>
    %cst_20 = arith.constant 1.000000e+00 : f32
    %79 = vector.broadcast %cst_20 : f32 to vector<2x192xf32>
    %80 = arith.addf %79, %78 : vector<2x192xf32>
    %81 = arith.divf %79, %80 : vector<2x192xf32>
    %82 = vector.extract_strided_slice %81 {offsets = [0, 0], sizes = [2, 64], strides = [1, 1]} : vector<2x192xf32> to vector<2x64xf32>
    %83 = vector.extract_strided_slice %81 {offsets = [0, 64], sizes = [2, 64], strides = [1, 1]} : vector<2x192xf32> to vector<2x64xf32>
    %84 = vector.extract_strided_slice %81 {offsets = [0, 128], sizes = [2, 64], strides = [1, 1]} : vector<2x192xf32> to vector<2x64xf32>
    %85 = vector.extract_strided_slice %75 {offsets = [0, 192], sizes = [2, 64], strides = [1, 1]} : vector<2x256xf32> to vector<2x64xf32>
    %86 = math.tanh %85 : vector<2x64xf32>
    %87 = arith.mulf %83, %67 : vector<2x64xf32>
    %88 = arith.mulf %82, %86 : vector<2x64xf32>
    %89 = arith.addf %87, %88 : vector<2x64xf32>
    %90 = math.tanh %89 : vector<2x64xf32>
    %91 = arith.mulf %84, %90 : vector<2x64xf32>
    %c0_21 = arith.constant 0 : index
    %c0_22 = arith.constant 0 : index
    %c0_23 = arith.constant 0 : index
    %c0_24 = arith.constant 0 : index
    %92 = vector.load %arg12[%c0_21, %c0_22, %c0_23, %c0_24] : memref<8x2x2x64xf32, #tpu.memory_space<vmem>>, vector<1x1x2x64xf32>
    %93 = vector.shape_cast %92 : vector<1x1x2x64xf32> to vector<2x64xf32>
    %94 = vector.shape_cast %91 : vector<2x64xf32> to vector<1x1x2x64xf32>
    tpu.vector_store %arg12[%c0_21, %c0_22, %c0_23, %c0_24], %94 {strides = array<i32>} : memref<8x2x2x64xf32, #tpu.memory_space<vmem>>, vector<1x1x2x64xf32>,
    %c7 = arith.constant 7 : index
    %c1 = arith.constant 1 : index
    %c0_25 = arith.constant 0 : index
    %c0_26 = arith.constant 0 : index
    %95 = vector.load %arg12[%c7, %c1, %c0_25, %c0_26] : memref<8x2x2x64xf32, #tpu.memory_space<vmem>>, vector<1x1x2x64xf32>
    %96 = vector.shape_cast %95 : vector<1x1x2x64xf32> to vector<2x64xf32>
    %97 = vector.shape_cast %91 : vector<2x64xf32> to vector<1x1x2x64xf32>
    tpu.vector_store %arg12[%c7, %c1, %c0_25, %c0_26], %97 {strides = array<i32>} : memref<8x2x2x64xf32, #tpu.memory_space<vmem>>, vector<1x1x2x64xf32>,
    %98 = tpu.concatenate %24, %59, %91 in 1 : vector<2x32xf32>, vector<2x32xf32>, vector<2x64xf32> -> vector<2x128xf32>
    %99 = arith.truncf %98 : vector<2x128xf32> to vector<2x128xbf16>
    %cst_27 = arith.constant dense<0.000000e+00> : vector<2x256xf32>
    %100 = tpu.matmul %99, %68, %cst_27 {dimension_numbers = #tpu.dot_dimension_numbers<[1], [0], [0], [1], [0, 0, 1, 1], [], []>} : vector<2x128xbf16>, vector<128x256xbf16>, vector<2x256xf32> -> vector<2x256xf32>
    %101 = vector.broadcast %70 : vector<1x256xf32> to vector<2x256xf32>
    %102 = arith.addf %100, %101 : vector<2x256xf32>
    %103 = vector.extract_strided_slice %102 {offsets = [0, 0], sizes = [2, 192], strides = [1, 1]} : vector<2x256xf32> to vector<2x192xf32>
    %104 = arith.negf %103 : vector<2x192xf32>
    %105 = math.exp %104 : vector<2x192xf32>
    %cst_28 = arith.constant 1.000000e+00 : f32
    %106 = vector.broadcast %cst_28 : f32 to vector<2x192xf32>
    %107 = arith.addf %106, %105 : vector<2x192xf32>
    %108 = arith.divf %106, %107 : vector<2x192xf32>
    %109 = vector.extract_strided_slice %108 {offsets = [0, 0], sizes = [2, 64], strides = [1, 1]} : vector<2x192xf32> to vector<2x64xf32>
    %110 = vector.extract_strided_slice %108 {offsets = [0, 64], sizes = [2, 64], strides = [1, 1]} : vector<2x192xf32> to vector<2x64xf32>
    %111 = vector.extract_strided_slice %108 {offsets = [0, 128], sizes = [2, 64], strides = [1, 1]} : vector<2x192xf32> to vector<2x64xf32>
    %112 = vector.extract_strided_slice %102 {offsets = [0, 192], sizes = [2, 64], strides = [1, 1]} : vector<2x256xf32> to vector<2x64xf32>
    %113 = math.tanh %112 : vector<2x64xf32>
    %114 = arith.mulf %110, %89 : vector<2x64xf32>
    %115 = arith.mulf %109, %113 : vector<2x64xf32>
    %116 = arith.addf %114, %115 : vector<2x64xf32>
    %117 = math.tanh %116 : vector<2x64xf32>
    %118 = arith.mulf %111, %117 : vector<2x64xf32>
    %c1_29 = arith.constant 1 : index
    %c0_30 = arith.constant 0 : index
    %c0_31 = arith.constant 0 : index
    %c0_32 = arith.constant 0 : index
    %119 = vector.load %arg12[%c1_29, %c0_30, %c0_31, %c0_32] : memref<8x2x2x64xf32, #tpu.memory_space<vmem>>, vector<1x1x2x64xf32>
    %120 = vector.shape_cast %119 : vector<1x1x2x64xf32> to vector<2x64xf32>
    %121 = vector.shape_cast %118 : vector<2x64xf32> to vector<1x1x2x64xf32>
    tpu.vector_store %arg12[%c1_29, %c0_30, %c0_31, %c0_32], %121 {strides = array<i32>} : memref<8x2x2x64xf32, #tpu.memory_space<vmem>>, vector<1x1x2x64xf32>,
    %c6 = arith.constant 6 : index
    %c1_33 = arith.constant 1 : index
    %c0_34 = arith.constant 0 : index
    %c0_35 = arith.constant 0 : index
    %122 = vector.load %arg12[%c6, %c1_33, %c0_34, %c0_35] : memref<8x2x2x64xf32, #tpu.memory_space<vmem>>, vector<1x1x2x64xf32>
    %123 = vector.shape_cast %122 : vector<1x1x2x64xf32> to vector<2x64xf32>
    %124 = vector.shape_cast %118 : vector<2x64xf32> to vector<1x1x2x64xf32>
    tpu.vector_store %arg12[%c6, %c1_33, %c0_34, %c0_35], %124 {strides = array<i32>} : memref<8x2x2x64xf32, #tpu.memory_space<vmem>>, vector<1x1x2x64xf32>,
    %125 = tpu.concatenate %31, %52, %118 in 1 : vector<2x32xf32>, vector<2x32xf32>, vector<2x64xf32> -> vector<2x128xf32>
    %126 = arith.truncf %125 : vector<2x128xf32> to vector<2x128xbf16>
    %cst_36 = arith.constant dense<0.000000e+00> : vector<2x256xf32>
    %127 = tpu.matmul %126, %68, %cst_36 {dimension_numbers = #tpu.dot_dimension_numbers<[1], [0], [0], [1], [0, 0, 1, 1], [], []>} : vector<2x128xbf16>, vector<128x256xbf16>, vector<2x256xf32> -> vector<2x256xf32>
    %128 = vector.broadcast %70 : vector<1x256xf32> to vector<2x256xf32>
    %129 = arith.addf %127, %128 : vector<2x256xf32>
    %130 = vector.extract_strided_slice %129 {offsets = [0, 0], sizes = [2, 192], strides = [1, 1]} : vector<2x256xf32> to vector<2x192xf32>
    %131 = arith.negf %130 : vector<2x192xf32>
    %132 = math.exp %131 : vector<2x192xf32>
    %cst_37 = arith.constant 1.000000e+00 : f32
    %133 = vector.broadcast %cst_37 : f32 to vector<2x192xf32>
    %134 = arith.addf %133, %132 : vector<2x192xf32>
    %135 = arith.divf %133, %134 : vector<2x192xf32>
    %136 = vector.extract_strided_slice %135 {offsets = [0, 0], sizes = [2, 64], strides = [1, 1]} : vector<2x192xf32> to vector<2x64xf32>
    %137 = vector.extract_strided_slice %135 {offsets = [0, 64], sizes = [2, 64], strides = [1, 1]} : vector<2x192xf32> to vector<2x64xf32>
    %138 = vector.extract_strided_slice %135 {offsets = [0, 128], sizes = [2, 64], strides = [1, 1]} : vector<2x192xf32> to vector<2x64xf32>
    %139 = vector.extract_strided_slice %129 {offsets = [0, 192], sizes = [2, 64], strides = [1, 1]} : vector<2x256xf32> to vector<2x64xf32>
    %140 = math.tanh %139 : vector<2x64xf32>
    %141 = arith.mulf %137, %116 : vector<2x64xf32>
    %142 = arith.mulf %136, %140 : vector<2x64xf32>
    %143 = arith.addf %141, %142 : vector<2x64xf32>
    %144 = math.tanh %143 : vector<2x64xf32>
    %145 = arith.mulf %138, %144 : vector<2x64xf32>
    %c2 = arith.constant 2 : index
    %c0_38 = arith.constant 0 : index
    %c0_39 = arith.constant 0 : index
    %c0_40 = arith.constant 0 : index
    %146 = vector.load %arg12[%c2, %c0_38, %c0_39, %c0_40] : memref<8x2x2x64xf32, #tpu.memory_space<vmem>>, vector<1x1x2x64xf32>
    %147 = vector.shape_cast %146 : vector<1x1x2x64xf32> to vector<2x64xf32>
    %148 = vector.shape_cast %145 : vector<2x64xf32> to vector<1x1x2x64xf32>
    tpu.vector_store %arg12[%c2, %c0_38, %c0_39, %c0_40], %148 {strides = array<i32>} : memref<8x2x2x64xf32, #tpu.memory_space<vmem>>, vector<1x1x2x64xf32>,
    %c5 = arith.constant 5 : index
    %c1_41 = arith.constant 1 : index
    %c0_42 = arith.constant 0 : index
    %c0_43 = arith.constant 0 : index
    %149 = vector.load %arg12[%c5, %c1_41, %c0_42, %c0_43] : memref<8x2x2x64xf32, #tpu.memory_space<vmem>>, vector<1x1x2x64xf32>
    %150 = vector.shape_cast %149 : vector<1x1x2x64xf32> to vector<2x64xf32>
    %151 = vector.shape_cast %145 : vector<2x64xf32> to vector<1x1x2x64xf32>
    tpu.vector_store %arg12[%c5, %c1_41, %c0_42, %c0_43], %151 {strides = array<i32>} : memref<8x2x2x64xf32, #tpu.memory_space<vmem>>, vector<1x1x2x64xf32>,
    %152 = tpu.concatenate %38, %45, %145 in 1 : vector<2x32xf32>, vector<2x32xf32>, vector<2x64xf32> -> vector<2x128xf32>
    %153 = arith.truncf %152 : vector<2x128xf32> to vector<2x128xbf16>
    %cst_44 = arith.constant dense<0.000000e+00> : vector<2x256xf32>
    %154 = tpu.matmul %153, %68, %cst_44 {dimension_numbers = #tpu.dot_dimension_numbers<[1], [0], [0], [1], [0, 0, 1, 1], [], []>} : vector<2x128xbf16>, vector<128x256xbf16>, vector<2x256xf32> -> vector<2x256xf32>
    %155 = vector.broadcast %70 : vector<1x256xf32> to vector<2x256xf32>
    %156 = arith.addf %154, %155 : vector<2x256xf32>
    %157 = vector.extract_strided_slice %156 {offsets = [0, 0], sizes = [2, 192], strides = [1, 1]} : vector<2x256xf32> to vector<2x192xf32>
    %158 = arith.negf %157 : vector<2x192xf32>
    %159 = math.exp %158 : vector<2x192xf32>
    %cst_45 = arith.constant 1.000000e+00 : f32
    %160 = vector.broadcast %cst_45 : f32 to vector<2x192xf32>
    %161 = arith.addf %160, %159 : vector<2x192xf32>
    %162 = arith.divf %160, %161 : vector<2x192xf32>
    %163 = vector.extract_strided_slice %162 {offsets = [0, 0], sizes = [2, 64], strides = [1, 1]} : vector<2x192xf32> to vector<2x64xf32>
    %164 = vector.extract_strided_slice %162 {offsets = [0, 64], sizes = [2, 64], strides = [1, 1]} : vector<2x192xf32> to vector<2x64xf32>
    %165 = vector.extract_strided_slice %162 {offsets = [0, 128], sizes = [2, 64], strides = [1, 1]} : vector<2x192xf32> to vector<2x64xf32>
    %166 = vector.extract_strided_slice %156 {offsets = [0, 192], sizes = [2, 64], strides = [1, 1]} : vector<2x256xf32> to vector<2x64xf32>
    %167 = math.tanh %166 : vector<2x64xf32>
    %168 = arith.mulf %164, %143 : vector<2x64xf32>
    %169 = arith.mulf %163, %167 : vector<2x64xf32>
    %170 = arith.addf %168, %169 : vector<2x64xf32>
    %171 = math.tanh %170 : vector<2x64xf32>
    %172 = arith.mulf %165, %171 : vector<2x64xf32>
    %c3 = arith.constant 3 : index
    %c0_46 = arith.constant 0 : index
    %c0_47 = arith.constant 0 : index
    %c0_48 = arith.constant 0 : index
    %173 = vector.load %arg12[%c3, %c0_46, %c0_47, %c0_48] : memref<8x2x2x64xf32, #tpu.memory_space<vmem>>, vector<1x1x2x64xf32>
    %174 = vector.shape_cast %173 : vector<1x1x2x64xf32> to vector<2x64xf32>
    %175 = vector.shape_cast %172 : vector<2x64xf32> to vector<1x1x2x64xf32>
    tpu.vector_store %arg12[%c3, %c0_46, %c0_47, %c0_48], %175 {strides = array<i32>} : memref<8x2x2x64xf32, #tpu.memory_space<vmem>>, vector<1x1x2x64xf32>,
    %c4 = arith.constant 4 : index
    %c1_49 = arith.constant 1 : index
    %c0_50 = arith.constant 0 : index
    %c0_51 = arith.constant 0 : index
    %176 = vector.load %arg12[%c4, %c1_49, %c0_50, %c0_51] : memref<8x2x2x64xf32, #tpu.memory_space<vmem>>, vector<1x1x2x64xf32>
    %177 = vector.shape_cast %176 : vector<1x1x2x64xf32> to vector<2x64xf32>
    %178 = vector.shape_cast %172 : vector<2x64xf32> to vector<1x1x2x64xf32>
    tpu.vector_store %arg12[%c4, %c1_49, %c0_50, %c0_51], %178 {strides = array<i32>} : memref<8x2x2x64xf32, #tpu.memory_space<vmem>>, vector<1x1x2x64xf32>,
    %179 = tpu.concatenate %45, %38, %172 in 1 : vector<2x32xf32>, vector<2x32xf32>, vector<2x64xf32> -> vector<2x128xf32>
    %180 = arith.truncf %179 : vector<2x128xf32> to vector<2x128xbf16>
    %cst_52 = arith.constant dense<0.000000e+00> : vector<2x256xf32>
    %181 = tpu.matmul %180, %68, %cst_52 {dimension_numbers = #tpu.dot_dimension_numbers<[1], [0], [0], [1], [0, 0, 1, 1], [], []>} : vector<2x128xbf16>, vector<128x256xbf16>, vector<2x256xf32> -> vector<2x256xf32>
    %182 = vector.broadcast %70 : vector<1x256xf32> to vector<2x256xf32>
    %183 = arith.addf %181, %182 : vector<2x256xf32>
    %184 = vector.extract_strided_slice %183 {offsets = [0, 0], sizes = [2, 192], strides = [1, 1]} : vector<2x256xf32> to vector<2x192xf32>
    %185 = arith.negf %184 : vector<2x192xf32>
    %186 = math.exp %185 : vector<2x192xf32>
    %cst_53 = arith.constant 1.000000e+00 : f32
    %187 = vector.broadcast %cst_53 : f32 to vector<2x192xf32>
    %188 = arith.addf %187, %186 : vector<2x192xf32>
    %189 = arith.divf %187, %188 : vector<2x192xf32>
    %190 = vector.extract_strided_slice %189 {offsets = [0, 0], sizes = [2, 64], strides = [1, 1]} : vector<2x192xf32> to vector<2x64xf32>
    %191 = vector.extract_strided_slice %189 {offsets = [0, 64], sizes = [2, 64], strides = [1, 1]} : vector<2x192xf32> to vector<2x64xf32>
    %192 = vector.extract_strided_slice %189 {offsets = [0, 128], sizes = [2, 64], strides = [1, 1]} : vector<2x192xf32> to vector<2x64xf32>
    %193 = vector.extract_strided_slice %183 {offsets = [0, 192], sizes = [2, 64], strides = [1, 1]} : vector<2x256xf32> to vector<2x64xf32>
    %194 = math.tanh %193 : vector<2x64xf32>
    %195 = arith.mulf %191, %170 : vector<2x64xf32>
    %196 = arith.mulf %190, %194 : vector<2x64xf32>
    %197 = arith.addf %195, %196 : vector<2x64xf32>
    %198 = math.tanh %197 : vector<2x64xf32>
    %199 = arith.mulf %192, %198 : vector<2x64xf32>
    %c4_54 = arith.constant 4 : index
    %c0_55 = arith.constant 0 : index
    %c0_56 = arith.constant 0 : index
    %c0_57 = arith.constant 0 : index
    %200 = vector.load %arg12[%c4_54, %c0_55, %c0_56, %c0_57] : memref<8x2x2x64xf32, #tpu.memory_space<vmem>>, vector<1x1x2x64xf32>
    %201 = vector.shape_cast %200 : vector<1x1x2x64xf32> to vector<2x64xf32>
    %202 = vector.shape_cast %199 : vector<2x64xf32> to vector<1x1x2x64xf32>
    tpu.vector_store %arg12[%c4_54, %c0_55, %c0_56, %c0_57], %202 {strides = array<i32>} : memref<8x2x2x64xf32, #tpu.memory_space<vmem>>, vector<1x1x2x64xf32>,
    %c3_58 = arith.constant 3 : index
    %c1_59 = arith.constant 1 : index
    %c0_60 = arith.constant 0 : index
    %c0_61 = arith.constant 0 : index
    %203 = vector.load %arg12[%c3_58, %c1_59, %c0_60, %c0_61] : memref<8x2x2x64xf32, #tpu.memory_space<vmem>>, vector<1x1x2x64xf32>
    %204 = vector.shape_cast %203 : vector<1x1x2x64xf32> to vector<2x64xf32>
    %205 = vector.shape_cast %199 : vector<2x64xf32> to vector<1x1x2x64xf32>
    tpu.vector_store %arg12[%c3_58, %c1_59, %c0_60, %c0_61], %205 {strides = array<i32>} : memref<8x2x2x64xf32, #tpu.memory_space<vmem>>, vector<1x1x2x64xf32>,
    %206 = tpu.concatenate %52, %31, %199 in 1 : vector<2x32xf32>, vector<2x32xf32>, vector<2x64xf32> -> vector<2x128xf32>
    %207 = arith.truncf %206 : vector<2x128xf32> to vector<2x128xbf16>
    %cst_62 = arith.constant dense<0.000000e+00> : vector<2x256xf32>
    %208 = tpu.matmul %207, %68, %cst_62 {dimension_numbers = #tpu.dot_dimension_numbers<[1], [0], [0], [1], [0, 0, 1, 1], [], []>} : vector<2x128xbf16>, vector<128x256xbf16>, vector<2x256xf32> -> vector<2x256xf32>
    %209 = vector.broadcast %70 : vector<1x256xf32> to vector<2x256xf32>
    %210 = arith.addf %208, %209 : vector<2x256xf32>
    %211 = vector.extract_strided_slice %210 {offsets = [0, 0], sizes = [2, 192], strides = [1, 1]} : vector<2x256xf32> to vector<2x192xf32>
    %212 = arith.negf %211 : vector<2x192xf32>
    %213 = math.exp %212 : vector<2x192xf32>
    %cst_63 = arith.constant 1.000000e+00 : f32
    %214 = vector.broadcast %cst_63 : f32 to vector<2x192xf32>
    %215 = arith.addf %214, %213 : vector<2x192xf32>
    %216 = arith.divf %214, %215 : vector<2x192xf32>
    %217 = vector.extract_strided_slice %216 {offsets = [0, 0], sizes = [2, 64], strides = [1, 1]} : vector<2x192xf32> to vector<2x64xf32>
    %218 = vector.extract_strided_slice %216 {offsets = [0, 64], sizes = [2, 64], strides = [1, 1]} : vector<2x192xf32> to vector<2x64xf32>
    %219 = vector.extract_strided_slice %216 {offsets = [0, 128], sizes = [2, 64], strides = [1, 1]} : vector<2x192xf32> to vector<2x64xf32>
    %220 = vector.extract_strided_slice %210 {offsets = [0, 192], sizes = [2, 64], strides = [1, 1]} : vector<2x256xf32> to vector<2x64xf32>
    %221 = math.tanh %220 : vector<2x64xf32>
    %222 = arith.mulf %218, %197 : vector<2x64xf32>
    %223 = arith.mulf %217, %221 : vector<2x64xf32>
    %224 = arith.addf %222, %223 : vector<2x64xf32>
    %225 = math.tanh %224 : vector<2x64xf32>
    %226 = arith.mulf %219, %225 : vector<2x64xf32>
    %c5_64 = arith.constant 5 : index
    %c0_65 = arith.constant 0 : index
    %c0_66 = arith.constant 0 : index
    %c0_67 = arith.constant 0 : index
    %227 = vector.load %arg12[%c5_64, %c0_65, %c0_66, %c0_67] : memref<8x2x2x64xf32, #tpu.memory_space<vmem>>, vector<1x1x2x64xf32>
    %228 = vector.shape_cast %227 : vector<1x1x2x64xf32> to vector<2x64xf32>
    %229 = vector.shape_cast %226 : vector<2x64xf32> to vector<1x1x2x64xf32>
    tpu.vector_store %arg12[%c5_64, %c0_65, %c0_66, %c0_67], %229 {strides = array<i32>} : memref<8x2x2x64xf32, #tpu.memory_space<vmem>>, vector<1x1x2x64xf32>,
    %c2_68 = arith.constant 2 : index
    %c1_69 = arith.constant 1 : index
    %c0_70 = arith.constant 0 : index
    %c0_71 = arith.constant 0 : index
    %230 = vector.load %arg12[%c2_68, %c1_69, %c0_70, %c0_71] : memref<8x2x2x64xf32, #tpu.memory_space<vmem>>, vector<1x1x2x64xf32>
    %231 = vector.shape_cast %230 : vector<1x1x2x64xf32> to vector<2x64xf32>
    %232 = vector.shape_cast %226 : vector<2x64xf32> to vector<1x1x2x64xf32>
    tpu.vector_store %arg12[%c2_68, %c1_69, %c0_70, %c0_71], %232 {strides = array<i32>} : memref<8x2x2x64xf32, #tpu.memory_space<vmem>>, vector<1x1x2x64xf32>,
    %233 = tpu.concatenate %59, %24, %226 in 1 : vector<2x32xf32>, vector<2x32xf32>, vector<2x64xf32> -> vector<2x128xf32>
    %234 = arith.truncf %233 : vector<2x128xf32> to vector<2x128xbf16>
    %cst_72 = arith.constant dense<0.000000e+00> : vector<2x256xf32>
    %235 = tpu.matmul %234, %68, %cst_72 {dimension_numbers = #tpu.dot_dimension_numbers<[1], [0], [0], [1], [0, 0, 1, 1], [], []>} : vector<2x128xbf16>, vector<128x256xbf16>, vector<2x256xf32> -> vector<2x256xf32>
    %236 = vector.broadcast %70 : vector<1x256xf32> to vector<2x256xf32>
    %237 = arith.addf %235, %236 : vector<2x256xf32>
    %238 = vector.extract_strided_slice %237 {offsets = [0, 0], sizes = [2, 192], strides = [1, 1]} : vector<2x256xf32> to vector<2x192xf32>
    %239 = arith.negf %238 : vector<2x192xf32>
    %240 = math.exp %239 : vector<2x192xf32>
    %cst_73 = arith.constant 1.000000e+00 : f32
    %241 = vector.broadcast %cst_73 : f32 to vector<2x192xf32>
    %242 = arith.addf %241, %240 : vector<2x192xf32>
    %243 = arith.divf %241, %242 : vector<2x192xf32>
    %244 = vector.extract_strided_slice %243 {offsets = [0, 0], sizes = [2, 64], strides = [1, 1]} : vector<2x192xf32> to vector<2x64xf32>
    %245 = vector.extract_strided_slice %243 {offsets = [0, 64], sizes = [2, 64], strides = [1, 1]} : vector<2x192xf32> to vector<2x64xf32>
    %246 = vector.extract_strided_slice %243 {offsets = [0, 128], sizes = [2, 64], strides = [1, 1]} : vector<2x192xf32> to vector<2x64xf32>
    %247 = vector.extract_strided_slice %237 {offsets = [0, 192], sizes = [2, 64], strides = [1, 1]} : vector<2x256xf32> to vector<2x64xf32>
    %248 = math.tanh %247 : vector<2x64xf32>
    %249 = arith.mulf %245, %224 : vector<2x64xf32>
    %250 = arith.mulf %244, %248 : vector<2x64xf32>
    %251 = arith.addf %249, %250 : vector<2x64xf32>
    %252 = math.tanh %251 : vector<2x64xf32>
    %253 = arith.mulf %246, %252 : vector<2x64xf32>
    %c6_74 = arith.constant 6 : index
    %c0_75 = arith.constant 0 : index
    %c0_76 = arith.constant 0 : index
    %c0_77 = arith.constant 0 : index
    %254 = vector.load %arg12[%c6_74, %c0_75, %c0_76, %c0_77] : memref<8x2x2x64xf32, #tpu.memory_space<vmem>>, vector<1x1x2x64xf32>
    %255 = vector.shape_cast %254 : vector<1x1x2x64xf32> to vector<2x64xf32>
    %256 = vector.shape_cast %253 : vector<2x64xf32> to vector<1x1x2x64xf32>
    tpu.vector_store %arg12[%c6_74, %c0_75, %c0_76, %c0_77], %256 {strides = array<i32>} : memref<8x2x2x64xf32, #tpu.memory_space<vmem>>, vector<1x1x2x64xf32>,
    %c1_78 = arith.constant 1 : index
    %c1_79 = arith.constant 1 : index
    %c0_80 = arith.constant 0 : index
    %c0_81 = arith.constant 0 : index
    %257 = vector.load %arg12[%c1_78, %c1_79, %c0_80, %c0_81] : memref<8x2x2x64xf32, #tpu.memory_space<vmem>>, vector<1x1x2x64xf32>
    %258 = vector.shape_cast %257 : vector<1x1x2x64xf32> to vector<2x64xf32>
    %259 = vector.shape_cast %253 : vector<2x64xf32> to vector<1x1x2x64xf32>
    tpu.vector_store %arg12[%c1_78, %c1_79, %c0_80, %c0_81], %259 {strides = array<i32>} : memref<8x2x2x64xf32, #tpu.memory_space<vmem>>, vector<1x1x2x64xf32>,
    %260 = tpu.concatenate %66, %17, %253 in 1 : vector<2x32xf32>, vector<2x32xf32>, vector<2x64xf32> -> vector<2x128xf32>
    %261 = arith.truncf %260 : vector<2x128xf32> to vector<2x128xbf16>
    %cst_82 = arith.constant dense<0.000000e+00> : vector<2x256xf32>
    %262 = tpu.matmul %261, %68, %cst_82 {dimension_numbers = #tpu.dot_dimension_numbers<[1], [0], [0], [1], [0, 0, 1, 1], [], []>} : vector<2x128xbf16>, vector<128x256xbf16>, vector<2x256xf32> -> vector<2x256xf32>
    %263 = vector.broadcast %70 : vector<1x256xf32> to vector<2x256xf32>
    %264 = arith.addf %262, %263 : vector<2x256xf32>
    %265 = vector.extract_strided_slice %264 {offsets = [0, 0], sizes = [2, 192], strides = [1, 1]} : vector<2x256xf32> to vector<2x192xf32>
    %266 = arith.negf %265 : vector<2x192xf32>
    %267 = math.exp %266 : vector<2x192xf32>
    %cst_83 = arith.constant 1.000000e+00 : f32
    %268 = vector.broadcast %cst_83 : f32 to vector<2x192xf32>
    %269 = arith.addf %268, %267 : vector<2x192xf32>
    %270 = arith.divf %268, %269 : vector<2x192xf32>
    %271 = vector.extract_strided_slice %270 {offsets = [0, 0], sizes = [2, 64], strides = [1, 1]} : vector<2x192xf32> to vector<2x64xf32>
    %272 = vector.extract_strided_slice %270 {offsets = [0, 64], sizes = [2, 64], strides = [1, 1]} : vector<2x192xf32> to vector<2x64xf32>
    %273 = vector.extract_strided_slice %270 {offsets = [0, 128], sizes = [2, 64], strides = [1, 1]} : vector<2x192xf32> to vector<2x64xf32>
    %274 = vector.extract_strided_slice %264 {offsets = [0, 192], sizes = [2, 64], strides = [1, 1]} : vector<2x256xf32> to vector<2x64xf32>
    %275 = math.tanh %274 : vector<2x64xf32>
    %276 = arith.mulf %272, %251 : vector<2x64xf32>
    %277 = arith.mulf %271, %275 : vector<2x64xf32>
    %278 = arith.addf %276, %277 : vector<2x64xf32>
    %279 = math.tanh %278 : vector<2x64xf32>
    %280 = arith.mulf %273, %279 : vector<2x64xf32>
    %c7_84 = arith.constant 7 : index
    %c0_85 = arith.constant 0 : index
    %c0_86 = arith.constant 0 : index
    %c0_87 = arith.constant 0 : index
    %281 = vector.load %arg12[%c7_84, %c0_85, %c0_86, %c0_87] : memref<8x2x2x64xf32, #tpu.memory_space<vmem>>, vector<1x1x2x64xf32>
    %282 = vector.shape_cast %281 : vector<1x1x2x64xf32> to vector<2x64xf32>
    %283 = vector.shape_cast %280 : vector<2x64xf32> to vector<1x1x2x64xf32>
    tpu.vector_store %arg12[%c7_84, %c0_85, %c0_86, %c0_87], %283 {strides = array<i32>} : memref<8x2x2x64xf32, #tpu.memory_space<vmem>>, vector<1x1x2x64xf32>,
    %c0_88 = arith.constant 0 : index
    %c1_89 = arith.constant 1 : index
    %c0_90 = arith.constant 0 : index
    %c0_91 = arith.constant 0 : index
    %284 = vector.load %arg12[%c0_88, %c1_89, %c0_90, %c0_91] : memref<8x2x2x64xf32, #tpu.memory_space<vmem>>, vector<1x1x2x64xf32>
    %285 = vector.shape_cast %284 : vector<1x1x2x64xf32> to vector<2x64xf32>
    %286 = vector.shape_cast %280 : vector<2x64xf32> to vector<1x1x2x64xf32>
    tpu.vector_store %arg12[%c0_88, %c1_89, %c0_90, %c0_91], %286 {strides = array<i32>} : memref<8x2x2x64xf32, #tpu.memory_space<vmem>>, vector<1x1x2x64xf32>,
    %c0_92 = arith.constant 0 : index
    %c0_93 = arith.constant 0 : index
    %c0_94 = arith.constant 0 : index
    %287 = vector.load %arg3[%c0_92, %c0_93, %c0_94] : memref<3x192x256xbf16, #tpu.memory_space<vmem>>, vector<1x192x256xbf16>
    %288 = vector.shape_cast %287 : vector<1x192x256xbf16> to vector<192x256xbf16>
    %c1_95 = arith.constant 1 : index
    %c0_96 = arith.constant 0 : index
    %c0_97 = arith.constant 0 : index
    %289 = vector.load %arg4[%c1_95, %c0_96, %c0_97] : memref<4x1x256xf32, #tpu.memory_space<vmem>>, vector<1x1x256xf32>
    %290 = vector.shape_cast %289 : vector<1x1x256xf32> to vector<1x256xf32>
    %c0_98 = arith.constant 0 : index
    %c0_99 = arith.constant 0 : index
    %c0_100 = arith.constant 0 : index
    %c0_101 = arith.constant 0 : index
    %291 = vector.load %arg12[%c0_98, %c0_99, %c0_100, %c0_101] : memref<8x2x2x64xf32, #tpu.memory_space<vmem>>, vector<1x1x2x64xf32>
    %292 = vector.shape_cast %291 : vector<1x1x2x64xf32> to vector<2x64xf32>
    %c0_102 = arith.constant 0 : index
    %c1_103 = arith.constant 1 : index
    %c0_104 = arith.constant 0 : index
    %c0_105 = arith.constant 0 : index
    %293 = vector.load %arg12[%c0_102, %c1_103, %c0_104, %c0_105] : memref<8x2x2x64xf32, #tpu.memory_space<vmem>>, vector<1x1x2x64xf32>
    %294 = vector.shape_cast %293 : vector<1x1x2x64xf32> to vector<2x64xf32>
    %295 = tpu.concatenate %292, %294, %67 in 1 : vector<2x64xf32>, vector<2x64xf32>, vector<2x64xf32> -> vector<2x192xf32>
    %296 = arith.truncf %295 : vector<2x192xf32> to vector<2x192xbf16>
    %cst_106 = arith.constant dense<0.000000e+00> : vector<2x256xf32>
    %297 = tpu.matmul %296, %288, %cst_106 {dimension_numbers = #tpu.dot_dimension_numbers<[1], [0], [0], [1], [0, 0, 1, 1], [], []>} : vector<2x192xbf16>, vector<192x256xbf16>, vector<2x256xf32> -> vector<2x256xf32>
    %298 = vector.broadcast %290 : vector<1x256xf32> to vector<2x256xf32>
    %299 = arith.addf %297, %298 : vector<2x256xf32>
    %300 = vector.extract_strided_slice %299 {offsets = [0, 0], sizes = [2, 192], strides = [1, 1]} : vector<2x256xf32> to vector<2x192xf32>
    %301 = arith.negf %300 : vector<2x192xf32>
    %302 = math.exp %301 : vector<2x192xf32>
    %cst_107 = arith.constant 1.000000e+00 : f32
    %303 = vector.broadcast %cst_107 : f32 to vector<2x192xf32>
    %304 = arith.addf %303, %302 : vector<2x192xf32>
    %305 = arith.divf %303, %304 : vector<2x192xf32>
    %306 = vector.extract_strided_slice %305 {offsets = [0, 0], sizes = [2, 64], strides = [1, 1]} : vector<2x192xf32> to vector<2x64xf32>
    %307 = vector.extract_strided_slice %305 {offsets = [0, 64], sizes = [2, 64], strides = [1, 1]} : vector<2x192xf32> to vector<2x64xf32>
    %308 = vector.extract_strided_slice %305 {offsets = [0, 128], sizes = [2, 64], strides = [1, 1]} : vector<2x192xf32> to vector<2x64xf32>
    %309 = vector.extract_strided_slice %299 {offsets = [0, 192], sizes = [2, 64], strides = [1, 1]} : vector<2x256xf32> to vector<2x64xf32>
    %310 = math.tanh %309 : vector<2x64xf32>
    %311 = arith.mulf %307, %67 : vector<2x64xf32>
    %312 = arith.mulf %306, %310 : vector<2x64xf32>
    %313 = arith.addf %311, %312 : vector<2x64xf32>
    %314 = math.tanh %313 : vector<2x64xf32>
    %315 = arith.mulf %308, %314 : vector<2x64xf32>
    %c0_108 = arith.constant 0 : index
    %c0_109 = arith.constant 0 : index
    %c0_110 = arith.constant 0 : index
    %c0_111 = arith.constant 0 : index
    %316 = vector.load %arg11[%c0_108, %c0_109, %c0_110, %c0_111] : memref<8x2x2x64xf32, #tpu.memory_space<vmem>>, vector<1x1x2x64xf32>
    %317 = vector.shape_cast %316 : vector<1x1x2x64xf32> to vector<2x64xf32>
    %318 = vector.shape_cast %315 : vector<2x64xf32> to vector<1x1x2x64xf32>
    tpu.vector_store %arg11[%c0_108, %c0_109, %c0_110, %c0_111], %318 {strides = array<i32>} : memref<8x2x2x64xf32, #tpu.memory_space<vmem>>, vector<1x1x2x64xf32>,
    %c7_112 = arith.constant 7 : index
    %c1_113 = arith.constant 1 : index
    %c0_114 = arith.constant 0 : index
    %c0_115 = arith.constant 0 : index
    %319 = vector.load %arg11[%c7_112, %c1_113, %c0_114, %c0_115] : memref<8x2x2x64xf32, #tpu.memory_space<vmem>>, vector<1x1x2x64xf32>
    %320 = vector.shape_cast %319 : vector<1x1x2x64xf32> to vector<2x64xf32>
    %321 = vector.shape_cast %315 : vector<2x64xf32> to vector<1x1x2x64xf32>
    tpu.vector_store %arg11[%c7_112, %c1_113, %c0_114, %c0_115], %321 {strides = array<i32>} : memref<8x2x2x64xf32, #tpu.memory_space<vmem>>, vector<1x1x2x64xf32>,
    %c1_116 = arith.constant 1 : index
    %c0_117 = arith.constant 0 : index
    %c0_118 = arith.constant 0 : index
    %c0_119 = arith.constant 0 : index
    %322 = vector.load %arg12[%c1_116, %c0_117, %c0_118, %c0_119] : memref<8x2x2x64xf32, #tpu.memory_space<vmem>>, vector<1x1x2x64xf32>
    %323 = vector.shape_cast %322 : vector<1x1x2x64xf32> to vector<2x64xf32>
    %c1_120 = arith.constant 1 : index
    %c1_121 = arith.constant 1 : index
    %c0_122 = arith.constant 0 : index
    %c0_123 = arith.constant 0 : index
    %324 = vector.load %arg12[%c1_120, %c1_121, %c0_122, %c0_123] : memref<8x2x2x64xf32, #tpu.memory_space<vmem>>, vector<1x1x2x64xf32>
    %325 = vector.shape_cast %324 : vector<1x1x2x64xf32> to vector<2x64xf32>
    %326 = tpu.concatenate %323, %325, %315 in 1 : vector<2x64xf32>, vector<2x64xf32>, vector<2x64xf32> -> vector<2x192xf32>
    %327 = arith.truncf %326 : vector<2x192xf32> to vector<2x192xbf16>
    %cst_124 = arith.constant dense<0.000000e+00> : vector<2x256xf32>
    %328 = tpu.matmul %327, %288, %cst_124 {dimension_numbers = #tpu.dot_dimension_numbers<[1], [0], [0], [1], [0, 0, 1, 1], [], []>} : vector<2x192xbf16>, vector<192x256xbf16>, vector<2x256xf32> -> vector<2x256xf32>
    %329 = vector.broadcast %290 : vector<1x256xf32> to vector<2x256xf32>
    %330 = arith.addf %328, %329 : vector<2x256xf32>
    %331 = vector.extract_strided_slice %330 {offsets = [0, 0], sizes = [2, 192], strides = [1, 1]} : vector<2x256xf32> to vector<2x192xf32>
    %332 = arith.negf %331 : vector<2x192xf32>
    %333 = math.exp %332 : vector<2x192xf32>
    %cst_125 = arith.constant 1.000000e+00 : f32
    %334 = vector.broadcast %cst_125 : f32 to vector<2x192xf32>
    %335 = arith.addf %334, %333 : vector<2x192xf32>
    %336 = arith.divf %334, %335 : vector<2x192xf32>
    %337 = vector.extract_strided_slice %336 {offsets = [0, 0], sizes = [2, 64], strides = [1, 1]} : vector<2x192xf32> to vector<2x64xf32>
    %338 = vector.extract_strided_slice %336 {offsets = [0, 64], sizes = [2, 64], strides = [1, 1]} : vector<2x192xf32> to vector<2x64xf32>
    %339 = vector.extract_strided_slice %336 {offsets = [0, 128], sizes = [2, 64], strides = [1, 1]} : vector<2x192xf32> to vector<2x64xf32>
    %340 = vector.extract_strided_slice %330 {offsets = [0, 192], sizes = [2, 64], strides = [1, 1]} : vector<2x256xf32> to vector<2x64xf32>
    %341 = math.tanh %340 : vector<2x64xf32>
    %342 = arith.mulf %338, %313 : vector<2x64xf32>
    %343 = arith.mulf %337, %341 : vector<2x64xf32>
    %344 = arith.addf %342, %343 : vector<2x64xf32>
    %345 = math.tanh %344 : vector<2x64xf32>
    %346 = arith.mulf %339, %345 : vector<2x64xf32>
    %c1_126 = arith.constant 1 : index
    %c0_127 = arith.constant 0 : index
    %c0_128 = arith.constant 0 : index
    %c0_129 = arith.constant 0 : index
    %347 = vector.load %arg11[%c1_126, %c0_127, %c0_128, %c0_129] : memref<8x2x2x64xf32, #tpu.memory_space<vmem>>, vector<1x1x2x64xf32>
    %348 = vector.shape_cast %347 : vector<1x1x2x64xf32> to vector<2x64xf32>
    %349 = vector.shape_cast %346 : vector<2x64xf32> to vector<1x1x2x64xf32>
    tpu.vector_store %arg11[%c1_126, %c0_127, %c0_128, %c0_129], %349 {strides = array<i32>} : memref<8x2x2x64xf32, #tpu.memory_space<vmem>>, vector<1x1x2x64xf32>,
    %c6_130 = arith.constant 6 : index
    %c1_131 = arith.constant 1 : index
    %c0_132 = arith.constant 0 : index
    %c0_133 = arith.constant 0 : index
    %350 = vector.load %arg11[%c6_130, %c1_131, %c0_132, %c0_133] : memref<8x2x2x64xf32, #tpu.memory_space<vmem>>, vector<1x1x2x64xf32>
    %351 = vector.shape_cast %350 : vector<1x1x2x64xf32> to vector<2x64xf32>
    %352 = vector.shape_cast %346 : vector<2x64xf32> to vector<1x1x2x64xf32>
    tpu.vector_store %arg11[%c6_130, %c1_131, %c0_132, %c0_133], %352 {strides = array<i32>} : memref<8x2x2x64xf32, #tpu.memory_space<vmem>>, vector<1x1x2x64xf32>,
    %c2_134 = arith.constant 2 : index
    %c0_135 = arith.constant 0 : index
    %c0_136 = arith.constant 0 : index
    %c0_137 = arith.constant 0 : index
    %353 = vector.load %arg12[%c2_134, %c0_135, %c0_136, %c0_137] : memref<8x2x2x64xf32, #tpu.memory_space<vmem>>, vector<1x1x2x64xf32>
    %354 = vector.shape_cast %353 : vector<1x1x2x64xf32> to vector<2x64xf32>
    %c2_138 = arith.constant 2 : index
    %c1_139 = arith.constant 1 : index
    %c0_140 = arith.constant 0 : index
    %c0_141 = arith.constant 0 : index
    %355 = vector.load %arg12[%c2_138, %c1_139, %c0_140, %c0_141] : memref<8x2x2x64xf32, #tpu.memory_space<vmem>>, vector<1x1x2x64xf32>
    %356 = vector.shape_cast %355 : vector<1x1x2x64xf32> to vector<2x64xf32>
    %357 = tpu.concatenate %354, %356, %346 in 1 : vector<2x64xf32>, vector<2x64xf32>, vector<2x64xf32> -> vector<2x192xf32>
    %358 = arith.truncf %357 : vector<2x192xf32> to vector<2x192xbf16>
    %cst_142 = arith.constant dense<0.000000e+00> : vector<2x256xf32>
    %359 = tpu.matmul %358, %288, %cst_142 {dimension_numbers = #tpu.dot_dimension_numbers<[1], [0], [0], [1], [0, 0, 1, 1], [], []>} : vector<2x192xbf16>, vector<192x256xbf16>, vector<2x256xf32> -> vector<2x256xf32>
    %360 = vector.broadcast %290 : vector<1x256xf32> to vector<2x256xf32>
    %361 = arith.addf %359, %360 : vector<2x256xf32>
    %362 = vector.extract_strided_slice %361 {offsets = [0, 0], sizes = [2, 192], strides = [1, 1]} : vector<2x256xf32> to vector<2x192xf32>
    %363 = arith.negf %362 : vector<2x192xf32>
    %364 = math.exp %363 : vector<2x192xf32>
    %cst_143 = arith.constant 1.000000e+00 : f32
    %365 = vector.broadcast %cst_143 : f32 to vector<2x192xf32>
    %366 = arith.addf %365, %364 : vector<2x192xf32>
    %367 = arith.divf %365, %366 : vector<2x192xf32>
    %368 = vector.extract_strided_slice %367 {offsets = [0, 0], sizes = [2, 64], strides = [1, 1]} : vector<2x192xf32> to vector<2x64xf32>
    %369 = vector.extract_strided_slice %367 {offsets = [0, 64], sizes = [2, 64], strides = [1, 1]} : vector<2x192xf32> to vector<2x64xf32>
    %370 = vector.extract_strided_slice %367 {offsets = [0, 128], sizes = [2, 64], strides = [1, 1]} : vector<2x192xf32> to vector<2x64xf32>
    %371 = vector.extract_strided_slice %361 {offsets = [0, 192], sizes = [2, 64], strides = [1, 1]} : vector<2x256xf32> to vector<2x64xf32>
    %372 = math.tanh %371 : vector<2x64xf32>
    %373 = arith.mulf %369, %344 : vector<2x64xf32>
    %374 = arith.mulf %368, %372 : vector<2x64xf32>
    %375 = arith.addf %373, %374 : vector<2x64xf32>
    %376 = math.tanh %375 : vector<2x64xf32>
    %377 = arith.mulf %370, %376 : vector<2x64xf32>
    %c2_144 = arith.constant 2 : index
    %c0_145 = arith.constant 0 : index
    %c0_146 = arith.constant 0 : index
    %c0_147 = arith.constant 0 : index
    %378 = vector.load %arg11[%c2_144, %c0_145, %c0_146, %c0_147] : memref<8x2x2x64xf32, #tpu.memory_space<vmem>>, vector<1x1x2x64xf32>
    %379 = vector.shape_cast %378 : vector<1x1x2x64xf32> to vector<2x64xf32>
    %380 = vector.shape_cast %377 : vector<2x64xf32> to vector<1x1x2x64xf32>
    tpu.vector_store %arg11[%c2_144, %c0_145, %c0_146, %c0_147], %380 {strides = array<i32>} : memref<8x2x2x64xf32, #tpu.memory_space<vmem>>, vector<1x1x2x64xf32>,
    %c5_148 = arith.constant 5 : index
    %c1_149 = arith.constant 1 : index
    %c0_150 = arith.constant 0 : index
    %c0_151 = arith.constant 0 : index
    %381 = vector.load %arg11[%c5_148, %c1_149, %c0_150, %c0_151] : memref<8x2x2x64xf32, #tpu.memory_space<vmem>>, vector<1x1x2x64xf32>
    %382 = vector.shape_cast %381 : vector<1x1x2x64xf32> to vector<2x64xf32>
    %383 = vector.shape_cast %377 : vector<2x64xf32> to vector<1x1x2x64xf32>
    tpu.vector_store %arg11[%c5_148, %c1_149, %c0_150, %c0_151], %383 {strides = array<i32>} : memref<8x2x2x64xf32, #tpu.memory_space<vmem>>, vector<1x1x2x64xf32>,
    %c3_152 = arith.constant 3 : index
    %c0_153 = arith.constant 0 : index
    %c0_154 = arith.constant 0 : index
    %c0_155 = arith.constant 0 : index
    %384 = vector.load %arg12[%c3_152, %c0_153, %c0_154, %c0_155] : memref<8x2x2x64xf32, #tpu.memory_space<vmem>>, vector<1x1x2x64xf32>
    %385 = vector.shape_cast %384 : vector<1x1x2x64xf32> to vector<2x64xf32>
    %c3_156 = arith.constant 3 : index
    %c1_157 = arith.constant 1 : index
    %c0_158 = arith.constant 0 : index
    %c0_159 = arith.constant 0 : index
    %386 = vector.load %arg12[%c3_156, %c1_157, %c0_158, %c0_159] : memref<8x2x2x64xf32, #tpu.memory_space<vmem>>, vector<1x1x2x64xf32>
    %387 = vector.shape_cast %386 : vector<1x1x2x64xf32> to vector<2x64xf32>
    %388 = tpu.concatenate %385, %387, %377 in 1 : vector<2x64xf32>, vector<2x64xf32>, vector<2x64xf32> -> vector<2x192xf32>
    %389 = arith.truncf %388 : vector<2x192xf32> to vector<2x192xbf16>
    %cst_160 = arith.constant dense<0.000000e+00> : vector<2x256xf32>
    %390 = tpu.matmul %389, %288, %cst_160 {dimension_numbers = #tpu.dot_dimension_numbers<[1], [0], [0], [1], [0, 0, 1, 1], [], []>} : vector<2x192xbf16>, vector<192x256xbf16>, vector<2x256xf32> -> vector<2x256xf32>
    %391 = vector.broadcast %290 : vector<1x256xf32> to vector<2x256xf32>
    %392 = arith.addf %390, %391 : vector<2x256xf32>
    %393 = vector.extract_strided_slice %392 {offsets = [0, 0], sizes = [2, 192], strides = [1, 1]} : vector<2x256xf32> to vector<2x192xf32>
    %394 = arith.negf %393 : vector<2x192xf32>
    %395 = math.exp %394 : vector<2x192xf32>
    %cst_161 = arith.constant 1.000000e+00 : f32
    %396 = vector.broadcast %cst_161 : f32 to vector<2x192xf32>
    %397 = arith.addf %396, %395 : vector<2x192xf32>
    %398 = arith.divf %396, %397 : vector<2x192xf32>
    %399 = vector.extract_strided_slice %398 {offsets = [0, 0], sizes = [2, 64], strides = [1, 1]} : vector<2x192xf32> to vector<2x64xf32>
    %400 = vector.extract_strided_slice %398 {offsets = [0, 64], sizes = [2, 64], strides = [1, 1]} : vector<2x192xf32> to vector<2x64xf32>
    %401 = vector.extract_strided_slice %398 {offsets = [0, 128], sizes = [2, 64], strides = [1, 1]} : vector<2x192xf32> to vector<2x64xf32>
    %402 = vector.extract_strided_slice %392 {offsets = [0, 192], sizes = [2, 64], strides = [1, 1]} : vector<2x256xf32> to vector<2x64xf32>
    %403 = math.tanh %402 : vector<2x64xf32>
    %404 = arith.mulf %400, %375 : vector<2x64xf32>
    %405 = arith.mulf %399, %403 : vector<2x64xf32>
    %406 = arith.addf %404, %405 : vector<2x64xf32>
    %407 = math.tanh %406 : vector<2x64xf32>
    %408 = arith.mulf %401, %407 : vector<2x64xf32>
    %c3_162 = arith.constant 3 : index
    %c0_163 = arith.constant 0 : index
    %c0_164 = arith.constant 0 : index
    %c0_165 = arith.constant 0 : index
    %409 = vector.load %arg11[%c3_162, %c0_163, %c0_164, %c0_165] : memref<8x2x2x64xf32, #tpu.memory_space<vmem>>, vector<1x1x2x64xf32>
    %410 = vector.shape_cast %409 : vector<1x1x2x64xf32> to vector<2x64xf32>
    %411 = vector.shape_cast %408 : vector<2x64xf32> to vector<1x1x2x64xf32>
    tpu.vector_store %arg11[%c3_162, %c0_163, %c0_164, %c0_165], %411 {strides = array<i32>} : memref<8x2x2x64xf32, #tpu.memory_space<vmem>>, vector<1x1x2x64xf32>,
    %c4_166 = arith.constant 4 : index
    %c1_167 = arith.constant 1 : index
    %c0_168 = arith.constant 0 : index
    %c0_169 = arith.constant 0 : index
    %412 = vector.load %arg11[%c4_166, %c1_167, %c0_168, %c0_169] : memref<8x2x2x64xf32, #tpu.memory_space<vmem>>, vector<1x1x2x64xf32>
    %413 = vector.shape_cast %412 : vector<1x1x2x64xf32> to vector<2x64xf32>
    %414 = vector.shape_cast %408 : vector<2x64xf32> to vector<1x1x2x64xf32>
    tpu.vector_store %arg11[%c4_166, %c1_167, %c0_168, %c0_169], %414 {strides = array<i32>} : memref<8x2x2x64xf32, #tpu.memory_space<vmem>>, vector<1x1x2x64xf32>,
    %c4_170 = arith.constant 4 : index
    %c0_171 = arith.constant 0 : index
    %c0_172 = arith.constant 0 : index
    %c0_173 = arith.constant 0 : index
    %415 = vector.load %arg12[%c4_170, %c0_171, %c0_172, %c0_173] : memref<8x2x2x64xf32, #tpu.memory_space<vmem>>, vector<1x1x2x64xf32>
    %416 = vector.shape_cast %415 : vector<1x1x2x64xf32> to vector<2x64xf32>
    %c4_174 = arith.constant 4 : index
    %c1_175 = arith.constant 1 : index
    %c0_176 = arith.constant 0 : index
    %c0_177 = arith.constant 0 : index
    %417 = vector.load %arg12[%c4_174, %c1_175, %c0_176, %c0_177] : memref<8x2x2x64xf32, #tpu.memory_space<vmem>>, vector<1x1x2x64xf32>
    %418 = vector.shape_cast %417 : vector<1x1x2x64xf32> to vector<2x64xf32>
    %419 = tpu.concatenate %416, %418, %408 in 1 : vector<2x64xf32>, vector<2x64xf32>, vector<2x64xf32> -> vector<2x192xf32>
    %420 = arith.truncf %419 : vector<2x192xf32> to vector<2x192xbf16>
    %cst_178 = arith.constant dense<0.000000e+00> : vector<2x256xf32>
    %421 = tpu.matmul %420, %288, %cst_178 {dimension_numbers = #tpu.dot_dimension_numbers<[1], [0], [0], [1], [0, 0, 1, 1], [], []>} : vector<2x192xbf16>, vector<192x256xbf16>, vector<2x256xf32> -> vector<2x256xf32>
    %422 = vector.broadcast %290 : vector<1x256xf32> to vector<2x256xf32>
    %423 = arith.addf %421, %422 : vector<2x256xf32>
    %424 = vector.extract_strided_slice %423 {offsets = [0, 0], sizes = [2, 192], strides = [1, 1]} : vector<2x256xf32> to vector<2x192xf32>
    %425 = arith.negf %424 : vector<2x192xf32>
    %426 = math.exp %425 : vector<2x192xf32>
    %cst_179 = arith.constant 1.000000e+00 : f32
    %427 = vector.broadcast %cst_179 : f32 to vector<2x192xf32>
    %428 = arith.addf %427, %426 : vector<2x192xf32>
    %429 = arith.divf %427, %428 : vector<2x192xf32>
    %430 = vector.extract_strided_slice %429 {offsets = [0, 0], sizes = [2, 64], strides = [1, 1]} : vector<2x192xf32> to vector<2x64xf32>
    %431 = vector.extract_strided_slice %429 {offsets = [0, 64], sizes = [2, 64], strides = [1, 1]} : vector<2x192xf32> to vector<2x64xf32>
    %432 = vector.extract_strided_slice %429 {offsets = [0, 128], sizes = [2, 64], strides = [1, 1]} : vector<2x192xf32> to vector<2x64xf32>
    %433 = vector.extract_strided_slice %423 {offsets = [0, 192], sizes = [2, 64], strides = [1, 1]} : vector<2x256xf32> to vector<2x64xf32>
    %434 = math.tanh %433 : vector<2x64xf32>
    %435 = arith.mulf %431, %406 : vector<2x64xf32>
    %436 = arith.mulf %430, %434 : vector<2x64xf32>
    %437 = arith.addf %435, %436 : vector<2x64xf32>
    %438 = math.tanh %437 : vector<2x64xf32>
    %439 = arith.mulf %432, %438 : vector<2x64xf32>
    %c4_180 = arith.constant 4 : index
    %c0_181 = arith.constant 0 : index
    %c0_182 = arith.constant 0 : index
    %c0_183 = arith.constant 0 : index
    %440 = vector.load %arg11[%c4_180, %c0_181, %c0_182, %c0_183] : memref<8x2x2x64xf32, #tpu.memory_space<vmem>>, vector<1x1x2x64xf32>
    %441 = vector.shape_cast %440 : vector<1x1x2x64xf32> to vector<2x64xf32>
    %442 = vector.shape_cast %439 : vector<2x64xf32> to vector<1x1x2x64xf32>
    tpu.vector_store %arg11[%c4_180, %c0_181, %c0_182, %c0_183], %442 {strides = array<i32>} : memref<8x2x2x64xf32, #tpu.memory_space<vmem>>, vector<1x1x2x64xf32>,
    %c3_184 = arith.constant 3 : index
    %c1_185 = arith.constant 1 : index
    %c0_186 = arith.constant 0 : index
    %c0_187 = arith.constant 0 : index
    %443 = vector.load %arg11[%c3_184, %c1_185, %c0_186, %c0_187] : memref<8x2x2x64xf32, #tpu.memory_space<vmem>>, vector<1x1x2x64xf32>
    %444 = vector.shape_cast %443 : vector<1x1x2x64xf32> to vector<2x64xf32>
    %445 = vector.shape_cast %439 : vector<2x64xf32> to vector<1x1x2x64xf32>
    tpu.vector_store %arg11[%c3_184, %c1_185, %c0_186, %c0_187], %445 {strides = array<i32>} : memref<8x2x2x64xf32, #tpu.memory_space<vmem>>, vector<1x1x2x64xf32>,
    %c5_188 = arith.constant 5 : index
    %c0_189 = arith.constant 0 : index
    %c0_190 = arith.constant 0 : index
    %c0_191 = arith.constant 0 : index
    %446 = vector.load %arg12[%c5_188, %c0_189, %c0_190, %c0_191] : memref<8x2x2x64xf32, #tpu.memory_space<vmem>>, vector<1x1x2x64xf32>
    %447 = vector.shape_cast %446 : vector<1x1x2x64xf32> to vector<2x64xf32>
    %c5_192 = arith.constant 5 : index
    %c1_193 = arith.constant 1 : index
    %c0_194 = arith.constant 0 : index
    %c0_195 = arith.constant 0 : index
    %448 = vector.load %arg12[%c5_192, %c1_193, %c0_194, %c0_195] : memref<8x2x2x64xf32, #tpu.memory_space<vmem>>, vector<1x1x2x64xf32>
    %449 = vector.shape_cast %448 : vector<1x1x2x64xf32> to vector<2x64xf32>
    %450 = tpu.concatenate %447, %449, %439 in 1 : vector<2x64xf32>, vector<2x64xf32>, vector<2x64xf32> -> vector<2x192xf32>
    %451 = arith.truncf %450 : vector<2x192xf32> to vector<2x192xbf16>
    %cst_196 = arith.constant dense<0.000000e+00> : vector<2x256xf32>
    %452 = tpu.matmul %451, %288, %cst_196 {dimension_numbers = #tpu.dot_dimension_numbers<[1], [0], [0], [1], [0, 0, 1, 1], [], []>} : vector<2x192xbf16>, vector<192x256xbf16>, vector<2x256xf32> -> vector<2x256xf32>
    %453 = vector.broadcast %290 : vector<1x256xf32> to vector<2x256xf32>
    %454 = arith.addf %452, %453 : vector<2x256xf32>
    %455 = vector.extract_strided_slice %454 {offsets = [0, 0], sizes = [2, 192], strides = [1, 1]} : vector<2x256xf32> to vector<2x192xf32>
    %456 = arith.negf %455 : vector<2x192xf32>
    %457 = math.exp %456 : vector<2x192xf32>
    %cst_197 = arith.constant 1.000000e+00 : f32
    %458 = vector.broadcast %cst_197 : f32 to vector<2x192xf32>
    %459 = arith.addf %458, %457 : vector<2x192xf32>
    %460 = arith.divf %458, %459 : vector<2x192xf32>
    %461 = vector.extract_strided_slice %460 {offsets = [0, 0], sizes = [2, 64], strides = [1, 1]} : vector<2x192xf32> to vector<2x64xf32>
    %462 = vector.extract_strided_slice %460 {offsets = [0, 64], sizes = [2, 64], strides = [1, 1]} : vector<2x192xf32> to vector<2x64xf32>
    %463 = vector.extract_strided_slice %460 {offsets = [0, 128], sizes = [2, 64], strides = [1, 1]} : vector<2x192xf32> to vector<2x64xf32>
    %464 = vector.extract_strided_slice %454 {offsets = [0, 192], sizes = [2, 64], strides = [1, 1]} : vector<2x256xf32> to vector<2x64xf32>
    %465 = math.tanh %464 : vector<2x64xf32>
    %466 = arith.mulf %462, %437 : vector<2x64xf32>
    %467 = arith.mulf %461, %465 : vector<2x64xf32>
    %468 = arith.addf %466, %467 : vector<2x64xf32>
    %469 = math.tanh %468 : vector<2x64xf32>
    %470 = arith.mulf %463, %469 : vector<2x64xf32>
    %c5_198 = arith.constant 5 : index
    %c0_199 = arith.constant 0 : index
    %c0_200 = arith.constant 0 : index
    %c0_201 = arith.constant 0 : index
    %471 = vector.load %arg11[%c5_198, %c0_199, %c0_200, %c0_201] : memref<8x2x2x64xf32, #tpu.memory_space<vmem>>, vector<1x1x2x64xf32>
    %472 = vector.shape_cast %471 : vector<1x1x2x64xf32> to vector<2x64xf32>
    %473 = vector.shape_cast %470 : vector<2x64xf32> to vector<1x1x2x64xf32>
    tpu.vector_store %arg11[%c5_198, %c0_199, %c0_200, %c0_201], %473 {strides = array<i32>} : memref<8x2x2x64xf32, #tpu.memory_space<vmem>>, vector<1x1x2x64xf32>,
    %c2_202 = arith.constant 2 : index
    %c1_203 = arith.constant 1 : index
    %c0_204 = arith.constant 0 : index
    %c0_205 = arith.constant 0 : index
    %474 = vector.load %arg11[%c2_202, %c1_203, %c0_204, %c0_205] : memref<8x2x2x64xf32, #tpu.memory_space<vmem>>, vector<1x1x2x64xf32>
    %475 = vector.shape_cast %474 : vector<1x1x2x64xf32> to vector<2x64xf32>
    %476 = vector.shape_cast %470 : vector<2x64xf32> to vector<1x1x2x64xf32>
    tpu.vector_store %arg11[%c2_202, %c1_203, %c0_204, %c0_205], %476 {strides = array<i32>} : memref<8x2x2x64xf32, #tpu.memory_space<vmem>>, vector<1x1x2x64xf32>,
    %c6_206 = arith.constant 6 : index
    %c0_207 = arith.constant 0 : index
    %c0_208 = arith.constant 0 : index
    %c0_209 = arith.constant 0 : index
    %477 = vector.load %arg12[%c6_206, %c0_207, %c0_208, %c0_209] : memref<8x2x2x64xf32, #tpu.memory_space<vmem>>, vector<1x1x2x64xf32>
    %478 = vector.shape_cast %477 : vector<1x1x2x64xf32> to vector<2x64xf32>
    %c6_210 = arith.constant 6 : index
    %c1_211 = arith.constant 1 : index
    %c0_212 = arith.constant 0 : index
    %c0_213 = arith.constant 0 : index
    %479 = vector.load %arg12[%c6_210, %c1_211, %c0_212, %c0_213] : memref<8x2x2x64xf32, #tpu.memory_space<vmem>>, vector<1x1x2x64xf32>
    %480 = vector.shape_cast %479 : vector<1x1x2x64xf32> to vector<2x64xf32>
    %481 = tpu.concatenate %478, %480, %470 in 1 : vector<2x64xf32>, vector<2x64xf32>, vector<2x64xf32> -> vector<2x192xf32>
    %482 = arith.truncf %481 : vector<2x192xf32> to vector<2x192xbf16>
    %cst_214 = arith.constant dense<0.000000e+00> : vector<2x256xf32>
    %483 = tpu.matmul %482, %288, %cst_214 {dimension_numbers = #tpu.dot_dimension_numbers<[1], [0], [0], [1], [0, 0, 1, 1], [], []>} : vector<2x192xbf16>, vector<192x256xbf16>, vector<2x256xf32> -> vector<2x256xf32>
    %484 = vector.broadcast %290 : vector<1x256xf32> to vector<2x256xf32>
    %485 = arith.addf %483, %484 : vector<2x256xf32>
    %486 = vector.extract_strided_slice %485 {offsets = [0, 0], sizes = [2, 192], strides = [1, 1]} : vector<2x256xf32> to vector<2x192xf32>
    %487 = arith.negf %486 : vector<2x192xf32>
    %488 = math.exp %487 : vector<2x192xf32>
    %cst_215 = arith.constant 1.000000e+00 : f32
    %489 = vector.broadcast %cst_215 : f32 to vector<2x192xf32>
    %490 = arith.addf %489, %488 : vector<2x192xf32>
    %491 = arith.divf %489, %490 : vector<2x192xf32>
    %492 = vector.extract_strided_slice %491 {offsets = [0, 0], sizes = [2, 64], strides = [1, 1]} : vector<2x192xf32> to vector<2x64xf32>
    %493 = vector.extract_strided_slice %491 {offsets = [0, 64], sizes = [2, 64], strides = [1, 1]} : vector<2x192xf32> to vector<2x64xf32>
    %494 = vector.extract_strided_slice %491 {offsets = [0, 128], sizes = [2, 64], strides = [1, 1]} : vector<2x192xf32> to vector<2x64xf32>
    %495 = vector.extract_strided_slice %485 {offsets = [0, 192], sizes = [2, 64], strides = [1, 1]} : vector<2x256xf32> to vector<2x64xf32>
    %496 = math.tanh %495 : vector<2x64xf32>
    %497 = arith.mulf %493, %468 : vector<2x64xf32>
    %498 = arith.mulf %492, %496 : vector<2x64xf32>
    %499 = arith.addf %497, %498 : vector<2x64xf32>
    %500 = math.tanh %499 : vector<2x64xf32>
    %501 = arith.mulf %494, %500 : vector<2x64xf32>
    %c6_216 = arith.constant 6 : index
    %c0_217 = arith.constant 0 : index
    %c0_218 = arith.constant 0 : index
    %c0_219 = arith.constant 0 : index
    %502 = vector.load %arg11[%c6_216, %c0_217, %c0_218, %c0_219] : memref<8x2x2x64xf32, #tpu.memory_space<vmem>>, vector<1x1x2x64xf32>
    %503 = vector.shape_cast %502 : vector<1x1x2x64xf32> to vector<2x64xf32>
    %504 = vector.shape_cast %501 : vector<2x64xf32> to vector<1x1x2x64xf32>
    tpu.vector_store %arg11[%c6_216, %c0_217, %c0_218, %c0_219], %504 {strides = array<i32>} : memref<8x2x2x64xf32, #tpu.memory_space<vmem>>, vector<1x1x2x64xf32>,
    %c1_220 = arith.constant 1 : index
    %c1_221 = arith.constant 1 : index
    %c0_222 = arith.constant 0 : index
    %c0_223 = arith.constant 0 : index
    %505 = vector.load %arg11[%c1_220, %c1_221, %c0_222, %c0_223] : memref<8x2x2x64xf32, #tpu.memory_space<vmem>>, vector<1x1x2x64xf32>
    %506 = vector.shape_cast %505 : vector<1x1x2x64xf32> to vector<2x64xf32>
    %507 = vector.shape_cast %501 : vector<2x64xf32> to vector<1x1x2x64xf32>
    tpu.vector_store %arg11[%c1_220, %c1_221, %c0_222, %c0_223], %507 {strides = array<i32>} : memref<8x2x2x64xf32, #tpu.memory_space<vmem>>, vector<1x1x2x64xf32>,
    %c7_224 = arith.constant 7 : index
    %c0_225 = arith.constant 0 : index
    %c0_226 = arith.constant 0 : index
    %c0_227 = arith.constant 0 : index
    %508 = vector.load %arg12[%c7_224, %c0_225, %c0_226, %c0_227] : memref<8x2x2x64xf32, #tpu.memory_space<vmem>>, vector<1x1x2x64xf32>
    %509 = vector.shape_cast %508 : vector<1x1x2x64xf32> to vector<2x64xf32>
    %c7_228 = arith.constant 7 : index
    %c1_229 = arith.constant 1 : index
    %c0_230 = arith.constant 0 : index
    %c0_231 = arith.constant 0 : index
    %510 = vector.load %arg12[%c7_228, %c1_229, %c0_230, %c0_231] : memref<8x2x2x64xf32, #tpu.memory_space<vmem>>, vector<1x1x2x64xf32>
    %511 = vector.shape_cast %510 : vector<1x1x2x64xf32> to vector<2x64xf32>
    %512 = tpu.concatenate %509, %511, %501 in 1 : vector<2x64xf32>, vector<2x64xf32>, vector<2x64xf32> -> vector<2x192xf32>
    %513 = arith.truncf %512 : vector<2x192xf32> to vector<2x192xbf16>
    %cst_232 = arith.constant dense<0.000000e+00> : vector<2x256xf32>
    %514 = tpu.matmul %513, %288, %cst_232 {dimension_numbers = #tpu.dot_dimension_numbers<[1], [0], [0], [1], [0, 0, 1, 1], [], []>} : vector<2x192xbf16>, vector<192x256xbf16>, vector<2x256xf32> -> vector<2x256xf32>
    %515 = vector.broadcast %290 : vector<1x256xf32> to vector<2x256xf32>
    %516 = arith.addf %514, %515 : vector<2x256xf32>
    %517 = vector.extract_strided_slice %516 {offsets = [0, 0], sizes = [2, 192], strides = [1, 1]} : vector<2x256xf32> to vector<2x192xf32>
    %518 = arith.negf %517 : vector<2x192xf32>
    %519 = math.exp %518 : vector<2x192xf32>
    %cst_233 = arith.constant 1.000000e+00 : f32
    %520 = vector.broadcast %cst_233 : f32 to vector<2x192xf32>
    %521 = arith.addf %520, %519 : vector<2x192xf32>
    %522 = arith.divf %520, %521 : vector<2x192xf32>
    %523 = vector.extract_strided_slice %522 {offsets = [0, 0], sizes = [2, 64], strides = [1, 1]} : vector<2x192xf32> to vector<2x64xf32>
    %524 = vector.extract_strided_slice %522 {offsets = [0, 64], sizes = [2, 64], strides = [1, 1]} : vector<2x192xf32> to vector<2x64xf32>
    %525 = vector.extract_strided_slice %522 {offsets = [0, 128], sizes = [2, 64], strides = [1, 1]} : vector<2x192xf32> to vector<2x64xf32>
    %526 = vector.extract_strided_slice %516 {offsets = [0, 192], sizes = [2, 64], strides = [1, 1]} : vector<2x256xf32> to vector<2x64xf32>
    %527 = math.tanh %526 : vector<2x64xf32>
    %528 = arith.mulf %524, %499 : vector<2x64xf32>
    %529 = arith.mulf %523, %527 : vector<2x64xf32>
    %530 = arith.addf %528, %529 : vector<2x64xf32>
    %531 = math.tanh %530 : vector<2x64xf32>
    %532 = arith.mulf %525, %531 : vector<2x64xf32>
    %c7_234 = arith.constant 7 : index
    %c0_235 = arith.constant 0 : index
    %c0_236 = arith.constant 0 : index
    %c0_237 = arith.constant 0 : index
    %533 = vector.load %arg11[%c7_234, %c0_235, %c0_236, %c0_237] : memref<8x2x2x64xf32, #tpu.memory_space<vmem>>, vector<1x1x2x64xf32>
    %534 = vector.shape_cast %533 : vector<1x1x2x64xf32> to vector<2x64xf32>
    %535 = vector.shape_cast %532 : vector<2x64xf32> to vector<1x1x2x64xf32>
    tpu.vector_store %arg11[%c7_234, %c0_235, %c0_236, %c0_237], %535 {strides = array<i32>} : memref<8x2x2x64xf32, #tpu.memory_space<vmem>>, vector<1x1x2x64xf32>,
    %c0_238 = arith.constant 0 : index
    %c1_239 = arith.constant 1 : index
    %c0_240 = arith.constant 0 : index
    %c0_241 = arith.constant 0 : index
    %536 = vector.load %arg11[%c0_238, %c1_239, %c0_240, %c0_241] : memref<8x2x2x64xf32, #tpu.memory_space<vmem>>, vector<1x1x2x64xf32>
    %537 = vector.shape_cast %536 : vector<1x1x2x64xf32> to vector<2x64xf32>
    %538 = vector.shape_cast %532 : vector<2x64xf32> to vector<1x1x2x64xf32>
    tpu.vector_store %arg11[%c0_238, %c1_239, %c0_240, %c0_241], %538 {strides = array<i32>} : memref<8x2x2x64xf32, #tpu.memory_space<vmem>>, vector<1x1x2x64xf32>,
    %c1_242 = arith.constant 1 : index
    %c0_243 = arith.constant 0 : index
    %c0_244 = arith.constant 0 : index
    %539 = vector.load %arg3[%c1_242, %c0_243, %c0_244] : memref<3x192x256xbf16, #tpu.memory_space<vmem>>, vector<1x192x256xbf16>
    %540 = vector.shape_cast %539 : vector<1x192x256xbf16> to vector<192x256xbf16>
    %c2_245 = arith.constant 2 : index
    %c0_246 = arith.constant 0 : index
    %c0_247 = arith.constant 0 : index
    %541 = vector.load %arg4[%c2_245, %c0_246, %c0_247] : memref<4x1x256xf32, #tpu.memory_space<vmem>>, vector<1x1x256xf32>
    %542 = vector.shape_cast %541 : vector<1x1x256xf32> to vector<1x256xf32>
    %c0_248 = arith.constant 0 : index
    %c0_249 = arith.constant 0 : index
    %c0_250 = arith.constant 0 : index
    %c0_251 = arith.constant 0 : index
    %543 = vector.load %arg11[%c0_248, %c0_249, %c0_250, %c0_251] : memref<8x2x2x64xf32, #tpu.memory_space<vmem>>, vector<1x1x2x64xf32>
    %544 = vector.shape_cast %543 : vector<1x1x2x64xf32> to vector<2x64xf32>
    %c0_252 = arith.constant 0 : index
    %c1_253 = arith.constant 1 : index
    %c0_254 = arith.constant 0 : index
    %c0_255 = arith.constant 0 : index
    %545 = vector.load %arg11[%c0_252, %c1_253, %c0_254, %c0_255] : memref<8x2x2x64xf32, #tpu.memory_space<vmem>>, vector<1x1x2x64xf32>
    %546 = vector.shape_cast %545 : vector<1x1x2x64xf32> to vector<2x64xf32>
    %547 = tpu.concatenate %544, %546, %67 in 1 : vector<2x64xf32>, vector<2x64xf32>, vector<2x64xf32> -> vector<2x192xf32>
    %548 = arith.truncf %547 : vector<2x192xf32> to vector<2x192xbf16>
    %cst_256 = arith.constant dense<0.000000e+00> : vector<2x256xf32>
    %549 = tpu.matmul %548, %540, %cst_256 {dimension_numbers = #tpu.dot_dimension_numbers<[1], [0], [0], [1], [0, 0, 1, 1], [], []>} : vector<2x192xbf16>, vector<192x256xbf16>, vector<2x256xf32> -> vector<2x256xf32>
    %550 = vector.broadcast %542 : vector<1x256xf32> to vector<2x256xf32>
    %551 = arith.addf %549, %550 : vector<2x256xf32>
    %552 = vector.extract_strided_slice %551 {offsets = [0, 0], sizes = [2, 192], strides = [1, 1]} : vector<2x256xf32> to vector<2x192xf32>
    %553 = arith.negf %552 : vector<2x192xf32>
    %554 = math.exp %553 : vector<2x192xf32>
    %cst_257 = arith.constant 1.000000e+00 : f32
    %555 = vector.broadcast %cst_257 : f32 to vector<2x192xf32>
    %556 = arith.addf %555, %554 : vector<2x192xf32>
    %557 = arith.divf %555, %556 : vector<2x192xf32>
    %558 = vector.extract_strided_slice %557 {offsets = [0, 0], sizes = [2, 64], strides = [1, 1]} : vector<2x192xf32> to vector<2x64xf32>
    %559 = vector.extract_strided_slice %557 {offsets = [0, 64], sizes = [2, 64], strides = [1, 1]} : vector<2x192xf32> to vector<2x64xf32>
    %560 = vector.extract_strided_slice %557 {offsets = [0, 128], sizes = [2, 64], strides = [1, 1]} : vector<2x192xf32> to vector<2x64xf32>
    %561 = vector.extract_strided_slice %551 {offsets = [0, 192], sizes = [2, 64], strides = [1, 1]} : vector<2x256xf32> to vector<2x64xf32>
    %562 = math.tanh %561 : vector<2x64xf32>
    %563 = arith.mulf %559, %67 : vector<2x64xf32>
    %564 = arith.mulf %558, %562 : vector<2x64xf32>
    %565 = arith.addf %563, %564 : vector<2x64xf32>
    %566 = math.tanh %565 : vector<2x64xf32>
    %567 = arith.mulf %560, %566 : vector<2x64xf32>
    %c0_258 = arith.constant 0 : index
    %c0_259 = arith.constant 0 : index
    %c0_260 = arith.constant 0 : index
    %c0_261 = arith.constant 0 : index
    %568 = vector.load %arg12[%c0_258, %c0_259, %c0_260, %c0_261] : memref<8x2x2x64xf32, #tpu.memory_space<vmem>>, vector<1x1x2x64xf32>
    %569 = vector.shape_cast %568 : vector<1x1x2x64xf32> to vector<2x64xf32>
    %570 = vector.shape_cast %567 : vector<2x64xf32> to vector<1x1x2x64xf32>
    tpu.vector_store %arg12[%c0_258, %c0_259, %c0_260, %c0_261], %570 {strides = array<i32>} : memref<8x2x2x64xf32, #tpu.memory_space<vmem>>, vector<1x1x2x64xf32>,
    %c7_262 = arith.constant 7 : index
    %c1_263 = arith.constant 1 : index
    %c0_264 = arith.constant 0 : index
    %c0_265 = arith.constant 0 : index
    %571 = vector.load %arg12[%c7_262, %c1_263, %c0_264, %c0_265] : memref<8x2x2x64xf32, #tpu.memory_space<vmem>>, vector<1x1x2x64xf32>
    %572 = vector.shape_cast %571 : vector<1x1x2x64xf32> to vector<2x64xf32>
    %573 = vector.shape_cast %567 : vector<2x64xf32> to vector<1x1x2x64xf32>
    tpu.vector_store %arg12[%c7_262, %c1_263, %c0_264, %c0_265], %573 {strides = array<i32>} : memref<8x2x2x64xf32, #tpu.memory_space<vmem>>, vector<1x1x2x64xf32>,
    %c1_266 = arith.constant 1 : index
    %c0_267 = arith.constant 0 : index
    %c0_268 = arith.constant 0 : index
    %c0_269 = arith.constant 0 : index
    %574 = vector.load %arg11[%c1_266, %c0_267, %c0_268, %c0_269] : memref<8x2x2x64xf32, #tpu.memory_space<vmem>>, vector<1x1x2x64xf32>
    %575 = vector.shape_cast %574 : vector<1x1x2x64xf32> to vector<2x64xf32>
    %c1_270 = arith.constant 1 : index
    %c1_271 = arith.constant 1 : index
    %c0_272 = arith.constant 0 : index
    %c0_273 = arith.constant 0 : index
    %576 = vector.load %arg11[%c1_270, %c1_271, %c0_272, %c0_273] : memref<8x2x2x64xf32, #tpu.memory_space<vmem>>, vector<1x1x2x64xf32>
    %577 = vector.shape_cast %576 : vector<1x1x2x64xf32> to vector<2x64xf32>
    %578 = tpu.concatenate %575, %577, %567 in 1 : vector<2x64xf32>, vector<2x64xf32>, vector<2x64xf32> -> vector<2x192xf32>
    %579 = arith.truncf %578 : vector<2x192xf32> to vector<2x192xbf16>
    %cst_274 = arith.constant dense<0.000000e+00> : vector<2x256xf32>
    %580 = tpu.matmul %579, %540, %cst_274 {dimension_numbers = #tpu.dot_dimension_numbers<[1], [0], [0], [1], [0, 0, 1, 1], [], []>} : vector<2x192xbf16>, vector<192x256xbf16>, vector<2x256xf32> -> vector<2x256xf32>
    %581 = vector.broadcast %542 : vector<1x256xf32> to vector<2x256xf32>
    %582 = arith.addf %580, %581 : vector<2x256xf32>
    %583 = vector.extract_strided_slice %582 {offsets = [0, 0], sizes = [2, 192], strides = [1, 1]} : vector<2x256xf32> to vector<2x192xf32>
    %584 = arith.negf %583 : vector<2x192xf32>
    %585 = math.exp %584 : vector<2x192xf32>
    %cst_275 = arith.constant 1.000000e+00 : f32
    %586 = vector.broadcast %cst_275 : f32 to vector<2x192xf32>
    %587 = arith.addf %586, %585 : vector<2x192xf32>
    %588 = arith.divf %586, %587 : vector<2x192xf32>
    %589 = vector.extract_strided_slice %588 {offsets = [0, 0], sizes = [2, 64], strides = [1, 1]} : vector<2x192xf32> to vector<2x64xf32>
    %590 = vector.extract_strided_slice %588 {offsets = [0, 64], sizes = [2, 64], strides = [1, 1]} : vector<2x192xf32> to vector<2x64xf32>
    %591 = vector.extract_strided_slice %588 {offsets = [0, 128], sizes = [2, 64], strides = [1, 1]} : vector<2x192xf32> to vector<2x64xf32>
    %592 = vector.extract_strided_slice %582 {offsets = [0, 192], sizes = [2, 64], strides = [1, 1]} : vector<2x256xf32> to vector<2x64xf32>
    %593 = math.tanh %592 : vector<2x64xf32>
    %594 = arith.mulf %590, %565 : vector<2x64xf32>
    %595 = arith.mulf %589, %593 : vector<2x64xf32>
    %596 = arith.addf %594, %595 : vector<2x64xf32>
    %597 = math.tanh %596 : vector<2x64xf32>
    %598 = arith.mulf %591, %597 : vector<2x64xf32>
    %c1_276 = arith.constant 1 : index
    %c0_277 = arith.constant 0 : index
    %c0_278 = arith.constant 0 : index
    %c0_279 = arith.constant 0 : index
    %599 = vector.load %arg12[%c1_276, %c0_277, %c0_278, %c0_279] : memref<8x2x2x64xf32, #tpu.memory_space<vmem>>, vector<1x1x2x64xf32>
    %600 = vector.shape_cast %599 : vector<1x1x2x64xf32> to vector<2x64xf32>
    %601 = vector.shape_cast %598 : vector<2x64xf32> to vector<1x1x2x64xf32>
    tpu.vector_store %arg12[%c1_276, %c0_277, %c0_278, %c0_279], %601 {strides = array<i32>} : memref<8x2x2x64xf32, #tpu.memory_space<vmem>>, vector<1x1x2x64xf32>,
    %c6_280 = arith.constant 6 : index
    %c1_281 = arith.constant 1 : index
    %c0_282 = arith.constant 0 : index
    %c0_283 = arith.constant 0 : index
    %602 = vector.load %arg12[%c6_280, %c1_281, %c0_282, %c0_283] : memref<8x2x2x64xf32, #tpu.memory_space<vmem>>, vector<1x1x2x64xf32>
    %603 = vector.shape_cast %602 : vector<1x1x2x64xf32> to vector<2x64xf32>
    %604 = vector.shape_cast %598 : vector<2x64xf32> to vector<1x1x2x64xf32>
    tpu.vector_store %arg12[%c6_280, %c1_281, %c0_282, %c0_283], %604 {strides = array<i32>} : memref<8x2x2x64xf32, #tpu.memory_space<vmem>>, vector<1x1x2x64xf32>,
    %c2_284 = arith.constant 2 : index
    %c0_285 = arith.constant 0 : index
    %c0_286 = arith.constant 0 : index
    %c0_287 = arith.constant 0 : index
    %605 = vector.load %arg11[%c2_284, %c0_285, %c0_286, %c0_287] : memref<8x2x2x64xf32, #tpu.memory_space<vmem>>, vector<1x1x2x64xf32>
    %606 = vector.shape_cast %605 : vector<1x1x2x64xf32> to vector<2x64xf32>
    %c2_288 = arith.constant 2 : index
    %c1_289 = arith.constant 1 : index
    %c0_290 = arith.constant 0 : index
    %c0_291 = arith.constant 0 : index
    %607 = vector.load %arg11[%c2_288, %c1_289, %c0_290, %c0_291] : memref<8x2x2x64xf32, #tpu.memory_space<vmem>>, vector<1x1x2x64xf32>
    %608 = vector.shape_cast %607 : vector<1x1x2x64xf32> to vector<2x64xf32>
    %609 = tpu.concatenate %606, %608, %598 in 1 : vector<2x64xf32>, vector<2x64xf32>, vector<2x64xf32> -> vector<2x192xf32>
    %610 = arith.truncf %609 : vector<2x192xf32> to vector<2x192xbf16>
    %cst_292 = arith.constant dense<0.000000e+00> : vector<2x256xf32>
    %611 = tpu.matmul %610, %540, %cst_292 {dimension_numbers = #tpu.dot_dimension_numbers<[1], [0], [0], [1], [0, 0, 1, 1], [], []>} : vector<2x192xbf16>, vector<192x256xbf16>, vector<2x256xf32> -> vector<2x256xf32>
    %612 = vector.broadcast %542 : vector<1x256xf32> to vector<2x256xf32>
    %613 = arith.addf %611, %612 : vector<2x256xf32>
    %614 = vector.extract_strided_slice %613 {offsets = [0, 0], sizes = [2, 192], strides = [1, 1]} : vector<2x256xf32> to vector<2x192xf32>
    %615 = arith.negf %614 : vector<2x192xf32>
    %616 = math.exp %615 : vector<2x192xf32>
    %cst_293 = arith.constant 1.000000e+00 : f32
    %617 = vector.broadcast %cst_293 : f32 to vector<2x192xf32>
    %618 = arith.addf %617, %616 : vector<2x192xf32>
    %619 = arith.divf %617, %618 : vector<2x192xf32>
    %620 = vector.extract_strided_slice %619 {offsets = [0, 0], sizes = [2, 64], strides = [1, 1]} : vector<2x192xf32> to vector<2x64xf32>
    %621 = vector.extract_strided_slice %619 {offsets = [0, 64], sizes = [2, 64], strides = [1, 1]} : vector<2x192xf32> to vector<2x64xf32>
    %622 = vector.extract_strided_slice %619 {offsets = [0, 128], sizes = [2, 64], strides = [1, 1]} : vector<2x192xf32> to vector<2x64xf32>
    %623 = vector.extract_strided_slice %613 {offsets = [0, 192], sizes = [2, 64], strides = [1, 1]} : vector<2x256xf32> to vector<2x64xf32>
    %624 = math.tanh %623 : vector<2x64xf32>
    %625 = arith.mulf %621, %596 : vector<2x64xf32>
    %626 = arith.mulf %620, %624 : vector<2x64xf32>
    %627 = arith.addf %625, %626 : vector<2x64xf32>
    %628 = math.tanh %627 : vector<2x64xf32>
    %629 = arith.mulf %622, %628 : vector<2x64xf32>
    %c2_294 = arith.constant 2 : index
    %c0_295 = arith.constant 0 : index
    %c0_296 = arith.constant 0 : index
    %c0_297 = arith.constant 0 : index
    %630 = vector.load %arg12[%c2_294, %c0_295, %c0_296, %c0_297] : memref<8x2x2x64xf32, #tpu.memory_space<vmem>>, vector<1x1x2x64xf32>
    %631 = vector.shape_cast %630 : vector<1x1x2x64xf32> to vector<2x64xf32>
    %632 = vector.shape_cast %629 : vector<2x64xf32> to vector<1x1x2x64xf32>
    tpu.vector_store %arg12[%c2_294, %c0_295, %c0_296, %c0_297], %632 {strides = array<i32>} : memref<8x2x2x64xf32, #tpu.memory_space<vmem>>, vector<1x1x2x64xf32>,
    %c5_298 = arith.constant 5 : index
    %c1_299 = arith.constant 1 : index
    %c0_300 = arith.constant 0 : index
    %c0_301 = arith.constant 0 : index
    %633 = vector.load %arg12[%c5_298, %c1_299, %c0_300, %c0_301] : memref<8x2x2x64xf32, #tpu.memory_space<vmem>>, vector<1x1x2x64xf32>
    %634 = vector.shape_cast %633 : vector<1x1x2x64xf32> to vector<2x64xf32>
    %635 = vector.shape_cast %629 : vector<2x64xf32> to vector<1x1x2x64xf32>
    tpu.vector_store %arg12[%c5_298, %c1_299, %c0_300, %c0_301], %635 {strides = array<i32>} : memref<8x2x2x64xf32, #tpu.memory_space<vmem>>, vector<1x1x2x64xf32>,
    %c3_302 = arith.constant 3 : index
    %c0_303 = arith.constant 0 : index
    %c0_304 = arith.constant 0 : index
    %c0_305 = arith.constant 0 : index
    %636 = vector.load %arg11[%c3_302, %c0_303, %c0_304, %c0_305] : memref<8x2x2x64xf32, #tpu.memory_space<vmem>>, vector<1x1x2x64xf32>
    %637 = vector.shape_cast %636 : vector<1x1x2x64xf32> to vector<2x64xf32>
    %c3_306 = arith.constant 3 : index
    %c1_307 = arith.constant 1 : index
    %c0_308 = arith.constant 0 : index
    %c0_309 = arith.constant 0 : index
    %638 = vector.load %arg11[%c3_306, %c1_307, %c0_308, %c0_309] : memref<8x2x2x64xf32, #tpu.memory_space<vmem>>, vector<1x1x2x64xf32>
    %639 = vector.shape_cast %638 : vector<1x1x2x64xf32> to vector<2x64xf32>
    %640 = tpu.concatenate %637, %639, %629 in 1 : vector<2x64xf32>, vector<2x64xf32>, vector<2x64xf32> -> vector<2x192xf32>
    %641 = arith.truncf %640 : vector<2x192xf32> to vector<2x192xbf16>
    %cst_310 = arith.constant dense<0.000000e+00> : vector<2x256xf32>
    %642 = tpu.matmul %641, %540, %cst_310 {dimension_numbers = #tpu.dot_dimension_numbers<[1], [0], [0], [1], [0, 0, 1, 1], [], []>} : vector<2x192xbf16>, vector<192x256xbf16>, vector<2x256xf32> -> vector<2x256xf32>
    %643 = vector.broadcast %542 : vector<1x256xf32> to vector<2x256xf32>
    %644 = arith.addf %642, %643 : vector<2x256xf32>
    %645 = vector.extract_strided_slice %644 {offsets = [0, 0], sizes = [2, 192], strides = [1, 1]} : vector<2x256xf32> to vector<2x192xf32>
    %646 = arith.negf %645 : vector<2x192xf32>
    %647 = math.exp %646 : vector<2x192xf32>
    %cst_311 = arith.constant 1.000000e+00 : f32
    %648 = vector.broadcast %cst_311 : f32 to vector<2x192xf32>
    %649 = arith.addf %648, %647 : vector<2x192xf32>
    %650 = arith.divf %648, %649 : vector<2x192xf32>
    %651 = vector.extract_strided_slice %650 {offsets = [0, 0], sizes = [2, 64], strides = [1, 1]} : vector<2x192xf32> to vector<2x64xf32>
    %652 = vector.extract_strided_slice %650 {offsets = [0, 64], sizes = [2, 64], strides = [1, 1]} : vector<2x192xf32> to vector<2x64xf32>
    %653 = vector.extract_strided_slice %650 {offsets = [0, 128], sizes = [2, 64], strides = [1, 1]} : vector<2x192xf32> to vector<2x64xf32>
    %654 = vector.extract_strided_slice %644 {offsets = [0, 192], sizes = [2, 64], strides = [1, 1]} : vector<2x256xf32> to vector<2x64xf32>
    %655 = math.tanh %654 : vector<2x64xf32>
    %656 = arith.mulf %652, %627 : vector<2x64xf32>
    %657 = arith.mulf %651, %655 : vector<2x64xf32>
    %658 = arith.addf %656, %657 : vector<2x64xf32>
    %659 = math.tanh %658 : vector<2x64xf32>
    %660 = arith.mulf %653, %659 : vector<2x64xf32>
    %c3_312 = arith.constant 3 : index
    %c0_313 = arith.constant 0 : index
    %c0_314 = arith.constant 0 : index
    %c0_315 = arith.constant 0 : index
    %661 = vector.load %arg12[%c3_312, %c0_313, %c0_314, %c0_315] : memref<8x2x2x64xf32, #tpu.memory_space<vmem>>, vector<1x1x2x64xf32>
    %662 = vector.shape_cast %661 : vector<1x1x2x64xf32> to vector<2x64xf32>
    %663 = vector.shape_cast %660 : vector<2x64xf32> to vector<1x1x2x64xf32>
    tpu.vector_store %arg12[%c3_312, %c0_313, %c0_314, %c0_315], %663 {strides = array<i32>} : memref<8x2x2x64xf32, #tpu.memory_space<vmem>>, vector<1x1x2x64xf32>,
    %c4_316 = arith.constant 4 : index
    %c1_317 = arith.constant 1 : index
    %c0_318 = arith.constant 0 : index
    %c0_319 = arith.constant 0 : index
    %664 = vector.load %arg12[%c4_316, %c1_317, %c0_318, %c0_319] : memref<8x2x2x64xf32, #tpu.memory_space<vmem>>, vector<1x1x2x64xf32>
    %665 = vector.shape_cast %664 : vector<1x1x2x64xf32> to vector<2x64xf32>
    %666 = vector.shape_cast %660 : vector<2x64xf32> to vector<1x1x2x64xf32>
    tpu.vector_store %arg12[%c4_316, %c1_317, %c0_318, %c0_319], %666 {strides = array<i32>} : memref<8x2x2x64xf32, #tpu.memory_space<vmem>>, vector<1x1x2x64xf32>,
    %c4_320 = arith.constant 4 : index
    %c0_321 = arith.constant 0 : index
    %c0_322 = arith.constant 0 : index
    %c0_323 = arith.constant 0 : index
    %667 = vector.load %arg11[%c4_320, %c0_321, %c0_322, %c0_323] : memref<8x2x2x64xf32, #tpu.memory_space<vmem>>, vector<1x1x2x64xf32>
    %668 = vector.shape_cast %667 : vector<1x1x2x64xf32> to vector<2x64xf32>
    %c4_324 = arith.constant 4 : index
    %c1_325 = arith.constant 1 : index
    %c0_326 = arith.constant 0 : index
    %c0_327 = arith.constant 0 : index
    %669 = vector.load %arg11[%c4_324, %c1_325, %c0_326, %c0_327] : memref<8x2x2x64xf32, #tpu.memory_space<vmem>>, vector<1x1x2x64xf32>
    %670 = vector.shape_cast %669 : vector<1x1x2x64xf32> to vector<2x64xf32>
    %671 = tpu.concatenate %668, %670, %660 in 1 : vector<2x64xf32>, vector<2x64xf32>, vector<2x64xf32> -> vector<2x192xf32>
    %672 = arith.truncf %671 : vector<2x192xf32> to vector<2x192xbf16>
    %cst_328 = arith.constant dense<0.000000e+00> : vector<2x256xf32>
    %673 = tpu.matmul %672, %540, %cst_328 {dimension_numbers = #tpu.dot_dimension_numbers<[1], [0], [0], [1], [0, 0, 1, 1], [], []>} : vector<2x192xbf16>, vector<192x256xbf16>, vector<2x256xf32> -> vector<2x256xf32>
    %674 = vector.broadcast %542 : vector<1x256xf32> to vector<2x256xf32>
    %675 = arith.addf %673, %674 : vector<2x256xf32>
    %676 = vector.extract_strided_slice %675 {offsets = [0, 0], sizes = [2, 192], strides = [1, 1]} : vector<2x256xf32> to vector<2x192xf32>
    %677 = arith.negf %676 : vector<2x192xf32>
    %678 = math.exp %677 : vector<2x192xf32>
    %cst_329 = arith.constant 1.000000e+00 : f32
    %679 = vector.broadcast %cst_329 : f32 to vector<2x192xf32>
    %680 = arith.addf %679, %678 : vector<2x192xf32>
    %681 = arith.divf %679, %680 : vector<2x192xf32>
    %682 = vector.extract_strided_slice %681 {offsets = [0, 0], sizes = [2, 64], strides = [1, 1]} : vector<2x192xf32> to vector<2x64xf32>
    %683 = vector.extract_strided_slice %681 {offsets = [0, 64], sizes = [2, 64], strides = [1, 1]} : vector<2x192xf32> to vector<2x64xf32>
    %684 = vector.extract_strided_slice %681 {offsets = [0, 128], sizes = [2, 64], strides = [1, 1]} : vector<2x192xf32> to vector<2x64xf32>
    %685 = vector.extract_strided_slice %675 {offsets = [0, 192], sizes = [2, 64], strides = [1, 1]} : vector<2x256xf32> to vector<2x64xf32>
    %686 = math.tanh %685 : vector<2x64xf32>
    %687 = arith.mulf %683, %658 : vector<2x64xf32>
    %688 = arith.mulf %682, %686 : vector<2x64xf32>
    %689 = arith.addf %687, %688 : vector<2x64xf32>
    %690 = math.tanh %689 : vector<2x64xf32>
    %691 = arith.mulf %684, %690 : vector<2x64xf32>
    %c4_330 = arith.constant 4 : index
    %c0_331 = arith.constant 0 : index
    %c0_332 = arith.constant 0 : index
    %c0_333 = arith.constant 0 : index
    %692 = vector.load %arg12[%c4_330, %c0_331, %c0_332, %c0_333] : memref<8x2x2x64xf32, #tpu.memory_space<vmem>>, vector<1x1x2x64xf32>
    %693 = vector.shape_cast %692 : vector<1x1x2x64xf32> to vector<2x64xf32>
    %694 = vector.shape_cast %691 : vector<2x64xf32> to vector<1x1x2x64xf32>
    tpu.vector_store %arg12[%c4_330, %c0_331, %c0_332, %c0_333], %694 {strides = array<i32>} : memref<8x2x2x64xf32, #tpu.memory_space<vmem>>, vector<1x1x2x64xf32>,
    %c3_334 = arith.constant 3 : index
    %c1_335 = arith.constant 1 : index
    %c0_336 = arith.constant 0 : index
    %c0_337 = arith.constant 0 : index
    %695 = vector.load %arg12[%c3_334, %c1_335, %c0_336, %c0_337] : memref<8x2x2x64xf32, #tpu.memory_space<vmem>>, vector<1x1x2x64xf32>
    %696 = vector.shape_cast %695 : vector<1x1x2x64xf32> to vector<2x64xf32>
    %697 = vector.shape_cast %691 : vector<2x64xf32> to vector<1x1x2x64xf32>
    tpu.vector_store %arg12[%c3_334, %c1_335, %c0_336, %c0_337], %697 {strides = array<i32>} : memref<8x2x2x64xf32, #tpu.memory_space<vmem>>, vector<1x1x2x64xf32>,
    %c5_338 = arith.constant 5 : index
    %c0_339 = arith.constant 0 : index
    %c0_340 = arith.constant 0 : index
    %c0_341 = arith.constant 0 : index
    %698 = vector.load %arg11[%c5_338, %c0_339, %c0_340, %c0_341] : memref<8x2x2x64xf32, #tpu.memory_space<vmem>>, vector<1x1x2x64xf32>
    %699 = vector.shape_cast %698 : vector<1x1x2x64xf32> to vector<2x64xf32>
    %c5_342 = arith.constant 5 : index
    %c1_343 = arith.constant 1 : index
    %c0_344 = arith.constant 0 : index
    %c0_345 = arith.constant 0 : index
    %700 = vector.load %arg11[%c5_342, %c1_343, %c0_344, %c0_345] : memref<8x2x2x64xf32, #tpu.memory_space<vmem>>, vector<1x1x2x64xf32>
    %701 = vector.shape_cast %700 : vector<1x1x2x64xf32> to vector<2x64xf32>
    %702 = tpu.concatenate %699, %701, %691 in 1 : vector<2x64xf32>, vector<2x64xf32>, vector<2x64xf32> -> vector<2x192xf32>
    %703 = arith.truncf %702 : vector<2x192xf32> to vector<2x192xbf16>
    %cst_346 = arith.constant dense<0.000000e+00> : vector<2x256xf32>
    %704 = tpu.matmul %703, %540, %cst_346 {dimension_numbers = #tpu.dot_dimension_numbers<[1], [0], [0], [1], [0, 0, 1, 1], [], []>} : vector<2x192xbf16>, vector<192x256xbf16>, vector<2x256xf32> -> vector<2x256xf32>
    %705 = vector.broadcast %542 : vector<1x256xf32> to vector<2x256xf32>
    %706 = arith.addf %704, %705 : vector<2x256xf32>
    %707 = vector.extract_strided_slice %706 {offsets = [0, 0], sizes = [2, 192], strides = [1, 1]} : vector<2x256xf32> to vector<2x192xf32>
    %708 = arith.negf %707 : vector<2x192xf32>
    %709 = math.exp %708 : vector<2x192xf32>
    %cst_347 = arith.constant 1.000000e+00 : f32
    %710 = vector.broadcast %cst_347 : f32 to vector<2x192xf32>
    %711 = arith.addf %710, %709 : vector<2x192xf32>
    %712 = arith.divf %710, %711 : vector<2x192xf32>
    %713 = vector.extract_strided_slice %712 {offsets = [0, 0], sizes = [2, 64], strides = [1, 1]} : vector<2x192xf32> to vector<2x64xf32>
    %714 = vector.extract_strided_slice %712 {offsets = [0, 64], sizes = [2, 64], strides = [1, 1]} : vector<2x192xf32> to vector<2x64xf32>
    %715 = vector.extract_strided_slice %712 {offsets = [0, 128], sizes = [2, 64], strides = [1, 1]} : vector<2x192xf32> to vector<2x64xf32>
    %716 = vector.extract_strided_slice %706 {offsets = [0, 192], sizes = [2, 64], strides = [1, 1]} : vector<2x256xf32> to vector<2x64xf32>
    %717 = math.tanh %716 : vector<2x64xf32>
    %718 = arith.mulf %714, %689 : vector<2x64xf32>
    %719 = arith.mulf %713, %717 : vector<2x64xf32>
    %720 = arith.addf %718, %719 : vector<2x64xf32>
    %721 = math.tanh %720 : vector<2x64xf32>
    %722 = arith.mulf %715, %721 : vector<2x64xf32>
    %c5_348 = arith.constant 5 : index
    %c0_349 = arith.constant 0 : index
    %c0_350 = arith.constant 0 : index
    %c0_351 = arith.constant 0 : index
    %723 = vector.load %arg12[%c5_348, %c0_349, %c0_350, %c0_351] : memref<8x2x2x64xf32, #tpu.memory_space<vmem>>, vector<1x1x2x64xf32>
    %724 = vector.shape_cast %723 : vector<1x1x2x64xf32> to vector<2x64xf32>
    %725 = vector.shape_cast %722 : vector<2x64xf32> to vector<1x1x2x64xf32>
    tpu.vector_store %arg12[%c5_348, %c0_349, %c0_350, %c0_351], %725 {strides = array<i32>} : memref<8x2x2x64xf32, #tpu.memory_space<vmem>>, vector<1x1x2x64xf32>,
    %c2_352 = arith.constant 2 : index
    %c1_353 = arith.constant 1 : index
    %c0_354 = arith.constant 0 : index
    %c0_355 = arith.constant 0 : index
    %726 = vector.load %arg12[%c2_352, %c1_353, %c0_354, %c0_355] : memref<8x2x2x64xf32, #tpu.memory_space<vmem>>, vector<1x1x2x64xf32>
    %727 = vector.shape_cast %726 : vector<1x1x2x64xf32> to vector<2x64xf32>
    %728 = vector.shape_cast %722 : vector<2x64xf32> to vector<1x1x2x64xf32>
    tpu.vector_store %arg12[%c2_352, %c1_353, %c0_354, %c0_355], %728 {strides = array<i32>} : memref<8x2x2x64xf32, #tpu.memory_space<vmem>>, vector<1x1x2x64xf32>,
    %c6_356 = arith.constant 6 : index
    %c0_357 = arith.constant 0 : index
    %c0_358 = arith.constant 0 : index
    %c0_359 = arith.constant 0 : index
    %729 = vector.load %arg11[%c6_356, %c0_357, %c0_358, %c0_359] : memref<8x2x2x64xf32, #tpu.memory_space<vmem>>, vector<1x1x2x64xf32>
    %730 = vector.shape_cast %729 : vector<1x1x2x64xf32> to vector<2x64xf32>
    %c6_360 = arith.constant 6 : index
    %c1_361 = arith.constant 1 : index
    %c0_362 = arith.constant 0 : index
    %c0_363 = arith.constant 0 : index
    %731 = vector.load %arg11[%c6_360, %c1_361, %c0_362, %c0_363] : memref<8x2x2x64xf32, #tpu.memory_space<vmem>>, vector<1x1x2x64xf32>
    %732 = vector.shape_cast %731 : vector<1x1x2x64xf32> to vector<2x64xf32>
    %733 = tpu.concatenate %730, %732, %722 in 1 : vector<2x64xf32>, vector<2x64xf32>, vector<2x64xf32> -> vector<2x192xf32>
    %734 = arith.truncf %733 : vector<2x192xf32> to vector<2x192xbf16>
    %cst_364 = arith.constant dense<0.000000e+00> : vector<2x256xf32>
    %735 = tpu.matmul %734, %540, %cst_364 {dimension_numbers = #tpu.dot_dimension_numbers<[1], [0], [0], [1], [0, 0, 1, 1], [], []>} : vector<2x192xbf16>, vector<192x256xbf16>, vector<2x256xf32> -> vector<2x256xf32>
    %736 = vector.broadcast %542 : vector<1x256xf32> to vector<2x256xf32>
    %737 = arith.addf %735, %736 : vector<2x256xf32>
    %738 = vector.extract_strided_slice %737 {offsets = [0, 0], sizes = [2, 192], strides = [1, 1]} : vector<2x256xf32> to vector<2x192xf32>
    %739 = arith.negf %738 : vector<2x192xf32>
    %740 = math.exp %739 : vector<2x192xf32>
    %cst_365 = arith.constant 1.000000e+00 : f32
    %741 = vector.broadcast %cst_365 : f32 to vector<2x192xf32>
    %742 = arith.addf %741, %740 : vector<2x192xf32>
    %743 = arith.divf %741, %742 : vector<2x192xf32>
    %744 = vector.extract_strided_slice %743 {offsets = [0, 0], sizes = [2, 64], strides = [1, 1]} : vector<2x192xf32> to vector<2x64xf32>
    %745 = vector.extract_strided_slice %743 {offsets = [0, 64], sizes = [2, 64], strides = [1, 1]} : vector<2x192xf32> to vector<2x64xf32>
    %746 = vector.extract_strided_slice %743 {offsets = [0, 128], sizes = [2, 64], strides = [1, 1]} : vector<2x192xf32> to vector<2x64xf32>
    %747 = vector.extract_strided_slice %737 {offsets = [0, 192], sizes = [2, 64], strides = [1, 1]} : vector<2x256xf32> to vector<2x64xf32>
    %748 = math.tanh %747 : vector<2x64xf32>
    %749 = arith.mulf %745, %720 : vector<2x64xf32>
    %750 = arith.mulf %744, %748 : vector<2x64xf32>
    %751 = arith.addf %749, %750 : vector<2x64xf32>
    %752 = math.tanh %751 : vector<2x64xf32>
    %753 = arith.mulf %746, %752 : vector<2x64xf32>
    %c6_366 = arith.constant 6 : index
    %c0_367 = arith.constant 0 : index
    %c0_368 = arith.constant 0 : index
    %c0_369 = arith.constant 0 : index
    %754 = vector.load %arg12[%c6_366, %c0_367, %c0_368, %c0_369] : memref<8x2x2x64xf32, #tpu.memory_space<vmem>>, vector<1x1x2x64xf32>
    %755 = vector.shape_cast %754 : vector<1x1x2x64xf32> to vector<2x64xf32>
    %756 = vector.shape_cast %753 : vector<2x64xf32> to vector<1x1x2x64xf32>
    tpu.vector_store %arg12[%c6_366, %c0_367, %c0_368, %c0_369], %756 {strides = array<i32>} : memref<8x2x2x64xf32, #tpu.memory_space<vmem>>, vector<1x1x2x64xf32>,
    %c1_370 = arith.constant 1 : index
    %c1_371 = arith.constant 1 : index
    %c0_372 = arith.constant 0 : index
    %c0_373 = arith.constant 0 : index
    %757 = vector.load %arg12[%c1_370, %c1_371, %c0_372, %c0_373] : memref<8x2x2x64xf32, #tpu.memory_space<vmem>>, vector<1x1x2x64xf32>
    %758 = vector.shape_cast %757 : vector<1x1x2x64xf32> to vector<2x64xf32>
    %759 = vector.shape_cast %753 : vector<2x64xf32> to vector<1x1x2x64xf32>
    tpu.vector_store %arg12[%c1_370, %c1_371, %c0_372, %c0_373], %759 {strides = array<i32>} : memref<8x2x2x64xf32, #tpu.memory_space<vmem>>, vector<1x1x2x64xf32>,
    %c7_374 = arith.constant 7 : index
    %c0_375 = arith.constant 0 : index
    %c0_376 = arith.constant 0 : index
    %c0_377 = arith.constant 0 : index
    %760 = vector.load %arg11[%c7_374, %c0_375, %c0_376, %c0_377] : memref<8x2x2x64xf32, #tpu.memory_space<vmem>>, vector<1x1x2x64xf32>
    %761 = vector.shape_cast %760 : vector<1x1x2x64xf32> to vector<2x64xf32>
    %c7_378 = arith.constant 7 : index
    %c1_379 = arith.constant 1 : index
    %c0_380 = arith.constant 0 : index
    %c0_381 = arith.constant 0 : index
    %762 = vector.load %arg11[%c7_378, %c1_379, %c0_380, %c0_381] : memref<8x2x2x64xf32, #tpu.memory_space<vmem>>, vector<1x1x2x64xf32>
    %763 = vector.shape_cast %762 : vector<1x1x2x64xf32> to vector<2x64xf32>
    %764 = tpu.concatenate %761, %763, %753 in 1 : vector<2x64xf32>, vector<2x64xf32>, vector<2x64xf32> -> vector<2x192xf32>
    %765 = arith.truncf %764 : vector<2x192xf32> to vector<2x192xbf16>
    %cst_382 = arith.constant dense<0.000000e+00> : vector<2x256xf32>
    %766 = tpu.matmul %765, %540, %cst_382 {dimension_numbers = #tpu.dot_dimension_numbers<[1], [0], [0], [1], [0, 0, 1, 1], [], []>} : vector<2x192xbf16>, vector<192x256xbf16>, vector<2x256xf32> -> vector<2x256xf32>
    %767 = vector.broadcast %542 : vector<1x256xf32> to vector<2x256xf32>
    %768 = arith.addf %766, %767 : vector<2x256xf32>
    %769 = vector.extract_strided_slice %768 {offsets = [0, 0], sizes = [2, 192], strides = [1, 1]} : vector<2x256xf32> to vector<2x192xf32>
    %770 = arith.negf %769 : vector<2x192xf32>
    %771 = math.exp %770 : vector<2x192xf32>
    %cst_383 = arith.constant 1.000000e+00 : f32
    %772 = vector.broadcast %cst_383 : f32 to vector<2x192xf32>
    %773 = arith.addf %772, %771 : vector<2x192xf32>
    %774 = arith.divf %772, %773 : vector<2x192xf32>
    %775 = vector.extract_strided_slice %774 {offsets = [0, 0], sizes = [2, 64], strides = [1, 1]} : vector<2x192xf32> to vector<2x64xf32>
    %776 = vector.extract_strided_slice %774 {offsets = [0, 64], sizes = [2, 64], strides = [1, 1]} : vector<2x192xf32> to vector<2x64xf32>
    %777 = vector.extract_strided_slice %774 {offsets = [0, 128], sizes = [2, 64], strides = [1, 1]} : vector<2x192xf32> to vector<2x64xf32>
    %778 = vector.extract_strided_slice %768 {offsets = [0, 192], sizes = [2, 64], strides = [1, 1]} : vector<2x256xf32> to vector<2x64xf32>
    %779 = math.tanh %778 : vector<2x64xf32>
    %780 = arith.mulf %776, %751 : vector<2x64xf32>
    %781 = arith.mulf %775, %779 : vector<2x64xf32>
    %782 = arith.addf %780, %781 : vector<2x64xf32>
    %783 = math.tanh %782 : vector<2x64xf32>
    %784 = arith.mulf %777, %783 : vector<2x64xf32>
    %c7_384 = arith.constant 7 : index
    %c0_385 = arith.constant 0 : index
    %c0_386 = arith.constant 0 : index
    %c0_387 = arith.constant 0 : index
    %785 = vector.load %arg12[%c7_384, %c0_385, %c0_386, %c0_387] : memref<8x2x2x64xf32, #tpu.memory_space<vmem>>, vector<1x1x2x64xf32>
    %786 = vector.shape_cast %785 : vector<1x1x2x64xf32> to vector<2x64xf32>
    %787 = vector.shape_cast %784 : vector<2x64xf32> to vector<1x1x2x64xf32>
    tpu.vector_store %arg12[%c7_384, %c0_385, %c0_386, %c0_387], %787 {strides = array<i32>} : memref<8x2x2x64xf32, #tpu.memory_space<vmem>>, vector<1x1x2x64xf32>,
    %c0_388 = arith.constant 0 : index
    %c1_389 = arith.constant 1 : index
    %c0_390 = arith.constant 0 : index
    %c0_391 = arith.constant 0 : index
    %788 = vector.load %arg12[%c0_388, %c1_389, %c0_390, %c0_391] : memref<8x2x2x64xf32, #tpu.memory_space<vmem>>, vector<1x1x2x64xf32>
    %789 = vector.shape_cast %788 : vector<1x1x2x64xf32> to vector<2x64xf32>
    %790 = vector.shape_cast %784 : vector<2x64xf32> to vector<1x1x2x64xf32>
    tpu.vector_store %arg12[%c0_388, %c1_389, %c0_390, %c0_391], %790 {strides = array<i32>} : memref<8x2x2x64xf32, #tpu.memory_space<vmem>>, vector<1x1x2x64xf32>,
    %c2_392 = arith.constant 2 : index
    %c0_393 = arith.constant 0 : index
    %c0_394 = arith.constant 0 : index
    %791 = vector.load %arg3[%c2_392, %c0_393, %c0_394] : memref<3x192x256xbf16, #tpu.memory_space<vmem>>, vector<1x192x256xbf16>
    %792 = vector.shape_cast %791 : vector<1x192x256xbf16> to vector<192x256xbf16>
    %c3_395 = arith.constant 3 : index
    %c0_396 = arith.constant 0 : index
    %c0_397 = arith.constant 0 : index
    %793 = vector.load %arg4[%c3_395, %c0_396, %c0_397] : memref<4x1x256xf32, #tpu.memory_space<vmem>>, vector<1x1x256xf32>
    %794 = vector.shape_cast %793 : vector<1x1x256xf32> to vector<1x256xf32>
    %c0_398 = arith.constant 0 : index
    %c0_399 = arith.constant 0 : index
    %c0_400 = arith.constant 0 : index
    %c0_401 = arith.constant 0 : index
    %795 = vector.load %arg12[%c0_398, %c0_399, %c0_400, %c0_401] : memref<8x2x2x64xf32, #tpu.memory_space<vmem>>, vector<1x1x2x64xf32>
    %796 = vector.shape_cast %795 : vector<1x1x2x64xf32> to vector<2x64xf32>
    %c0_402 = arith.constant 0 : index
    %c1_403 = arith.constant 1 : index
    %c0_404 = arith.constant 0 : index
    %c0_405 = arith.constant 0 : index
    %797 = vector.load %arg12[%c0_402, %c1_403, %c0_404, %c0_405] : memref<8x2x2x64xf32, #tpu.memory_space<vmem>>, vector<1x1x2x64xf32>
    %798 = vector.shape_cast %797 : vector<1x1x2x64xf32> to vector<2x64xf32>
    %799 = tpu.concatenate %796, %798, %67 in 1 : vector<2x64xf32>, vector<2x64xf32>, vector<2x64xf32> -> vector<2x192xf32>
    %800 = arith.truncf %799 : vector<2x192xf32> to vector<2x192xbf16>
    %cst_406 = arith.constant dense<0.000000e+00> : vector<2x256xf32>
    %801 = tpu.matmul %800, %792, %cst_406 {dimension_numbers = #tpu.dot_dimension_numbers<[1], [0], [0], [1], [0, 0, 1, 1], [], []>} : vector<2x192xbf16>, vector<192x256xbf16>, vector<2x256xf32> -> vector<2x256xf32>
    %802 = vector.broadcast %794 : vector<1x256xf32> to vector<2x256xf32>
    %803 = arith.addf %801, %802 : vector<2x256xf32>
    %804 = vector.extract_strided_slice %803 {offsets = [0, 0], sizes = [2, 192], strides = [1, 1]} : vector<2x256xf32> to vector<2x192xf32>
    %805 = arith.negf %804 : vector<2x192xf32>
    %806 = math.exp %805 : vector<2x192xf32>
    %cst_407 = arith.constant 1.000000e+00 : f32
    %807 = vector.broadcast %cst_407 : f32 to vector<2x192xf32>
    %808 = arith.addf %807, %806 : vector<2x192xf32>
    %809 = arith.divf %807, %808 : vector<2x192xf32>
    %810 = vector.extract_strided_slice %809 {offsets = [0, 0], sizes = [2, 64], strides = [1, 1]} : vector<2x192xf32> to vector<2x64xf32>
    %811 = vector.extract_strided_slice %809 {offsets = [0, 64], sizes = [2, 64], strides = [1, 1]} : vector<2x192xf32> to vector<2x64xf32>
    %812 = vector.extract_strided_slice %809 {offsets = [0, 128], sizes = [2, 64], strides = [1, 1]} : vector<2x192xf32> to vector<2x64xf32>
    %813 = vector.extract_strided_slice %803 {offsets = [0, 192], sizes = [2, 64], strides = [1, 1]} : vector<2x256xf32> to vector<2x64xf32>
    %814 = math.tanh %813 : vector<2x64xf32>
    %815 = arith.mulf %811, %67 : vector<2x64xf32>
    %816 = arith.mulf %810, %814 : vector<2x64xf32>
    %817 = arith.addf %815, %816 : vector<2x64xf32>
    %818 = math.tanh %817 : vector<2x64xf32>
    %819 = arith.mulf %812, %818 : vector<2x64xf32>
    %c1_408 = arith.constant 1 : index
    %c0_409 = arith.constant 0 : index
    %c0_410 = arith.constant 0 : index
    %c0_411 = arith.constant 0 : index
    %820 = vector.load %arg12[%c1_408, %c0_409, %c0_410, %c0_411] : memref<8x2x2x64xf32, #tpu.memory_space<vmem>>, vector<1x1x2x64xf32>
    %821 = vector.shape_cast %820 : vector<1x1x2x64xf32> to vector<2x64xf32>
    %c1_412 = arith.constant 1 : index
    %c1_413 = arith.constant 1 : index
    %c0_414 = arith.constant 0 : index
    %c0_415 = arith.constant 0 : index
    %822 = vector.load %arg12[%c1_412, %c1_413, %c0_414, %c0_415] : memref<8x2x2x64xf32, #tpu.memory_space<vmem>>, vector<1x1x2x64xf32>
    %823 = vector.shape_cast %822 : vector<1x1x2x64xf32> to vector<2x64xf32>
    %824 = tpu.concatenate %821, %823, %819 in 1 : vector<2x64xf32>, vector<2x64xf32>, vector<2x64xf32> -> vector<2x192xf32>
    %825 = arith.truncf %824 : vector<2x192xf32> to vector<2x192xbf16>
    %cst_416 = arith.constant dense<0.000000e+00> : vector<2x256xf32>
    %826 = tpu.matmul %825, %792, %cst_416 {dimension_numbers = #tpu.dot_dimension_numbers<[1], [0], [0], [1], [0, 0, 1, 1], [], []>} : vector<2x192xbf16>, vector<192x256xbf16>, vector<2x256xf32> -> vector<2x256xf32>
    %827 = vector.broadcast %794 : vector<1x256xf32> to vector<2x256xf32>
    %828 = arith.addf %826, %827 : vector<2x256xf32>
    %829 = vector.extract_strided_slice %828 {offsets = [0, 0], sizes = [2, 192], strides = [1, 1]} : vector<2x256xf32> to vector<2x192xf32>
    %830 = arith.negf %829 : vector<2x192xf32>
    %831 = math.exp %830 : vector<2x192xf32>
    %cst_417 = arith.constant 1.000000e+00 : f32
    %832 = vector.broadcast %cst_417 : f32 to vector<2x192xf32>
    %833 = arith.addf %832, %831 : vector<2x192xf32>
    %834 = arith.divf %832, %833 : vector<2x192xf32>
    %835 = vector.extract_strided_slice %834 {offsets = [0, 0], sizes = [2, 64], strides = [1, 1]} : vector<2x192xf32> to vector<2x64xf32>
    %836 = vector.extract_strided_slice %834 {offsets = [0, 64], sizes = [2, 64], strides = [1, 1]} : vector<2x192xf32> to vector<2x64xf32>
    %837 = vector.extract_strided_slice %834 {offsets = [0, 128], sizes = [2, 64], strides = [1, 1]} : vector<2x192xf32> to vector<2x64xf32>
    %838 = vector.extract_strided_slice %828 {offsets = [0, 192], sizes = [2, 64], strides = [1, 1]} : vector<2x256xf32> to vector<2x64xf32>
    %839 = math.tanh %838 : vector<2x64xf32>
    %840 = arith.mulf %836, %817 : vector<2x64xf32>
    %841 = arith.mulf %835, %839 : vector<2x64xf32>
    %842 = arith.addf %840, %841 : vector<2x64xf32>
    %843 = math.tanh %842 : vector<2x64xf32>
    %844 = arith.mulf %837, %843 : vector<2x64xf32>
    %c2_418 = arith.constant 2 : index
    %c0_419 = arith.constant 0 : index
    %c0_420 = arith.constant 0 : index
    %c0_421 = arith.constant 0 : index
    %845 = vector.load %arg12[%c2_418, %c0_419, %c0_420, %c0_421] : memref<8x2x2x64xf32, #tpu.memory_space<vmem>>, vector<1x1x2x64xf32>
    %846 = vector.shape_cast %845 : vector<1x1x2x64xf32> to vector<2x64xf32>
    %c2_422 = arith.constant 2 : index
    %c1_423 = arith.constant 1 : index
    %c0_424 = arith.constant 0 : index
    %c0_425 = arith.constant 0 : index
    %847 = vector.load %arg12[%c2_422, %c1_423, %c0_424, %c0_425] : memref<8x2x2x64xf32, #tpu.memory_space<vmem>>, vector<1x1x2x64xf32>
    %848 = vector.shape_cast %847 : vector<1x1x2x64xf32> to vector<2x64xf32>
    %849 = tpu.concatenate %846, %848, %844 in 1 : vector<2x64xf32>, vector<2x64xf32>, vector<2x64xf32> -> vector<2x192xf32>
    %850 = arith.truncf %849 : vector<2x192xf32> to vector<2x192xbf16>
    %cst_426 = arith.constant dense<0.000000e+00> : vector<2x256xf32>
    %851 = tpu.matmul %850, %792, %cst_426 {dimension_numbers = #tpu.dot_dimension_numbers<[1], [0], [0], [1], [0, 0, 1, 1], [], []>} : vector<2x192xbf16>, vector<192x256xbf16>, vector<2x256xf32> -> vector<2x256xf32>
    %852 = vector.broadcast %794 : vector<1x256xf32> to vector<2x256xf32>
    %853 = arith.addf %851, %852 : vector<2x256xf32>
    %854 = vector.extract_strided_slice %853 {offsets = [0, 0], sizes = [2, 192], strides = [1, 1]} : vector<2x256xf32> to vector<2x192xf32>
    %855 = arith.negf %854 : vector<2x192xf32>
    %856 = math.exp %855 : vector<2x192xf32>
    %cst_427 = arith.constant 1.000000e+00 : f32
    %857 = vector.broadcast %cst_427 : f32 to vector<2x192xf32>
    %858 = arith.addf %857, %856 : vector<2x192xf32>
    %859 = arith.divf %857, %858 : vector<2x192xf32>
    %860 = vector.extract_strided_slice %859 {offsets = [0, 0], sizes = [2, 64], strides = [1, 1]} : vector<2x192xf32> to vector<2x64xf32>
    %861 = vector.extract_strided_slice %859 {offsets = [0, 64], sizes = [2, 64], strides = [1, 1]} : vector<2x192xf32> to vector<2x64xf32>
    %862 = vector.extract_strided_slice %859 {offsets = [0, 128], sizes = [2, 64], strides = [1, 1]} : vector<2x192xf32> to vector<2x64xf32>
    %863 = vector.extract_strided_slice %853 {offsets = [0, 192], sizes = [2, 64], strides = [1, 1]} : vector<2x256xf32> to vector<2x64xf32>
    %864 = math.tanh %863 : vector<2x64xf32>
    %865 = arith.mulf %861, %842 : vector<2x64xf32>
    %866 = arith.mulf %860, %864 : vector<2x64xf32>
    %867 = arith.addf %865, %866 : vector<2x64xf32>
    %868 = math.tanh %867 : vector<2x64xf32>
    %869 = arith.mulf %862, %868 : vector<2x64xf32>
    %c3_428 = arith.constant 3 : index
    %c0_429 = arith.constant 0 : index
    %c0_430 = arith.constant 0 : index
    %c0_431 = arith.constant 0 : index
    %870 = vector.load %arg12[%c3_428, %c0_429, %c0_430, %c0_431] : memref<8x2x2x64xf32, #tpu.memory_space<vmem>>, vector<1x1x2x64xf32>
    %871 = vector.shape_cast %870 : vector<1x1x2x64xf32> to vector<2x64xf32>
    %c3_432 = arith.constant 3 : index
    %c1_433 = arith.constant 1 : index
    %c0_434 = arith.constant 0 : index
    %c0_435 = arith.constant 0 : index
    %872 = vector.load %arg12[%c3_432, %c1_433, %c0_434, %c0_435] : memref<8x2x2x64xf32, #tpu.memory_space<vmem>>, vector<1x1x2x64xf32>
    %873 = vector.shape_cast %872 : vector<1x1x2x64xf32> to vector<2x64xf32>
    %874 = tpu.concatenate %871, %873, %869 in 1 : vector<2x64xf32>, vector<2x64xf32>, vector<2x64xf32> -> vector<2x192xf32>
    %875 = arith.truncf %874 : vector<2x192xf32> to vector<2x192xbf16>
    %cst_436 = arith.constant dense<0.000000e+00> : vector<2x256xf32>
    %876 = tpu.matmul %875, %792, %cst_436 {dimension_numbers = #tpu.dot_dimension_numbers<[1], [0], [0], [1], [0, 0, 1, 1], [], []>} : vector<2x192xbf16>, vector<192x256xbf16>, vector<2x256xf32> -> vector<2x256xf32>
    %877 = vector.broadcast %794 : vector<1x256xf32> to vector<2x256xf32>
    %878 = arith.addf %876, %877 : vector<2x256xf32>
    %879 = vector.extract_strided_slice %878 {offsets = [0, 0], sizes = [2, 192], strides = [1, 1]} : vector<2x256xf32> to vector<2x192xf32>
    %880 = arith.negf %879 : vector<2x192xf32>
    %881 = math.exp %880 : vector<2x192xf32>
    %cst_437 = arith.constant 1.000000e+00 : f32
    %882 = vector.broadcast %cst_437 : f32 to vector<2x192xf32>
    %883 = arith.addf %882, %881 : vector<2x192xf32>
    %884 = arith.divf %882, %883 : vector<2x192xf32>
    %885 = vector.extract_strided_slice %884 {offsets = [0, 0], sizes = [2, 64], strides = [1, 1]} : vector<2x192xf32> to vector<2x64xf32>
    %886 = vector.extract_strided_slice %884 {offsets = [0, 64], sizes = [2, 64], strides = [1, 1]} : vector<2x192xf32> to vector<2x64xf32>
    %887 = vector.extract_strided_slice %884 {offsets = [0, 128], sizes = [2, 64], strides = [1, 1]} : vector<2x192xf32> to vector<2x64xf32>
    %888 = vector.extract_strided_slice %878 {offsets = [0, 192], sizes = [2, 64], strides = [1, 1]} : vector<2x256xf32> to vector<2x64xf32>
    %889 = math.tanh %888 : vector<2x64xf32>
    %890 = arith.mulf %886, %867 : vector<2x64xf32>
    %891 = arith.mulf %885, %889 : vector<2x64xf32>
    %892 = arith.addf %890, %891 : vector<2x64xf32>
    %893 = math.tanh %892 : vector<2x64xf32>
    %894 = arith.mulf %887, %893 : vector<2x64xf32>
    %c4_438 = arith.constant 4 : index
    %c0_439 = arith.constant 0 : index
    %c0_440 = arith.constant 0 : index
    %c0_441 = arith.constant 0 : index
    %895 = vector.load %arg12[%c4_438, %c0_439, %c0_440, %c0_441] : memref<8x2x2x64xf32, #tpu.memory_space<vmem>>, vector<1x1x2x64xf32>
    %896 = vector.shape_cast %895 : vector<1x1x2x64xf32> to vector<2x64xf32>
    %c4_442 = arith.constant 4 : index
    %c1_443 = arith.constant 1 : index
    %c0_444 = arith.constant 0 : index
    %c0_445 = arith.constant 0 : index
    %897 = vector.load %arg12[%c4_442, %c1_443, %c0_444, %c0_445] : memref<8x2x2x64xf32, #tpu.memory_space<vmem>>, vector<1x1x2x64xf32>
    %898 = vector.shape_cast %897 : vector<1x1x2x64xf32> to vector<2x64xf32>
    %899 = tpu.concatenate %896, %898, %894 in 1 : vector<2x64xf32>, vector<2x64xf32>, vector<2x64xf32> -> vector<2x192xf32>
    %900 = arith.truncf %899 : vector<2x192xf32> to vector<2x192xbf16>
    %cst_446 = arith.constant dense<0.000000e+00> : vector<2x256xf32>
    %901 = tpu.matmul %900, %792, %cst_446 {dimension_numbers = #tpu.dot_dimension_numbers<[1], [0], [0], [1], [0, 0, 1, 1], [], []>} : vector<2x192xbf16>, vector<192x256xbf16>, vector<2x256xf32> -> vector<2x256xf32>
    %902 = vector.broadcast %794 : vector<1x256xf32> to vector<2x256xf32>
    %903 = arith.addf %901, %902 : vector<2x256xf32>
    %904 = vector.extract_strided_slice %903 {offsets = [0, 0], sizes = [2, 192], strides = [1, 1]} : vector<2x256xf32> to vector<2x192xf32>
    %905 = arith.negf %904 : vector<2x192xf32>
    %906 = math.exp %905 : vector<2x192xf32>
    %cst_447 = arith.constant 1.000000e+00 : f32
    %907 = vector.broadcast %cst_447 : f32 to vector<2x192xf32>
    %908 = arith.addf %907, %906 : vector<2x192xf32>
    %909 = arith.divf %907, %908 : vector<2x192xf32>
    %910 = vector.extract_strided_slice %909 {offsets = [0, 0], sizes = [2, 64], strides = [1, 1]} : vector<2x192xf32> to vector<2x64xf32>
    %911 = vector.extract_strided_slice %909 {offsets = [0, 64], sizes = [2, 64], strides = [1, 1]} : vector<2x192xf32> to vector<2x64xf32>
    %912 = vector.extract_strided_slice %909 {offsets = [0, 128], sizes = [2, 64], strides = [1, 1]} : vector<2x192xf32> to vector<2x64xf32>
    %913 = vector.extract_strided_slice %903 {offsets = [0, 192], sizes = [2, 64], strides = [1, 1]} : vector<2x256xf32> to vector<2x64xf32>
    %914 = math.tanh %913 : vector<2x64xf32>
    %915 = arith.mulf %911, %892 : vector<2x64xf32>
    %916 = arith.mulf %910, %914 : vector<2x64xf32>
    %917 = arith.addf %915, %916 : vector<2x64xf32>
    %918 = math.tanh %917 : vector<2x64xf32>
    %919 = arith.mulf %912, %918 : vector<2x64xf32>
    %c5_448 = arith.constant 5 : index
    %c0_449 = arith.constant 0 : index
    %c0_450 = arith.constant 0 : index
    %c0_451 = arith.constant 0 : index
    %920 = vector.load %arg12[%c5_448, %c0_449, %c0_450, %c0_451] : memref<8x2x2x64xf32, #tpu.memory_space<vmem>>, vector<1x1x2x64xf32>
    %921 = vector.shape_cast %920 : vector<1x1x2x64xf32> to vector<2x64xf32>
    %c5_452 = arith.constant 5 : index
    %c1_453 = arith.constant 1 : index
    %c0_454 = arith.constant 0 : index
    %c0_455 = arith.constant 0 : index
    %922 = vector.load %arg12[%c5_452, %c1_453, %c0_454, %c0_455] : memref<8x2x2x64xf32, #tpu.memory_space<vmem>>, vector<1x1x2x64xf32>
    %923 = vector.shape_cast %922 : vector<1x1x2x64xf32> to vector<2x64xf32>
    %924 = tpu.concatenate %921, %923, %919 in 1 : vector<2x64xf32>, vector<2x64xf32>, vector<2x64xf32> -> vector<2x192xf32>
    %925 = arith.truncf %924 : vector<2x192xf32> to vector<2x192xbf16>
    %cst_456 = arith.constant dense<0.000000e+00> : vector<2x256xf32>
    %926 = tpu.matmul %925, %792, %cst_456 {dimension_numbers = #tpu.dot_dimension_numbers<[1], [0], [0], [1], [0, 0, 1, 1], [], []>} : vector<2x192xbf16>, vector<192x256xbf16>, vector<2x256xf32> -> vector<2x256xf32>
    %927 = vector.broadcast %794 : vector<1x256xf32> to vector<2x256xf32>
    %928 = arith.addf %926, %927 : vector<2x256xf32>
    %929 = vector.extract_strided_slice %928 {offsets = [0, 0], sizes = [2, 192], strides = [1, 1]} : vector<2x256xf32> to vector<2x192xf32>
    %930 = arith.negf %929 : vector<2x192xf32>
    %931 = math.exp %930 : vector<2x192xf32>
    %cst_457 = arith.constant 1.000000e+00 : f32
    %932 = vector.broadcast %cst_457 : f32 to vector<2x192xf32>
    %933 = arith.addf %932, %931 : vector<2x192xf32>
    %934 = arith.divf %932, %933 : vector<2x192xf32>
    %935 = vector.extract_strided_slice %934 {offsets = [0, 0], sizes = [2, 64], strides = [1, 1]} : vector<2x192xf32> to vector<2x64xf32>
    %936 = vector.extract_strided_slice %934 {offsets = [0, 64], sizes = [2, 64], strides = [1, 1]} : vector<2x192xf32> to vector<2x64xf32>
    %937 = vector.extract_strided_slice %934 {offsets = [0, 128], sizes = [2, 64], strides = [1, 1]} : vector<2x192xf32> to vector<2x64xf32>
    %938 = vector.extract_strided_slice %928 {offsets = [0, 192], sizes = [2, 64], strides = [1, 1]} : vector<2x256xf32> to vector<2x64xf32>
    %939 = math.tanh %938 : vector<2x64xf32>
    %940 = arith.mulf %936, %917 : vector<2x64xf32>
    %941 = arith.mulf %935, %939 : vector<2x64xf32>
    %942 = arith.addf %940, %941 : vector<2x64xf32>
    %943 = math.tanh %942 : vector<2x64xf32>
    %944 = arith.mulf %937, %943 : vector<2x64xf32>
    %c6_458 = arith.constant 6 : index
    %c0_459 = arith.constant 0 : index
    %c0_460 = arith.constant 0 : index
    %c0_461 = arith.constant 0 : index
    %945 = vector.load %arg12[%c6_458, %c0_459, %c0_460, %c0_461] : memref<8x2x2x64xf32, #tpu.memory_space<vmem>>, vector<1x1x2x64xf32>
    %946 = vector.shape_cast %945 : vector<1x1x2x64xf32> to vector<2x64xf32>
    %c6_462 = arith.constant 6 : index
    %c1_463 = arith.constant 1 : index
    %c0_464 = arith.constant 0 : index
    %c0_465 = arith.constant 0 : index
    %947 = vector.load %arg12[%c6_462, %c1_463, %c0_464, %c0_465] : memref<8x2x2x64xf32, #tpu.memory_space<vmem>>, vector<1x1x2x64xf32>
    %948 = vector.shape_cast %947 : vector<1x1x2x64xf32> to vector<2x64xf32>
    %949 = tpu.concatenate %946, %948, %944 in 1 : vector<2x64xf32>, vector<2x64xf32>, vector<2x64xf32> -> vector<2x192xf32>
    %950 = arith.truncf %949 : vector<2x192xf32> to vector<2x192xbf16>
    %cst_466 = arith.constant dense<0.000000e+00> : vector<2x256xf32>
    %951 = tpu.matmul %950, %792, %cst_466 {dimension_numbers = #tpu.dot_dimension_numbers<[1], [0], [0], [1], [0, 0, 1, 1], [], []>} : vector<2x192xbf16>, vector<192x256xbf16>, vector<2x256xf32> -> vector<2x256xf32>
    %952 = vector.broadcast %794 : vector<1x256xf32> to vector<2x256xf32>
    %953 = arith.addf %951, %952 : vector<2x256xf32>
    %954 = vector.extract_strided_slice %953 {offsets = [0, 0], sizes = [2, 192], strides = [1, 1]} : vector<2x256xf32> to vector<2x192xf32>
    %955 = arith.negf %954 : vector<2x192xf32>
    %956 = math.exp %955 : vector<2x192xf32>
    %cst_467 = arith.constant 1.000000e+00 : f32
    %957 = vector.broadcast %cst_467 : f32 to vector<2x192xf32>
    %958 = arith.addf %957, %956 : vector<2x192xf32>
    %959 = arith.divf %957, %958 : vector<2x192xf32>
    %960 = vector.extract_strided_slice %959 {offsets = [0, 0], sizes = [2, 64], strides = [1, 1]} : vector<2x192xf32> to vector<2x64xf32>
    %961 = vector.extract_strided_slice %959 {offsets = [0, 64], sizes = [2, 64], strides = [1, 1]} : vector<2x192xf32> to vector<2x64xf32>
    %962 = vector.extract_strided_slice %959 {offsets = [0, 128], sizes = [2, 64], strides = [1, 1]} : vector<2x192xf32> to vector<2x64xf32>
    %963 = vector.extract_strided_slice %953 {offsets = [0, 192], sizes = [2, 64], strides = [1, 1]} : vector<2x256xf32> to vector<2x64xf32>
    %964 = math.tanh %963 : vector<2x64xf32>
    %965 = arith.mulf %961, %942 : vector<2x64xf32>
    %966 = arith.mulf %960, %964 : vector<2x64xf32>
    %967 = arith.addf %965, %966 : vector<2x64xf32>
    %968 = math.tanh %967 : vector<2x64xf32>
    %969 = arith.mulf %962, %968 : vector<2x64xf32>
    %c7_468 = arith.constant 7 : index
    %c0_469 = arith.constant 0 : index
    %c0_470 = arith.constant 0 : index
    %c0_471 = arith.constant 0 : index
    %970 = vector.load %arg12[%c7_468, %c0_469, %c0_470, %c0_471] : memref<8x2x2x64xf32, #tpu.memory_space<vmem>>, vector<1x1x2x64xf32>
    %971 = vector.shape_cast %970 : vector<1x1x2x64xf32> to vector<2x64xf32>
    %c7_472 = arith.constant 7 : index
    %c1_473 = arith.constant 1 : index
    %c0_474 = arith.constant 0 : index
    %c0_475 = arith.constant 0 : index
    %972 = vector.load %arg12[%c7_472, %c1_473, %c0_474, %c0_475] : memref<8x2x2x64xf32, #tpu.memory_space<vmem>>, vector<1x1x2x64xf32>
    %973 = vector.shape_cast %972 : vector<1x1x2x64xf32> to vector<2x64xf32>
    %974 = tpu.concatenate %971, %973, %969 in 1 : vector<2x64xf32>, vector<2x64xf32>, vector<2x64xf32> -> vector<2x192xf32>
    %975 = arith.truncf %974 : vector<2x192xf32> to vector<2x192xbf16>
    %cst_476 = arith.constant dense<0.000000e+00> : vector<2x256xf32>
    %976 = tpu.matmul %975, %792, %cst_476 {dimension_numbers = #tpu.dot_dimension_numbers<[1], [0], [0], [1], [0, 0, 1, 1], [], []>} : vector<2x192xbf16>, vector<192x256xbf16>, vector<2x256xf32> -> vector<2x256xf32>
    %977 = vector.broadcast %794 : vector<1x256xf32> to vector<2x256xf32>
    %978 = arith.addf %976, %977 : vector<2x256xf32>
    %979 = vector.extract_strided_slice %978 {offsets = [0, 0], sizes = [2, 192], strides = [1, 1]} : vector<2x256xf32> to vector<2x192xf32>
    %980 = arith.negf %979 : vector<2x192xf32>
    %981 = math.exp %980 : vector<2x192xf32>
    %cst_477 = arith.constant 1.000000e+00 : f32
    %982 = vector.broadcast %cst_477 : f32 to vector<2x192xf32>
    %983 = arith.addf %982, %981 : vector<2x192xf32>
    %984 = arith.divf %982, %983 : vector<2x192xf32>
    %985 = vector.extract_strided_slice %984 {offsets = [0, 0], sizes = [2, 64], strides = [1, 1]} : vector<2x192xf32> to vector<2x64xf32>
    %986 = vector.extract_strided_slice %984 {offsets = [0, 64], sizes = [2, 64], strides = [1, 1]} : vector<2x192xf32> to vector<2x64xf32>
    %987 = vector.extract_strided_slice %984 {offsets = [0, 128], sizes = [2, 64], strides = [1, 1]} : vector<2x192xf32> to vector<2x64xf32>
    %988 = vector.extract_strided_slice %978 {offsets = [0, 192], sizes = [2, 64], strides = [1, 1]} : vector<2x256xf32> to vector<2x64xf32>
    %989 = math.tanh %988 : vector<2x64xf32>
    %990 = arith.mulf %986, %967 : vector<2x64xf32>
    %991 = arith.mulf %985, %989 : vector<2x64xf32>
    %992 = arith.addf %990, %991 : vector<2x64xf32>
    %993 = math.tanh %992 : vector<2x64xf32>
    %994 = arith.mulf %987, %993 : vector<2x64xf32>
    %c0_478 = arith.constant 0 : index
    %c0_479 = arith.constant 0 : index
    %995 = vector.load %arg5[%c0_478, %c0_479] : memref<96x256xbf16, #tpu.memory_space<vmem>>, vector<96x256xbf16>
    %c0_480 = arith.constant 0 : index
    %c0_481 = arith.constant 0 : index
    %c0_482 = arith.constant 0 : index
    %996 = vector.load %arg6[%c0_480, %c0_481, %c0_482] : memref<3x128x256xbf16, #tpu.memory_space<vmem>>, vector<1x128x256xbf16>
    %997 = vector.shape_cast %996 : vector<1x128x256xbf16> to vector<128x256xbf16>
    %c1_483 = arith.constant 1 : index
    %c0_484 = arith.constant 0 : index
    %c0_485 = arith.constant 0 : index
    %998 = vector.load %arg6[%c1_483, %c0_484, %c0_485] : memref<3x128x256xbf16, #tpu.memory_space<vmem>>, vector<1x128x256xbf16>
    %999 = vector.shape_cast %998 : vector<1x128x256xbf16> to vector<128x256xbf16>
    %c2_486 = arith.constant 2 : index
    %c0_487 = arith.constant 0 : index
    %c0_488 = arith.constant 0 : index
    %1000 = vector.load %arg6[%c2_486, %c0_487, %c0_488] : memref<3x128x256xbf16, #tpu.memory_space<vmem>>, vector<1x128x256xbf16>
    %1001 = vector.shape_cast %1000 : vector<1x128x256xbf16> to vector<128x256xbf16>
    %c0_489 = arith.constant 0 : index
    %c0_490 = arith.constant 0 : index
    %c0_491 = arith.constant 0 : index
    %1002 = vector.load %arg7[%c0_489, %c0_490, %c0_491] : memref<4x1x256xf32, #tpu.memory_space<vmem>>, vector<1x1x256xf32>
    %1003 = vector.shape_cast %1002 : vector<1x1x256xf32> to vector<1x256xf32>
    %c1_492 = arith.constant 1 : index
    %c0_493 = arith.constant 0 : index
    %c0_494 = arith.constant 0 : index
    %1004 = vector.load %arg7[%c1_492, %c0_493, %c0_494] : memref<4x1x256xf32, #tpu.memory_space<vmem>>, vector<1x1x256xf32>
    %1005 = vector.shape_cast %1004 : vector<1x1x256xf32> to vector<1x256xf32>
    %c2_495 = arith.constant 2 : index
    %c0_496 = arith.constant 0 : index
    %c0_497 = arith.constant 0 : index
    %1006 = vector.load %arg7[%c2_495, %c0_496, %c0_497] : memref<4x1x256xf32, #tpu.memory_space<vmem>>, vector<1x1x256xf32>
    %1007 = vector.shape_cast %1006 : vector<1x1x256xf32> to vector<1x256xf32>
    %c3_498 = arith.constant 3 : index
    %c0_499 = arith.constant 0 : index
    %c0_500 = arith.constant 0 : index
    %1008 = vector.load %arg7[%c3_498, %c0_499, %c0_500] : memref<4x1x256xf32, #tpu.memory_space<vmem>>, vector<1x1x256xf32>
    %1009 = vector.shape_cast %1008 : vector<1x1x256xf32> to vector<1x256xf32>
    %c0_501 = arith.constant 0 : index
    %c0_502 = arith.constant 0 : index
    %1010 = vector.load %arg8[%c0_501, %c0_502] : memref<64x128xbf16, #tpu.memory_space<vmem>>, vector<64x128xbf16>
    %c0_503 = arith.constant 0 : index
    %c0_504 = arith.constant 0 : index
    %1011 = vector.load %arg9[%c0_503, %c0_504] : memref<1x128xf32, #tpu.memory_space<vmem>>, vector<1x128xf32>
    %1012 = tpu.concatenate %17, %280 in 1 : vector<2x32xf32>, vector<2x64xf32> -> vector<2x96xf32>
    %1013 = arith.truncf %1012 : vector<2x96xf32> to vector<2x96xbf16>
    %cst_505 = arith.constant dense<0.000000e+00> : vector<2x256xf32>
    %1014 = tpu.matmul %1013, %995, %cst_505 {dimension_numbers = #tpu.dot_dimension_numbers<[1], [0], [0], [1], [0, 0, 1, 1], [], []>} : vector<2x96xbf16>, vector<96x256xbf16>, vector<2x256xf32> -> vector<2x256xf32>
    %1015 = vector.broadcast %1003 : vector<1x256xf32> to vector<2x256xf32>
    %1016 = arith.addf %1014, %1015 : vector<2x256xf32>
    %1017 = vector.extract_strided_slice %1016 {offsets = [0, 0], sizes = [2, 192], strides = [1, 1]} : vector<2x256xf32> to vector<2x192xf32>
    %1018 = arith.negf %1017 : vector<2x192xf32>
    %1019 = math.exp %1018 : vector<2x192xf32>
    %cst_506 = arith.constant 1.000000e+00 : f32
    %1020 = vector.broadcast %cst_506 : f32 to vector<2x192xf32>
    %1021 = arith.addf %1020, %1019 : vector<2x192xf32>
    %1022 = arith.divf %1020, %1021 : vector<2x192xf32>
    %1023 = vector.extract_strided_slice %1022 {offsets = [0, 0], sizes = [2, 64], strides = [1, 1]} : vector<2x192xf32> to vector<2x64xf32>
    %1024 = vector.extract_strided_slice %1022 {offsets = [0, 64], sizes = [2, 64], strides = [1, 1]} : vector<2x192xf32> to vector<2x64xf32>
    %1025 = vector.extract_strided_slice %1022 {offsets = [0, 128], sizes = [2, 64], strides = [1, 1]} : vector<2x192xf32> to vector<2x64xf32>
    %1026 = vector.extract_strided_slice %1016 {offsets = [0, 192], sizes = [2, 64], strides = [1, 1]} : vector<2x256xf32> to vector<2x64xf32>
    %1027 = math.tanh %1026 : vector<2x64xf32>
    %1028 = arith.mulf %1024, %278 : vector<2x64xf32>
    %1029 = arith.mulf %1023, %1027 : vector<2x64xf32>
    %1030 = arith.addf %1028, %1029 : vector<2x64xf32>
    %1031 = math.tanh %1030 : vector<2x64xf32>
    %1032 = arith.mulf %1025, %1031 : vector<2x64xf32>
    %1033 = tpu.concatenate %1032, %532 in 1 : vector<2x64xf32>, vector<2x64xf32> -> vector<2x128xf32>
    %1034 = arith.truncf %1033 : vector<2x128xf32> to vector<2x128xbf16>
    %cst_507 = arith.constant dense<0.000000e+00> : vector<2x256xf32>
    %1035 = tpu.matmul %1034, %997, %cst_507 {dimension_numbers = #tpu.dot_dimension_numbers<[1], [0], [0], [1], [0, 0, 1, 1], [], []>} : vector<2x128xbf16>, vector<128x256xbf16>, vector<2x256xf32> -> vector<2x256xf32>
    %1036 = vector.broadcast %1005 : vector<1x256xf32> to vector<2x256xf32>
    %1037 = arith.addf %1035, %1036 : vector<2x256xf32>
    %1038 = vector.extract_strided_slice %1037 {offsets = [0, 0], sizes = [2, 192], strides = [1, 1]} : vector<2x256xf32> to vector<2x192xf32>
    %1039 = arith.negf %1038 : vector<2x192xf32>
    %1040 = math.exp %1039 : vector<2x192xf32>
    %cst_508 = arith.constant 1.000000e+00 : f32
    %1041 = vector.broadcast %cst_508 : f32 to vector<2x192xf32>
    %1042 = arith.addf %1041, %1040 : vector<2x192xf32>
    %1043 = arith.divf %1041, %1042 : vector<2x192xf32>
    %1044 = vector.extract_strided_slice %1043 {offsets = [0, 0], sizes = [2, 64], strides = [1, 1]} : vector<2x192xf32> to vector<2x64xf32>
    %1045 = vector.extract_strided_slice %1043 {offsets = [0, 64], sizes = [2, 64], strides = [1, 1]} : vector<2x192xf32> to vector<2x64xf32>
    %1046 = vector.extract_strided_slice %1043 {offsets = [0, 128], sizes = [2, 64], strides = [1, 1]} : vector<2x192xf32> to vector<2x64xf32>
    %1047 = vector.extract_strided_slice %1037 {offsets = [0, 192], sizes = [2, 64], strides = [1, 1]} : vector<2x256xf32> to vector<2x64xf32>
    %1048 = math.tanh %1047 : vector<2x64xf32>
    %1049 = arith.mulf %1045, %530 : vector<2x64xf32>
    %1050 = arith.mulf %1044, %1048 : vector<2x64xf32>
    %1051 = arith.addf %1049, %1050 : vector<2x64xf32>
    %1052 = math.tanh %1051 : vector<2x64xf32>
    %1053 = arith.mulf %1046, %1052 : vector<2x64xf32>
    %1054 = tpu.concatenate %1053, %784 in 1 : vector<2x64xf32>, vector<2x64xf32> -> vector<2x128xf32>
    %1055 = arith.truncf %1054 : vector<2x128xf32> to vector<2x128xbf16>
    %cst_509 = arith.constant dense<0.000000e+00> : vector<2x256xf32>
    %1056 = tpu.matmul %1055, %999, %cst_509 {dimension_numbers = #tpu.dot_dimension_numbers<[1], [0], [0], [1], [0, 0, 1, 1], [], []>} : vector<2x128xbf16>, vector<128x256xbf16>, vector<2x256xf32> -> vector<2x256xf32>
    %1057 = vector.broadcast %1007 : vector<1x256xf32> to vector<2x256xf32>
    %1058 = arith.addf %1056, %1057 : vector<2x256xf32>
    %1059 = vector.extract_strided_slice %1058 {offsets = [0, 0], sizes = [2, 192], strides = [1, 1]} : vector<2x256xf32> to vector<2x192xf32>
    %1060 = arith.negf %1059 : vector<2x192xf32>
    %1061 = math.exp %1060 : vector<2x192xf32>
    %cst_510 = arith.constant 1.000000e+00 : f32
    %1062 = vector.broadcast %cst_510 : f32 to vector<2x192xf32>
    %1063 = arith.addf %1062, %1061 : vector<2x192xf32>
    %1064 = arith.divf %1062, %1063 : vector<2x192xf32>
    %1065 = vector.extract_strided_slice %1064 {offsets = [0, 0], sizes = [2, 64], strides = [1, 1]} : vector<2x192xf32> to vector<2x64xf32>
    %1066 = vector.extract_strided_slice %1064 {offsets = [0, 64], sizes = [2, 64], strides = [1, 1]} : vector<2x192xf32> to vector<2x64xf32>
    %1067 = vector.extract_strided_slice %1064 {offsets = [0, 128], sizes = [2, 64], strides = [1, 1]} : vector<2x192xf32> to vector<2x64xf32>
    %1068 = vector.extract_strided_slice %1058 {offsets = [0, 192], sizes = [2, 64], strides = [1, 1]} : vector<2x256xf32> to vector<2x64xf32>
    %1069 = math.tanh %1068 : vector<2x64xf32>
    %1070 = arith.mulf %1066, %782 : vector<2x64xf32>
    %1071 = arith.mulf %1065, %1069 : vector<2x64xf32>
    %1072 = arith.addf %1070, %1071 : vector<2x64xf32>
    %1073 = math.tanh %1072 : vector<2x64xf32>
    %1074 = arith.mulf %1067, %1073 : vector<2x64xf32>
    %1075 = tpu.concatenate %1074, %994 in 1 : vector<2x64xf32>, vector<2x64xf32> -> vector<2x128xf32>
    %1076 = arith.truncf %1075 : vector<2x128xf32> to vector<2x128xbf16>
    %cst_511 = arith.constant dense<0.000000e+00> : vector<2x256xf32>
    %1077 = tpu.matmul %1076, %1001, %cst_511 {dimension_numbers = #tpu.dot_dimension_numbers<[1], [0], [0], [1], [0, 0, 1, 1], [], []>} : vector<2x128xbf16>, vector<128x256xbf16>, vector<2x256xf32> -> vector<2x256xf32>
    %1078 = vector.broadcast %1009 : vector<1x256xf32> to vector<2x256xf32>
    %1079 = arith.addf %1077, %1078 : vector<2x256xf32>
    %1080 = vector.extract_strided_slice %1079 {offsets = [0, 0], sizes = [2, 192], strides = [1, 1]} : vector<2x256xf32> to vector<2x192xf32>
    %1081 = arith.negf %1080 : vector<2x192xf32>
    %1082 = math.exp %1081 : vector<2x192xf32>
    %cst_512 = arith.constant 1.000000e+00 : f32
    %1083 = vector.broadcast %cst_512 : f32 to vector<2x192xf32>
    %1084 = arith.addf %1083, %1082 : vector<2x192xf32>
    %1085 = arith.divf %1083, %1084 : vector<2x192xf32>
    %1086 = vector.extract_strided_slice %1085 {offsets = [0, 0], sizes = [2, 64], strides = [1, 1]} : vector<2x192xf32> to vector<2x64xf32>
    %1087 = vector.extract_strided_slice %1085 {offsets = [0, 64], sizes = [2, 64], strides = [1, 1]} : vector<2x192xf32> to vector<2x64xf32>
    %1088 = vector.extract_strided_slice %1085 {offsets = [0, 128], sizes = [2, 64], strides = [1, 1]} : vector<2x192xf32> to vector<2x64xf32>
    %1089 = vector.extract_strided_slice %1079 {offsets = [0, 192], sizes = [2, 64], strides = [1, 1]} : vector<2x256xf32> to vector<2x64xf32>
    %1090 = math.tanh %1089 : vector<2x64xf32>
    %1091 = arith.mulf %1087, %992 : vector<2x64xf32>
    %1092 = arith.mulf %1086, %1090 : vector<2x64xf32>
    %1093 = arith.addf %1091, %1092 : vector<2x64xf32>
    %1094 = math.tanh %1093 : vector<2x64xf32>
    %1095 = arith.mulf %1088, %1094 : vector<2x64xf32>
    %1096 = arith.truncf %1095 : vector<2x64xf32> to vector<2x64xbf16>
    %cst_513 = arith.constant dense<0.000000e+00> : vector<2x128xf32>
    %1097 = tpu.matmul %1096, %1010, %cst_513 {dimension_numbers = #tpu.dot_dimension_numbers<[1], [0], [0], [1], [0, 0, 1, 1], [], []>} : vector<2x64xbf16>, vector<64x128xbf16>, vector<2x128xf32> -> vector<2x128xf32>
    %1098 = vector.broadcast %1011 : vector<1x128xf32> to vector<2x128xf32>
    %1099 = arith.addf %1097, %1098 : vector<2x128xf32>
    %c1_514 = arith.constant 1 : index
    %c0_515 = arith.constant 0 : index
    %c0_516 = arith.constant 0 : index
    %1100 = vector.load %arg10[%c1_514, %c0_515, %c0_516] : memref<8x2x128xf32, #tpu.memory_space<vmem>>, vector<1x2x128xf32>
    %1101 = vector.shape_cast %1100 : vector<1x2x128xf32> to vector<2x128xf32>
    %1102 = vector.shape_cast %1099 : vector<2x128xf32> to vector<1x2x128xf32>
    tpu.vector_store %arg10[%c1_514, %c0_515, %c0_516], %1102 {strides = array<i32>} : memref<8x2x128xf32, #tpu.memory_space<vmem>>, vector<1x2x128xf32>,
    %cst_517 = arith.constant dense<0xFF800000> : vector<2xf32>
    %1103 = vector.multi_reduction <maximumf>, %1099, %cst_517 [1] : vector<2x128xf32> to vector<2xf32>
    %1104 = vector.shape_cast %1103 : vector<2xf32> to vector<2x1xf32>
    %1105 = vector.broadcast %1104 : vector<2x1xf32> to vector<2x128xf32>
    %1106 = arith.cmpf oeq, %1099, %1105 : vector<2x128xf32>
    %c128_i32 = arith.constant 128 : i32
    %1107 = vector.broadcast %c128_i32 : i32 to vector<2x128xi32>
    %1108 = arith.select %1106, %2, %1107 : vector<2x128xi1>, vector<2x128xi32>
    %cst_518 = arith.constant dense<2147483647> : vector<2xi32>
    %1109 = vector.multi_reduction <minsi>, %1108, %cst_518 [1] : vector<2x128xi32> to vector<2xi32>
    %1110 = vector.shape_cast %1109 : vector<2xi32> to vector<2x1xi32>
    %1111 = vector.broadcast %1110 : vector<2x1xi32> to vector<2x128xi32>
    %1112 = arith.cmpi eq, %2, %1111 : vector<2x128xi32>
    %1113 = arith.extui %1112 : vector<2x128xi1> to vector<2x128xi32>
    %1114 = arith.sitofp %1113 : vector<2x128xi32> to vector<2x128xf32>
    %1115 = arith.truncf %1114 : vector<2x128xf32> to vector<2x128xbf16>
    %cst_519 = arith.constant dense<0.000000e+00> : vector<2x32xf32>
    %1116 = tpu.matmul %1115, %1, %cst_519 {dimension_numbers = #tpu.dot_dimension_numbers<[1], [0], [0], [1], [0, 0, 1, 1], [], []>} : vector<2x128xbf16>, vector<128x32xbf16>, vector<2x32xf32> -> vector<2x32xf32>
    %1117 = tpu.concatenate %1116, %1032 in 1 : vector<2x32xf32>, vector<2x64xf32> -> vector<2x96xf32>
    %1118 = arith.truncf %1117 : vector<2x96xf32> to vector<2x96xbf16>
    %cst_520 = arith.constant dense<0.000000e+00> : vector<2x256xf32>
    %1119 = tpu.matmul %1118, %995, %cst_520 {dimension_numbers = #tpu.dot_dimension_numbers<[1], [0], [0], [1], [0, 0, 1, 1], [], []>} : vector<2x96xbf16>, vector<96x256xbf16>, vector<2x256xf32> -> vector<2x256xf32>
    %1120 = vector.broadcast %1003 : vector<1x256xf32> to vector<2x256xf32>
    %1121 = arith.addf %1119, %1120 : vector<2x256xf32>
    %1122 = vector.extract_strided_slice %1121 {offsets = [0, 0], sizes = [2, 192], strides = [1, 1]} : vector<2x256xf32> to vector<2x192xf32>
    %1123 = arith.negf %1122 : vector<2x192xf32>
    %1124 = math.exp %1123 : vector<2x192xf32>
    %cst_521 = arith.constant 1.000000e+00 : f32
    %1125 = vector.broadcast %cst_521 : f32 to vector<2x192xf32>
    %1126 = arith.addf %1125, %1124 : vector<2x192xf32>
    %1127 = arith.divf %1125, %1126 : vector<2x192xf32>
    %1128 = vector.extract_strided_slice %1127 {offsets = [0, 0], sizes = [2, 64], strides = [1, 1]} : vector<2x192xf32> to vector<2x64xf32>
    %1129 = vector.extract_strided_slice %1127 {offsets = [0, 64], sizes = [2, 64], strides = [1, 1]} : vector<2x192xf32> to vector<2x64xf32>
    %1130 = vector.extract_strided_slice %1127 {offsets = [0, 128], sizes = [2, 64], strides = [1, 1]} : vector<2x192xf32> to vector<2x64xf32>
    %1131 = vector.extract_strided_slice %1121 {offsets = [0, 192], sizes = [2, 64], strides = [1, 1]} : vector<2x256xf32> to vector<2x64xf32>
    %1132 = math.tanh %1131 : vector<2x64xf32>
    %1133 = arith.mulf %1129, %1030 : vector<2x64xf32>
    %1134 = arith.mulf %1128, %1132 : vector<2x64xf32>
    %1135 = arith.addf %1133, %1134 : vector<2x64xf32>
    %1136 = math.tanh %1135 : vector<2x64xf32>
    %1137 = arith.mulf %1130, %1136 : vector<2x64xf32>
    %1138 = tpu.concatenate %1137, %1053 in 1 : vector<2x64xf32>, vector<2x64xf32> -> vector<2x128xf32>
    %1139 = arith.truncf %1138 : vector<2x128xf32> to vector<2x128xbf16>
    %cst_522 = arith.constant dense<0.000000e+00> : vector<2x256xf32>
    %1140 = tpu.matmul %1139, %997, %cst_522 {dimension_numbers = #tpu.dot_dimension_numbers<[1], [0], [0], [1], [0, 0, 1, 1], [], []>} : vector<2x128xbf16>, vector<128x256xbf16>, vector<2x256xf32> -> vector<2x256xf32>
    %1141 = vector.broadcast %1005 : vector<1x256xf32> to vector<2x256xf32>
    %1142 = arith.addf %1140, %1141 : vector<2x256xf32>
    %1143 = vector.extract_strided_slice %1142 {offsets = [0, 0], sizes = [2, 192], strides = [1, 1]} : vector<2x256xf32> to vector<2x192xf32>
    %1144 = arith.negf %1143 : vector<2x192xf32>
    %1145 = math.exp %1144 : vector<2x192xf32>
    %cst_523 = arith.constant 1.000000e+00 : f32
    %1146 = vector.broadcast %cst_523 : f32 to vector<2x192xf32>
    %1147 = arith.addf %1146, %1145 : vector<2x192xf32>
    %1148 = arith.divf %1146, %1147 : vector<2x192xf32>
    %1149 = vector.extract_strided_slice %1148 {offsets = [0, 0], sizes = [2, 64], strides = [1, 1]} : vector<2x192xf32> to vector<2x64xf32>
    %1150 = vector.extract_strided_slice %1148 {offsets = [0, 64], sizes = [2, 64], strides = [1, 1]} : vector<2x192xf32> to vector<2x64xf32>
    %1151 = vector.extract_strided_slice %1148 {offsets = [0, 128], sizes = [2, 64], strides = [1, 1]} : vector<2x192xf32> to vector<2x64xf32>
    %1152 = vector.extract_strided_slice %1142 {offsets = [0, 192], sizes = [2, 64], strides = [1, 1]} : vector<2x256xf32> to vector<2x64xf32>
    %1153 = math.tanh %1152 : vector<2x64xf32>
    %1154 = arith.mulf %1150, %1051 : vector<2x64xf32>
    %1155 = arith.mulf %1149, %1153 : vector<2x64xf32>
    %1156 = arith.addf %1154, %1155 : vector<2x64xf32>
    %1157 = math.tanh %1156 : vector<2x64xf32>
    %1158 = arith.mulf %1151, %1157 : vector<2x64xf32>
    %1159 = tpu.concatenate %1158, %1074 in 1 : vector<2x64xf32>, vector<2x64xf32> -> vector<2x128xf32>
    %1160 = arith.truncf %1159 : vector<2x128xf32> to vector<2x128xbf16>
    %cst_524 = arith.constant dense<0.000000e+00> : vector<2x256xf32>
    %1161 = tpu.matmul %1160, %999, %cst_524 {dimension_numbers = #tpu.dot_dimension_numbers<[1], [0], [0], [1], [0, 0, 1, 1], [], []>} : vector<2x128xbf16>, vector<128x256xbf16>, vector<2x256xf32> -> vector<2x256xf32>
    %1162 = vector.broadcast %1007 : vector<1x256xf32> to vector<2x256xf32>
    %1163 = arith.addf %1161, %1162 : vector<2x256xf32>
    %1164 = vector.extract_strided_slice %1163 {offsets = [0, 0], sizes = [2, 192], strides = [1, 1]} : vector<2x256xf32> to vector<2x192xf32>
    %1165 = arith.negf %1164 : vector<2x192xf32>
    %1166 = math.exp %1165 : vector<2x192xf32>
    %cst_525 = arith.constant 1.000000e+00 : f32
    %1167 = vector.broadcast %cst_525 : f32 to vector<2x192xf32>
    %1168 = arith.addf %1167, %1166 : vector<2x192xf32>
    %1169 = arith.divf %1167, %1168 : vector<2x192xf32>
    %1170 = vector.extract_strided_slice %1169 {offsets = [0, 0], sizes = [2, 64], strides = [1, 1]} : vector<2x192xf32> to vector<2x64xf32>
    %1171 = vector.extract_strided_slice %1169 {offsets = [0, 64], sizes = [2, 64], strides = [1, 1]} : vector<2x192xf32> to vector<2x64xf32>
    %1172 = vector.extract_strided_slice %1169 {offsets = [0, 128], sizes = [2, 64], strides = [1, 1]} : vector<2x192xf32> to vector<2x64xf32>
    %1173 = vector.extract_strided_slice %1163 {offsets = [0, 192], sizes = [2, 64], strides = [1, 1]} : vector<2x256xf32> to vector<2x64xf32>
    %1174 = math.tanh %1173 : vector<2x64xf32>
    %1175 = arith.mulf %1171, %1072 : vector<2x64xf32>
    %1176 = arith.mulf %1170, %1174 : vector<2x64xf32>
    %1177 = arith.addf %1175, %1176 : vector<2x64xf32>
    %1178 = math.tanh %1177 : vector<2x64xf32>
    %1179 = arith.mulf %1172, %1178 : vector<2x64xf32>
    %1180 = tpu.concatenate %1179, %1095 in 1 : vector<2x64xf32>, vector<2x64xf32> -> vector<2x128xf32>
    %1181 = arith.truncf %1180 : vector<2x128xf32> to vector<2x128xbf16>
    %cst_526 = arith.constant dense<0.000000e+00> : vector<2x256xf32>
    %1182 = tpu.matmul %1181, %1001, %cst_526 {dimension_numbers = #tpu.dot_dimension_numbers<[1], [0], [0], [1], [0, 0, 1, 1], [], []>} : vector<2x128xbf16>, vector<128x256xbf16>, vector<2x256xf32> -> vector<2x256xf32>
    %1183 = vector.broadcast %1009 : vector<1x256xf32> to vector<2x256xf32>
    %1184 = arith.addf %1182, %1183 : vector<2x256xf32>
    %1185 = vector.extract_strided_slice %1184 {offsets = [0, 0], sizes = [2, 192], strides = [1, 1]} : vector<2x256xf32> to vector<2x192xf32>
    %1186 = arith.negf %1185 : vector<2x192xf32>
    %1187 = math.exp %1186 : vector<2x192xf32>
    %cst_527 = arith.constant 1.000000e+00 : f32
    %1188 = vector.broadcast %cst_527 : f32 to vector<2x192xf32>
    %1189 = arith.addf %1188, %1187 : vector<2x192xf32>
    %1190 = arith.divf %1188, %1189 : vector<2x192xf32>
    %1191 = vector.extract_strided_slice %1190 {offsets = [0, 0], sizes = [2, 64], strides = [1, 1]} : vector<2x192xf32> to vector<2x64xf32>
    %1192 = vector.extract_strided_slice %1190 {offsets = [0, 64], sizes = [2, 64], strides = [1, 1]} : vector<2x192xf32> to vector<2x64xf32>
    %1193 = vector.extract_strided_slice %1190 {offsets = [0, 128], sizes = [2, 64], strides = [1, 1]} : vector<2x192xf32> to vector<2x64xf32>
    %1194 = vector.extract_strided_slice %1184 {offsets = [0, 192], sizes = [2, 64], strides = [1, 1]} : vector<2x256xf32> to vector<2x64xf32>
    %1195 = math.tanh %1194 : vector<2x64xf32>
    %1196 = arith.mulf %1192, %1093 : vector<2x64xf32>
    %1197 = arith.mulf %1191, %1195 : vector<2x64xf32>
    %1198 = arith.addf %1196, %1197 : vector<2x64xf32>
    %1199 = math.tanh %1198 : vector<2x64xf32>
    %1200 = arith.mulf %1193, %1199 : vector<2x64xf32>
    %1201 = arith.truncf %1200 : vector<2x64xf32> to vector<2x64xbf16>
    %cst_528 = arith.constant dense<0.000000e+00> : vector<2x128xf32>
    %1202 = tpu.matmul %1201, %1010, %cst_528 {dimension_numbers = #tpu.dot_dimension_numbers<[1], [0], [0], [1], [0, 0, 1, 1], [], []>} : vector<2x64xbf16>, vector<64x128xbf16>, vector<2x128xf32> -> vector<2x128xf32>
    %1203 = vector.broadcast %1011 : vector<1x128xf32> to vector<2x128xf32>
    %1204 = arith.addf %1202, %1203 : vector<2x128xf32>
    %c2_529 = arith.constant 2 : index
    %c0_530 = arith.constant 0 : index
    %c0_531 = arith.constant 0 : index
    %1205 = vector.load %arg10[%c2_529, %c0_530, %c0_531] : memref<8x2x128xf32, #tpu.memory_space<vmem>>, vector<1x2x128xf32>
    %1206 = vector.shape_cast %1205 : vector<1x2x128xf32> to vector<2x128xf32>
    %1207 = vector.shape_cast %1204 : vector<2x128xf32> to vector<1x2x128xf32>
    tpu.vector_store %arg10[%c2_529, %c0_530, %c0_531], %1207 {strides = array<i32>} : memref<8x2x128xf32, #tpu.memory_space<vmem>>, vector<1x2x128xf32>,
    %cst_532 = arith.constant dense<0xFF800000> : vector<2xf32>
    %1208 = vector.multi_reduction <maximumf>, %1204, %cst_532 [1] : vector<2x128xf32> to vector<2xf32>
    %1209 = vector.shape_cast %1208 : vector<2xf32> to vector<2x1xf32>
    %1210 = vector.broadcast %1209 : vector<2x1xf32> to vector<2x128xf32>
    %1211 = arith.cmpf oeq, %1204, %1210 : vector<2x128xf32>
    %c128_i32_533 = arith.constant 128 : i32
    %1212 = vector.broadcast %c128_i32_533 : i32 to vector<2x128xi32>
    %1213 = arith.select %1211, %2, %1212 : vector<2x128xi1>, vector<2x128xi32>
    %cst_534 = arith.constant dense<2147483647> : vector<2xi32>
    %1214 = vector.multi_reduction <minsi>, %1213, %cst_534 [1] : vector<2x128xi32> to vector<2xi32>
    %1215 = vector.shape_cast %1214 : vector<2xi32> to vector<2x1xi32>
    %1216 = vector.broadcast %1215 : vector<2x1xi32> to vector<2x128xi32>
    %1217 = arith.cmpi eq, %2, %1216 : vector<2x128xi32>
    %1218 = arith.extui %1217 : vector<2x128xi1> to vector<2x128xi32>
    %1219 = arith.sitofp %1218 : vector<2x128xi32> to vector<2x128xf32>
    %1220 = arith.truncf %1219 : vector<2x128xf32> to vector<2x128xbf16>
    %cst_535 = arith.constant dense<0.000000e+00> : vector<2x32xf32>
    %1221 = tpu.matmul %1220, %1, %cst_535 {dimension_numbers = #tpu.dot_dimension_numbers<[1], [0], [0], [1], [0, 0, 1, 1], [], []>} : vector<2x128xbf16>, vector<128x32xbf16>, vector<2x32xf32> -> vector<2x32xf32>
    %1222 = tpu.concatenate %1221, %1137 in 1 : vector<2x32xf32>, vector<2x64xf32> -> vector<2x96xf32>
    %1223 = arith.truncf %1222 : vector<2x96xf32> to vector<2x96xbf16>
    %cst_536 = arith.constant dense<0.000000e+00> : vector<2x256xf32>
    %1224 = tpu.matmul %1223, %995, %cst_536 {dimension_numbers = #tpu.dot_dimension_numbers<[1], [0], [0], [1], [0, 0, 1, 1], [], []>} : vector<2x96xbf16>, vector<96x256xbf16>, vector<2x256xf32> -> vector<2x256xf32>
    %1225 = vector.broadcast %1003 : vector<1x256xf32> to vector<2x256xf32>
    %1226 = arith.addf %1224, %1225 : vector<2x256xf32>
    %1227 = vector.extract_strided_slice %1226 {offsets = [0, 0], sizes = [2, 192], strides = [1, 1]} : vector<2x256xf32> to vector<2x192xf32>
    %1228 = arith.negf %1227 : vector<2x192xf32>
    %1229 = math.exp %1228 : vector<2x192xf32>
    %cst_537 = arith.constant 1.000000e+00 : f32
    %1230 = vector.broadcast %cst_537 : f32 to vector<2x192xf32>
    %1231 = arith.addf %1230, %1229 : vector<2x192xf32>
    %1232 = arith.divf %1230, %1231 : vector<2x192xf32>
    %1233 = vector.extract_strided_slice %1232 {offsets = [0, 0], sizes = [2, 64], strides = [1, 1]} : vector<2x192xf32> to vector<2x64xf32>
    %1234 = vector.extract_strided_slice %1232 {offsets = [0, 64], sizes = [2, 64], strides = [1, 1]} : vector<2x192xf32> to vector<2x64xf32>
    %1235 = vector.extract_strided_slice %1232 {offsets = [0, 128], sizes = [2, 64], strides = [1, 1]} : vector<2x192xf32> to vector<2x64xf32>
    %1236 = vector.extract_strided_slice %1226 {offsets = [0, 192], sizes = [2, 64], strides = [1, 1]} : vector<2x256xf32> to vector<2x64xf32>
    %1237 = math.tanh %1236 : vector<2x64xf32>
    %1238 = arith.mulf %1234, %1135 : vector<2x64xf32>
    %1239 = arith.mulf %1233, %1237 : vector<2x64xf32>
    %1240 = arith.addf %1238, %1239 : vector<2x64xf32>
    %1241 = math.tanh %1240 : vector<2x64xf32>
    %1242 = arith.mulf %1235, %1241 : vector<2x64xf32>
    %1243 = tpu.concatenate %1242, %1158 in 1 : vector<2x64xf32>, vector<2x64xf32> -> vector<2x128xf32>
    %1244 = arith.truncf %1243 : vector<2x128xf32> to vector<2x128xbf16>
    %cst_538 = arith.constant dense<0.000000e+00> : vector<2x256xf32>
    %1245 = tpu.matmul %1244, %997, %cst_538 {dimension_numbers = #tpu.dot_dimension_numbers<[1], [0], [0], [1], [0, 0, 1, 1], [], []>} : vector<2x128xbf16>, vector<128x256xbf16>, vector<2x256xf32> -> vector<2x256xf32>
    %1246 = vector.broadcast %1005 : vector<1x256xf32> to vector<2x256xf32>
    %1247 = arith.addf %1245, %1246 : vector<2x256xf32>
    %1248 = vector.extract_strided_slice %1247 {offsets = [0, 0], sizes = [2, 192], strides = [1, 1]} : vector<2x256xf32> to vector<2x192xf32>
    %1249 = arith.negf %1248 : vector<2x192xf32>
    %1250 = math.exp %1249 : vector<2x192xf32>
    %cst_539 = arith.constant 1.000000e+00 : f32
    %1251 = vector.broadcast %cst_539 : f32 to vector<2x192xf32>
    %1252 = arith.addf %1251, %1250 : vector<2x192xf32>
    %1253 = arith.divf %1251, %1252 : vector<2x192xf32>
    %1254 = vector.extract_strided_slice %1253 {offsets = [0, 0], sizes = [2, 64], strides = [1, 1]} : vector<2x192xf32> to vector<2x64xf32>
    %1255 = vector.extract_strided_slice %1253 {offsets = [0, 64], sizes = [2, 64], strides = [1, 1]} : vector<2x192xf32> to vector<2x64xf32>
    %1256 = vector.extract_strided_slice %1253 {offsets = [0, 128], sizes = [2, 64], strides = [1, 1]} : vector<2x192xf32> to vector<2x64xf32>
    %1257 = vector.extract_strided_slice %1247 {offsets = [0, 192], sizes = [2, 64], strides = [1, 1]} : vector<2x256xf32> to vector<2x64xf32>
    %1258 = math.tanh %1257 : vector<2x64xf32>
    %1259 = arith.mulf %1255, %1156 : vector<2x64xf32>
    %1260 = arith.mulf %1254, %1258 : vector<2x64xf32>
    %1261 = arith.addf %1259, %1260 : vector<2x64xf32>
    %1262 = math.tanh %1261 : vector<2x64xf32>
    %1263 = arith.mulf %1256, %1262 : vector<2x64xf32>
    %1264 = tpu.concatenate %1263, %1179 in 1 : vector<2x64xf32>, vector<2x64xf32> -> vector<2x128xf32>
    %1265 = arith.truncf %1264 : vector<2x128xf32> to vector<2x128xbf16>
    %cst_540 = arith.constant dense<0.000000e+00> : vector<2x256xf32>
    %1266 = tpu.matmul %1265, %999, %cst_540 {dimension_numbers = #tpu.dot_dimension_numbers<[1], [0], [0], [1], [0, 0, 1, 1], [], []>} : vector<2x128xbf16>, vector<128x256xbf16>, vector<2x256xf32> -> vector<2x256xf32>
    %1267 = vector.broadcast %1007 : vector<1x256xf32> to vector<2x256xf32>
    %1268 = arith.addf %1266, %1267 : vector<2x256xf32>
    %1269 = vector.extract_strided_slice %1268 {offsets = [0, 0], sizes = [2, 192], strides = [1, 1]} : vector<2x256xf32> to vector<2x192xf32>
    %1270 = arith.negf %1269 : vector<2x192xf32>
    %1271 = math.exp %1270 : vector<2x192xf32>
    %cst_541 = arith.constant 1.000000e+00 : f32
    %1272 = vector.broadcast %cst_541 : f32 to vector<2x192xf32>
    %1273 = arith.addf %1272, %1271 : vector<2x192xf32>
    %1274 = arith.divf %1272, %1273 : vector<2x192xf32>
    %1275 = vector.extract_strided_slice %1274 {offsets = [0, 0], sizes = [2, 64], strides = [1, 1]} : vector<2x192xf32> to vector<2x64xf32>
    %1276 = vector.extract_strided_slice %1274 {offsets = [0, 64], sizes = [2, 64], strides = [1, 1]} : vector<2x192xf32> to vector<2x64xf32>
    %1277 = vector.extract_strided_slice %1274 {offsets = [0, 128], sizes = [2, 64], strides = [1, 1]} : vector<2x192xf32> to vector<2x64xf32>
    %1278 = vector.extract_strided_slice %1268 {offsets = [0, 192], sizes = [2, 64], strides = [1, 1]} : vector<2x256xf32> to vector<2x64xf32>
    %1279 = math.tanh %1278 : vector<2x64xf32>
    %1280 = arith.mulf %1276, %1177 : vector<2x64xf32>
    %1281 = arith.mulf %1275, %1279 : vector<2x64xf32>
    %1282 = arith.addf %1280, %1281 : vector<2x64xf32>
    %1283 = math.tanh %1282 : vector<2x64xf32>
    %1284 = arith.mulf %1277, %1283 : vector<2x64xf32>
    %1285 = tpu.concatenate %1284, %1200 in 1 : vector<2x64xf32>, vector<2x64xf32> -> vector<2x128xf32>
    %1286 = arith.truncf %1285 : vector<2x128xf32> to vector<2x128xbf16>
    %cst_542 = arith.constant dense<0.000000e+00> : vector<2x256xf32>
    %1287 = tpu.matmul %1286, %1001, %cst_542 {dimension_numbers = #tpu.dot_dimension_numbers<[1], [0], [0], [1], [0, 0, 1, 1], [], []>} : vector<2x128xbf16>, vector<128x256xbf16>, vector<2x256xf32> -> vector<2x256xf32>
    %1288 = vector.broadcast %1009 : vector<1x256xf32> to vector<2x256xf32>
    %1289 = arith.addf %1287, %1288 : vector<2x256xf32>
    %1290 = vector.extract_strided_slice %1289 {offsets = [0, 0], sizes = [2, 192], strides = [1, 1]} : vector<2x256xf32> to vector<2x192xf32>
    %1291 = arith.negf %1290 : vector<2x192xf32>
    %1292 = math.exp %1291 : vector<2x192xf32>
    %cst_543 = arith.constant 1.000000e+00 : f32
    %1293 = vector.broadcast %cst_543 : f32 to vector<2x192xf32>
    %1294 = arith.addf %1293, %1292 : vector<2x192xf32>
    %1295 = arith.divf %1293, %1294 : vector<2x192xf32>
    %1296 = vector.extract_strided_slice %1295 {offsets = [0, 0], sizes = [2, 64], strides = [1, 1]} : vector<2x192xf32> to vector<2x64xf32>
    %1297 = vector.extract_strided_slice %1295 {offsets = [0, 64], sizes = [2, 64], strides = [1, 1]} : vector<2x192xf32> to vector<2x64xf32>
    %1298 = vector.extract_strided_slice %1295 {offsets = [0, 128], sizes = [2, 64], strides = [1, 1]} : vector<2x192xf32> to vector<2x64xf32>
    %1299 = vector.extract_strided_slice %1289 {offsets = [0, 192], sizes = [2, 64], strides = [1, 1]} : vector<2x256xf32> to vector<2x64xf32>
    %1300 = math.tanh %1299 : vector<2x64xf32>
    %1301 = arith.mulf %1297, %1198 : vector<2x64xf32>
    %1302 = arith.mulf %1296, %1300 : vector<2x64xf32>
    %1303 = arith.addf %1301, %1302 : vector<2x64xf32>
    %1304 = math.tanh %1303 : vector<2x64xf32>
    %1305 = arith.mulf %1298, %1304 : vector<2x64xf32>
    %1306 = arith.truncf %1305 : vector<2x64xf32> to vector<2x64xbf16>
    %cst_544 = arith.constant dense<0.000000e+00> : vector<2x128xf32>
    %1307 = tpu.matmul %1306, %1010, %cst_544 {dimension_numbers = #tpu.dot_dimension_numbers<[1], [0], [0], [1], [0, 0, 1, 1], [], []>} : vector<2x64xbf16>, vector<64x128xbf16>, vector<2x128xf32> -> vector<2x128xf32>
    %1308 = vector.broadcast %1011 : vector<1x128xf32> to vector<2x128xf32>
    %1309 = arith.addf %1307, %1308 : vector<2x128xf32>
    %c3_545 = arith.constant 3 : index
    %c0_546 = arith.constant 0 : index
    %c0_547 = arith.constant 0 : index
    %1310 = vector.load %arg10[%c3_545, %c0_546, %c0_547] : memref<8x2x128xf32, #tpu.memory_space<vmem>>, vector<1x2x128xf32>
    %1311 = vector.shape_cast %1310 : vector<1x2x128xf32> to vector<2x128xf32>
    %1312 = vector.shape_cast %1309 : vector<2x128xf32> to vector<1x2x128xf32>
    tpu.vector_store %arg10[%c3_545, %c0_546, %c0_547], %1312 {strides = array<i32>} : memref<8x2x128xf32, #tpu.memory_space<vmem>>, vector<1x2x128xf32>,
    %cst_548 = arith.constant dense<0xFF800000> : vector<2xf32>
    %1313 = vector.multi_reduction <maximumf>, %1309, %cst_548 [1] : vector<2x128xf32> to vector<2xf32>
    %1314 = vector.shape_cast %1313 : vector<2xf32> to vector<2x1xf32>
    %1315 = vector.broadcast %1314 : vector<2x1xf32> to vector<2x128xf32>
    %1316 = arith.cmpf oeq, %1309, %1315 : vector<2x128xf32>
    %c128_i32_549 = arith.constant 128 : i32
    %1317 = vector.broadcast %c128_i32_549 : i32 to vector<2x128xi32>
    %1318 = arith.select %1316, %2, %1317 : vector<2x128xi1>, vector<2x128xi32>
    %cst_550 = arith.constant dense<2147483647> : vector<2xi32>
    %1319 = vector.multi_reduction <minsi>, %1318, %cst_550 [1] : vector<2x128xi32> to vector<2xi32>
    %1320 = vector.shape_cast %1319 : vector<2xi32> to vector<2x1xi32>
    %1321 = vector.broadcast %1320 : vector<2x1xi32> to vector<2x128xi32>
    %1322 = arith.cmpi eq, %2, %1321 : vector<2x128xi32>
    %1323 = arith.extui %1322 : vector<2x128xi1> to vector<2x128xi32>
    %1324 = arith.sitofp %1323 : vector<2x128xi32> to vector<2x128xf32>
    %1325 = arith.truncf %1324 : vector<2x128xf32> to vector<2x128xbf16>
    %cst_551 = arith.constant dense<0.000000e+00> : vector<2x32xf32>
    %1326 = tpu.matmul %1325, %1, %cst_551 {dimension_numbers = #tpu.dot_dimension_numbers<[1], [0], [0], [1], [0, 0, 1, 1], [], []>} : vector<2x128xbf16>, vector<128x32xbf16>, vector<2x32xf32> -> vector<2x32xf32>
    %1327 = tpu.concatenate %1326, %1242 in 1 : vector<2x32xf32>, vector<2x64xf32> -> vector<2x96xf32>
    %1328 = arith.truncf %1327 : vector<2x96xf32> to vector<2x96xbf16>
    %cst_552 = arith.constant dense<0.000000e+00> : vector<2x256xf32>
    %1329 = tpu.matmul %1328, %995, %cst_552 {dimension_numbers = #tpu.dot_dimension_numbers<[1], [0], [0], [1], [0, 0, 1, 1], [], []>} : vector<2x96xbf16>, vector<96x256xbf16>, vector<2x256xf32> -> vector<2x256xf32>
    %1330 = vector.broadcast %1003 : vector<1x256xf32> to vector<2x256xf32>
    %1331 = arith.addf %1329, %1330 : vector<2x256xf32>
    %1332 = vector.extract_strided_slice %1331 {offsets = [0, 0], sizes = [2, 192], strides = [1, 1]} : vector<2x256xf32> to vector<2x192xf32>
    %1333 = arith.negf %1332 : vector<2x192xf32>
    %1334 = math.exp %1333 : vector<2x192xf32>
    %cst_553 = arith.constant 1.000000e+00 : f32
    %1335 = vector.broadcast %cst_553 : f32 to vector<2x192xf32>
    %1336 = arith.addf %1335, %1334 : vector<2x192xf32>
    %1337 = arith.divf %1335, %1336 : vector<2x192xf32>
    %1338 = vector.extract_strided_slice %1337 {offsets = [0, 0], sizes = [2, 64], strides = [1, 1]} : vector<2x192xf32> to vector<2x64xf32>
    %1339 = vector.extract_strided_slice %1337 {offsets = [0, 64], sizes = [2, 64], strides = [1, 1]} : vector<2x192xf32> to vector<2x64xf32>
    %1340 = vector.extract_strided_slice %1337 {offsets = [0, 128], sizes = [2, 64], strides = [1, 1]} : vector<2x192xf32> to vector<2x64xf32>
    %1341 = vector.extract_strided_slice %1331 {offsets = [0, 192], sizes = [2, 64], strides = [1, 1]} : vector<2x256xf32> to vector<2x64xf32>
    %1342 = math.tanh %1341 : vector<2x64xf32>
    %1343 = arith.mulf %1339, %1240 : vector<2x64xf32>
    %1344 = arith.mulf %1338, %1342 : vector<2x64xf32>
    %1345 = arith.addf %1343, %1344 : vector<2x64xf32>
    %1346 = math.tanh %1345 : vector<2x64xf32>
    %1347 = arith.mulf %1340, %1346 : vector<2x64xf32>
    %1348 = tpu.concatenate %1347, %1263 in 1 : vector<2x64xf32>, vector<2x64xf32> -> vector<2x128xf32>
    %1349 = arith.truncf %1348 : vector<2x128xf32> to vector<2x128xbf16>
    %cst_554 = arith.constant dense<0.000000e+00> : vector<2x256xf32>
    %1350 = tpu.matmul %1349, %997, %cst_554 {dimension_numbers = #tpu.dot_dimension_numbers<[1], [0], [0], [1], [0, 0, 1, 1], [], []>} : vector<2x128xbf16>, vector<128x256xbf16>, vector<2x256xf32> -> vector<2x256xf32>
    %1351 = vector.broadcast %1005 : vector<1x256xf32> to vector<2x256xf32>
    %1352 = arith.addf %1350, %1351 : vector<2x256xf32>
    %1353 = vector.extract_strided_slice %1352 {offsets = [0, 0], sizes = [2, 192], strides = [1, 1]} : vector<2x256xf32> to vector<2x192xf32>
    %1354 = arith.negf %1353 : vector<2x192xf32>
    %1355 = math.exp %1354 : vector<2x192xf32>
    %cst_555 = arith.constant 1.000000e+00 : f32
    %1356 = vector.broadcast %cst_555 : f32 to vector<2x192xf32>
    %1357 = arith.addf %1356, %1355 : vector<2x192xf32>
    %1358 = arith.divf %1356, %1357 : vector<2x192xf32>
    %1359 = vector.extract_strided_slice %1358 {offsets = [0, 0], sizes = [2, 64], strides = [1, 1]} : vector<2x192xf32> to vector<2x64xf32>
    %1360 = vector.extract_strided_slice %1358 {offsets = [0, 64], sizes = [2, 64], strides = [1, 1]} : vector<2x192xf32> to vector<2x64xf32>
    %1361 = vector.extract_strided_slice %1358 {offsets = [0, 128], sizes = [2, 64], strides = [1, 1]} : vector<2x192xf32> to vector<2x64xf32>
    %1362 = vector.extract_strided_slice %1352 {offsets = [0, 192], sizes = [2, 64], strides = [1, 1]} : vector<2x256xf32> to vector<2x64xf32>
    %1363 = math.tanh %1362 : vector<2x64xf32>
    %1364 = arith.mulf %1360, %1261 : vector<2x64xf32>
    %1365 = arith.mulf %1359, %1363 : vector<2x64xf32>
    %1366 = arith.addf %1364, %1365 : vector<2x64xf32>
    %1367 = math.tanh %1366 : vector<2x64xf32>
    %1368 = arith.mulf %1361, %1367 : vector<2x64xf32>
    %1369 = tpu.concatenate %1368, %1284 in 1 : vector<2x64xf32>, vector<2x64xf32> -> vector<2x128xf32>
    %1370 = arith.truncf %1369 : vector<2x128xf32> to vector<2x128xbf16>
    %cst_556 = arith.constant dense<0.000000e+00> : vector<2x256xf32>
    %1371 = tpu.matmul %1370, %999, %cst_556 {dimension_numbers = #tpu.dot_dimension_numbers<[1], [0], [0], [1], [0, 0, 1, 1], [], []>} : vector<2x128xbf16>, vector<128x256xbf16>, vector<2x256xf32> -> vector<2x256xf32>
    %1372 = vector.broadcast %1007 : vector<1x256xf32> to vector<2x256xf32>
    %1373 = arith.addf %1371, %1372 : vector<2x256xf32>
    %1374 = vector.extract_strided_slice %1373 {offsets = [0, 0], sizes = [2, 192], strides = [1, 1]} : vector<2x256xf32> to vector<2x192xf32>
    %1375 = arith.negf %1374 : vector<2x192xf32>
    %1376 = math.exp %1375 : vector<2x192xf32>
    %cst_557 = arith.constant 1.000000e+00 : f32
    %1377 = vector.broadcast %cst_557 : f32 to vector<2x192xf32>
    %1378 = arith.addf %1377, %1376 : vector<2x192xf32>
    %1379 = arith.divf %1377, %1378 : vector<2x192xf32>
    %1380 = vector.extract_strided_slice %1379 {offsets = [0, 0], sizes = [2, 64], strides = [1, 1]} : vector<2x192xf32> to vector<2x64xf32>
    %1381 = vector.extract_strided_slice %1379 {offsets = [0, 64], sizes = [2, 64], strides = [1, 1]} : vector<2x192xf32> to vector<2x64xf32>
    %1382 = vector.extract_strided_slice %1379 {offsets = [0, 128], sizes = [2, 64], strides = [1, 1]} : vector<2x192xf32> to vector<2x64xf32>
    %1383 = vector.extract_strided_slice %1373 {offsets = [0, 192], sizes = [2, 64], strides = [1, 1]} : vector<2x256xf32> to vector<2x64xf32>
    %1384 = math.tanh %1383 : vector<2x64xf32>
    %1385 = arith.mulf %1381, %1282 : vector<2x64xf32>
    %1386 = arith.mulf %1380, %1384 : vector<2x64xf32>
    %1387 = arith.addf %1385, %1386 : vector<2x64xf32>
    %1388 = math.tanh %1387 : vector<2x64xf32>
    %1389 = arith.mulf %1382, %1388 : vector<2x64xf32>
    %1390 = tpu.concatenate %1389, %1305 in 1 : vector<2x64xf32>, vector<2x64xf32> -> vector<2x128xf32>
    %1391 = arith.truncf %1390 : vector<2x128xf32> to vector<2x128xbf16>
    %cst_558 = arith.constant dense<0.000000e+00> : vector<2x256xf32>
    %1392 = tpu.matmul %1391, %1001, %cst_558 {dimension_numbers = #tpu.dot_dimension_numbers<[1], [0], [0], [1], [0, 0, 1, 1], [], []>} : vector<2x128xbf16>, vector<128x256xbf16>, vector<2x256xf32> -> vector<2x256xf32>
    %1393 = vector.broadcast %1009 : vector<1x256xf32> to vector<2x256xf32>
    %1394 = arith.addf %1392, %1393 : vector<2x256xf32>
    %1395 = vector.extract_strided_slice %1394 {offsets = [0, 0], sizes = [2, 192], strides = [1, 1]} : vector<2x256xf32> to vector<2x192xf32>
    %1396 = arith.negf %1395 : vector<2x192xf32>
    %1397 = math.exp %1396 : vector<2x192xf32>
    %cst_559 = arith.constant 1.000000e+00 : f32
    %1398 = vector.broadcast %cst_559 : f32 to vector<2x192xf32>
    %1399 = arith.addf %1398, %1397 : vector<2x192xf32>
    %1400 = arith.divf %1398, %1399 : vector<2x192xf32>
    %1401 = vector.extract_strided_slice %1400 {offsets = [0, 0], sizes = [2, 64], strides = [1, 1]} : vector<2x192xf32> to vector<2x64xf32>
    %1402 = vector.extract_strided_slice %1400 {offsets = [0, 64], sizes = [2, 64], strides = [1, 1]} : vector<2x192xf32> to vector<2x64xf32>
    %1403 = vector.extract_strided_slice %1400 {offsets = [0, 128], sizes = [2, 64], strides = [1, 1]} : vector<2x192xf32> to vector<2x64xf32>
    %1404 = vector.extract_strided_slice %1394 {offsets = [0, 192], sizes = [2, 64], strides = [1, 1]} : vector<2x256xf32> to vector<2x64xf32>
    %1405 = math.tanh %1404 : vector<2x64xf32>
    %1406 = arith.mulf %1402, %1303 : vector<2x64xf32>
    %1407 = arith.mulf %1401, %1405 : vector<2x64xf32>
    %1408 = arith.addf %1406, %1407 : vector<2x64xf32>
    %1409 = math.tanh %1408 : vector<2x64xf32>
    %1410 = arith.mulf %1403, %1409 : vector<2x64xf32>
    %1411 = arith.truncf %1410 : vector<2x64xf32> to vector<2x64xbf16>
    %cst_560 = arith.constant dense<0.000000e+00> : vector<2x128xf32>
    %1412 = tpu.matmul %1411, %1010, %cst_560 {dimension_numbers = #tpu.dot_dimension_numbers<[1], [0], [0], [1], [0, 0, 1, 1], [], []>} : vector<2x64xbf16>, vector<64x128xbf16>, vector<2x128xf32> -> vector<2x128xf32>
    %1413 = vector.broadcast %1011 : vector<1x128xf32> to vector<2x128xf32>
    %1414 = arith.addf %1412, %1413 : vector<2x128xf32>
    %c4_561 = arith.constant 4 : index
    %c0_562 = arith.constant 0 : index
    %c0_563 = arith.constant 0 : index
    %1415 = vector.load %arg10[%c4_561, %c0_562, %c0_563] : memref<8x2x128xf32, #tpu.memory_space<vmem>>, vector<1x2x128xf32>
    %1416 = vector.shape_cast %1415 : vector<1x2x128xf32> to vector<2x128xf32>
    %1417 = vector.shape_cast %1414 : vector<2x128xf32> to vector<1x2x128xf32>
    tpu.vector_store %arg10[%c4_561, %c0_562, %c0_563], %1417 {strides = array<i32>} : memref<8x2x128xf32, #tpu.memory_space<vmem>>, vector<1x2x128xf32>,
    %cst_564 = arith.constant dense<0xFF800000> : vector<2xf32>
    %1418 = vector.multi_reduction <maximumf>, %1414, %cst_564 [1] : vector<2x128xf32> to vector<2xf32>
    %1419 = vector.shape_cast %1418 : vector<2xf32> to vector<2x1xf32>
    %1420 = vector.broadcast %1419 : vector<2x1xf32> to vector<2x128xf32>
    %1421 = arith.cmpf oeq, %1414, %1420 : vector<2x128xf32>
    %c128_i32_565 = arith.constant 128 : i32
    %1422 = vector.broadcast %c128_i32_565 : i32 to vector<2x128xi32>
    %1423 = arith.select %1421, %2, %1422 : vector<2x128xi1>, vector<2x128xi32>
    %cst_566 = arith.constant dense<2147483647> : vector<2xi32>
    %1424 = vector.multi_reduction <minsi>, %1423, %cst_566 [1] : vector<2x128xi32> to vector<2xi32>
    %1425 = vector.shape_cast %1424 : vector<2xi32> to vector<2x1xi32>
    %1426 = vector.broadcast %1425 : vector<2x1xi32> to vector<2x128xi32>
    %1427 = arith.cmpi eq, %2, %1426 : vector<2x128xi32>
    %1428 = arith.extui %1427 : vector<2x128xi1> to vector<2x128xi32>
    %1429 = arith.sitofp %1428 : vector<2x128xi32> to vector<2x128xf32>
    %1430 = arith.truncf %1429 : vector<2x128xf32> to vector<2x128xbf16>
    %cst_567 = arith.constant dense<0.000000e+00> : vector<2x32xf32>
    %1431 = tpu.matmul %1430, %1, %cst_567 {dimension_numbers = #tpu.dot_dimension_numbers<[1], [0], [0], [1], [0, 0, 1, 1], [], []>} : vector<2x128xbf16>, vector<128x32xbf16>, vector<2x32xf32> -> vector<2x32xf32>
    %1432 = tpu.concatenate %1431, %1347 in 1 : vector<2x32xf32>, vector<2x64xf32> -> vector<2x96xf32>
    %1433 = arith.truncf %1432 : vector<2x96xf32> to vector<2x96xbf16>
    %cst_568 = arith.constant dense<0.000000e+00> : vector<2x256xf32>
    %1434 = tpu.matmul %1433, %995, %cst_568 {dimension_numbers = #tpu.dot_dimension_numbers<[1], [0], [0], [1], [0, 0, 1, 1], [], []>} : vector<2x96xbf16>, vector<96x256xbf16>, vector<2x256xf32> -> vector<2x256xf32>
    %1435 = vector.broadcast %1003 : vector<1x256xf32> to vector<2x256xf32>
    %1436 = arith.addf %1434, %1435 : vector<2x256xf32>
    %1437 = vector.extract_strided_slice %1436 {offsets = [0, 0], sizes = [2, 192], strides = [1, 1]} : vector<2x256xf32> to vector<2x192xf32>
    %1438 = arith.negf %1437 : vector<2x192xf32>
    %1439 = math.exp %1438 : vector<2x192xf32>
    %cst_569 = arith.constant 1.000000e+00 : f32
    %1440 = vector.broadcast %cst_569 : f32 to vector<2x192xf32>
    %1441 = arith.addf %1440, %1439 : vector<2x192xf32>
    %1442 = arith.divf %1440, %1441 : vector<2x192xf32>
    %1443 = vector.extract_strided_slice %1442 {offsets = [0, 0], sizes = [2, 64], strides = [1, 1]} : vector<2x192xf32> to vector<2x64xf32>
    %1444 = vector.extract_strided_slice %1442 {offsets = [0, 64], sizes = [2, 64], strides = [1, 1]} : vector<2x192xf32> to vector<2x64xf32>
    %1445 = vector.extract_strided_slice %1442 {offsets = [0, 128], sizes = [2, 64], strides = [1, 1]} : vector<2x192xf32> to vector<2x64xf32>
    %1446 = vector.extract_strided_slice %1436 {offsets = [0, 192], sizes = [2, 64], strides = [1, 1]} : vector<2x256xf32> to vector<2x64xf32>
    %1447 = math.tanh %1446 : vector<2x64xf32>
    %1448 = arith.mulf %1444, %1345 : vector<2x64xf32>
    %1449 = arith.mulf %1443, %1447 : vector<2x64xf32>
    %1450 = arith.addf %1448, %1449 : vector<2x64xf32>
    %1451 = math.tanh %1450 : vector<2x64xf32>
    %1452 = arith.mulf %1445, %1451 : vector<2x64xf32>
    %1453 = tpu.concatenate %1452, %1368 in 1 : vector<2x64xf32>, vector<2x64xf32> -> vector<2x128xf32>
    %1454 = arith.truncf %1453 : vector<2x128xf32> to vector<2x128xbf16>
    %cst_570 = arith.constant dense<0.000000e+00> : vector<2x256xf32>
    %1455 = tpu.matmul %1454, %997, %cst_570 {dimension_numbers = #tpu.dot_dimension_numbers<[1], [0], [0], [1], [0, 0, 1, 1], [], []>} : vector<2x128xbf16>, vector<128x256xbf16>, vector<2x256xf32> -> vector<2x256xf32>
    %1456 = vector.broadcast %1005 : vector<1x256xf32> to vector<2x256xf32>
    %1457 = arith.addf %1455, %1456 : vector<2x256xf32>
    %1458 = vector.extract_strided_slice %1457 {offsets = [0, 0], sizes = [2, 192], strides = [1, 1]} : vector<2x256xf32> to vector<2x192xf32>
    %1459 = arith.negf %1458 : vector<2x192xf32>
    %1460 = math.exp %1459 : vector<2x192xf32>
    %cst_571 = arith.constant 1.000000e+00 : f32
    %1461 = vector.broadcast %cst_571 : f32 to vector<2x192xf32>
    %1462 = arith.addf %1461, %1460 : vector<2x192xf32>
    %1463 = arith.divf %1461, %1462 : vector<2x192xf32>
    %1464 = vector.extract_strided_slice %1463 {offsets = [0, 0], sizes = [2, 64], strides = [1, 1]} : vector<2x192xf32> to vector<2x64xf32>
    %1465 = vector.extract_strided_slice %1463 {offsets = [0, 64], sizes = [2, 64], strides = [1, 1]} : vector<2x192xf32> to vector<2x64xf32>
    %1466 = vector.extract_strided_slice %1463 {offsets = [0, 128], sizes = [2, 64], strides = [1, 1]} : vector<2x192xf32> to vector<2x64xf32>
    %1467 = vector.extract_strided_slice %1457 {offsets = [0, 192], sizes = [2, 64], strides = [1, 1]} : vector<2x256xf32> to vector<2x64xf32>
    %1468 = math.tanh %1467 : vector<2x64xf32>
    %1469 = arith.mulf %1465, %1366 : vector<2x64xf32>
    %1470 = arith.mulf %1464, %1468 : vector<2x64xf32>
    %1471 = arith.addf %1469, %1470 : vector<2x64xf32>
    %1472 = math.tanh %1471 : vector<2x64xf32>
    %1473 = arith.mulf %1466, %1472 : vector<2x64xf32>
    %1474 = tpu.concatenate %1473, %1389 in 1 : vector<2x64xf32>, vector<2x64xf32> -> vector<2x128xf32>
    %1475 = arith.truncf %1474 : vector<2x128xf32> to vector<2x128xbf16>
    %cst_572 = arith.constant dense<0.000000e+00> : vector<2x256xf32>
    %1476 = tpu.matmul %1475, %999, %cst_572 {dimension_numbers = #tpu.dot_dimension_numbers<[1], [0], [0], [1], [0, 0, 1, 1], [], []>} : vector<2x128xbf16>, vector<128x256xbf16>, vector<2x256xf32> -> vector<2x256xf32>
    %1477 = vector.broadcast %1007 : vector<1x256xf32> to vector<2x256xf32>
    %1478 = arith.addf %1476, %1477 : vector<2x256xf32>
    %1479 = vector.extract_strided_slice %1478 {offsets = [0, 0], sizes = [2, 192], strides = [1, 1]} : vector<2x256xf32> to vector<2x192xf32>
    %1480 = arith.negf %1479 : vector<2x192xf32>
    %1481 = math.exp %1480 : vector<2x192xf32>
    %cst_573 = arith.constant 1.000000e+00 : f32
    %1482 = vector.broadcast %cst_573 : f32 to vector<2x192xf32>
    %1483 = arith.addf %1482, %1481 : vector<2x192xf32>
    %1484 = arith.divf %1482, %1483 : vector<2x192xf32>
    %1485 = vector.extract_strided_slice %1484 {offsets = [0, 0], sizes = [2, 64], strides = [1, 1]} : vector<2x192xf32> to vector<2x64xf32>
    %1486 = vector.extract_strided_slice %1484 {offsets = [0, 64], sizes = [2, 64], strides = [1, 1]} : vector<2x192xf32> to vector<2x64xf32>
    %1487 = vector.extract_strided_slice %1484 {offsets = [0, 128], sizes = [2, 64], strides = [1, 1]} : vector<2x192xf32> to vector<2x64xf32>
    %1488 = vector.extract_strided_slice %1478 {offsets = [0, 192], sizes = [2, 64], strides = [1, 1]} : vector<2x256xf32> to vector<2x64xf32>
    %1489 = math.tanh %1488 : vector<2x64xf32>
    %1490 = arith.mulf %1486, %1387 : vector<2x64xf32>
    %1491 = arith.mulf %1485, %1489 : vector<2x64xf32>
    %1492 = arith.addf %1490, %1491 : vector<2x64xf32>
    %1493 = math.tanh %1492 : vector<2x64xf32>
    %1494 = arith.mulf %1487, %1493 : vector<2x64xf32>
    %1495 = tpu.concatenate %1494, %1410 in 1 : vector<2x64xf32>, vector<2x64xf32> -> vector<2x128xf32>
    %1496 = arith.truncf %1495 : vector<2x128xf32> to vector<2x128xbf16>
    %cst_574 = arith.constant dense<0.000000e+00> : vector<2x256xf32>
    %1497 = tpu.matmul %1496, %1001, %cst_574 {dimension_numbers = #tpu.dot_dimension_numbers<[1], [0], [0], [1], [0, 0, 1, 1], [], []>} : vector<2x128xbf16>, vector<128x256xbf16>, vector<2x256xf32> -> vector<2x256xf32>
    %1498 = vector.broadcast %1009 : vector<1x256xf32> to vector<2x256xf32>
    %1499 = arith.addf %1497, %1498 : vector<2x256xf32>
    %1500 = vector.extract_strided_slice %1499 {offsets = [0, 0], sizes = [2, 192], strides = [1, 1]} : vector<2x256xf32> to vector<2x192xf32>
    %1501 = arith.negf %1500 : vector<2x192xf32>
    %1502 = math.exp %1501 : vector<2x192xf32>
    %cst_575 = arith.constant 1.000000e+00 : f32
    %1503 = vector.broadcast %cst_575 : f32 to vector<2x192xf32>
    %1504 = arith.addf %1503, %1502 : vector<2x192xf32>
    %1505 = arith.divf %1503, %1504 : vector<2x192xf32>
    %1506 = vector.extract_strided_slice %1505 {offsets = [0, 0], sizes = [2, 64], strides = [1, 1]} : vector<2x192xf32> to vector<2x64xf32>
    %1507 = vector.extract_strided_slice %1505 {offsets = [0, 64], sizes = [2, 64], strides = [1, 1]} : vector<2x192xf32> to vector<2x64xf32>
    %1508 = vector.extract_strided_slice %1505 {offsets = [0, 128], sizes = [2, 64], strides = [1, 1]} : vector<2x192xf32> to vector<2x64xf32>
    %1509 = vector.extract_strided_slice %1499 {offsets = [0, 192], sizes = [2, 64], strides = [1, 1]} : vector<2x256xf32> to vector<2x64xf32>
    %1510 = math.tanh %1509 : vector<2x64xf32>
    %1511 = arith.mulf %1507, %1408 : vector<2x64xf32>
    %1512 = arith.mulf %1506, %1510 : vector<2x64xf32>
    %1513 = arith.addf %1511, %1512 : vector<2x64xf32>
    %1514 = math.tanh %1513 : vector<2x64xf32>
    %1515 = arith.mulf %1508, %1514 : vector<2x64xf32>
    %1516 = arith.truncf %1515 : vector<2x64xf32> to vector<2x64xbf16>
    %cst_576 = arith.constant dense<0.000000e+00> : vector<2x128xf32>
    %1517 = tpu.matmul %1516, %1010, %cst_576 {dimension_numbers = #tpu.dot_dimension_numbers<[1], [0], [0], [1], [0, 0, 1, 1], [], []>} : vector<2x64xbf16>, vector<64x128xbf16>, vector<2x128xf32> -> vector<2x128xf32>
    %1518 = vector.broadcast %1011 : vector<1x128xf32> to vector<2x128xf32>
    %1519 = arith.addf %1517, %1518 : vector<2x128xf32>
    %c5_577 = arith.constant 5 : index
    %c0_578 = arith.constant 0 : index
    %c0_579 = arith.constant 0 : index
    %1520 = vector.load %arg10[%c5_577, %c0_578, %c0_579] : memref<8x2x128xf32, #tpu.memory_space<vmem>>, vector<1x2x128xf32>
    %1521 = vector.shape_cast %1520 : vector<1x2x128xf32> to vector<2x128xf32>
    %1522 = vector.shape_cast %1519 : vector<2x128xf32> to vector<1x2x128xf32>
    tpu.vector_store %arg10[%c5_577, %c0_578, %c0_579], %1522 {strides = array<i32>} : memref<8x2x128xf32, #tpu.memory_space<vmem>>, vector<1x2x128xf32>,
    %cst_580 = arith.constant dense<0xFF800000> : vector<2xf32>
    %1523 = vector.multi_reduction <maximumf>, %1519, %cst_580 [1] : vector<2x128xf32> to vector<2xf32>
    %1524 = vector.shape_cast %1523 : vector<2xf32> to vector<2x1xf32>
    %1525 = vector.broadcast %1524 : vector<2x1xf32> to vector<2x128xf32>
    %1526 = arith.cmpf oeq, %1519, %1525 : vector<2x128xf32>
    %c128_i32_581 = arith.constant 128 : i32
    %1527 = vector.broadcast %c128_i32_581 : i32 to vector<2x128xi32>
    %1528 = arith.select %1526, %2, %1527 : vector<2x128xi1>, vector<2x128xi32>
    %cst_582 = arith.constant dense<2147483647> : vector<2xi32>
    %1529 = vector.multi_reduction <minsi>, %1528, %cst_582 [1] : vector<2x128xi32> to vector<2xi32>
    %1530 = vector.shape_cast %1529 : vector<2xi32> to vector<2x1xi32>
    %1531 = vector.broadcast %1530 : vector<2x1xi32> to vector<2x128xi32>
    %1532 = arith.cmpi eq, %2, %1531 : vector<2x128xi32>
    %1533 = arith.extui %1532 : vector<2x128xi1> to vector<2x128xi32>
    %1534 = arith.sitofp %1533 : vector<2x128xi32> to vector<2x128xf32>
    %1535 = arith.truncf %1534 : vector<2x128xf32> to vector<2x128xbf16>
    %cst_583 = arith.constant dense<0.000000e+00> : vector<2x32xf32>
    %1536 = tpu.matmul %1535, %1, %cst_583 {dimension_numbers = #tpu.dot_dimension_numbers<[1], [0], [0], [1], [0, 0, 1, 1], [], []>} : vector<2x128xbf16>, vector<128x32xbf16>, vector<2x32xf32> -> vector<2x32xf32>
    %1537 = tpu.concatenate %1536, %1452 in 1 : vector<2x32xf32>, vector<2x64xf32> -> vector<2x96xf32>
    %1538 = arith.truncf %1537 : vector<2x96xf32> to vector<2x96xbf16>
    %cst_584 = arith.constant dense<0.000000e+00> : vector<2x256xf32>
    %1539 = tpu.matmul %1538, %995, %cst_584 {dimension_numbers = #tpu.dot_dimension_numbers<[1], [0], [0], [1], [0, 0, 1, 1], [], []>} : vector<2x96xbf16>, vector<96x256xbf16>, vector<2x256xf32> -> vector<2x256xf32>
    %1540 = vector.broadcast %1003 : vector<1x256xf32> to vector<2x256xf32>
    %1541 = arith.addf %1539, %1540 : vector<2x256xf32>
    %1542 = vector.extract_strided_slice %1541 {offsets = [0, 0], sizes = [2, 192], strides = [1, 1]} : vector<2x256xf32> to vector<2x192xf32>
    %1543 = arith.negf %1542 : vector<2x192xf32>
    %1544 = math.exp %1543 : vector<2x192xf32>
    %cst_585 = arith.constant 1.000000e+00 : f32
    %1545 = vector.broadcast %cst_585 : f32 to vector<2x192xf32>
    %1546 = arith.addf %1545, %1544 : vector<2x192xf32>
    %1547 = arith.divf %1545, %1546 : vector<2x192xf32>
    %1548 = vector.extract_strided_slice %1547 {offsets = [0, 0], sizes = [2, 64], strides = [1, 1]} : vector<2x192xf32> to vector<2x64xf32>
    %1549 = vector.extract_strided_slice %1547 {offsets = [0, 64], sizes = [2, 64], strides = [1, 1]} : vector<2x192xf32> to vector<2x64xf32>
    %1550 = vector.extract_strided_slice %1547 {offsets = [0, 128], sizes = [2, 64], strides = [1, 1]} : vector<2x192xf32> to vector<2x64xf32>
    %1551 = vector.extract_strided_slice %1541 {offsets = [0, 192], sizes = [2, 64], strides = [1, 1]} : vector<2x256xf32> to vector<2x64xf32>
    %1552 = math.tanh %1551 : vector<2x64xf32>
    %1553 = arith.mulf %1549, %1450 : vector<2x64xf32>
    %1554 = arith.mulf %1548, %1552 : vector<2x64xf32>
    %1555 = arith.addf %1553, %1554 : vector<2x64xf32>
    %1556 = math.tanh %1555 : vector<2x64xf32>
    %1557 = arith.mulf %1550, %1556 : vector<2x64xf32>
    %1558 = tpu.concatenate %1557, %1473 in 1 : vector<2x64xf32>, vector<2x64xf32> -> vector<2x128xf32>
    %1559 = arith.truncf %1558 : vector<2x128xf32> to vector<2x128xbf16>
    %cst_586 = arith.constant dense<0.000000e+00> : vector<2x256xf32>
    %1560 = tpu.matmul %1559, %997, %cst_586 {dimension_numbers = #tpu.dot_dimension_numbers<[1], [0], [0], [1], [0, 0, 1, 1], [], []>} : vector<2x128xbf16>, vector<128x256xbf16>, vector<2x256xf32> -> vector<2x256xf32>
    %1561 = vector.broadcast %1005 : vector<1x256xf32> to vector<2x256xf32>
    %1562 = arith.addf %1560, %1561 : vector<2x256xf32>
    %1563 = vector.extract_strided_slice %1562 {offsets = [0, 0], sizes = [2, 192], strides = [1, 1]} : vector<2x256xf32> to vector<2x192xf32>
    %1564 = arith.negf %1563 : vector<2x192xf32>
    %1565 = math.exp %1564 : vector<2x192xf32>
    %cst_587 = arith.constant 1.000000e+00 : f32
    %1566 = vector.broadcast %cst_587 : f32 to vector<2x192xf32>
    %1567 = arith.addf %1566, %1565 : vector<2x192xf32>
    %1568 = arith.divf %1566, %1567 : vector<2x192xf32>
    %1569 = vector.extract_strided_slice %1568 {offsets = [0, 0], sizes = [2, 64], strides = [1, 1]} : vector<2x192xf32> to vector<2x64xf32>
    %1570 = vector.extract_strided_slice %1568 {offsets = [0, 64], sizes = [2, 64], strides = [1, 1]} : vector<2x192xf32> to vector<2x64xf32>
    %1571 = vector.extract_strided_slice %1568 {offsets = [0, 128], sizes = [2, 64], strides = [1, 1]} : vector<2x192xf32> to vector<2x64xf32>
    %1572 = vector.extract_strided_slice %1562 {offsets = [0, 192], sizes = [2, 64], strides = [1, 1]} : vector<2x256xf32> to vector<2x64xf32>
    %1573 = math.tanh %1572 : vector<2x64xf32>
    %1574 = arith.mulf %1570, %1471 : vector<2x64xf32>
    %1575 = arith.mulf %1569, %1573 : vector<2x64xf32>
    %1576 = arith.addf %1574, %1575 : vector<2x64xf32>
    %1577 = math.tanh %1576 : vector<2x64xf32>
    %1578 = arith.mulf %1571, %1577 : vector<2x64xf32>
    %1579 = tpu.concatenate %1578, %1494 in 1 : vector<2x64xf32>, vector<2x64xf32> -> vector<2x128xf32>
    %1580 = arith.truncf %1579 : vector<2x128xf32> to vector<2x128xbf16>
    %cst_588 = arith.constant dense<0.000000e+00> : vector<2x256xf32>
    %1581 = tpu.matmul %1580, %999, %cst_588 {dimension_numbers = #tpu.dot_dimension_numbers<[1], [0], [0], [1], [0, 0, 1, 1], [], []>} : vector<2x128xbf16>, vector<128x256xbf16>, vector<2x256xf32> -> vector<2x256xf32>
    %1582 = vector.broadcast %1007 : vector<1x256xf32> to vector<2x256xf32>
    %1583 = arith.addf %1581, %1582 : vector<2x256xf32>
    %1584 = vector.extract_strided_slice %1583 {offsets = [0, 0], sizes = [2, 192], strides = [1, 1]} : vector<2x256xf32> to vector<2x192xf32>
    %1585 = arith.negf %1584 : vector<2x192xf32>
    %1586 = math.exp %1585 : vector<2x192xf32>
    %cst_589 = arith.constant 1.000000e+00 : f32
    %1587 = vector.broadcast %cst_589 : f32 to vector<2x192xf32>
    %1588 = arith.addf %1587, %1586 : vector<2x192xf32>
    %1589 = arith.divf %1587, %1588 : vector<2x192xf32>
    %1590 = vector.extract_strided_slice %1589 {offsets = [0, 0], sizes = [2, 64], strides = [1, 1]} : vector<2x192xf32> to vector<2x64xf32>
    %1591 = vector.extract_strided_slice %1589 {offsets = [0, 64], sizes = [2, 64], strides = [1, 1]} : vector<2x192xf32> to vector<2x64xf32>
    %1592 = vector.extract_strided_slice %1589 {offsets = [0, 128], sizes = [2, 64], strides = [1, 1]} : vector<2x192xf32> to vector<2x64xf32>
    %1593 = vector.extract_strided_slice %1583 {offsets = [0, 192], sizes = [2, 64], strides = [1, 1]} : vector<2x256xf32> to vector<2x64xf32>
    %1594 = math.tanh %1593 : vector<2x64xf32>
    %1595 = arith.mulf %1591, %1492 : vector<2x64xf32>
    %1596 = arith.mulf %1590, %1594 : vector<2x64xf32>
    %1597 = arith.addf %1595, %1596 : vector<2x64xf32>
    %1598 = math.tanh %1597 : vector<2x64xf32>
    %1599 = arith.mulf %1592, %1598 : vector<2x64xf32>
    %1600 = tpu.concatenate %1599, %1515 in 1 : vector<2x64xf32>, vector<2x64xf32> -> vector<2x128xf32>
    %1601 = arith.truncf %1600 : vector<2x128xf32> to vector<2x128xbf16>
    %cst_590 = arith.constant dense<0.000000e+00> : vector<2x256xf32>
    %1602 = tpu.matmul %1601, %1001, %cst_590 {dimension_numbers = #tpu.dot_dimension_numbers<[1], [0], [0], [1], [0, 0, 1, 1], [], []>} : vector<2x128xbf16>, vector<128x256xbf16>, vector<2x256xf32> -> vector<2x256xf32>
    %1603 = vector.broadcast %1009 : vector<1x256xf32> to vector<2x256xf32>
    %1604 = arith.addf %1602, %1603 : vector<2x256xf32>
    %1605 = vector.extract_strided_slice %1604 {offsets = [0, 0], sizes = [2, 192], strides = [1, 1]} : vector<2x256xf32> to vector<2x192xf32>
    %1606 = arith.negf %1605 : vector<2x192xf32>
    %1607 = math.exp %1606 : vector<2x192xf32>
    %cst_591 = arith.constant 1.000000e+00 : f32
    %1608 = vector.broadcast %cst_591 : f32 to vector<2x192xf32>
    %1609 = arith.addf %1608, %1607 : vector<2x192xf32>
    %1610 = arith.divf %1608, %1609 : vector<2x192xf32>
    %1611 = vector.extract_strided_slice %1610 {offsets = [0, 0], sizes = [2, 64], strides = [1, 1]} : vector<2x192xf32> to vector<2x64xf32>
    %1612 = vector.extract_strided_slice %1610 {offsets = [0, 64], sizes = [2, 64], strides = [1, 1]} : vector<2x192xf32> to vector<2x64xf32>
    %1613 = vector.extract_strided_slice %1610 {offsets = [0, 128], sizes = [2, 64], strides = [1, 1]} : vector<2x192xf32> to vector<2x64xf32>
    %1614 = vector.extract_strided_slice %1604 {offsets = [0, 192], sizes = [2, 64], strides = [1, 1]} : vector<2x256xf32> to vector<2x64xf32>
    %1615 = math.tanh %1614 : vector<2x64xf32>
    %1616 = arith.mulf %1612, %1513 : vector<2x64xf32>
    %1617 = arith.mulf %1611, %1615 : vector<2x64xf32>
    %1618 = arith.addf %1616, %1617 : vector<2x64xf32>
    %1619 = math.tanh %1618 : vector<2x64xf32>
    %1620 = arith.mulf %1613, %1619 : vector<2x64xf32>
    %1621 = arith.truncf %1620 : vector<2x64xf32> to vector<2x64xbf16>
    %cst_592 = arith.constant dense<0.000000e+00> : vector<2x128xf32>
    %1622 = tpu.matmul %1621, %1010, %cst_592 {dimension_numbers = #tpu.dot_dimension_numbers<[1], [0], [0], [1], [0, 0, 1, 1], [], []>} : vector<2x64xbf16>, vector<64x128xbf16>, vector<2x128xf32> -> vector<2x128xf32>
    %1623 = vector.broadcast %1011 : vector<1x128xf32> to vector<2x128xf32>
    %1624 = arith.addf %1622, %1623 : vector<2x128xf32>
    %c6_593 = arith.constant 6 : index
    %c0_594 = arith.constant 0 : index
    %c0_595 = arith.constant 0 : index
    %1625 = vector.load %arg10[%c6_593, %c0_594, %c0_595] : memref<8x2x128xf32, #tpu.memory_space<vmem>>, vector<1x2x128xf32>
    %1626 = vector.shape_cast %1625 : vector<1x2x128xf32> to vector<2x128xf32>
    %1627 = vector.shape_cast %1624 : vector<2x128xf32> to vector<1x2x128xf32>
    tpu.vector_store %arg10[%c6_593, %c0_594, %c0_595], %1627 {strides = array<i32>} : memref<8x2x128xf32, #tpu.memory_space<vmem>>, vector<1x2x128xf32>,
    %cst_596 = arith.constant dense<0xFF800000> : vector<2xf32>
    %1628 = vector.multi_reduction <maximumf>, %1624, %cst_596 [1] : vector<2x128xf32> to vector<2xf32>
    %1629 = vector.shape_cast %1628 : vector<2xf32> to vector<2x1xf32>
    %1630 = vector.broadcast %1629 : vector<2x1xf32> to vector<2x128xf32>
    %1631 = arith.cmpf oeq, %1624, %1630 : vector<2x128xf32>
    %c128_i32_597 = arith.constant 128 : i32
    %1632 = vector.broadcast %c128_i32_597 : i32 to vector<2x128xi32>
    %1633 = arith.select %1631, %2, %1632 : vector<2x128xi1>, vector<2x128xi32>
    %cst_598 = arith.constant dense<2147483647> : vector<2xi32>
    %1634 = vector.multi_reduction <minsi>, %1633, %cst_598 [1] : vector<2x128xi32> to vector<2xi32>
    %1635 = vector.shape_cast %1634 : vector<2xi32> to vector<2x1xi32>
    %1636 = vector.broadcast %1635 : vector<2x1xi32> to vector<2x128xi32>
    %1637 = arith.cmpi eq, %2, %1636 : vector<2x128xi32>
    %1638 = arith.extui %1637 : vector<2x128xi1> to vector<2x128xi32>
    %1639 = arith.sitofp %1638 : vector<2x128xi32> to vector<2x128xf32>
    %1640 = arith.truncf %1639 : vector<2x128xf32> to vector<2x128xbf16>
    %cst_599 = arith.constant dense<0.000000e+00> : vector<2x32xf32>
    %1641 = tpu.matmul %1640, %1, %cst_599 {dimension_numbers = #tpu.dot_dimension_numbers<[1], [0], [0], [1], [0, 0, 1, 1], [], []>} : vector<2x128xbf16>, vector<128x32xbf16>, vector<2x32xf32> -> vector<2x32xf32>
    %1642 = tpu.concatenate %1641, %1557 in 1 : vector<2x32xf32>, vector<2x64xf32> -> vector<2x96xf32>
    %1643 = arith.truncf %1642 : vector<2x96xf32> to vector<2x96xbf16>
    %cst_600 = arith.constant dense<0.000000e+00> : vector<2x256xf32>
    %1644 = tpu.matmul %1643, %995, %cst_600 {dimension_numbers = #tpu.dot_dimension_numbers<[1], [0], [0], [1], [0, 0, 1, 1], [], []>} : vector<2x96xbf16>, vector<96x256xbf16>, vector<2x256xf32> -> vector<2x256xf32>
    %1645 = vector.broadcast %1003 : vector<1x256xf32> to vector<2x256xf32>
    %1646 = arith.addf %1644, %1645 : vector<2x256xf32>
    %1647 = vector.extract_strided_slice %1646 {offsets = [0, 0], sizes = [2, 192], strides = [1, 1]} : vector<2x256xf32> to vector<2x192xf32>
    %1648 = arith.negf %1647 : vector<2x192xf32>
    %1649 = math.exp %1648 : vector<2x192xf32>
    %cst_601 = arith.constant 1.000000e+00 : f32
    %1650 = vector.broadcast %cst_601 : f32 to vector<2x192xf32>
    %1651 = arith.addf %1650, %1649 : vector<2x192xf32>
    %1652 = arith.divf %1650, %1651 : vector<2x192xf32>
    %1653 = vector.extract_strided_slice %1652 {offsets = [0, 0], sizes = [2, 64], strides = [1, 1]} : vector<2x192xf32> to vector<2x64xf32>
    %1654 = vector.extract_strided_slice %1652 {offsets = [0, 64], sizes = [2, 64], strides = [1, 1]} : vector<2x192xf32> to vector<2x64xf32>
    %1655 = vector.extract_strided_slice %1652 {offsets = [0, 128], sizes = [2, 64], strides = [1, 1]} : vector<2x192xf32> to vector<2x64xf32>
    %1656 = vector.extract_strided_slice %1646 {offsets = [0, 192], sizes = [2, 64], strides = [1, 1]} : vector<2x256xf32> to vector<2x64xf32>
    %1657 = math.tanh %1656 : vector<2x64xf32>
    %1658 = arith.mulf %1654, %1555 : vector<2x64xf32>
    %1659 = arith.mulf %1653, %1657 : vector<2x64xf32>
    %1660 = arith.addf %1658, %1659 : vector<2x64xf32>
    %1661 = math.tanh %1660 : vector<2x64xf32>
    %1662 = arith.mulf %1655, %1661 : vector<2x64xf32>
    %1663 = tpu.concatenate %1662, %1578 in 1 : vector<2x64xf32>, vector<2x64xf32> -> vector<2x128xf32>
    %1664 = arith.truncf %1663 : vector<2x128xf32> to vector<2x128xbf16>
    %cst_602 = arith.constant dense<0.000000e+00> : vector<2x256xf32>
    %1665 = tpu.matmul %1664, %997, %cst_602 {dimension_numbers = #tpu.dot_dimension_numbers<[1], [0], [0], [1], [0, 0, 1, 1], [], []>} : vector<2x128xbf16>, vector<128x256xbf16>, vector<2x256xf32> -> vector<2x256xf32>
    %1666 = vector.broadcast %1005 : vector<1x256xf32> to vector<2x256xf32>
    %1667 = arith.addf %1665, %1666 : vector<2x256xf32>
    %1668 = vector.extract_strided_slice %1667 {offsets = [0, 0], sizes = [2, 192], strides = [1, 1]} : vector<2x256xf32> to vector<2x192xf32>
    %1669 = arith.negf %1668 : vector<2x192xf32>
    %1670 = math.exp %1669 : vector<2x192xf32>
    %cst_603 = arith.constant 1.000000e+00 : f32
    %1671 = vector.broadcast %cst_603 : f32 to vector<2x192xf32>
    %1672 = arith.addf %1671, %1670 : vector<2x192xf32>
    %1673 = arith.divf %1671, %1672 : vector<2x192xf32>
    %1674 = vector.extract_strided_slice %1673 {offsets = [0, 0], sizes = [2, 64], strides = [1, 1]} : vector<2x192xf32> to vector<2x64xf32>
    %1675 = vector.extract_strided_slice %1673 {offsets = [0, 64], sizes = [2, 64], strides = [1, 1]} : vector<2x192xf32> to vector<2x64xf32>
    %1676 = vector.extract_strided_slice %1673 {offsets = [0, 128], sizes = [2, 64], strides = [1, 1]} : vector<2x192xf32> to vector<2x64xf32>
    %1677 = vector.extract_strided_slice %1667 {offsets = [0, 192], sizes = [2, 64], strides = [1, 1]} : vector<2x256xf32> to vector<2x64xf32>
    %1678 = math.tanh %1677 : vector<2x64xf32>
    %1679 = arith.mulf %1675, %1576 : vector<2x64xf32>
    %1680 = arith.mulf %1674, %1678 : vector<2x64xf32>
    %1681 = arith.addf %1679, %1680 : vector<2x64xf32>
    %1682 = math.tanh %1681 : vector<2x64xf32>
    %1683 = arith.mulf %1676, %1682 : vector<2x64xf32>
    %1684 = tpu.concatenate %1683, %1599 in 1 : vector<2x64xf32>, vector<2x64xf32> -> vector<2x128xf32>
    %1685 = arith.truncf %1684 : vector<2x128xf32> to vector<2x128xbf16>
    %cst_604 = arith.constant dense<0.000000e+00> : vector<2x256xf32>
    %1686 = tpu.matmul %1685, %999, %cst_604 {dimension_numbers = #tpu.dot_dimension_numbers<[1], [0], [0], [1], [0, 0, 1, 1], [], []>} : vector<2x128xbf16>, vector<128x256xbf16>, vector<2x256xf32> -> vector<2x256xf32>
    %1687 = vector.broadcast %1007 : vector<1x256xf32> to vector<2x256xf32>
    %1688 = arith.addf %1686, %1687 : vector<2x256xf32>
    %1689 = vector.extract_strided_slice %1688 {offsets = [0, 0], sizes = [2, 192], strides = [1, 1]} : vector<2x256xf32> to vector<2x192xf32>
    %1690 = arith.negf %1689 : vector<2x192xf32>
    %1691 = math.exp %1690 : vector<2x192xf32>
    %cst_605 = arith.constant 1.000000e+00 : f32
    %1692 = vector.broadcast %cst_605 : f32 to vector<2x192xf32>
    %1693 = arith.addf %1692, %1691 : vector<2x192xf32>
    %1694 = arith.divf %1692, %1693 : vector<2x192xf32>
    %1695 = vector.extract_strided_slice %1694 {offsets = [0, 0], sizes = [2, 64], strides = [1, 1]} : vector<2x192xf32> to vector<2x64xf32>
    %1696 = vector.extract_strided_slice %1694 {offsets = [0, 64], sizes = [2, 64], strides = [1, 1]} : vector<2x192xf32> to vector<2x64xf32>
    %1697 = vector.extract_strided_slice %1694 {offsets = [0, 128], sizes = [2, 64], strides = [1, 1]} : vector<2x192xf32> to vector<2x64xf32>
    %1698 = vector.extract_strided_slice %1688 {offsets = [0, 192], sizes = [2, 64], strides = [1, 1]} : vector<2x256xf32> to vector<2x64xf32>
    %1699 = math.tanh %1698 : vector<2x64xf32>
    %1700 = arith.mulf %1696, %1597 : vector<2x64xf32>
    %1701 = arith.mulf %1695, %1699 : vector<2x64xf32>
    %1702 = arith.addf %1700, %1701 : vector<2x64xf32>
    %1703 = math.tanh %1702 : vector<2x64xf32>
    %1704 = arith.mulf %1697, %1703 : vector<2x64xf32>
    %1705 = tpu.concatenate %1704, %1620 in 1 : vector<2x64xf32>, vector<2x64xf32> -> vector<2x128xf32>
    %1706 = arith.truncf %1705 : vector<2x128xf32> to vector<2x128xbf16>
    %cst_606 = arith.constant dense<0.000000e+00> : vector<2x256xf32>
    %1707 = tpu.matmul %1706, %1001, %cst_606 {dimension_numbers = #tpu.dot_dimension_numbers<[1], [0], [0], [1], [0, 0, 1, 1], [], []>} : vector<2x128xbf16>, vector<128x256xbf16>, vector<2x256xf32> -> vector<2x256xf32>
    %1708 = vector.broadcast %1009 : vector<1x256xf32> to vector<2x256xf32>
    %1709 = arith.addf %1707, %1708 : vector<2x256xf32>
    %1710 = vector.extract_strided_slice %1709 {offsets = [0, 0], sizes = [2, 192], strides = [1, 1]} : vector<2x256xf32> to vector<2x192xf32>
    %1711 = arith.negf %1710 : vector<2x192xf32>
    %1712 = math.exp %1711 : vector<2x192xf32>
    %cst_607 = arith.constant 1.000000e+00 : f32
    %1713 = vector.broadcast %cst_607 : f32 to vector<2x192xf32>
    %1714 = arith.addf %1713, %1712 : vector<2x192xf32>
    %1715 = arith.divf %1713, %1714 : vector<2x192xf32>
    %1716 = vector.extract_strided_slice %1715 {offsets = [0, 0], sizes = [2, 64], strides = [1, 1]} : vector<2x192xf32> to vector<2x64xf32>
    %1717 = vector.extract_strided_slice %1715 {offsets = [0, 64], sizes = [2, 64], strides = [1, 1]} : vector<2x192xf32> to vector<2x64xf32>
    %1718 = vector.extract_strided_slice %1715 {offsets = [0, 128], sizes = [2, 64], strides = [1, 1]} : vector<2x192xf32> to vector<2x64xf32>
    %1719 = vector.extract_strided_slice %1709 {offsets = [0, 192], sizes = [2, 64], strides = [1, 1]} : vector<2x256xf32> to vector<2x64xf32>
    %1720 = math.tanh %1719 : vector<2x64xf32>
    %1721 = arith.mulf %1717, %1618 : vector<2x64xf32>
    %1722 = arith.mulf %1716, %1720 : vector<2x64xf32>
    %1723 = arith.addf %1721, %1722 : vector<2x64xf32>
    %1724 = math.tanh %1723 : vector<2x64xf32>
    %1725 = arith.mulf %1718, %1724 : vector<2x64xf32>
    %1726 = arith.truncf %1725 : vector<2x64xf32> to vector<2x64xbf16>
    %cst_608 = arith.constant dense<0.000000e+00> : vector<2x128xf32>
    %1727 = tpu.matmul %1726, %1010, %cst_608 {dimension_numbers = #tpu.dot_dimension_numbers<[1], [0], [0], [1], [0, 0, 1, 1], [], []>} : vector<2x64xbf16>, vector<64x128xbf16>, vector<2x128xf32> -> vector<2x128xf32>
    %1728 = vector.broadcast %1011 : vector<1x128xf32> to vector<2x128xf32>
    %1729 = arith.addf %1727, %1728 : vector<2x128xf32>
    %c7_609 = arith.constant 7 : index
    %c0_610 = arith.constant 0 : index
    %c0_611 = arith.constant 0 : index
    %1730 = vector.load %arg10[%c7_609, %c0_610, %c0_611] : memref<8x2x128xf32, #tpu.memory_space<vmem>>, vector<1x2x128xf32>
    %1731 = vector.shape_cast %1730 : vector<1x2x128xf32> to vector<2x128xf32>
    %1732 = vector.shape_cast %1729 : vector<2x128xf32> to vector<1x2x128xf32>
    tpu.vector_store %arg10[%c7_609, %c0_610, %c0_611], %1732 {strides = array<i32>} : memref<8x2x128xf32, #tpu.memory_space<vmem>>, vector<1x2x128xf32>,
    return
  }
}

</mosaic_0001>

<llo_original>
// kernel: tran_lstm_forward.1
$region0: #{tran_lstm_forward.1}
  #allocation0 [shape = 'u32[]', space=smem, size = 0x4, offset = 0x4, fixed_abs, tag = 'smem constant byte address 0x4 - core index']
  #allocation1 [shape = 'u32[144,128]{1,0:T(1,128)}', space=vmem, size = 0x12000, scoped, tag = 'internal scratch']
  #allocation2 [shape = 'f32[8,2,2,64]{3,2,1,0:T(2,128)}', space=vmem, size = 0x4000, scoped, tag = 'scratch operand']
  #allocation3 [shape = 'f32[8,2,2,64]{3,2,1,0:T(2,128)}', space=vmem, size = 0x4000, scoped, tag = 'scratch operand']
  %s0 = inlined_call_operand.vmem [shape: s32[2,8], index: 0, kind: input, shape index: {}]
  %s1 = inlined_call_operand.vmem [shape: bf16[128,32], index: 1, kind: input, shape index: {}]
  %s2 = inlined_call_operand.hbm [shape: bf16[128,256], index: 2, kind: input, shape index: {}]
  %s3 = inlined_call_operand.hbm [shape: bf16[3,192,256], index: 3, kind: input, shape index: {}]
  %s4 = inlined_call_operand.vmem [shape: f32[4,1,256], index: 4, kind: input, shape index: {}]
  %s5 = inlined_call_operand.hbm [shape: bf16[96,256], index: 5, kind: input, shape index: {}]
  %s6 = inlined_call_operand.hbm [shape: bf16[3,128,256], index: 6, kind: input, shape index: {}]
  %s7 = inlined_call_operand.vmem [shape: f32[4,1,256], index: 7, kind: input, shape index: {}]
  %s8 = inlined_call_operand.vmem [shape: bf16[64,128], index: 8, kind: input, shape index: {}]
  %s9 = inlined_call_operand.vmem [shape: f32[1,128], index: 9, kind: input, shape index: {}]
  %s10 = inlined_call_operand.vmem [shape: f32[8,2,128], index: 10, kind: output, shape index: {}]
  %s11 = sld [smem:[#allocation0]]
  $region66: #{tran_lstm_forward.1} parent=0
    _
  %s13 = ssub.s32 1, %s11
  %s14 = scalar_select 0, %s13, %s11
  $region1: #{tran_lstm_forward.1} parent=0
    #allocation4 [shape = 'u8[65536]{0}', space=vmem, size = 0x10000, scoped, tag = 'input window, operand 2, single buffered']
    #allocation5 [shape = 's32[1]{0}', space=sflag, size = 0x4, scoped, tag = 'scoped memory for tran_lstm_forward.1']
    #allocation6 [shape = 'u8[294912]{0}', space=vmem, size = 0x48000, scoped, tag = 'input window, operand 3, single buffered']
    #allocation7 [shape = 's32[1]{0}', space=sflag, size = 0x4, scoped, tag = 'scoped memory for tran_lstm_forward.1']
    #allocation8 [shape = 'u8[49152]{0}', space=vmem, size = 0xc000, scoped, tag = 'input window, operand 5, single buffered']
    #allocation9 [shape = 'u8[196608]{0}', space=vmem, size = 0x30000, scoped, tag = 'input window, operand 6, single buffered']
    #allocation10 [shape = 's32[1]{0}', space=sflag, size = 0x4, scoped, tag = 'scoped memory for tran_lstm_forward.1']
    %15 = vsyncpa [#allocation5], 0
    %16 = vsyncpa [#allocation7], 0
    %17 = vsyncpa [#allocation10], 0
    // Predicated region
    $region2: #{tran_lstm_forward.1} parent=1 // pred_check
      _
    $region3: #{tran_lstm_forward.1} parent=1 // pred_check_branch
      %19 = sbr.rel (0) target = $region5
    $region4: #{tran_lstm_forward.1} parent=1 // pred_region
      _
    $region5: #{tran_lstm_forward.1} parent=1 // pred_fallthru
      _
    // Predicated region
    $region6: #{tran_lstm_forward.1} parent=1 // pred_check
      _
    $region7: #{tran_lstm_forward.1} parent=1 // pred_check_branch
      %21 = sbr.rel (0) target = $region9
    $region8: #{tran_lstm_forward.1} parent=1 // pred_region
      _
    $region9: #{tran_lstm_forward.1} parent=1 // pred_fallthru
      _
    // Predicated region
    $region10: #{tran_lstm_forward.1} parent=1 // pred_check
      _
    $region11: #{tran_lstm_forward.1} parent=1 // pred_check_branch
      %23 = sbr.rel (0) target = $region13
    $region12: #{tran_lstm_forward.1} parent=1 // pred_region
      %s25 = ssub.s32 2048, 2048
      %26 = vsyncadd [#allocation5], %s25
      %s27 = sshll.u32 [#allocation4], 4
      %s28 = int_to_ptr.vmem [resolvable:$true] %s27
      %33 = dma.hbm_to_vmem [thread:$0]  %s2, 2048, %s28, [#allocation5], 128, 128, 8
    $region13: #{tran_lstm_forward.1} parent=1 // pred_fallthru
      _
    // Predicated region
    $region14: #{tran_lstm_forward.1} parent=1 // pred_check
      _
    $region15: #{tran_lstm_forward.1} parent=1 // pred_check_branch
      %35 = sbr.rel (0) target = $region17
    $region16: #{tran_lstm_forward.1} parent=1 // pred_region
      %s37 = ssub.s32 9216, 9216
      %38 = vsyncadd [#allocation7], %s37
      %s39 = sshll.u32 [#allocation6], 4
      %s40 = int_to_ptr.vmem [resolvable:$true] %s39
      %45 = dma.hbm_to_vmem [thread:$0]  %s3, 9216, %s40, [#allocation7], 128, 128, 8
    $region17: #{tran_lstm_forward.1} parent=1 // pred_fallthru
      _
    // Predicated region
    $region18: #{tran_lstm_forward.1} parent=1 // pred_check
      _
    $region19: #{tran_lstm_forward.1} parent=1 // pred_check_branch
      %47 = sbr.rel (0) target = $region21
    $region20: #{tran_lstm_forward.1} parent=1 // pred_region
      _
    $region21: #{tran_lstm_forward.1} parent=1 // pred_fallthru
      _
    // Predicated region
    $region22: #{tran_lstm_forward.1} parent=1 // pred_check
      _
    $region23: #{tran_lstm_forward.1} parent=1 // pred_check_branch
      %49 = sbr.rel (0) target = $region25
    $region24: #{tran_lstm_forward.1} parent=1 // pred_region
      %s51 = ssub.s32 1536, 1536
      %52 = vsyncadd [#allocation7], %s51
      %s53 = sshll.u32 [#allocation8], 4
      %s54 = int_to_ptr.vmem [resolvable:$true] %s53
      %59 = dma.hbm_to_vmem [thread:$0]  %s5, 1536, %s54, [#allocation7], 128, 128, 8
    $region25: #{tran_lstm_forward.1} parent=1 // pred_fallthru
      _
    // Predicated region
    $region26: #{tran_lstm_forward.1} parent=1 // pred_check
      _
    $region27: #{tran_lstm_forward.1} parent=1 // pred_check_branch
      %61 = sbr.rel (0) target = $region29
    $region28: #{tran_lstm_forward.1} parent=1 // pred_region
      %s63 = ssub.s32 6144, 6144
      %64 = vsyncadd [#allocation10], %s63
      %s65 = sshll.u32 [#allocation9], 4
      %s66 = int_to_ptr.vmem [resolvable:$true] %s65
      %71 = dma.hbm_to_vmem [thread:$0]  %s6, 6144, %s66, [#allocation10], 128, 128, 8
    $region29: #{tran_lstm_forward.1} parent=1 // pred_fallthru
      _
    // Predicated region
    $region30: #{tran_lstm_forward.1} parent=1 // pred_check
      _
    $region31: #{tran_lstm_forward.1} parent=1 // pred_check_branch
      %73 = sbr.rel (0) target = $region33
    $region32: #{tran_lstm_forward.1} parent=1 // pred_region
      _
    $region33: #{tran_lstm_forward.1} parent=1 // pred_fallthru
      _
    // Predicated region
    $region34: #{tran_lstm_forward.1} parent=1 // pred_check
      _
    $region35: #{tran_lstm_forward.1} parent=1 // pred_check_branch
      %75 = sbr.rel (0) target = $region37
    $region36: #{tran_lstm_forward.1} parent=1 // pred_region
      _
    $region37: #{tran_lstm_forward.1} parent=1 // pred_fallthru
      _
    // Predicated region
    $region38: #{tran_lstm_forward.1} parent=1 // pred_check
      _
    $region39: #{tran_lstm_forward.1} parent=1 // pred_check_branch
      %77 = sbr.rel (0) target = $region41
    $region40: #{tran_lstm_forward.1} parent=1 // pred_region
      _
    $region41: #{tran_lstm_forward.1} parent=1 // pred_fallthru
      _
    // Predicated region
    $region42: #{tran_lstm_forward.1} parent=1 // pred_check
      _
    $region43: #{tran_lstm_forward.1} parent=1 // pred_check_branch
      %79 = sbr.rel (0) target = $region45
    $region44: #{tran_lstm_forward.1} parent=1 // pred_region
      %80 = dma.done [#allocation5], 2048
    $region45: #{tran_lstm_forward.1} parent=1 // pred_fallthru
      _
    // Predicated region
    $region46: #{tran_lstm_forward.1} parent=1 // pred_check
      _
    $region47: #{tran_lstm_forward.1} parent=1 // pred_check_branch
      %82 = sbr.rel (0) target = $region49
    $region48: #{tran_lstm_forward.1} parent=1 // pred_region
      %83 = dma.done [#allocation7], 9216
    $region49: #{tran_lstm_forward.1} parent=1 // pred_fallthru
      _
    // Predicated region
    $region50: #{tran_lstm_forward.1} parent=1 // pred_check
      _
    $region51: #{tran_lstm_forward.1} parent=1 // pred_check_branch
      %85 = sbr.rel (0) target = $region53
    $region52: #{tran_lstm_forward.1} parent=1 // pred_region
      %86 = dma.done [#allocation7], 1536
    $region53: #{tran_lstm_forward.1} parent=1 // pred_fallthru
      _
    // Predicated region
    $region54: #{tran_lstm_forward.1} parent=1 // pred_check
      _
    $region55: #{tran_lstm_forward.1} parent=1 // pred_check_branch
      %88 = sbr.rel (0) target = $region57
    $region56: #{tran_lstm_forward.1} parent=1 // pred_region
      %89 = dma.done [#allocation10], 6144
    $region57: #{tran_lstm_forward.1} parent=1 // pred_fallthru
      _
    %v91 = vld [vmem:[%s0] sm:$0x3]
    %v92 = vld [vmem:[%s1] sm:$0xf]
    %v93 = vld [vmem:[%s1 + $0x4] sm:$0xf]
    %v94 = vld [vmem:[%s1 + $0x8] sm:$0xf]
    %v95 = vld [vmem:[%s1 + $0xc] sm:$0xf]
    %v96 = vld [vmem:[%s1 + $0x10] sm:$0xf]
    %v97 = vld [vmem:[%s1 + $0x14] sm:$0xf]
    %v98 = vld [vmem:[%s1 + $0x18] sm:$0xf]
    %v99 = vld [vmem:[%s1 + $0x1c] sm:$0xf]
    %v100 = vld [vmem:[%s1 + $0x20] sm:$0xf]
    %v101 = vld [vmem:[%s1 + $0x24] sm:$0xf]
    %v102 = vld [vmem:[%s1 + $0x28] sm:$0xf]
    %v103 = vld [vmem:[%s1 + $0x2c] sm:$0xf]
    %v104 = vld [vmem:[%s1 + $0x30] sm:$0xf]
    %v105 = vld [vmem:[%s1 + $0x34] sm:$0xf]
    %v106 = vld [vmem:[%s1 + $0x38] sm:$0xf]
    %v107 = vld [vmem:[%s1 + $0x3c] sm:$0xf]
    %v108 = vlaneseq
    %v109 = vand.u32 %v108, 127
    %110 = vset.pattern.permute.xlu0 0
    %111 = vperm.xlu0 %110, %v91
    %v112 = vpop.permute.xlu0 %111
    %vm113 = vcmp.eq.s32.totalorder %v109, %v112
    %v114 = vsel %vm113, 1, 0
    %v115 = vcvt.s32.f32 %v114
    %v116 = vlaneseq
    %v117 = vshrl.u32 %v116, 7
    %v118 = vsub.s32 0, %v117
    %v119 = vrot.slane %v115, %v118
    %120 = vst [vmem:[%s10] sm:$0x3] %v119
    %v121 = vpack.c.bf16 %v115, %v115
    %v138 = vunpack.c.l.b16 %v92
    %v139 = vunpack.c.l.b16 %v93
    %v140 = vunpack.c.l.b16 %v94
    %v141 = vunpack.c.l.b16 %v95
    %v142 = vunpack.c.l.b16 %v96
    %v143 = vunpack.c.l.b16 %v97
    %v144 = vunpack.c.l.b16 %v98
    %v145 = vunpack.c.l.b16 %v99
    %v146 = vunpack.c.l.b16 %v100
    %v147 = vunpack.c.l.b16 %v101
    %v148 = vunpack.c.l.b16 %v102
    %v149 = vunpack.c.l.b16 %v103
    %v150 = vunpack.c.l.b16 %v104
    %v151 = vunpack.c.l.b16 %v105
    %v152 = vunpack.c.l.b16 %v106
    %v153 = vunpack.c.l.b16 %v107
    %v154 = vpack.c.b16 %v139, %v138
    %v155 = vpack.c.b16 %v141, %v140
    %v156 = vpack.c.b16 %v143, %v142
    %v157 = vpack.c.b16 %v145, %v144
    %v158 = vpack.c.b16 %v147, %v146
    %v159 = vpack.c.b16 %v149, %v148
    %v160 = vpack.c.b16 %v151, %v150
    %v161 = vpack.c.b16 %v153, %v152
    %170 = vmatprep.subr.bf16.mxu0 0
    %171 = vmatpush1.bf16.msra.mxu0 %v161
    %172 = vmatprep.subr.bf16.mxu0 0
    %173 = vmatpush1.bf16.msra.mxu0 %v160
    %174 = vmatprep.subr.bf16.mxu0 0
    %175 = vmatpush1.bf16.msra.mxu0 %v159
    %176 = vmatprep.subr.bf16.mxu0 0
    %177 = vmatpush1.bf16.msra.mxu0 %v158
    %178 = vmatprep.subr.bf16.mxu0 0
    %179 = vmatpush1.bf16.msra.mxu0 %v157
    %180 = vmatprep.subr.bf16.mxu0 0
    %181 = vmatpush1.bf16.msra.mxu0 %v156
    %182 = vmatprep.subr.bf16.mxu0 0
    %183 = vmatpush1.bf16.msra.mxu0 %v155
    %184 = vmatprep.subr.bf16.mxu0 0
    %185 = vmatpush1.bf16.msra.mxu0 %v154
    %186 = vmatprep.subr.bf16.mxu0 0
    %187 = vmatpush2.bf16.msra.mxu0 0
    %188 = vmatprep.subr.bf16.mxu0 0
    %189 = vmatpush2.bf16.msra.mxu0 0
    %190 = vmatprep.subr.bf16.mxu0 0
    %191 = vmatpush2.bf16.msra.mxu0 0
    %192 = vmatprep.subr.bf16.mxu0 0
    %193 = vmatpush2.bf16.msra.mxu0 0
    %194 = vmatprep.subr.bf16.mxu0 0
    %195 = vmatpush2.bf16.msra.mxu0 0
    %196 = vmatprep.subr.bf16.mxu0 0
    %197 = vmatpush2.bf16.msra.mxu0 0
    %198 = vmatprep.subr.bf16.mxu0 0
    %199 = vmatpush2.bf16.msra.mxu0 0
    %200 = vmatprep.subr.bf16.mxu0 0
    %201 = vmatpush2.bf16.msra.mxu0 0
    %202 = vmatprep.mubr.bf16.mxu0 0
    %203 = vmatmul.mubr.bf16.gmra.mxu0 %v121
    %v204 = vpop.f32.mrf.mxu0
    %v205 = vadd.f32 0.0, %v204
    %v206 = vpop.f32.mrf.mxu0
    %v207 = vpop.f32.mrf.mxu0
    %v208 = vpop.f32.mrf.mxu0
    %209 = vdwg.mxu0
    %210 = vset.pattern.permute.xlu0 1
    %211 = vperm.xlu0 %210, %v91
    %v212 = vpop.permute.xlu0 %211
    %vm213 = vcmp.eq.s32.totalorder %v109, %v212
    %v214 = vsel %vm213, 1, 0
    %v215 = vcvt.s32.f32 %v214
    %v216 = vpack.c.bf16 %v215, %v215
    %217 = vmatprep.subr.bf16.mxu0 0
    %218 = vmatpush1.bf16.msra.mxu0 %v161
    %219 = vmatprep.subr.bf16.mxu0 0
    %220 = vmatpush1.bf16.msra.mxu0 %v160
    %221 = vmatprep.subr.bf16.mxu0 0
    %222 = vmatpush1.bf16.msra.mxu0 %v159
    %223 = vmatprep.subr.bf16.mxu0 0
    %224 = vmatpush1.bf16.msra.mxu0 %v158
    %225 = vmatprep.subr.bf16.mxu0 0
    %226 = vmatpush1.bf16.msra.mxu0 %v157
    %227 = vmatprep.subr.bf16.mxu0 0
    %228 = vmatpush1.bf16.msra.mxu0 %v156
    %229 = vmatprep.subr.bf16.mxu0 0
    %230 = vmatpush1.bf16.msra.mxu0 %v155
    %231 = vmatprep.subr.bf16.mxu0 0
    %232 = vmatpush1.bf16.msra.mxu0 %v154
    %233 = vmatprep.subr.bf16.mxu0 0
    %234 = vmatpush2.bf16.msra.mxu0 0
    %235 = vmatprep.subr.bf16.mxu0 0
    %236 = vmatpush2.bf16.msra.mxu0 0
    %237 = vmatprep.subr.bf16.mxu0 0
    %238 = vmatpush2.bf16.msra.mxu0 0
    %239 = vmatprep.subr.bf16.mxu0 0
    %240 = vmatpush2.bf16.msra.mxu0 0
    %241 = vmatprep.subr.bf16.mxu0 0
    %242 = vmatpush2.bf16.msra.mxu0 0
    %243 = vmatprep.subr.bf16.mxu0 0
    %244 = vmatpush2.bf16.msra.mxu0 0
    %245 = vmatprep.subr.bf16.mxu0 0
    %246 = vmatpush2.bf16.msra.mxu0 0
    %247 = vmatprep.subr.bf16.mxu0 0
    %248 = vmatpush2.bf16.msra.mxu0 0
    %249 = vmatprep.mubr.bf16.mxu0 0
    %250 = vmatmul.mubr.bf16.gmra.mxu0 %v216
    %v251 = vpop.f32.mrf.mxu0
    %v252 = vadd.f32 0.0, %v251
    %v253 = vpop.f32.mrf.mxu0
    %v254 = vpop.f32.mrf.mxu0
    %v255 = vpop.f32.mrf.mxu0
    %256 = vdwg.mxu0
    %257 = vset.pattern.permute.xlu0 2
    %258 = vperm.xlu0 %257, %v91
    %v259 = vpop.permute.xlu0 %258
    %vm260 = vcmp.eq.s32.totalorder %v109, %v259
    %v261 = vsel %vm260, 1, 0
    %v262 = vcvt.s32.f32 %v261
    %v263 = vpack.c.bf16 %v262, %v262
    %264 = vmatprep.subr.bf16.mxu0 0
    %265 = vmatpush1.bf16.msra.mxu0 %v161
    %266 = vmatprep.subr.bf16.mxu0 0
    %267 = vmatpush1.bf16.msra.mxu0 %v160
    %268 = vmatprep.subr.bf16.mxu0 0
    %269 = vmatpush1.bf16.msra.mxu0 %v159
    %270 = vmatprep.subr.bf16.mxu0 0
    %271 = vmatpush1.bf16.msra.mxu0 %v158
    %272 = vmatprep.subr.bf16.mxu0 0
    %273 = vmatpush1.bf16.msra.mxu0 %v157
    %274 = vmatprep.subr.bf16.mxu0 0
    %275 = vmatpush1.bf16.msra.mxu0 %v156
    %276 = vmatprep.subr.bf16.mxu0 0
    %277 = vmatpush1.bf16.msra.mxu0 %v155
    %278 = vmatprep.subr.bf16.mxu0 0
    %279 = vmatpush1.bf16.msra.mxu0 %v154
    %280 = vmatprep.subr.bf16.mxu0 0
    %281 = vmatpush2.bf16.msra.mxu0 0
    %282 = vmatprep.subr.bf16.mxu0 0
    %283 = vmatpush2.bf16.msra.mxu0 0
    %284 = vmatprep.subr.bf16.mxu0 0
    %285 = vmatpush2.bf16.msra.mxu0 0
    %286 = vmatprep.subr.bf16.mxu0 0
    %287 = vmatpush2.bf16.msra.mxu0 0
    %288 = vmatprep.subr.bf16.mxu0 0
    %289 = vmatpush2.bf16.msra.mxu0 0
    %290 = vmatprep.subr.bf16.mxu0 0
    %291 = vmatpush2.bf16.msra.mxu0 0
    %292 = vmatprep.subr.bf16.mxu0 0
    %293 = vmatpush2.bf16.msra.mxu0 0
    %294 = vmatprep.subr.bf16.mxu0 0
    %295 = vmatpush2.bf16.msra.mxu0 0
    %296 = vmatprep.mubr.bf16.mxu0 0
    %297 = vmatmul.mubr.bf16.gmra.mxu0 %v263
    %v298 = vpop.f32.mrf.mxu0
    %v299 = vadd.f32 0.0, %v298
    %v300 = vpop.f32.mrf.mxu0
    %v301 = vpop.f32.mrf.mxu0
    %v302 = vpop.f32.mrf.mxu0
    %303 = vdwg.mxu0
    %304 = vset.pattern.permute.xlu0 3
    %305 = vperm.xlu0 %304, %v91
    %v306 = vpop.permute.xlu0 %305
    %vm307 = vcmp.eq.s32.totalorder %v109, %v306
    %v308 = vsel %vm307, 1, 0
    %v309 = vcvt.s32.f32 %v308
    %v310 = vpack.c.bf16 %v309, %v309
    %311 = vmatprep.subr.bf16.mxu0 0
    %312 = vmatpush1.bf16.msra.mxu0 %v161
    %313 = vmatprep.subr.bf16.mxu0 0
    %314 = vmatpush1.bf16.msra.mxu0 %v160
    %315 = vmatprep.subr.bf16.mxu0 0
    %316 = vmatpush1.bf16.msra.mxu0 %v159
    %317 = vmatprep.subr.bf16.mxu0 0
    %318 = vmatpush1.bf16.msra.mxu0 %v158
    %319 = vmatprep.subr.bf16.mxu0 0
    %320 = vmatpush1.bf16.msra.mxu0 %v157
    %321 = vmatprep.subr.bf16.mxu0 0
    %322 = vmatpush1.bf16.msra.mxu0 %v156
    %323 = vmatprep.subr.bf16.mxu0 0
    %324 = vmatpush1.bf16.msra.mxu0 %v155
    %325 = vmatprep.subr.bf16.mxu0 0
    %326 = vmatpush1.bf16.msra.mxu0 %v154
    %327 = vmatprep.subr.bf16.mxu0 0
    %328 = vmatpush2.bf16.msra.mxu0 0
    %329 = vmatprep.subr.bf16.mxu0 0
    %330 = vmatpush2.bf16.msra.mxu0 0
    %331 = vmatprep.subr.bf16.mxu0 0
    %332 = vmatpush2.bf16.msra.mxu0 0
    %333 = vmatprep.subr.bf16.mxu0 0
    %334 = vmatpush2.bf16.msra.mxu0 0
    %335 = vmatprep.subr.bf16.mxu0 0
    %336 = vmatpush2.bf16.msra.mxu0 0
    %337 = vmatprep.subr.bf16.mxu0 0
    %338 = vmatpush2.bf16.msra.mxu0 0
    %339 = vmatprep.subr.bf16.mxu0 0
    %340 = vmatpush2.bf16.msra.mxu0 0
    %341 = vmatprep.subr.bf16.mxu0 0
    %342 = vmatpush2.bf16.msra.mxu0 0
    %343 = vmatprep.mubr.bf16.mxu0 0
    %344 = vmatmul.mubr.bf16.gmra.mxu0 %v310
    %v345 = vpop.f32.mrf.mxu0
    %v346 = vadd.f32 0.0, %v345
    %v347 = vpop.f32.mrf.mxu0
    %v348 = vpop.f32.mrf.mxu0
    %v349 = vpop.f32.mrf.mxu0
    %350 = vdwg.mxu0
    %351 = vset.pattern.permute.xlu0 4
    %352 = vperm.xlu0 %351, %v91
    %v353 = vpop.permute.xlu0 %352
    %vm354 = vcmp.eq.s32.totalorder %v109, %v353
    %v355 = vsel %vm354, 1, 0
    %v356 = vcvt.s32.f32 %v355
    %v357 = vpack.c.bf16 %v356, %v356
    %358 = vmatprep.subr.bf16.mxu0 0
    %359 = vmatpush1.bf16.msra.mxu0 %v161
    %360 = vmatprep.subr.bf16.mxu0 0
    %361 = vmatpush1.bf16.msra.mxu0 %v160
    %362 = vmatprep.subr.bf16.mxu0 0
    %363 = vmatpush1.bf16.msra.mxu0 %v159
    %364 = vmatprep.subr.bf16.mxu0 0
    %365 = vmatpush1.bf16.msra.mxu0 %v158
    %366 = vmatprep.subr.bf16.mxu0 0
    %367 = vmatpush1.bf16.msra.mxu0 %v157
    %368 = vmatprep.subr.bf16.mxu0 0
    %369 = vmatpush1.bf16.msra.mxu0 %v156
    %370 = vmatprep.subr.bf16.mxu0 0
    %371 = vmatpush1.bf16.msra.mxu0 %v155
    %372 = vmatprep.subr.bf16.mxu0 0
    %373 = vmatpush1.bf16.msra.mxu0 %v154
    %374 = vmatprep.subr.bf16.mxu0 0
    %375 = vmatpush2.bf16.msra.mxu0 0
    %376 = vmatprep.subr.bf16.mxu0 0
    %377 = vmatpush2.bf16.msra.mxu0 0
    %378 = vmatprep.subr.bf16.mxu0 0
    %379 = vmatpush2.bf16.msra.mxu0 0
    %380 = vmatprep.subr.bf16.mxu0 0
    %381 = vmatpush2.bf16.msra.mxu0 0
    %382 = vmatprep.subr.bf16.mxu0 0
    %383 = vmatpush2.bf16.msra.mxu0 0
    %384 = vmatprep.subr.bf16.mxu0 0
    %385 = vmatpush2.bf16.msra.mxu0 0
    %386 = vmatprep.subr.bf16.mxu0 0
    %387 = vmatpush2.bf16.msra.mxu0 0
    %388 = vmatprep.subr.bf16.mxu0 0
    %389 = vmatpush2.bf16.msra.mxu0 0
    %390 = vmatprep.mubr.bf16.mxu0 0
    %391 = vmatmul.mubr.bf16.gmra.mxu0 %v357
    %v392 = vpop.f32.mrf.mxu0
    %v393 = vadd.f32 0.0, %v392
    %v394 = vpop.f32.mrf.mxu0
    %v395 = vpop.f32.mrf.mxu0
    %v396 = vpop.f32.mrf.mxu0
    %397 = vdwg.mxu0
    %398 = vset.pattern.permute.xlu0 5
    %399 = vperm.xlu0 %398, %v91
    %v400 = vpop.permute.xlu0 %399
    %vm401 = vcmp.eq.s32.totalorder %v109, %v400
    %v402 = vsel %vm401, 1, 0
    %v403 = vcvt.s32.f32 %v402
    %v404 = vpack.c.bf16 %v403, %v403
    %405 = vmatprep.subr.bf16.mxu0 0
    %406 = vmatpush1.bf16.msra.mxu0 %v161
    %407 = vmatprep.subr.bf16.mxu0 0
    %408 = vmatpush1.bf16.msra.mxu0 %v160
    %409 = vmatprep.subr.bf16.mxu0 0
    %410 = vmatpush1.bf16.msra.mxu0 %v159
    %411 = vmatprep.subr.bf16.mxu0 0
    %412 = vmatpush1.bf16.msra.mxu0 %v158
    %413 = vmatprep.subr.bf16.mxu0 0
    %414 = vmatpush1.bf16.msra.mxu0 %v157
    %415 = vmatprep.subr.bf16.mxu0 0
    %416 = vmatpush1.bf16.msra.mxu0 %v156
    %417 = vmatprep.subr.bf16.mxu0 0
    %418 = vmatpush1.bf16.msra.mxu0 %v155
    %419 = vmatprep.subr.bf16.mxu0 0
    %420 = vmatpush1.bf16.msra.mxu0 %v154
    %421 = vmatprep.subr.bf16.mxu0 0
    %422 = vmatpush2.bf16.msra.mxu0 0
    %423 = vmatprep.subr.bf16.mxu0 0
    %424 = vmatpush2.bf16.msra.mxu0 0
    %425 = vmatprep.subr.bf16.mxu0 0
    %426 = vmatpush2.bf16.msra.mxu0 0
    %427 = vmatprep.subr.bf16.mxu0 0
    %428 = vmatpush2.bf16.msra.mxu0 0
    %429 = vmatprep.subr.bf16.mxu0 0
    %430 = vmatpush2.bf16.msra.mxu0 0
    %431 = vmatprep.subr.bf16.mxu0 0
    %432 = vmatpush2.bf16.msra.mxu0 0
    %433 = vmatprep.subr.bf16.mxu0 0
    %434 = vmatpush2.bf16.msra.mxu0 0
    %435 = vmatprep.subr.bf16.mxu0 0
    %436 = vmatpush2.bf16.msra.mxu0 0
    %437 = vmatprep.mubr.bf16.mxu0 0
    %438 = vmatmul.mubr.bf16.gmra.mxu0 %v404
    %v439 = vpop.f32.mrf.mxu0
    %v440 = vadd.f32 0.0, %v439
    %v441 = vpop.f32.mrf.mxu0
    %v442 = vpop.f32.mrf.mxu0
    %v443 = vpop.f32.mrf.mxu0
    %444 = vdwg.mxu0
    %445 = vset.pattern.permute.xlu0 6
    %446 = vperm.xlu0 %445, %v91
    %v447 = vpop.permute.xlu0 %446
    %vm448 = vcmp.eq.s32.totalorder %v109, %v447
    %v449 = vsel %vm448, 1, 0
    %v450 = vcvt.s32.f32 %v449
    %v451 = vpack.c.bf16 %v450, %v450
    %452 = vmatprep.subr.bf16.mxu0 0
    %453 = vmatpush1.bf16.msra.mxu0 %v161
    %454 = vmatprep.subr.bf16.mxu0 0
    %455 = vmatpush1.bf16.msra.mxu0 %v160
    %456 = vmatprep.subr.bf16.mxu0 0
    %457 = vmatpush1.bf16.msra.mxu0 %v159
    %458 = vmatprep.subr.bf16.mxu0 0
    %459 = vmatpush1.bf16.msra.mxu0 %v158
    %460 = vmatprep.subr.bf16.mxu0 0
    %461 = vmatpush1.bf16.msra.mxu0 %v157
    %462 = vmatprep.subr.bf16.mxu0 0
    %463 = vmatpush1.bf16.msra.mxu0 %v156
    %464 = vmatprep.subr.bf16.mxu0 0
    %465 = vmatpush1.bf16.msra.mxu0 %v155
    %466 = vmatprep.subr.bf16.mxu0 0
    %467 = vmatpush1.bf16.msra.mxu0 %v154
    %468 = vmatprep.subr.bf16.mxu0 0
    %469 = vmatpush2.bf16.msra.mxu0 0
    %470 = vmatprep.subr.bf16.mxu0 0
    %471 = vmatpush2.bf16.msra.mxu0 0
    %472 = vmatprep.subr.bf16.mxu0 0
    %473 = vmatpush2.bf16.msra.mxu0 0
    %474 = vmatprep.subr.bf16.mxu0 0
    %475 = vmatpush2.bf16.msra.mxu0 0
    %476 = vmatprep.subr.bf16.mxu0 0
    %477 = vmatpush2.bf16.msra.mxu0 0
    %478 = vmatprep.subr.bf16.mxu0 0
    %479 = vmatpush2.bf16.msra.mxu0 0
    %480 = vmatprep.subr.bf16.mxu0 0
    %481 = vmatpush2.bf16.msra.mxu0 0
    %482 = vmatprep.subr.bf16.mxu0 0
    %483 = vmatpush2.bf16.msra.mxu0 0
    %484 = vmatprep.mubr.bf16.mxu0 0
    %485 = vmatmul.mubr.bf16.gmra.mxu0 %v451
    %v486 = vpop.f32.mrf.mxu0
    %v487 = vadd.f32 0.0, %v486
    %v488 = vpop.f32.mrf.mxu0
    %v489 = vpop.f32.mrf.mxu0
    %v490 = vpop.f32.mrf.mxu0
    %491 = vdwg.mxu0
    %492 = vset.pattern.permute.xlu0 7
    %493 = vperm.xlu0 %492, %v91
    %v494 = vpop.permute.xlu0 %493
    %vm495 = vcmp.eq.s32.totalorder %v109, %v494
    %v496 = vsel %vm495, 1, 0
    %v497 = vcvt.s32.f32 %v496
    %v498 = vpack.c.bf16 %v497, %v497
    %499 = vmatprep.subr.bf16.mxu0 0
    %500 = vmatpush1.bf16.msra.mxu0 %v161
    %501 = vmatprep.subr.bf16.mxu0 0
    %502 = vmatpush1.bf16.msra.mxu0 %v160
    %503 = vmatprep.subr.bf16.mxu0 0
    %504 = vmatpush1.bf16.msra.mxu0 %v159
    %505 = vmatprep.subr.bf16.mxu0 0
    %506 = vmatpush1.bf16.msra.mxu0 %v158
    %507 = vmatprep.subr.bf16.mxu0 0
    %508 = vmatpush1.bf16.msra.mxu0 %v157
    %509 = vmatprep.subr.bf16.mxu0 0
    %510 = vmatpush1.bf16.msra.mxu0 %v156
    %511 = vmatprep.subr.bf16.mxu0 0
    %512 = vmatpush1.bf16.msra.mxu0 %v155
    %513 = vmatprep.subr.bf16.mxu0 0
    %514 = vmatpush1.bf16.msra.mxu0 %v154
    %515 = vmatprep.subr.bf16.mxu0 0
    %516 = vmatpush2.bf16.msra.mxu0 0
    %517 = vmatprep.subr.bf16.mxu0 0
    %518 = vmatpush2.bf16.msra.mxu0 0
    %519 = vmatprep.subr.bf16.mxu0 0
    %520 = vmatpush2.bf16.msra.mxu0 0
    %521 = vmatprep.subr.bf16.mxu0 0
    %522 = vmatpush2.bf16.msra.mxu0 0
    %523 = vmatprep.subr.bf16.mxu0 0
    %524 = vmatpush2.bf16.msra.mxu0 0
    %525 = vmatprep.subr.bf16.mxu0 0
    %526 = vmatpush2.bf16.msra.mxu0 0
    %527 = vmatprep.subr.bf16.mxu0 0
    %528 = vmatpush2.bf16.msra.mxu0 0
    %529 = vmatprep.subr.bf16.mxu0 0
    %530 = vmatpush2.bf16.msra.mxu0 0
    %531 = vmatprep.mubr.bf16.mxu0 0
    %532 = vmatmul.mubr.bf16.gmra.mxu0 %v498
    %v533 = vpop.f32.mrf.mxu0
    %v534 = vadd.f32 0.0, %v533
    %v535 = vpop.f32.mrf.mxu0
    %v536 = vpop.f32.mrf.mxu0
    %v537 = vpop.f32.mrf.mxu0
    %538 = vdwg.mxu0
    %v539 = vld [vmem:[#allocation4] sm:$0xff]
    %v540 = vld [vmem:[#allocation4 + $0x8] sm:$0xff]
    %v541 = vld [vmem:[#allocation4 + $0x10] sm:$0xff]
    %v542 = vld [vmem:[#allocation4 + $0x18] sm:$0xff]
    %v543 = vld [vmem:[#allocation4 + $0x20] sm:$0xff]
    %v544 = vld [vmem:[#allocation4 + $0x28] sm:$0xff]
    %v545 = vld [vmem:[#allocation4 + $0x30] sm:$0xff]
    %v546 = vld [vmem:[#allocation4 + $0x38] sm:$0xff]
    %v547 = vld [vmem:[#allocation4 + $0x40] sm:$0xff]
    %v548 = vld [vmem:[#allocation4 + $0x48] sm:$0xff]
    %v549 = vld [vmem:[#allocation4 + $0x50] sm:$0xff]
    %v550 = vld [vmem:[#allocation4 + $0x58] sm:$0xff]
    %v551 = vld [vmem:[#allocation4 + $0x60] sm:$0xff]
    %v552 = vld [vmem:[#allocation4 + $0x68] sm:$0xff]
    %v553 = vld [vmem:[#allocation4 + $0x70] sm:$0xff]
    %v554 = vld [vmem:[#allocation4 + $0x78] sm:$0xff]
    %v555 = vld [vmem:[%s4] sm:$0x3]
    %557 = vrot.lane.b32.xlu0 %v534, 32
    %v558 = vpop.permute.xlu0 %557
    %vm560 = vcmask 261120
    %v561 = vsel %vm560, %v205, %v558
    %vm562 = vcmask 523264
    %v563 = vsel %vm562, %v561, 0.0
    %v564 = vpack.c.bf16 %v563, %v563
    %v566 = vlaneseq
    %v567 = vshrl.u32 %v566, 7
    %v568 = vsub.s32 0, %v567
    %v569 = vrot.slane %v555, %v568
    %v570 = vlaneseq
    %v571 = vshrl.u32 %v570, 7
    %v572 = vsub.s32 1, %v571
    %v573 = vrot.slane %v555, %v572
    %v592 = vunpack.c.l.b16 %v539
    %v593 = vunpack.c.h.b16 %v539
    %v594 = vunpack.c.l.b16 %v540
    %v595 = vunpack.c.h.b16 %v540
    %v596 = vunpack.c.l.b16 %v541
    %v597 = vunpack.c.h.b16 %v541
    %v598 = vunpack.c.l.b16 %v542
    %v599 = vunpack.c.h.b16 %v542
    %v600 = vunpack.c.l.b16 %v543
    %v601 = vunpack.c.h.b16 %v543
    %v602 = vunpack.c.l.b16 %v544
    %v603 = vunpack.c.h.b16 %v544
    %v604 = vunpack.c.l.b16 %v545
    %v605 = vunpack.c.h.b16 %v545
    %v606 = vunpack.c.l.b16 %v546
    %v607 = vunpack.c.h.b16 %v546
    %v608 = vunpack.c.l.b16 %v547
    %v609 = vunpack.c.h.b16 %v547
    %v610 = vunpack.c.l.b16 %v548
    %v611 = vunpack.c.h.b16 %v548
    %v612 = vunpack.c.l.b16 %v549
    %v613 = vunpack.c.h.b16 %v549
    %v614 = vunpack.c.l.b16 %v550
    %v615 = vunpack.c.h.b16 %v550
    %v616 = vunpack.c.l.b16 %v551
    %v617 = vunpack.c.h.b16 %v551
    %v618 = vunpack.c.l.b16 %v552
    %v619 = vunpack.c.h.b16 %v552
    %v620 = vunpack.c.l.b16 %v553
    %v621 = vunpack.c.h.b16 %v553
    %v622 = vunpack.c.l.b16 %v554
    %v623 = vunpack.c.h.b16 %v554
    %v624 = vpack.c.b16 %v594, %v592
    %v625 = vpack.c.b16 %v595, %v593
    %v626 = vpack.c.b16 %v598, %v596
    %v627 = vpack.c.b16 %v599, %v597
    %v628 = vpack.c.b16 %v602, %v600
    %v629 = vpack.c.b16 %v603, %v601
    %v630 = vpack.c.b16 %v606, %v604
    %v631 = vpack.c.b16 %v607, %v605
    %v632 = vpack.c.b16 %v610, %v608
    %v633 = vpack.c.b16 %v611, %v609
    %v634 = vpack.c.b16 %v614, %v612
    %v635 = vpack.c.b16 %v615, %v613
    %v636 = vpack.c.b16 %v618, %v616
    %v637 = vpack.c.b16 %v619, %v617
    %v638 = vpack.c.b16 %v622, %v620
    %v639 = vpack.c.b16 %v623, %v621
    %656 = vmatprep.subr.bf16.mxu0 %v639
    %657 = vmatpush1.bf16.msra.mxu0 %v638
    %658 = vmatprep.subr.bf16.mxu0 %v637
    %659 = vmatpush1.bf16.msra.mxu0 %v636
    %660 = vmatprep.subr.bf16.mxu0 %v635
    %661 = vmatpush1.bf16.msra.mxu0 %v634
    %662 = vmatprep.subr.bf16.mxu0 %v633
    %663 = vmatpush1.bf16.msra.mxu0 %v632
    %664 = vmatprep.subr.bf16.mxu0 %v631
    %665 = vmatpush1.bf16.msra.mxu0 %v630
    %666 = vmatprep.subr.bf16.mxu0 %v629
    %667 = vmatpush1.bf16.msra.mxu0 %v628
    %668 = vmatprep.subr.bf16.mxu0 %v627
    %669 = vmatpush1.bf16.msra.mxu0 %v626
    %670 = vmatprep.subr.bf16.mxu0 %v625
    %671 = vmatpush1.bf16.msra.mxu0 %v624
    %672 = vmatprep.subr.bf16.mxu0 0
    %673 = vmatpush2.bf16.msra.mxu0 0
    %674 = vmatprep.subr.bf16.mxu0 0
    %675 = vmatpush2.bf16.msra.mxu0 0
    %676 = vmatprep.subr.bf16.mxu0 0
    %677 = vmatpush2.bf16.msra.mxu0 0
    %678 = vmatprep.subr.bf16.mxu0 0
    %679 = vmatpush2.bf16.msra.mxu0 0
    %680 = vmatprep.subr.bf16.mxu0 0
    %681 = vmatpush2.bf16.msra.mxu0 0
    %682 = vmatprep.subr.bf16.mxu0 0
    %683 = vmatpush2.bf16.msra.mxu0 0
    %684 = vmatprep.subr.bf16.mxu0 0
    %685 = vmatpush2.bf16.msra.mxu0 0
    %686 = vmatprep.subr.bf16.mxu0 0
    %687 = vmatpush2.bf16.msra.mxu0 0
    %688 = vmatprep.mubr.bf16.mxu0 0
    %689 = vmatmul.mubr.bf16.gmra.mxu0 %v564
    %v690 = vpop.f32.mrf.mxu0
    %v691 = vadd.f32 %v569, %v690
    %v692 = vpop.f32.mrf.mxu0
    %v693 = vadd.f32 %v573, %v692
    %v694 = vpop.f32.mrf.mxu0
    %v695 = vpop.f32.mrf.mxu0
    %696 = vdwg.mxu0
    %v697 = vxor.u32 %v691, 2147483648
    %v698 = vxor.u32 %v693, 2147483648
    %v699 = vmul.f32 %v697, 1.442695
    %v700 = vpow.pop %v699
    %v701 = vmul.f32 %v698, 1.442695
    %v702 = vpow.pop %v701
    %v703 = vadd.f32 %v700, 1.0
    %v704 = vadd.f32 %v702, 1.0
    %v705 = vrcp.pop %v703
    %v706 = vmul.f32 1.0, %v705
    %v707 = vrcp.pop %v704
    %v708 = vmul.f32 1.0, %v707
    %v709 = vtanh.pop %v693
    %v710 = vmul.f32 %v706, 0.0
    %712 = vrot.lane.b32.xlu0 %v709, 64
    %v713 = vpop.permute.xlu0 %712
    %v715 = vmul.f32 %v706, %v713
    %717 = vrot.lane.b32.xlu0 %v715, 64
    %v718 = vpop.permute.xlu0 %717
    %v720 = vadd.f32 %v710, %v718
    %v721 = vtanh.pop %v720
    %723 = vrot.lane.b32.xlu0 %v721, 64
    %v724 = vpop.permute.xlu0 %723
    %v726 = vmul.f32 %v708, %v724
    %vm727 = vcmask 517120
    %728 = vst.msk [vmem:[#allocation3] sm:$0x3] %vm727, %v726
    %s729 = scalar_lea.vmem [#allocation3], 30
    %730 = vst.msk [vmem:[%s729] sm:$0x3] %vm727, %v726
    %732 = vrot.lane.b32.xlu0 %v487, 32
    %v733 = vpop.permute.xlu0 %732
    %736 = vrot.lane.b32.xlu0 %v726, 64
    %v737 = vpop.permute.xlu0 %736
    %v739 = vsel %vm560, %v252, %v733
    %v740 = vsel %vm562, %v739, %v737
    %v741 = vpack.c.bf16 %v740, %v740
    %742 = vmatprep.subr.bf16.mxu0 %v639
    %743 = vmatpush1.bf16.msra.mxu0 %v638
    %744 = vmatprep.subr.bf16.mxu0 %v637
    %745 = vmatpush1.bf16.msra.mxu0 %v636
    %746 = vmatprep.subr.bf16.mxu0 %v635
    %747 = vmatpush1.bf16.msra.mxu0 %v634
    %748 = vmatprep.subr.bf16.mxu0 %v633
    %749 = vmatpush1.bf16.msra.mxu0 %v632
    %750 = vmatprep.subr.bf16.mxu0 %v631
    %751 = vmatpush1.bf16.msra.mxu0 %v630
    %752 = vmatprep.subr.bf16.mxu0 %v629
    %753 = vmatpush1.bf16.msra.mxu0 %v628
    %754 = vmatprep.subr.bf16.mxu0 %v627
    %755 = vmatpush1.bf16.msra.mxu0 %v626
    %756 = vmatprep.subr.bf16.mxu0 %v625
    %757 = vmatpush1.bf16.msra.mxu0 %v624
    %758 = vmatprep.subr.bf16.mxu0 0
    %759 = vmatpush2.bf16.msra.mxu0 0
    %760 = vmatprep.subr.bf16.mxu0 0
    %761 = vmatpush2.bf16.msra.mxu0 0
    %762 = vmatprep.subr.bf16.mxu0 0
    %763 = vmatpush2.bf16.msra.mxu0 0
    %764 = vmatprep.subr.bf16.mxu0 0
    %765 = vmatpush2.bf16.msra.mxu0 0
    %766 = vmatprep.subr.bf16.mxu0 0
    %767 = vmatpush2.bf16.msra.mxu0 0
    %768 = vmatprep.subr.bf16.mxu0 0
    %769 = vmatpush2.bf16.msra.mxu0 0
    %770 = vmatprep.subr.bf16.mxu0 0
    %771 = vmatpush2.bf16.msra.mxu0 0
    %772 = vmatprep.subr.bf16.mxu0 0
    %773 = vmatpush2.bf16.msra.mxu0 0
    %774 = vmatprep.mubr.bf16.mxu0 0
    %775 = vmatmul.mubr.bf16.gmra.mxu0 %v741
    %v776 = vpop.f32.mrf.mxu0
    %v777 = vadd.f32 %v569, %v776
    %v778 = vpop.f32.mrf.mxu0
    %v779 = vadd.f32 %v573, %v778
    %v780 = vpop.f32.mrf.mxu0
    %v781 = vpop.f32.mrf.mxu0
    %782 = vdwg.mxu0
    %v783 = vxor.u32 %v777, 2147483648
    %v784 = vxor.u32 %v779, 2147483648
    %v785 = vmul.f32 %v783, 1.442695
    %v786 = vpow.pop %v785
    %v787 = vmul.f32 %v784, 1.442695
    %v788 = vpow.pop %v787
    %v789 = vadd.f32 %v786, 1.0
    %v790 = vadd.f32 %v788, 1.0
    %v791 = vrcp.pop %v789
    %v792 = vmul.f32 1.0, %v791
    %v793 = vrcp.pop %v790
    %v794 = vmul.f32 1.0, %v793
    %v795 = vtanh.pop %v779
    %v796 = vmul.f32 %v792, %v720
    %798 = vrot.lane.b32.xlu0 %v795, 64
    %v799 = vpop.permute.xlu0 %798
    %v801 = vmul.f32 %v792, %v799
    %803 = vrot.lane.b32.xlu0 %v801, 64
    %v804 = vpop.permute.xlu0 %803
    %v806 = vadd.f32 %v796, %v804
    %v807 = vtanh.pop %v806
    %809 = vrot.lane.b32.xlu0 %v807, 64
    %v810 = vpop.permute.xlu0 %809
    %v812 = vmul.f32 %v794, %v810
    %s813 = scalar_lea.vmem [#allocation3], 4
    %814 = vst.msk [vmem:[%s813] sm:$0x3] %vm727, %v812
    %s815 = scalar_lea.vmem [#allocation3], 26
    %816 = vst.msk [vmem:[%s815] sm:$0x3] %vm727, %v812
    %818 = vrot.lane.b32.xlu0 %v440, 32
    %v819 = vpop.permute.xlu0 %818
    %822 = vrot.lane.b32.xlu0 %v812, 64
    %v823 = vpop.permute.xlu0 %822
    %v825 = vsel %vm560, %v299, %v819
    %v826 = vsel %vm562, %v825, %v823
    %v827 = vpack.c.bf16 %v826, %v826
    %828 = vmatprep.subr.bf16.mxu0 %v639
    %829 = vmatpush1.bf16.msra.mxu0 %v638
    %830 = vmatprep.subr.bf16.mxu0 %v637
    %831 = vmatpush1.bf16.msra.mxu0 %v636
    %832 = vmatprep.subr.bf16.mxu0 %v635
    %833 = vmatpush1.bf16.msra.mxu0 %v634
    %834 = vmatprep.subr.bf16.mxu0 %v633
    %835 = vmatpush1.bf16.msra.mxu0 %v632
    %836 = vmatprep.subr.bf16.mxu0 %v631
    %837 = vmatpush1.bf16.msra.mxu0 %v630
    %838 = vmatprep.subr.bf16.mxu0 %v629
    %839 = vmatpush1.bf16.msra.mxu0 %v628
    %840 = vmatprep.subr.bf16.mxu0 %v627
    %841 = vmatpush1.bf16.msra.mxu0 %v626
    %842 = vmatprep.subr.bf16.mxu0 %v625
    %843 = vmatpush1.bf16.msra.mxu0 %v624
    %844 = vmatprep.subr.bf16.mxu0 0
    %845 = vmatpush2.bf16.msra.mxu0 0
    %846 = vmatprep.subr.bf16.mxu0 0
    %847 = vmatpush2.bf16.msra.mxu0 0
    %848 = vmatprep.subr.bf16.mxu0 0
    %849 = vmatpush2.bf16.msra.mxu0 0
    %850 = vmatprep.subr.bf16.mxu0 0
    %851 = vmatpush2.bf16.msra.mxu0 0
    %852 = vmatprep.subr.bf16.mxu0 0
    %853 = vmatpush2.bf16.msra.mxu0 0
    %854 = vmatprep.subr.bf16.mxu0 0
    %855 = vmatpush2.bf16.msra.mxu0 0
    %856 = vmatprep.subr.bf16.mxu0 0
    %857 = vmatpush2.bf16.msra.mxu0 0
    %858 = vmatprep.subr.bf16.mxu0 0
    %859 = vmatpush2.bf16.msra.mxu0 0
    %860 = vmatprep.mubr.bf16.mxu0 0
    %861 = vmatmul.mubr.bf16.gmra.mxu0 %v827
    %v862 = vpop.f32.mrf.mxu0
    %v863 = vadd.f32 %v569, %v862
    %v864 = vpop.f32.mrf.mxu0
    %v865 = vadd.f32 %v573, %v864
    %v866 = vpop.f32.mrf.mxu0
    %v867 = vpop.f32.mrf.mxu0
    %868 = vdwg.mxu0
    %v869 = vxor.u32 %v863, 2147483648
    %v870 = vxor.u32 %v865, 2147483648
    %v871 = vmul.f32 %v869, 1.442695
    %v872 = vpow.pop %v871
    %v873 = vmul.f32 %v870, 1.442695
    %v874 = vpow.pop %v873
    %v875 = vadd.f32 %v872, 1.0
    %v876 = vadd.f32 %v874, 1.0
    %v877 = vrcp.pop %v875
    %v878 = vmul.f32 1.0, %v877
    %v879 = vrcp.pop %v876
    %v880 = vmul.f32 1.0, %v879
    %v881 = vtanh.pop %v865
    %v882 = vmul.f32 %v878, %v806
    %884 = vrot.lane.b32.xlu0 %v881, 64
    %v885 = vpop.permute.xlu0 %884
    %v887 = vmul.f32 %v878, %v885
    %889 = vrot.lane.b32.xlu0 %v887, 64
    %v890 = vpop.permute.xlu0 %889
    %v892 = vadd.f32 %v882, %v890
    %v893 = vtanh.pop %v892
    %895 = vrot.lane.b32.xlu0 %v893, 64
    %v896 = vpop.permute.xlu0 %895
    %v898 = vmul.f32 %v880, %v896
    %s899 = scalar_lea.vmem [#allocation3], 8
    %900 = vst.msk [vmem:[%s899] sm:$0x3] %vm727, %v898
    %s901 = scalar_lea.vmem [#allocation3], 22
    %902 = vst.msk [vmem:[%s901] sm:$0x3] %vm727, %v898
    %904 = vrot.lane.b32.xlu0 %v393, 32
    %v905 = vpop.permute.xlu0 %904
    %908 = vrot.lane.b32.xlu0 %v898, 64
    %v909 = vpop.permute.xlu0 %908
    %v911 = vsel %vm560, %v346, %v905
    %v912 = vsel %vm562, %v911, %v909
    %v913 = vpack.c.bf16 %v912, %v912
    %914 = vmatprep.subr.bf16.mxu0 %v639
    %915 = vmatpush1.bf16.msra.mxu0 %v638
    %916 = vmatprep.subr.bf16.mxu0 %v637
    %917 = vmatpush1.bf16.msra.mxu0 %v636
    %918 = vmatprep.subr.bf16.mxu0 %v635
    %919 = vmatpush1.bf16.msra.mxu0 %v634
    %920 = vmatprep.subr.bf16.mxu0 %v633
    %921 = vmatpush1.bf16.msra.mxu0 %v632
    %922 = vmatprep.subr.bf16.mxu0 %v631
    %923 = vmatpush1.bf16.msra.mxu0 %v630
    %924 = vmatprep.subr.bf16.mxu0 %v629
    %925 = vmatpush1.bf16.msra.mxu0 %v628
    %926 = vmatprep.subr.bf16.mxu0 %v627
    %927 = vmatpush1.bf16.msra.mxu0 %v626
    %928 = vmatprep.subr.bf16.mxu0 %v625
    %929 = vmatpush1.bf16.msra.mxu0 %v624
    %930 = vmatprep.subr.bf16.mxu0 0
    %931 = vmatpush2.bf16.msra.mxu0 0
    %932 = vmatprep.subr.bf16.mxu0 0
    %933 = vmatpush2.bf16.msra.mxu0 0
    %934 = vmatprep.subr.bf16.mxu0 0
    %935 = vmatpush2.bf16.msra.mxu0 0
    %936 = vmatprep.subr.bf16.mxu0 0
    %937 = vmatpush2.bf16.msra.mxu0 0
    %938 = vmatprep.subr.bf16.mxu0 0
    %939 = vmatpush2.bf16.msra.mxu0 0
    %940 = vmatprep.subr.bf16.mxu0 0
    %941 = vmatpush2.bf16.msra.mxu0 0
    %942 = vmatprep.subr.bf16.mxu0 0
    %943 = vmatpush2.bf16.msra.mxu0 0
    %944 = vmatprep.subr.bf16.mxu0 0
    %945 = vmatpush2.bf16.msra.mxu0 0
    %946 = vmatprep.mubr.bf16.mxu0 0
    %947 = vmatmul.mubr.bf16.gmra.mxu0 %v913
    %v948 = vpop.f32.mrf.mxu0
    %v949 = vadd.f32 %v569, %v948
    %v950 = vpop.f32.mrf.mxu0
    %v951 = vadd.f32 %v573, %v950
    %v952 = vpop.f32.mrf.mxu0
    %v953 = vpop.f32.mrf.mxu0
    %954 = vdwg.mxu0
    %v955 = vxor.u32 %v949, 2147483648
    %v956 = vxor.u32 %v951, 2147483648
    %v957 = vmul.f32 %v955, 1.442695
    %v958 = vpow.pop %v957
    %v959 = vmul.f32 %v956, 1.442695
    %v960 = vpow.pop %v959
    %v961 = vadd.f32 %v958, 1.0
    %v962 = vadd.f32 %v960, 1.0
    %v963 = vrcp.pop %v961
    %v964 = vmul.f32 1.0, %v963
    %v965 = vrcp.pop %v962
    %v966 = vmul.f32 1.0, %v965
    %v967 = vtanh.pop %v951
    %v968 = vmul.f32 %v964, %v892
    %970 = vrot.lane.b32.xlu0 %v967, 64
    %v971 = vpop.permute.xlu0 %970
    %v973 = vmul.f32 %v964, %v971
    %975 = vrot.lane.b32.xlu0 %v973, 64
    %v976 = vpop.permute.xlu0 %975
    %v978 = vadd.f32 %v968, %v976
    %v979 = vtanh.pop %v978
    %981 = vrot.lane.b32.xlu0 %v979, 64
    %v982 = vpop.permute.xlu0 %981
    %v984 = vmul.f32 %v966, %v982
    %s985 = scalar_lea.vmem [#allocation3], 12
    %986 = vst.msk [vmem:[%s985] sm:$0x3] %vm727, %v984
    %s987 = scalar_lea.vmem [#allocation3], 18
    %988 = vst.msk [vmem:[%s987] sm:$0x3] %vm727, %v984
    %990 = vrot.lane.b32.xlu0 %v346, 32
    %v991 = vpop.permute.xlu0 %990
    %994 = vrot.lane.b32.xlu0 %v984, 64
    %v995 = vpop.permute.xlu0 %994
    %v997 = vsel %vm560, %v393, %v991
    %v998 = vsel %vm562, %v997, %v995
    %v999 = vpack.c.bf16 %v998, %v998
    %1000 = vmatprep.subr.bf16.mxu0 %v639
    %1001 = vmatpush1.bf16.msra.mxu0 %v638
    %1002 = vmatprep.subr.bf16.mxu0 %v637
    %1003 = vmatpush1.bf16.msra.mxu0 %v636
    %1004 = vmatprep.subr.bf16.mxu0 %v635
    %1005 = vmatpush1.bf16.msra.mxu0 %v634
    %1006 = vmatprep.subr.bf16.mxu0 %v633
    %1007 = vmatpush1.bf16.msra.mxu0 %v632
    %1008 = vmatprep.subr.bf16.mxu0 %v631
    %1009 = vmatpush1.bf16.msra.mxu0 %v630
    %1010 = vmatprep.subr.bf16.mxu0 %v629
    %1011 = vmatpush1.bf16.msra.mxu0 %v628
    %1012 = vmatprep.subr.bf16.mxu0 %v627
    %1013 = vmatpush1.bf16.msra.mxu0 %v626
    %1014 = vmatprep.subr.bf16.mxu0 %v625
    %1015 = vmatpush1.bf16.msra.mxu0 %v624
    %1016 = vmatprep.subr.bf16.mxu0 0
    %1017 = vmatpush2.bf16.msra.mxu0 0
    %1018 = vmatprep.subr.bf16.mxu0 0
    %1019 = vmatpush2.bf16.msra.mxu0 0
    %1020 = vmatprep.subr.bf16.mxu0 0
    %1021 = vmatpush2.bf16.msra.mxu0 0
    %1022 = vmatprep.subr.bf16.mxu0 0
    %1023 = vmatpush2.bf16.msra.mxu0 0
    %1024 = vmatprep.subr.bf16.mxu0 0
    %1025 = vmatpush2.bf16.msra.mxu0 0
    %1026 = vmatprep.subr.bf16.mxu0 0
    %1027 = vmatpush2.bf16.msra.mxu0 0
    %1028 = vmatprep.subr.bf16.mxu0 0
    %1029 = vmatpush2.bf16.msra.mxu0 0
    %1030 = vmatprep.subr.bf16.mxu0 0
    %1031 = vmatpush2.bf16.msra.mxu0 0
    %1032 = vmatprep.mubr.bf16.mxu0 0
    %1033 = vmatmul.mubr.bf16.gmra.mxu0 %v999
    %v1034 = vpop.f32.mrf.mxu0
    %v1035 = vadd.f32 %v569, %v1034
    %v1036 = vpop.f32.mrf.mxu0
    %v1037 = vadd.f32 %v573, %v1036
    %v1038 = vpop.f32.mrf.mxu0
    %v1039 = vpop.f32.mrf.mxu0
    %1040 = vdwg.mxu0
    %v1041 = vxor.u32 %v1035, 2147483648
    %v1042 = vxor.u32 %v1037, 2147483648
    %v1043 = vmul.f32 %v1041, 1.442695
    %v1044 = vpow.pop %v1043
    %v1045 = vmul.f32 %v1042, 1.442695
    %v1046 = vpow.pop %v1045
    %v1047 = vadd.f32 %v1044, 1.0
    %v1048 = vadd.f32 %v1046, 1.0
    %v1049 = vrcp.pop %v1047
    %v1050 = vmul.f32 1.0, %v1049
    %v1051 = vrcp.pop %v1048
    %v1052 = vmul.f32 1.0, %v1051
    %v1053 = vtanh.pop %v1037
    %v1054 = vmul.f32 %v1050, %v978
    %1056 = vrot.lane.b32.xlu0 %v1053, 64
    %v1057 = vpop.permute.xlu0 %1056
    %v1059 = vmul.f32 %v1050, %v1057
    %1061 = vrot.lane.b32.xlu0 %v1059, 64
    %v1062 = vpop.permute.xlu0 %1061
    %v1064 = vadd.f32 %v1054, %v1062
    %v1065 = vtanh.pop %v1064
    %1067 = vrot.lane.b32.xlu0 %v1065, 64
    %v1068 = vpop.permute.xlu0 %1067
    %v1070 = vmul.f32 %v1052, %v1068
    %s1071 = scalar_lea.vmem [#allocation3], 16
    %1072 = vst.msk [vmem:[%s1071] sm:$0x3] %vm727, %v1070
    %s1073 = scalar_lea.vmem [#allocation3], 14
    %1074 = vst.msk [vmem:[%s1073] sm:$0x3] %vm727, %v1070
    %1076 = vrot.lane.b32.xlu0 %v299, 32
    %v1077 = vpop.permute.xlu0 %1076
    %1080 = vrot.lane.b32.xlu0 %v1070, 64
    %v1081 = vpop.permute.xlu0 %1080
    %v1083 = vsel %vm560, %v440, %v1077
    %v1084 = vsel %vm562, %v1083, %v1081
    %v1085 = vpack.c.bf16 %v1084, %v1084
    %1086 = vmatprep.subr.bf16.mxu0 %v639
    %1087 = vmatpush1.bf16.msra.mxu0 %v638
    %1088 = vmatprep.subr.bf16.mxu0 %v637
    %1089 = vmatpush1.bf16.msra.mxu0 %v636
    %1090 = vmatprep.subr.bf16.mxu0 %v635
    %1091 = vmatpush1.bf16.msra.mxu0 %v634
    %1092 = vmatprep.subr.bf16.mxu0 %v633
    %1093 = vmatpush1.bf16.msra.mxu0 %v632
    %1094 = vmatprep.subr.bf16.mxu0 %v631
    %1095 = vmatpush1.bf16.msra.mxu0 %v630
    %1096 = vmatprep.subr.bf16.mxu0 %v629
    %1097 = vmatpush1.bf16.msra.mxu0 %v628
    %1098 = vmatprep.subr.bf16.mxu0 %v627
    %1099 = vmatpush1.bf16.msra.mxu0 %v626
    %1100 = vmatprep.subr.bf16.mxu0 %v625
    %1101 = vmatpush1.bf16.msra.mxu0 %v624
    %1102 = vmatprep.subr.bf16.mxu0 0
    %1103 = vmatpush2.bf16.msra.mxu0 0
    %1104 = vmatprep.subr.bf16.mxu0 0
    %1105 = vmatpush2.bf16.msra.mxu0 0
    %1106 = vmatprep.subr.bf16.mxu0 0
    %1107 = vmatpush2.bf16.msra.mxu0 0
    %1108 = vmatprep.subr.bf16.mxu0 0
    %1109 = vmatpush2.bf16.msra.mxu0 0
    %1110 = vmatprep.subr.bf16.mxu0 0
    %1111 = vmatpush2.bf16.msra.mxu0 0
    %1112 = vmatprep.subr.bf16.mxu0 0
    %1113 = vmatpush2.bf16.msra.mxu0 0
    %1114 = vmatprep.subr.bf16.mxu0 0
    %1115 = vmatpush2.bf16.msra.mxu0 0
    %1116 = vmatprep.subr.bf16.mxu0 0
    %1117 = vmatpush2.bf16.msra.mxu0 0
    %1118 = vmatprep.mubr.bf16.mxu0 0
    %1119 = vmatmul.mubr.bf16.gmra.mxu0 %v1085
    %v1120 = vpop.f32.mrf.mxu0
    %v1121 = vadd.f32 %v569, %v1120
    %v1122 = vpop.f32.mrf.mxu0
    %v1123 = vadd.f32 %v573, %v1122
    %v1124 = vpop.f32.mrf.mxu0
    %v1125 = vpop.f32.mrf.mxu0
    %1126 = vdwg.mxu0
    %v1127 = vxor.u32 %v1121, 2147483648
    %v1128 = vxor.u32 %v1123, 2147483648
    %v1129 = vmul.f32 %v1127, 1.442695
    %v1130 = vpow.pop %v1129
    %v1131 = vmul.f32 %v1128, 1.442695
    %v1132 = vpow.pop %v1131
    %v1133 = vadd.f32 %v1130, 1.0
    %v1134 = vadd.f32 %v1132, 1.0
    %v1135 = vrcp.pop %v1133
    %v1136 = vmul.f32 1.0, %v1135
    %v1137 = vrcp.pop %v1134
    %v1138 = vmul.f32 1.0, %v1137
    %v1139 = vtanh.pop %v1123
    %v1140 = vmul.f32 %v1136, %v1064
    %1142 = vrot.lane.b32.xlu0 %v1139, 64
    %v1143 = vpop.permute.xlu0 %1142
    %v1145 = vmul.f32 %v1136, %v1143
    %1147 = vrot.lane.b32.xlu0 %v1145, 64
    %v1148 = vpop.permute.xlu0 %1147
    %v1150 = vadd.f32 %v1140, %v1148
    %v1151 = vtanh.pop %v1150
    %1153 = vrot.lane.b32.xlu0 %v1151, 64
    %v1154 = vpop.permute.xlu0 %1153
    %v1156 = vmul.f32 %v1138, %v1154
    %s1157 = scalar_lea.vmem [#allocation3], 20
    %1158 = vst.msk [vmem:[%s1157] sm:$0x3] %vm727, %v1156
    %s1159 = scalar_lea.vmem [#allocation3], 10
    %1160 = vst.msk [vmem:[%s1159] sm:$0x3] %vm727, %v1156
    %1162 = vrot.lane.b32.xlu0 %v252, 32
    %v1163 = vpop.permute.xlu0 %1162
    %1166 = vrot.lane.b32.xlu0 %v1156, 64
    %v1167 = vpop.permute.xlu0 %1166
    %v1169 = vsel %vm560, %v487, %v1163
    %v1170 = vsel %vm562, %v1169, %v1167
    %v1171 = vpack.c.bf16 %v1170, %v1170
    %1172 = vmatprep.subr.bf16.mxu0 %v639
    %1173 = vmatpush1.bf16.msra.mxu0 %v638
    %1174 = vmatprep.subr.bf16.mxu0 %v637
    %1175 = vmatpush1.bf16.msra.mxu0 %v636
    %1176 = vmatprep.subr.bf16.mxu0 %v635
    %1177 = vmatpush1.bf16.msra.mxu0 %v634
    %1178 = vmatprep.subr.bf16.mxu0 %v633
    %1179 = vmatpush1.bf16.msra.mxu0 %v632
    %1180 = vmatprep.subr.bf16.mxu0 %v631
    %1181 = vmatpush1.bf16.msra.mxu0 %v630
    %1182 = vmatprep.subr.bf16.mxu0 %v629
    %1183 = vmatpush1.bf16.msra.mxu0 %v628
    %1184 = vmatprep.subr.bf16.mxu0 %v627
    %1185 = vmatpush1.bf16.msra.mxu0 %v626
    %1186 = vmatprep.subr.bf16.mxu0 %v625
    %1187 = vmatpush1.bf16.msra.mxu0 %v624
    %1188 = vmatprep.subr.bf16.mxu0 0
    %1189 = vmatpush2.bf16.msra.mxu0 0
    %1190 = vmatprep.subr.bf16.mxu0 0
    %1191 = vmatpush2.bf16.msra.mxu0 0
    %1192 = vmatprep.subr.bf16.mxu0 0
    %1193 = vmatpush2.bf16.msra.mxu0 0
    %1194 = vmatprep.subr.bf16.mxu0 0
    %1195 = vmatpush2.bf16.msra.mxu0 0
    %1196 = vmatprep.subr.bf16.mxu0 0
    %1197 = vmatpush2.bf16.msra.mxu0 0
    %1198 = vmatprep.subr.bf16.mxu0 0
    %1199 = vmatpush2.bf16.msra.mxu0 0
    %1200 = vmatprep.subr.bf16.mxu0 0
    %1201 = vmatpush2.bf16.msra.mxu0 0
    %1202 = vmatprep.subr.bf16.mxu0 0
    %1203 = vmatpush2.bf16.msra.mxu0 0
    %1204 = vmatprep.mubr.bf16.mxu0 0
    %1205 = vmatmul.mubr.bf16.gmra.mxu0 %v1171
    %v1206 = vpop.f32.mrf.mxu0
    %v1207 = vadd.f32 %v569, %v1206
    %v1208 = vpop.f32.mrf.mxu0
    %v1209 = vadd.f32 %v573, %v1208
    %v1210 = vpop.f32.mrf.mxu0
    %v1211 = vpop.f32.mrf.mxu0
    %1212 = vdwg.mxu0
    %v1213 = vxor.u32 %v1207, 2147483648
    %v1214 = vxor.u32 %v1209, 2147483648
    %v1215 = vmul.f32 %v1213, 1.442695
    %v1216 = vpow.pop %v1215
    %v1217 = vmul.f32 %v1214, 1.442695
    %v1218 = vpow.pop %v1217
    %v1219 = vadd.f32 %v1216, 1.0
    %v1220 = vadd.f32 %v1218, 1.0
    %v1221 = vrcp.pop %v1219
    %v1222 = vmul.f32 1.0, %v1221
    %v1223 = vrcp.pop %v1220
    %v1224 = vmul.f32 1.0, %v1223
    %v1225 = vtanh.pop %v1209
    %v1226 = vmul.f32 %v1222, %v1150
    %1228 = vrot.lane.b32.xlu0 %v1225, 64
    %v1229 = vpop.permute.xlu0 %1228
    %v1231 = vmul.f32 %v1222, %v1229
    %1233 = vrot.lane.b32.xlu0 %v1231, 64
    %v1234 = vpop.permute.xlu0 %1233
    %v1236 = vadd.f32 %v1226, %v1234
    %v1237 = vtanh.pop %v1236
    %1239 = vrot.lane.b32.xlu0 %v1237, 64
    %v1240 = vpop.permute.xlu0 %1239
    %v1242 = vmul.f32 %v1224, %v1240
    %s1243 = scalar_lea.vmem [#allocation3], 24
    %1244 = vst.msk [vmem:[%s1243] sm:$0x3] %vm727, %v1242
    %s1245 = scalar_lea.vmem [#allocation3], 6
    %1246 = vst.msk [vmem:[%s1245] sm:$0x3] %vm727, %v1242
    %1248 = vrot.lane.b32.xlu0 %v205, 32
    %v1249 = vpop.permute.xlu0 %1248
    %1252 = vrot.lane.b32.xlu0 %v1242, 64
    %v1253 = vpop.permute.xlu0 %1252
    %v1255 = vsel %vm560, %v534, %v1249
    %v1256 = vsel %vm562, %v1255, %v1253
    %v1257 = vpack.c.bf16 %v1256, %v1256
    %1258 = vmatprep.subr.bf16.mxu0 %v639
    %1259 = vmatpush1.bf16.msra.mxu0 %v638
    %1260 = vmatprep.subr.bf16.mxu0 %v637
    %1261 = vmatpush1.bf16.msra.mxu0 %v636
    %1262 = vmatprep.subr.bf16.mxu0 %v635
    %1263 = vmatpush1.bf16.msra.mxu0 %v634
    %1264 = vmatprep.subr.bf16.mxu0 %v633
    %1265 = vmatpush1.bf16.msra.mxu0 %v632
    %1266 = vmatprep.subr.bf16.mxu0 %v631
    %1267 = vmatpush1.bf16.msra.mxu0 %v630
    %1268 = vmatprep.subr.bf16.mxu0 %v629
    %1269 = vmatpush1.bf16.msra.mxu0 %v628
    %1270 = vmatprep.subr.bf16.mxu0 %v627
    %1271 = vmatpush1.bf16.msra.mxu0 %v626
    %1272 = vmatprep.subr.bf16.mxu0 %v625
    %1273 = vmatpush1.bf16.msra.mxu0 %v624
    %1274 = vmatprep.subr.bf16.mxu0 0
    %1275 = vmatpush2.bf16.msra.mxu0 0
    %1276 = vmatprep.subr.bf16.mxu0 0
    %1277 = vmatpush2.bf16.msra.mxu0 0
    %1278 = vmatprep.subr.bf16.mxu0 0
    %1279 = vmatpush2.bf16.msra.mxu0 0
    %1280 = vmatprep.subr.bf16.mxu0 0
    %1281 = vmatpush2.bf16.msra.mxu0 0
    %1282 = vmatprep.subr.bf16.mxu0 0
    %1283 = vmatpush2.bf16.msra.mxu0 0
    %1284 = vmatprep.subr.bf16.mxu0 0
    %1285 = vmatpush2.bf16.msra.mxu0 0
    %1286 = vmatprep.subr.bf16.mxu0 0
    %1287 = vmatpush2.bf16.msra.mxu0 0
    %1288 = vmatprep.subr.bf16.mxu0 0
    %1289 = vmatpush2.bf16.msra.mxu0 0
    %1290 = vmatprep.mubr.bf16.mxu0 0
    %1291 = vmatmul.mubr.bf16.gmra.mxu0 %v1257
    %v1292 = vpop.f32.mrf.mxu0
    %v1293 = vadd.f32 %v569, %v1292
    %v1294 = vpop.f32.mrf.mxu0
    %v1295 = vadd.f32 %v573, %v1294
    %v1296 = vpop.f32.mrf.mxu0
    %v1297 = vpop.f32.mrf.mxu0
    %1298 = vdwg.mxu0
    %v1299 = vxor.u32 %v1293, 2147483648
    %v1300 = vxor.u32 %v1295, 2147483648
    %v1301 = vmul.f32 %v1299, 1.442695
    %v1302 = vpow.pop %v1301
    %v1303 = vmul.f32 %v1300, 1.442695
    %v1304 = vpow.pop %v1303
    %v1305 = vadd.f32 %v1302, 1.0
    %v1306 = vadd.f32 %v1304, 1.0
    %v1307 = vrcp.pop %v1305
    %v1308 = vmul.f32 1.0, %v1307
    %v1309 = vrcp.pop %v1306
    %v1310 = vmul.f32 1.0, %v1309
    %v1311 = vtanh.pop %v1295
    %v1312 = vmul.f32 %v1308, %v1236
    %1314 = vrot.lane.b32.xlu0 %v1311, 64
    %v1315 = vpop.permute.xlu0 %1314
    %v1317 = vmul.f32 %v1308, %v1315
    %1319 = vrot.lane.b32.xlu0 %v1317, 64
    %v1320 = vpop.permute.xlu0 %1319
    %v1322 = vadd.f32 %v1312, %v1320
    %v1323 = vtanh.pop %v1322
    %1325 = vrot.lane.b32.xlu0 %v1323, 64
    %v1326 = vpop.permute.xlu0 %1325
    %v1328 = vmul.f32 %v1310, %v1326
    %s1329 = scalar_lea.vmem [#allocation3], 28
    %1330 = vst.msk [vmem:[%s1329] sm:$0x3] %vm727, %v1328
    %s1331 = scalar_lea.vmem [#allocation3], 2
    %1332 = vst.msk [vmem:[%s1331] sm:$0x3] %vm727, %v1328
    %v1333 = vld [vmem:[#allocation6] sm:$0xff]
    %v1334 = vld [vmem:[#allocation6 + $0x8] sm:$0xff]
    %v1335 = vld [vmem:[#allocation6 + $0x10] sm:$0xff]
    %v1336 = vld [vmem:[#allocation6 + $0x18] sm:$0xff]
    %v1337 = vld [vmem:[#allocation6 + $0x20] sm:$0xff]
    %v1338 = vld [vmem:[#allocation6 + $0x28] sm:$0xff]
    %v1339 = vld [vmem:[#allocation6 + $0x30] sm:$0xff]
    %v1340 = vld [vmem:[#allocation6 + $0x38] sm:$0xff]
    %v1341 = vld [vmem:[#allocation6 + $0x40] sm:$0xff]
    %v1342 = vld [vmem:[#allocation6 + $0x48] sm:$0xff]
    %v1343 = vld [vmem:[#allocation6 + $0x50] sm:$0xff]
    %v1344 = vld [vmem:[#allocation6 + $0x58] sm:$0xff]
    %v1345 = vld [vmem:[#allocation6 + $0x60] sm:$0xff]
    %v1346 = vld [vmem:[#allocation6 + $0x68] sm:$0xff]
    %v1347 = vld [vmem:[#allocation6 + $0x70] sm:$0xff]
    %v1348 = vld [vmem:[#allocation6 + $0x78] sm:$0xff]
    %v1349 = vld [vmem:[#allocation6 + $0x80] sm:$0xff]
    %v1350 = vld [vmem:[#allocation6 + $0x88] sm:$0xff]
    %v1351 = vld [vmem:[#allocation6 + $0x90] sm:$0xff]
    %v1352 = vld [vmem:[#allocation6 + $0x98] sm:$0xff]
    %v1353 = vld [vmem:[#allocation6 + $0xa0] sm:$0xff]
    %v1354 = vld [vmem:[#allocation6 + $0xa8] sm:$0xff]
    %v1355 = vld [vmem:[#allocation6 + $0xb0] sm:$0xff]
    %v1356 = vld [vmem:[#allocation6 + $0xb8] sm:$0xff]
    %s1357 = scalar_lea.vmem %s4, 2
    %v1358 = vld [vmem:[%s1357] sm:$0x3]
    %v1359 = vld [vmem:[#allocation3] sm:$0x3]
    %v1360 = vld [vmem:[%s1331] sm:$0x3]
    %1362 = vrot.lane.b32.xlu0 %v1360, 64
    %v1363 = vpop.permute.xlu0 %1362
    %v1365 = vsel %vm562, %v1359, %v1363
    %v1366 = vpack.c.bf16 %v1365, %v1365
    %v1367 = vpack.c.bf16 0.0, 0.0
    %v1369 = vlaneseq
    %v1370 = vshrl.u32 %v1369, 7
    %v1371 = vsub.s32 0, %v1370
    %v1372 = vrot.slane %v1358, %v1371
    %v1373 = vlaneseq
    %v1374 = vshrl.u32 %v1373, 7
    %v1375 = vsub.s32 1, %v1374
    %v1376 = vrot.slane %v1358, %v1375
    %v1403 = vunpack.c.l.b16 %v1333
    %v1404 = vunpack.c.h.b16 %v1333
    %v1405 = vunpack.c.l.b16 %v1334
    %v1406 = vunpack.c.h.b16 %v1334
    %v1407 = vunpack.c.l.b16 %v1335
    %v1408 = vunpack.c.h.b16 %v1335
    %v1409 = vunpack.c.l.b16 %v1336
    %v1410 = vunpack.c.h.b16 %v1336
    %v1411 = vunpack.c.l.b16 %v1337
    %v1412 = vunpack.c.h.b16 %v1337
    %v1413 = vunpack.c.l.b16 %v1338
    %v1414 = vunpack.c.h.b16 %v1338
    %v1415 = vunpack.c.l.b16 %v1339
    %v1416 = vunpack.c.h.b16 %v1339
    %v1417 = vunpack.c.l.b16 %v1340
    %v1418 = vunpack.c.h.b16 %v1340
    %v1419 = vunpack.c.l.b16 %v1341
    %v1420 = vunpack.c.h.b16 %v1341
    %v1421 = vunpack.c.l.b16 %v1342
    %v1422 = vunpack.c.h.b16 %v1342
    %v1423 = vunpack.c.l.b16 %v1343
    %v1424 = vunpack.c.h.b16 %v1343
    %v1425 = vunpack.c.l.b16 %v1344
    %v1426 = vunpack.c.h.b16 %v1344
    %v1427 = vunpack.c.l.b16 %v1345
    %v1428 = vunpack.c.h.b16 %v1345
    %v1429 = vunpack.c.l.b16 %v1346
    %v1430 = vunpack.c.h.b16 %v1346
    %v1431 = vunpack.c.l.b16 %v1347
    %v1432 = vunpack.c.h.b16 %v1347
    %v1433 = vunpack.c.l.b16 %v1348
    %v1434 = vunpack.c.h.b16 %v1348
    %v1435 = vunpack.c.l.b16 %v1349
    %v1436 = vunpack.c.h.b16 %v1349
    %v1437 = vunpack.c.l.b16 %v1350
    %v1438 = vunpack.c.h.b16 %v1350
    %v1439 = vunpack.c.l.b16 %v1351
    %v1440 = vunpack.c.h.b16 %v1351
    %v1441 = vunpack.c.l.b16 %v1352
    %v1442 = vunpack.c.h.b16 %v1352
    %v1443 = vunpack.c.l.b16 %v1353
    %v1444 = vunpack.c.h.b16 %v1353
    %v1445 = vunpack.c.l.b16 %v1354
    %v1446 = vunpack.c.h.b16 %v1354
    %v1447 = vunpack.c.l.b16 %v1355
    %v1448 = vunpack.c.h.b16 %v1355
    %v1449 = vunpack.c.l.b16 %v1356
    %v1450 = vunpack.c.h.b16 %v1356
    %v1451 = vpack.c.b16 %v1405, %v1403
    %v1452 = vpack.c.b16 %v1406, %v1404
    %v1453 = vpack.c.b16 %v1409, %v1407
    %v1454 = vpack.c.b16 %v1410, %v1408
    %v1455 = vpack.c.b16 %v1413, %v1411
    %v1456 = vpack.c.b16 %v1414, %v1412
    %v1457 = vpack.c.b16 %v1417, %v1415
    %v1458 = vpack.c.b16 %v1418, %v1416
    %v1459 = vpack.c.b16 %v1421, %v1419
    %v1460 = vpack.c.b16 %v1422, %v1420
    %v1461 = vpack.c.b16 %v1425, %v1423
    %v1462 = vpack.c.b16 %v1426, %v1424
    %v1463 = vpack.c.b16 %v1429, %v1427
    %v1464 = vpack.c.b16 %v1430, %v1428
    %v1465 = vpack.c.b16 %v1433, %v1431
    %v1466 = vpack.c.b16 %v1434, %v1432
    %v1467 = vpack.c.b16 %v1437, %v1435
    %v1468 = vpack.c.b16 %v1438, %v1436
    %v1469 = vpack.c.b16 %v1441, %v1439
    %v1470 = vpack.c.b16 %v1442, %v1440
    %v1471 = vpack.c.b16 %v1445, %v1443
    %v1472 = vpack.c.b16 %v1446, %v1444
    %v1473 = vpack.c.b16 %v1449, %v1447
    %v1474 = vpack.c.b16 %v1450, %v1448
    %v1500 = vsel %vm562, %v1367, 0
    %1502 = vmatprep.subr.bf16.mxu0 %v1466
    %1503 = vmatpush1.bf16.msra.mxu0 %v1465
    %1504 = vmatprep.subr.bf16.mxu0 %v1464
    %1505 = vmatpush1.bf16.msra.mxu0 %v1463
    %1506 = vmatprep.subr.bf16.mxu0 %v1462
    %1507 = vmatpush1.bf16.msra.mxu0 %v1461
    %1508 = vmatprep.subr.bf16.mxu0 %v1460
    %1509 = vmatpush1.bf16.msra.mxu0 %v1459
    %1510 = vmatprep.subr.bf16.mxu0 %v1458
    %1511 = vmatpush1.bf16.msra.mxu0 %v1457
    %1512 = vmatprep.subr.bf16.mxu0 %v1456
    %1513 = vmatpush1.bf16.msra.mxu0 %v1455
    %1514 = vmatprep.subr.bf16.mxu0 %v1454
    %1515 = vmatpush1.bf16.msra.mxu0 %v1453
    %1516 = vmatprep.subr.bf16.mxu0 %v1452
    %1517 = vmatpush1.bf16.msra.mxu0 %v1451
    %1518 = vmatprep.subr.bf16.mxu0 0
    %1519 = vmatpush2.bf16.msra.mxu0 0
    %1520 = vmatprep.subr.bf16.mxu0 0
    %1521 = vmatpush2.bf16.msra.mxu0 0
    %1522 = vmatprep.subr.bf16.mxu0 0
    %1523 = vmatpush2.bf16.msra.mxu0 0
    %1524 = vmatprep.subr.bf16.mxu0 0
    %1525 = vmatpush2.bf16.msra.mxu0 0
    %1526 = vmatprep.subr.bf16.mxu0 %v1474
    %1527 = vmatpush2.bf16.msra.mxu0 %v1473
    %1528 = vmatprep.subr.bf16.mxu0 %v1472
    %1529 = vmatpush2.bf16.msra.mxu0 %v1471
    %1530 = vmatprep.subr.bf16.mxu0 %v1470
    %1531 = vmatpush2.bf16.msra.mxu0 %v1469
    %1532 = vmatprep.subr.bf16.mxu0 %v1468
    %1533 = vmatpush2.bf16.msra.mxu0 %v1467
    %1534 = vmatprep.mubr.bf16.mxu0 %v1500
    %1535 = vmatmul.mubr.bf16.gmra.mxu0 %v1366
    %v1536 = vpop.f32.mrf.mxu0
    %v1537 = vadd.f32 %v1372, %v1536
    %v1538 = vpop.f32.mrf.mxu0
    %v1539 = vadd.f32 %v1376, %v1538
    %v1540 = vpop.f32.mrf.mxu0
    %v1541 = vpop.f32.mrf.mxu0
    %1542 = vdwg.mxu0
    %v1543 = vxor.u32 %v1537, 2147483648
    %v1544 = vxor.u32 %v1539, 2147483648
    %v1545 = vmul.f32 %v1543, 1.442695
    %v1546 = vpow.pop %v1545
    %v1547 = vmul.f32 %v1544, 1.442695
    %v1548 = vpow.pop %v1547
    %v1549 = vadd.f32 %v1546, 1.0
    %v1550 = vadd.f32 %v1548, 1.0
    %v1551 = vrcp.pop %v1549
    %v1552 = vmul.f32 1.0, %v1551
    %v1553 = vrcp.pop %v1550
    %v1554 = vmul.f32 1.0, %v1553
    %v1555 = vtanh.pop %v1539
    %v1556 = vmul.f32 %v1552, 0.0
    %1558 = vrot.lane.b32.xlu0 %v1555, 64
    %v1559 = vpop.permute.xlu0 %1558
    %v1561 = vmul.f32 %v1552, %v1559
    %1563 = vrot.lane.b32.xlu0 %v1561, 64
    %v1564 = vpop.permute.xlu0 %1563
    %v1566 = vadd.f32 %v1556, %v1564
    %v1567 = vtanh.pop %v1566
    %1569 = vrot.lane.b32.xlu0 %v1567, 64
    %v1570 = vpop.permute.xlu0 %1569
    %v1572 = vmul.f32 %v1554, %v1570
    %1573 = vst.msk [vmem:[#allocation2] sm:$0x3] %vm727, %v1572
    %s1574 = scalar_lea.vmem [#allocation2], 30
    %1575 = vst.msk [vmem:[%s1574] sm:$0x3] %vm727, %v1572
    %v1576 = vld [vmem:[%s813] sm:$0x3]
    %v1577 = vld [vmem:[%s1245] sm:$0x3]
    %1579 = vrot.lane.b32.xlu0 %v1577, 64
    %v1580 = vpop.permute.xlu0 %1579
    %v1582 = vsel %vm562, %v1576, %v1580
    %v1583 = vpack.c.bf16 %v1582, %v1582
    %v1584 = vpack.c.bf16 %v1572, %v1572
    %v1586 = vsel %vm562, %v1584, 0
    %1588 = vmatprep.subr.bf16.mxu0 %v1466
    %1589 = vmatpush1.bf16.msra.mxu0 %v1465
    %1590 = vmatprep.subr.bf16.mxu0 %v1464
    %1591 = vmatpush1.bf16.msra.mxu0 %v1463
    %1592 = vmatprep.subr.bf16.mxu0 %v1462
    %1593 = vmatpush1.bf16.msra.mxu0 %v1461
    %1594 = vmatprep.subr.bf16.mxu0 %v1460
    %1595 = vmatpush1.bf16.msra.mxu0 %v1459
    %1596 = vmatprep.subr.bf16.mxu0 %v1458
    %1597 = vmatpush1.bf16.msra.mxu0 %v1457
    %1598 = vmatprep.subr.bf16.mxu0 %v1456
    %1599 = vmatpush1.bf16.msra.mxu0 %v1455
    %1600 = vmatprep.subr.bf16.mxu0 %v1454
    %1601 = vmatpush1.bf16.msra.mxu0 %v1453
    %1602 = vmatprep.subr.bf16.mxu0 %v1452
    %1603 = vmatpush1.bf16.msra.mxu0 %v1451
    %1604 = vmatprep.subr.bf16.mxu0 0
    %1605 = vmatpush2.bf16.msra.mxu0 0
    %1606 = vmatprep.subr.bf16.mxu0 0
    %1607 = vmatpush2.bf16.msra.mxu0 0
    %1608 = vmatprep.subr.bf16.mxu0 0
    %1609 = vmatpush2.bf16.msra.mxu0 0
    %1610 = vmatprep.subr.bf16.mxu0 0
    %1611 = vmatpush2.bf16.msra.mxu0 0
    %1612 = vmatprep.subr.bf16.mxu0 %v1474
    %1613 = vmatpush2.bf16.msra.mxu0 %v1473
    %1614 = vmatprep.subr.bf16.mxu0 %v1472
    %1615 = vmatpush2.bf16.msra.mxu0 %v1471
    %1616 = vmatprep.subr.bf16.mxu0 %v1470
    %1617 = vmatpush2.bf16.msra.mxu0 %v1469
    %1618 = vmatprep.subr.bf16.mxu0 %v1468
    %1619 = vmatpush2.bf16.msra.mxu0 %v1467
    %1620 = vmatprep.mubr.bf16.mxu0 %v1586
    %1621 = vmatmul.mubr.bf16.gmra.mxu0 %v1583
    %v1622 = vpop.f32.mrf.mxu0
    %v1623 = vadd.f32 %v1372, %v1622
    %v1624 = vpop.f32.mrf.mxu0
    %v1625 = vadd.f32 %v1376, %v1624
    %v1626 = vpop.f32.mrf.mxu0
    %v1627 = vpop.f32.mrf.mxu0
    %1628 = vdwg.mxu0
    %v1629 = vxor.u32 %v1623, 2147483648
    %v1630 = vxor.u32 %v1625, 2147483648
    %v1631 = vmul.f32 %v1629, 1.442695
    %v1632 = vpow.pop %v1631
    %v1633 = vmul.f32 %v1630, 1.442695
    %v1634 = vpow.pop %v1633
    %v1635 = vadd.f32 %v1632, 1.0
    %v1636 = vadd.f32 %v1634, 1.0
    %v1637 = vrcp.pop %v1635
    %v1638 = vmul.f32 1.0, %v1637
    %v1639 = vrcp.pop %v1636
    %v1640 = vmul.f32 1.0, %v1639
    %v1641 = vtanh.pop %v1625
    %v1642 = vmul.f32 %v1638, %v1566
    %1644 = vrot.lane.b32.xlu0 %v1641, 64
    %v1645 = vpop.permute.xlu0 %1644
    %v1647 = vmul.f32 %v1638, %v1645
    %1649 = vrot.lane.b32.xlu0 %v1647, 64
    %v1650 = vpop.permute.xlu0 %1649
    %v1652 = vadd.f32 %v1642, %v1650
    %v1653 = vtanh.pop %v1652
    %1655 = vrot.lane.b32.xlu0 %v1653, 64
    %v1656 = vpop.permute.xlu0 %1655
    %v1658 = vmul.f32 %v1640, %v1656
    %s1659 = scalar_lea.vmem [#allocation2], 4
    %1660 = vst.msk [vmem:[%s1659] sm:$0x3] %vm727, %v1658
    %s1661 = scalar_lea.vmem [#allocation2], 26
    %1662 = vst.msk [vmem:[%s1661] sm:$0x3] %vm727, %v1658
    %v1663 = vld [vmem:[%s899] sm:$0x3]
    %v1664 = vld [vmem:[%s1159] sm:$0x3]
    %1666 = vrot.lane.b32.xlu0 %v1664, 64
    %v1667 = vpop.permute.xlu0 %1666
    %v1669 = vsel %vm562, %v1663, %v1667
    %v1670 = vpack.c.bf16 %v1669, %v1669
    %v1671 = vpack.c.bf16 %v1658, %v1658
    %v1673 = vsel %vm562, %v1671, 0
    %1675 = vmatprep.subr.bf16.mxu0 %v1466
    %1676 = vmatpush1.bf16.msra.mxu0 %v1465
    %1677 = vmatprep.subr.bf16.mxu0 %v1464
    %1678 = vmatpush1.bf16.msra.mxu0 %v1463
    %1679 = vmatprep.subr.bf16.mxu0 %v1462
    %1680 = vmatpush1.bf16.msra.mxu0 %v1461
    %1681 = vmatprep.subr.bf16.mxu0 %v1460
    %1682 = vmatpush1.bf16.msra.mxu0 %v1459
    %1683 = vmatprep.subr.bf16.mxu0 %v1458
    %1684 = vmatpush1.bf16.msra.mxu0 %v1457
    %1685 = vmatprep.subr.bf16.mxu0 %v1456
    %1686 = vmatpush1.bf16.msra.mxu0 %v1455
    %1687 = vmatprep.subr.bf16.mxu0 %v1454
    %1688 = vmatpush1.bf16.msra.mxu0 %v1453
    %1689 = vmatprep.subr.bf16.mxu0 %v1452
    %1690 = vmatpush1.bf16.msra.mxu0 %v1451
    %1691 = vmatprep.subr.bf16.mxu0 0
    %1692 = vmatpush2.bf16.msra.mxu0 0
    %1693 = vmatprep.subr.bf16.mxu0 0
    %1694 = vmatpush2.bf16.msra.mxu0 0
    %1695 = vmatprep.subr.bf16.mxu0 0
    %1696 = vmatpush2.bf16.msra.mxu0 0
    %1697 = vmatprep.subr.bf16.mxu0 0
    %1698 = vmatpush2.bf16.msra.mxu0 0
    %1699 = vmatprep.subr.bf16.mxu0 %v1474
    %1700 = vmatpush2.bf16.msra.mxu0 %v1473
    %1701 = vmatprep.subr.bf16.mxu0 %v1472
    %1702 = vmatpush2.bf16.msra.mxu0 %v1471
    %1703 = vmatprep.subr.bf16.mxu0 %v1470
    %1704 = vmatpush2.bf16.msra.mxu0 %v1469
    %1705 = vmatprep.subr.bf16.mxu0 %v1468
    %1706 = vmatpush2.bf16.msra.mxu0 %v1467
    %1707 = vmatprep.mubr.bf16.mxu0 %v1673
    %1708 = vmatmul.mubr.bf16.gmra.mxu0 %v1670
    %v1709 = vpop.f32.mrf.mxu0
    %v1710 = vadd.f32 %v1372, %v1709
    %v1711 = vpop.f32.mrf.mxu0
    %v1712 = vadd.f32 %v1376, %v1711
    %v1713 = vpop.f32.mrf.mxu0
    %v1714 = vpop.f32.mrf.mxu0
    %1715 = vdwg.mxu0
    %v1716 = vxor.u32 %v1710, 2147483648
    %v1717 = vxor.u32 %v1712, 2147483648
    %v1718 = vmul.f32 %v1716, 1.442695
    %v1719 = vpow.pop %v1718
    %v1720 = vmul.f32 %v1717, 1.442695
    %v1721 = vpow.pop %v1720
    %v1722 = vadd.f32 %v1719, 1.0
    %v1723 = vadd.f32 %v1721, 1.0
    %v1724 = vrcp.pop %v1722
    %v1725 = vmul.f32 1.0, %v1724
    %v1726 = vrcp.pop %v1723
    %v1727 = vmul.f32 1.0, %v1726
    %v1728 = vtanh.pop %v1712
    %v1729 = vmul.f32 %v1725, %v1652
    %1731 = vrot.lane.b32.xlu0 %v1728, 64
    %v1732 = vpop.permute.xlu0 %1731
    %v1734 = vmul.f32 %v1725, %v1732
    %1736 = vrot.lane.b32.xlu0 %v1734, 64
    %v1737 = vpop.permute.xlu0 %1736
    %v1739 = vadd.f32 %v1729, %v1737
    %v1740 = vtanh.pop %v1739
    %1742 = vrot.lane.b32.xlu0 %v1740, 64
    %v1743 = vpop.permute.xlu0 %1742
    %v1745 = vmul.f32 %v1727, %v1743
    %s1746 = scalar_lea.vmem [#allocation2], 8
    %1747 = vst.msk [vmem:[%s1746] sm:$0x3] %vm727, %v1745
    %s1748 = scalar_lea.vmem [#allocation2], 22
    %1749 = vst.msk [vmem:[%s1748] sm:$0x3] %vm727, %v1745
    %v1750 = vld [vmem:[%s985] sm:$0x3]
    %v1751 = vld [vmem:[%s1073] sm:$0x3]
    %1753 = vrot.lane.b32.xlu0 %v1751, 64
    %v1754 = vpop.permute.xlu0 %1753
    %v1756 = vsel %vm562, %v1750, %v1754
    %v1757 = vpack.c.bf16 %v1756, %v1756
    %v1758 = vpack.c.bf16 %v1745, %v1745
    %v1760 = vsel %vm562, %v1758, 0
    %1762 = vmatprep.subr.bf16.mxu0 %v1466
    %1763 = vmatpush1.bf16.msra.mxu0 %v1465
    %1764 = vmatprep.subr.bf16.mxu0 %v1464
    %1765 = vmatpush1.bf16.msra.mxu0 %v1463
    %1766 = vmatprep.subr.bf16.mxu0 %v1462
    %1767 = vmatpush1.bf16.msra.mxu0 %v1461
    %1768 = vmatprep.subr.bf16.mxu0 %v1460
    %1769 = vmatpush1.bf16.msra.mxu0 %v1459
    %1770 = vmatprep.subr.bf16.mxu0 %v1458
    %1771 = vmatpush1.bf16.msra.mxu0 %v1457
    %1772 = vmatprep.subr.bf16.mxu0 %v1456
    %1773 = vmatpush1.bf16.msra.mxu0 %v1455
    %1774 = vmatprep.subr.bf16.mxu0 %v1454
    %1775 = vmatpush1.bf16.msra.mxu0 %v1453
    %1776 = vmatprep.subr.bf16.mxu0 %v1452
    %1777 = vmatpush1.bf16.msra.mxu0 %v1451
    %1778 = vmatprep.subr.bf16.mxu0 0
    %1779 = vmatpush2.bf16.msra.mxu0 0
    %1780 = vmatprep.subr.bf16.mxu0 0
    %1781 = vmatpush2.bf16.msra.mxu0 0
    %1782 = vmatprep.subr.bf16.mxu0 0
    %1783 = vmatpush2.bf16.msra.mxu0 0
    %1784 = vmatprep.subr.bf16.mxu0 0
    %1785 = vmatpush2.bf16.msra.mxu0 0
    %1786 = vmatprep.subr.bf16.mxu0 %v1474
    %1787 = vmatpush2.bf16.msra.mxu0 %v1473
    %1788 = vmatprep.subr.bf16.mxu0 %v1472
    %1789 = vmatpush2.bf16.msra.mxu0 %v1471
    %1790 = vmatprep.subr.bf16.mxu0 %v1470
    %1791 = vmatpush2.bf16.msra.mxu0 %v1469
    %1792 = vmatprep.subr.bf16.mxu0 %v1468
    %1793 = vmatpush2.bf16.msra.mxu0 %v1467
    %1794 = vmatprep.mubr.bf16.mxu0 %v1760
    %1795 = vmatmul.mubr.bf16.gmra.mxu0 %v1757
    %v1796 = vpop.f32.mrf.mxu0
    %v1797 = vadd.f32 %v1372, %v1796
    %v1798 = vpop.f32.mrf.mxu0
    %v1799 = vadd.f32 %v1376, %v1798
    %v1800 = vpop.f32.mrf.mxu0
    %v1801 = vpop.f32.mrf.mxu0
    %1802 = vdwg.mxu0
    %v1803 = vxor.u32 %v1797, 2147483648
    %v1804 = vxor.u32 %v1799, 2147483648
    %v1805 = vmul.f32 %v1803, 1.442695
    %v1806 = vpow.pop %v1805
    %v1807 = vmul.f32 %v1804, 1.442695
    %v1808 = vpow.pop %v1807
    %v1809 = vadd.f32 %v1806, 1.0
    %v1810 = vadd.f32 %v1808, 1.0
    %v1811 = vrcp.pop %v1809
    %v1812 = vmul.f32 1.0, %v1811
    %v1813 = vrcp.pop %v1810
    %v1814 = vmul.f32 1.0, %v1813
    %v1815 = vtanh.pop %v1799
    %v1816 = vmul.f32 %v1812, %v1739
    %1818 = vrot.lane.b32.xlu0 %v1815, 64
    %v1819 = vpop.permute.xlu0 %1818
    %v1821 = vmul.f32 %v1812, %v1819
    %1823 = vrot.lane.b32.xlu0 %v1821, 64
    %v1824 = vpop.permute.xlu0 %1823
    %v1826 = vadd.f32 %v1816, %v1824
    %v1827 = vtanh.pop %v1826
    %1829 = vrot.lane.b32.xlu0 %v1827, 64
    %v1830 = vpop.permute.xlu0 %1829
    %v1832 = vmul.f32 %v1814, %v1830
    %s1833 = scalar_lea.vmem [#allocation2], 12
    %1834 = vst.msk [vmem:[%s1833] sm:$0x3] %vm727, %v1832
    %s1835 = scalar_lea.vmem [#allocation2], 18
    %1836 = vst.msk [vmem:[%s1835] sm:$0x3] %vm727, %v1832
    %v1837 = vld [vmem:[%s1071] sm:$0x3]
    %v1838 = vld [vmem:[%s987] sm:$0x3]
    %1840 = vrot.lane.b32.xlu0 %v1838, 64
    %v1841 = vpop.permute.xlu0 %1840
    %v1843 = vsel %vm562, %v1837, %v1841
    %v1844 = vpack.c.bf16 %v1843, %v1843
    %v1845 = vpack.c.bf16 %v1832, %v1832
    %v1847 = vsel %vm562, %v1845, 0
    %1849 = vmatprep.subr.bf16.mxu0 %v1466
    %1850 = vmatpush1.bf16.msra.mxu0 %v1465
    %1851 = vmatprep.subr.bf16.mxu0 %v1464
    %1852 = vmatpush1.bf16.msra.mxu0 %v1463
    %1853 = vmatprep.subr.bf16.mxu0 %v1462
    %1854 = vmatpush1.bf16.msra.mxu0 %v1461
    %1855 = vmatprep.subr.bf16.mxu0 %v1460
    %1856 = vmatpush1.bf16.msra.mxu0 %v1459
    %1857 = vmatprep.subr.bf16.mxu0 %v1458
    %1858 = vmatpush1.bf16.msra.mxu0 %v1457
    %1859 = vmatprep.subr.bf16.mxu0 %v1456
    %1860 = vmatpush1.bf16.msra.mxu0 %v1455
    %1861 = vmatprep.subr.bf16.mxu0 %v1454
    %1862 = vmatpush1.bf16.msra.mxu0 %v1453
    %1863 = vmatprep.subr.bf16.mxu0 %v1452
    %1864 = vmatpush1.bf16.msra.mxu0 %v1451
    %1865 = vmatprep.subr.bf16.mxu0 0
    %1866 = vmatpush2.bf16.msra.mxu0 0
    %1867 = vmatprep.subr.bf16.mxu0 0
    %1868 = vmatpush2.bf16.msra.mxu0 0
    %1869 = vmatprep.subr.bf16.mxu0 0
    %1870 = vmatpush2.bf16.msra.mxu0 0
    %1871 = vmatprep.subr.bf16.mxu0 0
    %1872 = vmatpush2.bf16.msra.mxu0 0
    %1873 = vmatprep.subr.bf16.mxu0 %v1474
    %1874 = vmatpush2.bf16.msra.mxu0 %v1473
    %1875 = vmatprep.subr.bf16.mxu0 %v1472
    %1876 = vmatpush2.bf16.msra.mxu0 %v1471
    %1877 = vmatprep.subr.bf16.mxu0 %v1470
    %1878 = vmatpush2.bf16.msra.mxu0 %v1469
    %1879 = vmatprep.subr.bf16.mxu0 %v1468
    %1880 = vmatpush2.bf16.msra.mxu0 %v1467
    %1881 = vmatprep.mubr.bf16.mxu0 %v1847
    %1882 = vmatmul.mubr.bf16.gmra.mxu0 %v1844
    %v1883 = vpop.f32.mrf.mxu0
    %v1884 = vadd.f32 %v1372, %v1883
    %v1885 = vpop.f32.mrf.mxu0
    %v1886 = vadd.f32 %v1376, %v1885
    %v1887 = vpop.f32.mrf.mxu0
    %v1888 = vpop.f32.mrf.mxu0
    %1889 = vdwg.mxu0
    %v1890 = vxor.u32 %v1884, 2147483648
    %v1891 = vxor.u32 %v1886, 2147483648
    %v1892 = vmul.f32 %v1890, 1.442695
    %v1893 = vpow.pop %v1892
    %v1894 = vmul.f32 %v1891, 1.442695
    %v1895 = vpow.pop %v1894
    %v1896 = vadd.f32 %v1893, 1.0
    %v1897 = vadd.f32 %v1895, 1.0
    %v1898 = vrcp.pop %v1896
    %v1899 = vmul.f32 1.0, %v1898
    %v1900 = vrcp.pop %v1897
    %v1901 = vmul.f32 1.0, %v1900
    %v1902 = vtanh.pop %v1886
    %v1903 = vmul.f32 %v1899, %v1826
    %1905 = vrot.lane.b32.xlu0 %v1902, 64
    %v1906 = vpop.permute.xlu0 %1905
    %v1908 = vmul.f32 %v1899, %v1906
    %1910 = vrot.lane.b32.xlu0 %v1908, 64
    %v1911 = vpop.permute.xlu0 %1910
    %v1913 = vadd.f32 %v1903, %v1911
    %v1914 = vtanh.pop %v1913
    %1916 = vrot.lane.b32.xlu0 %v1914, 64
    %v1917 = vpop.permute.xlu0 %1916
    %v1919 = vmul.f32 %v1901, %v1917
    %s1920 = scalar_lea.vmem [#allocation2], 16
    %1921 = vst.msk [vmem:[%s1920] sm:$0x3] %vm727, %v1919
    %s1922 = scalar_lea.vmem [#allocation2], 14
    %1923 = vst.msk [vmem:[%s1922] sm:$0x3] %vm727, %v1919
    %v1924 = vld [vmem:[%s1157] sm:$0x3]
    %v1925 = vld [vmem:[%s901] sm:$0x3]
    %1927 = vrot.lane.b32.xlu0 %v1925, 64
    %v1928 = vpop.permute.xlu0 %1927
    %v1930 = vsel %vm562, %v1924, %v1928
    %v1931 = vpack.c.bf16 %v1930, %v1930
    %v1932 = vpack.c.bf16 %v1919, %v1919
    %v1934 = vsel %vm562, %v1932, 0
    %1936 = vmatprep.subr.bf16.mxu0 %v1466
    %1937 = vmatpush1.bf16.msra.mxu0 %v1465
    %1938 = vmatprep.subr.bf16.mxu0 %v1464
    %1939 = vmatpush1.bf16.msra.mxu0 %v1463
    %1940 = vmatprep.subr.bf16.mxu0 %v1462
    %1941 = vmatpush1.bf16.msra.mxu0 %v1461
    %1942 = vmatprep.subr.bf16.mxu0 %v1460
    %1943 = vmatpush1.bf16.msra.mxu0 %v1459
    %1944 = vmatprep.subr.bf16.mxu0 %v1458
    %1945 = vmatpush1.bf16.msra.mxu0 %v1457
    %1946 = vmatprep.subr.bf16.mxu0 %v1456
    %1947 = vmatpush1.bf16.msra.mxu0 %v1455
    %1948 = vmatprep.subr.bf16.mxu0 %v1454
    %1949 = vmatpush1.bf16.msra.mxu0 %v1453
    %1950 = vmatprep.subr.bf16.mxu0 %v1452
    %1951 = vmatpush1.bf16.msra.mxu0 %v1451
    %1952 = vmatprep.subr.bf16.mxu0 0
    %1953 = vmatpush2.bf16.msra.mxu0 0
    %1954 = vmatprep.subr.bf16.mxu0 0
    %1955 = vmatpush2.bf16.msra.mxu0 0
    %1956 = vmatprep.subr.bf16.mxu0 0
    %1957 = vmatpush2.bf16.msra.mxu0 0
    %1958 = vmatprep.subr.bf16.mxu0 0
    %1959 = vmatpush2.bf16.msra.mxu0 0
    %1960 = vmatprep.subr.bf16.mxu0 %v1474
    %1961 = vmatpush2.bf16.msra.mxu0 %v1473
    %1962 = vmatprep.subr.bf16.mxu0 %v1472
    %1963 = vmatpush2.bf16.msra.mxu0 %v1471
    %1964 = vmatprep.subr.bf16.mxu0 %v1470
    %1965 = vmatpush2.bf16.msra.mxu0 %v1469
    %1966 = vmatprep.subr.bf16.mxu0 %v1468
    %1967 = vmatpush2.bf16.msra.mxu0 %v1467
    %1968 = vmatprep.mubr.bf16.mxu0 %v1934
    %1969 = vmatmul.mubr.bf16.gmra.mxu0 %v1931
    %v1970 = vpop.f32.mrf.mxu0
    %v1971 = vadd.f32 %v1372, %v1970
    %v1972 = vpop.f32.mrf.mxu0
    %v1973 = vadd.f32 %v1376, %v1972
    %v1974 = vpop.f32.mrf.mxu0
    %v1975 = vpop.f32.mrf.mxu0
    %1976 = vdwg.mxu0
    %v1977 = vxor.u32 %v1971, 2147483648
    %v1978 = vxor.u32 %v1973, 2147483648
    %v1979 = vmul.f32 %v1977, 1.442695
    %v1980 = vpow.pop %v1979
    %v1981 = vmul.f32 %v1978, 1.442695
    %v1982 = vpow.pop %v1981
    %v1983 = vadd.f32 %v1980, 1.0
    %v1984 = vadd.f32 %v1982, 1.0
    %v1985 = vrcp.pop %v1983
    %v1986 = vmul.f32 1.0, %v1985
    %v1987 = vrcp.pop %v1984
    %v1988 = vmul.f32 1.0, %v1987
    %v1989 = vtanh.pop %v1973
    %v1990 = vmul.f32 %v1986, %v1913
    %1992 = vrot.lane.b32.xlu0 %v1989, 64
    %v1993 = vpop.permute.xlu0 %1992
    %v1995 = vmul.f32 %v1986, %v1993
    %1997 = vrot.lane.b32.xlu0 %v1995, 64
    %v1998 = vpop.permute.xlu0 %1997
    %v2000 = vadd.f32 %v1990, %v1998
    %v2001 = vtanh.pop %v2000
    %2003 = vrot.lane.b32.xlu0 %v2001, 64
    %v2004 = vpop.permute.xlu0 %2003
    %v2006 = vmul.f32 %v1988, %v2004
    %s2007 = scalar_lea.vmem [#allocation2], 20
    %2008 = vst.msk [vmem:[%s2007] sm:$0x3] %vm727, %v2006
    %s2009 = scalar_lea.vmem [#allocation2], 10
    %2010 = vst.msk [vmem:[%s2009] sm:$0x3] %vm727, %v2006
    %v2011 = vld [vmem:[%s1243] sm:$0x3]
    %v2012 = vld [vmem:[%s815] sm:$0x3]
    %2014 = vrot.lane.b32.xlu0 %v2012, 64
    %v2015 = vpop.permute.xlu0 %2014
    %v2017 = vsel %vm562, %v2011, %v2015
    %v2018 = vpack.c.bf16 %v2017, %v2017
    %v2019 = vpack.c.bf16 %v2006, %v2006
    %v2021 = vsel %vm562, %v2019, 0
    %2023 = vmatprep.subr.bf16.mxu0 %v1466
    %2024 = vmatpush1.bf16.msra.mxu0 %v1465
    %2025 = vmatprep.subr.bf16.mxu0 %v1464
    %2026 = vmatpush1.bf16.msra.mxu0 %v1463
    %2027 = vmatprep.subr.bf16.mxu0 %v1462
    %2028 = vmatpush1.bf16.msra.mxu0 %v1461
    %2029 = vmatprep.subr.bf16.mxu0 %v1460
    %2030 = vmatpush1.bf16.msra.mxu0 %v1459
    %2031 = vmatprep.subr.bf16.mxu0 %v1458
    %2032 = vmatpush1.bf16.msra.mxu0 %v1457
    %2033 = vmatprep.subr.bf16.mxu0 %v1456
    %2034 = vmatpush1.bf16.msra.mxu0 %v1455
    %2035 = vmatprep.subr.bf16.mxu0 %v1454
    %2036 = vmatpush1.bf16.msra.mxu0 %v1453
    %2037 = vmatprep.subr.bf16.mxu0 %v1452
    %2038 = vmatpush1.bf16.msra.mxu0 %v1451
    %2039 = vmatprep.subr.bf16.mxu0 0
    %2040 = vmatpush2.bf16.msra.mxu0 0
    %2041 = vmatprep.subr.bf16.mxu0 0
    %2042 = vmatpush2.bf16.msra.mxu0 0
    %2043 = vmatprep.subr.bf16.mxu0 0
    %2044 = vmatpush2.bf16.msra.mxu0 0
    %2045 = vmatprep.subr.bf16.mxu0 0
    %2046 = vmatpush2.bf16.msra.mxu0 0
    %2047 = vmatprep.subr.bf16.mxu0 %v1474
    %2048 = vmatpush2.bf16.msra.mxu0 %v1473
    %2049 = vmatprep.subr.bf16.mxu0 %v1472
    %2050 = vmatpush2.bf16.msra.mxu0 %v1471
    %2051 = vmatprep.subr.bf16.mxu0 %v1470
    %2052 = vmatpush2.bf16.msra.mxu0 %v1469
    %2053 = vmatprep.subr.bf16.mxu0 %v1468
    %2054 = vmatpush2.bf16.msra.mxu0 %v1467
    %2055 = vmatprep.mubr.bf16.mxu0 %v2021
    %2056 = vmatmul.mubr.bf16.gmra.mxu0 %v2018
    %v2057 = vpop.f32.mrf.mxu0
    %v2058 = vadd.f32 %v1372, %v2057
    %v2059 = vpop.f32.mrf.mxu0
    %v2060 = vadd.f32 %v1376, %v2059
    %v2061 = vpop.f32.mrf.mxu0
    %v2062 = vpop.f32.mrf.mxu0
    %2063 = vdwg.mxu0
    %v2064 = vxor.u32 %v2058, 2147483648
    %v2065 = vxor.u32 %v2060, 2147483648
    %v2066 = vmul.f32 %v2064, 1.442695
    %v2067 = vpow.pop %v2066
    %v2068 = vmul.f32 %v2065, 1.442695
    %v2069 = vpow.pop %v2068
    %v2070 = vadd.f32 %v2067, 1.0
    %v2071 = vadd.f32 %v2069, 1.0
    %v2072 = vrcp.pop %v2070
    %v2073 = vmul.f32 1.0, %v2072
    %v2074 = vrcp.pop %v2071
    %v2075 = vmul.f32 1.0, %v2074
    %v2076 = vtanh.pop %v2060
    %v2077 = vmul.f32 %v2073, %v2000
    %2079 = vrot.lane.b32.xlu0 %v2076, 64
    %v2080 = vpop.permute.xlu0 %2079
    %v2082 = vmul.f32 %v2073, %v2080
    %2084 = vrot.lane.b32.xlu0 %v2082, 64
    %v2085 = vpop.permute.xlu0 %2084
    %v2087 = vadd.f32 %v2077, %v2085
    %v2088 = vtanh.pop %v2087
    %2090 = vrot.lane.b32.xlu0 %v2088, 64
    %v2091 = vpop.permute.xlu0 %2090
    %v2093 = vmul.f32 %v2075, %v2091
    %s2094 = scalar_lea.vmem [#allocation2], 24
    %2095 = vst.msk [vmem:[%s2094] sm:$0x3] %vm727, %v2093
    %s2096 = scalar_lea.vmem [#allocation2], 6
    %2097 = vst.msk [vmem:[%s2096] sm:$0x3] %vm727, %v2093
    %v2098 = vld [vmem:[%s1329] sm:$0x3]
    %v2099 = vld [vmem:[%s729] sm:$0x3]
    %2101 = vrot.lane.b32.xlu0 %v2099, 64
    %v2102 = vpop.permute.xlu0 %2101
    %v2104 = vsel %vm562, %v2098, %v2102
    %v2105 = vpack.c.bf16 %v2104, %v2104
    %v2106 = vpack.c.bf16 %v2093, %v2093
    %v2108 = vsel %vm562, %v2106, 0
    %2110 = vmatprep.subr.bf16.mxu0 %v1466
    %2111 = vmatpush1.bf16.msra.mxu0 %v1465
    %2112 = vmatprep.subr.bf16.mxu0 %v1464
    %2113 = vmatpush1.bf16.msra.mxu0 %v1463
    %2114 = vmatprep.subr.bf16.mxu0 %v1462
    %2115 = vmatpush1.bf16.msra.mxu0 %v1461
    %2116 = vmatprep.subr.bf16.mxu0 %v1460
    %2117 = vmatpush1.bf16.msra.mxu0 %v1459
    %2118 = vmatprep.subr.bf16.mxu0 %v1458
    %2119 = vmatpush1.bf16.msra.mxu0 %v1457
    %2120 = vmatprep.subr.bf16.mxu0 %v1456
    %2121 = vmatpush1.bf16.msra.mxu0 %v1455
    %2122 = vmatprep.subr.bf16.mxu0 %v1454
    %2123 = vmatpush1.bf16.msra.mxu0 %v1453
    %2124 = vmatprep.subr.bf16.mxu0 %v1452
    %2125 = vmatpush1.bf16.msra.mxu0 %v1451
    %2126 = vmatprep.subr.bf16.mxu0 0
    %2127 = vmatpush2.bf16.msra.mxu0 0
    %2128 = vmatprep.subr.bf16.mxu0 0
    %2129 = vmatpush2.bf16.msra.mxu0 0
    %2130 = vmatprep.subr.bf16.mxu0 0
    %2131 = vmatpush2.bf16.msra.mxu0 0
    %2132 = vmatprep.subr.bf16.mxu0 0
    %2133 = vmatpush2.bf16.msra.mxu0 0
    %2134 = vmatprep.subr.bf16.mxu0 %v1474
    %2135 = vmatpush2.bf16.msra.mxu0 %v1473
    %2136 = vmatprep.subr.bf16.mxu0 %v1472
    %2137 = vmatpush2.bf16.msra.mxu0 %v1471
    %2138 = vmatprep.subr.bf16.mxu0 %v1470
    %2139 = vmatpush2.bf16.msra.mxu0 %v1469
    %2140 = vmatprep.subr.bf16.mxu0 %v1468
    %2141 = vmatpush2.bf16.msra.mxu0 %v1467
    %2142 = vmatprep.mubr.bf16.mxu0 %v2108
    %2143 = vmatmul.mubr.bf16.gmra.mxu0 %v2105
    %v2144 = vpop.f32.mrf.mxu0
    %v2145 = vadd.f32 %v1372, %v2144
    %v2146 = vpop.f32.mrf.mxu0
    %v2147 = vadd.f32 %v1376, %v2146
    %v2148 = vpop.f32.mrf.mxu0
    %v2149 = vpop.f32.mrf.mxu0
    %2150 = vdwg.mxu0
    %v2151 = vxor.u32 %v2145, 2147483648
    %v2152 = vxor.u32 %v2147, 2147483648
    %v2153 = vmul.f32 %v2151, 1.442695
    %v2154 = vpow.pop %v2153
    %v2155 = vmul.f32 %v2152, 1.442695
    %v2156 = vpow.pop %v2155
    %v2157 = vadd.f32 %v2154, 1.0
    %v2158 = vadd.f32 %v2156, 1.0
    %v2159 = vrcp.pop %v2157
    %v2160 = vmul.f32 1.0, %v2159
    %v2161 = vrcp.pop %v2158
    %v2162 = vmul.f32 1.0, %v2161
    %v2163 = vtanh.pop %v2147
    %v2164 = vmul.f32 %v2160, %v2087
    %2166 = vrot.lane.b32.xlu0 %v2163, 64
    %v2167 = vpop.permute.xlu0 %2166
    %v2169 = vmul.f32 %v2160, %v2167
    %2171 = vrot.lane.b32.xlu0 %v2169, 64
    %v2172 = vpop.permute.xlu0 %2171
    %v2174 = vadd.f32 %v2164, %v2172
    %v2175 = vtanh.pop %v2174
    %2177 = vrot.lane.b32.xlu0 %v2175, 64
    %v2178 = vpop.permute.xlu0 %2177
    %v2180 = vmul.f32 %v2162, %v2178
    %s2181 = scalar_lea.vmem [#allocation2], 28
    %2182 = vst.msk [vmem:[%s2181] sm:$0x3] %vm727, %v2180
    %s2183 = scalar_lea.vmem [#allocation2], 2
    %2184 = vst.msk [vmem:[%s2183] sm:$0x3] %vm727, %v2180
    %s2185 = scalar_lea.vmem [#allocation6], 192
    %v2186 = vld [vmem:[%s2185] sm:$0xff]
    %v2187 = vld [vmem:[%s2185 + $0x8] sm:$0xff]
    %v2188 = vld [vmem:[%s2185 + $0x10] sm:$0xff]
    %v2189 = vld [vmem:[%s2185 + $0x18] sm:$0xff]
    %v2190 = vld [vmem:[%s2185 + $0x20] sm:$0xff]
    %v2191 = vld [vmem:[%s2185 + $0x28] sm:$0xff]
    %v2192 = vld [vmem:[%s2185 + $0x30] sm:$0xff]
    %v2193 = vld [vmem:[%s2185 + $0x38] sm:$0xff]
    %v2194 = vld [vmem:[%s2185 + $0x40] sm:$0xff]
    %v2195 = vld [vmem:[%s2185 + $0x48] sm:$0xff]
    %v2196 = vld [vmem:[%s2185 + $0x50] sm:$0xff]
    %v2197 = vld [vmem:[%s2185 + $0x58] sm:$0xff]
    %v2198 = vld [vmem:[%s2185 + $0x60] sm:$0xff]
    %v2199 = vld [vmem:[%s2185 + $0x68] sm:$0xff]
    %v2200 = vld [vmem:[%s2185 + $0x70] sm:$0xff]
    %v2201 = vld [vmem:[%s2185 + $0x78] sm:$0xff]
    %v2202 = vld [vmem:[%s2185 + $0x80] sm:$0xff]
    %v2203 = vld [vmem:[%s2185 + $0x88] sm:$0xff]
    %v2204 = vld [vmem:[%s2185 + $0x90] sm:$0xff]
    %v2205 = vld [vmem:[%s2185 + $0x98] sm:$0xff]
    %v2206 = vld [vmem:[%s2185 + $0xa0] sm:$0xff]
    %v2207 = vld [vmem:[%s2185 + $0xa8] sm:$0xff]
    %v2208 = vld [vmem:[%s2185 + $0xb0] sm:$0xff]
    %v2209 = vld [vmem:[%s2185 + $0xb8] sm:$0xff]
    %s2210 = scalar_lea.vmem %s4, 4
    %v2211 = vld [vmem:[%s2210] sm:$0x3]
    %v2212 = vld [vmem:[#allocation2] sm:$0x3]
    %v2213 = vld [vmem:[%s2183] sm:$0x3]
    %2215 = vrot.lane.b32.xlu0 %v2213, 64
    %v2216 = vpop.permute.xlu0 %2215
    %v2218 = vsel %vm562, %v2212, %v2216
    %v2219 = vpack.c.bf16 %v2218, %v2218
    %v2221 = vlaneseq
    %v2222 = vshrl.u32 %v2221, 7
    %v2223 = vsub.s32 0, %v2222
    %v2224 = vrot.slane %v2211, %v2223
    %v2225 = vlaneseq
    %v2226 = vshrl.u32 %v2225, 7
    %v2227 = vsub.s32 1, %v2226
    %v2228 = vrot.slane %v2211, %v2227
    %v2255 = vunpack.c.l.b16 %v2186
    %v2256 = vunpack.c.h.b16 %v2186
    %v2257 = vunpack.c.l.b16 %v2187
    %v2258 = vunpack.c.h.b16 %v2187
    %v2259 = vunpack.c.l.b16 %v2188
    %v2260 = vunpack.c.h.b16 %v2188
    %v2261 = vunpack.c.l.b16 %v2189
    %v2262 = vunpack.c.h.b16 %v2189
    %v2263 = vunpack.c.l.b16 %v2190
    %v2264 = vunpack.c.h.b16 %v2190
    %v2265 = vunpack.c.l.b16 %v2191
    %v2266 = vunpack.c.h.b16 %v2191
    %v2267 = vunpack.c.l.b16 %v2192
    %v2268 = vunpack.c.h.b16 %v2192
    %v2269 = vunpack.c.l.b16 %v2193
    %v2270 = vunpack.c.h.b16 %v2193
    %v2271 = vunpack.c.l.b16 %v2194
    %v2272 = vunpack.c.h.b16 %v2194
    %v2273 = vunpack.c.l.b16 %v2195
    %v2274 = vunpack.c.h.b16 %v2195
    %v2275 = vunpack.c.l.b16 %v2196
    %v2276 = vunpack.c.h.b16 %v2196
    %v2277 = vunpack.c.l.b16 %v2197
    %v2278 = vunpack.c.h.b16 %v2197
    %v2279 = vunpack.c.l.b16 %v2198
    %v2280 = vunpack.c.h.b16 %v2198
    %v2281 = vunpack.c.l.b16 %v2199
    %v2282 = vunpack.c.h.b16 %v2199
    %v2283 = vunpack.c.l.b16 %v2200
    %v2284 = vunpack.c.h.b16 %v2200
    %v2285 = vunpack.c.l.b16 %v2201
    %v2286 = vunpack.c.h.b16 %v2201
    %v2287 = vunpack.c.l.b16 %v2202
    %v2288 = vunpack.c.h.b16 %v2202
    %v2289 = vunpack.c.l.b16 %v2203
    %v2290 = vunpack.c.h.b16 %v2203
    %v2291 = vunpack.c.l.b16 %v2204
    %v2292 = vunpack.c.h.b16 %v2204
    %v2293 = vunpack.c.l.b16 %v2205
    %v2294 = vunpack.c.h.b16 %v2205
    %v2295 = vunpack.c.l.b16 %v2206
    %v2296 = vunpack.c.h.b16 %v2206
    %v2297 = vunpack.c.l.b16 %v2207
    %v2298 = vunpack.c.h.b16 %v2207
    %v2299 = vunpack.c.l.b16 %v2208
    %v2300 = vunpack.c.h.b16 %v2208
    %v2301 = vunpack.c.l.b16 %v2209
    %v2302 = vunpack.c.h.b16 %v2209
    %v2303 = vpack.c.b16 %v2257, %v2255
    %v2304 = vpack.c.b16 %v2258, %v2256
    %v2305 = vpack.c.b16 %v2261, %v2259
    %v2306 = vpack.c.b16 %v2262, %v2260
    %v2307 = vpack.c.b16 %v2265, %v2263
    %v2308 = vpack.c.b16 %v2266, %v2264
    %v2309 = vpack.c.b16 %v2269, %v2267
    %v2310 = vpack.c.b16 %v2270, %v2268
    %v2311 = vpack.c.b16 %v2273, %v2271
    %v2312 = vpack.c.b16 %v2274, %v2272
    %v2313 = vpack.c.b16 %v2277, %v2275
    %v2314 = vpack.c.b16 %v2278, %v2276
    %v2315 = vpack.c.b16 %v2281, %v2279
    %v2316 = vpack.c.b16 %v2282, %v2280
    %v2317 = vpack.c.b16 %v2285, %v2283
    %v2318 = vpack.c.b16 %v2286, %v2284
    %v2319 = vpack.c.b16 %v2289, %v2287
    %v2320 = vpack.c.b16 %v2290, %v2288
    %v2321 = vpack.c.b16 %v2293, %v2291
    %v2322 = vpack.c.b16 %v2294, %v2292
    %v2323 = vpack.c.b16 %v2297, %v2295
    %v2324 = vpack.c.b16 %v2298, %v2296
    %v2325 = vpack.c.b16 %v2301, %v2299
    %v2326 = vpack.c.b16 %v2302, %v2300
    %2351 = vmatprep.subr.bf16.mxu0 %v2318
    %2352 = vmatpush1.bf16.msra.mxu0 %v2317
    %2353 = vmatprep.subr.bf16.mxu0 %v2316
    %2354 = vmatpush1.bf16.msra.mxu0 %v2315
    %2355 = vmatprep.subr.bf16.mxu0 %v2314
    %2356 = vmatpush1.bf16.msra.mxu0 %v2313
    %2357 = vmatprep.subr.bf16.mxu0 %v2312
    %2358 = vmatpush1.bf16.msra.mxu0 %v2311
    %2359 = vmatprep.subr.bf16.mxu0 %v2310
    %2360 = vmatpush1.bf16.msra.mxu0 %v2309
    %2361 = vmatprep.subr.bf16.mxu0 %v2308
    %2362 = vmatpush1.bf16.msra.mxu0 %v2307
    %2363 = vmatprep.subr.bf16.mxu0 %v2306
    %2364 = vmatpush1.bf16.msra.mxu0 %v2305
    %2365 = vmatprep.subr.bf16.mxu0 %v2304
    %2366 = vmatpush1.bf16.msra.mxu0 %v2303
    %2367 = vmatprep.subr.bf16.mxu0 0
    %2368 = vmatpush2.bf16.msra.mxu0 0
    %2369 = vmatprep.subr.bf16.mxu0 0
    %2370 = vmatpush2.bf16.msra.mxu0 0
    %2371 = vmatprep.subr.bf16.mxu0 0
    %2372 = vmatpush2.bf16.msra.mxu0 0
    %2373 = vmatprep.subr.bf16.mxu0 0
    %2374 = vmatpush2.bf16.msra.mxu0 0
    %2375 = vmatprep.subr.bf16.mxu0 %v2326
    %2376 = vmatpush2.bf16.msra.mxu0 %v2325
    %2377 = vmatprep.subr.bf16.mxu0 %v2324
    %2378 = vmatpush2.bf16.msra.mxu0 %v2323
    %2379 = vmatprep.subr.bf16.mxu0 %v2322
    %2380 = vmatpush2.bf16.msra.mxu0 %v2321
    %2381 = vmatprep.subr.bf16.mxu0 %v2320
    %2382 = vmatpush2.bf16.msra.mxu0 %v2319
    %2383 = vmatprep.mubr.bf16.mxu0 %v1500
    %2384 = vmatmul.mubr.bf16.gmra.mxu0 %v2219
    %v2385 = vpop.f32.mrf.mxu0
    %v2386 = vadd.f32 %v2224, %v2385
    %v2387 = vpop.f32.mrf.mxu0
    %v2388 = vadd.f32 %v2228, %v2387
    %v2389 = vpop.f32.mrf.mxu0
    %v2390 = vpop.f32.mrf.mxu0
    %2391 = vdwg.mxu0
    %v2392 = vxor.u32 %v2386, 2147483648
    %v2393 = vxor.u32 %v2388, 2147483648
    %v2394 = vmul.f32 %v2392, 1.442695
    %v2395 = vpow.pop %v2394
    %v2396 = vmul.f32 %v2393, 1.442695
    %v2397 = vpow.pop %v2396
    %v2398 = vadd.f32 %v2395, 1.0
    %v2399 = vadd.f32 %v2397, 1.0
    %v2400 = vrcp.pop %v2398
    %v2401 = vmul.f32 1.0, %v2400
    %v2402 = vrcp.pop %v2399
    %v2403 = vmul.f32 1.0, %v2402
    %v2404 = vtanh.pop %v2388
    %v2405 = vmul.f32 %v2401, 0.0
    %2407 = vrot.lane.b32.xlu0 %v2404, 64
    %v2408 = vpop.permute.xlu0 %2407
    %v2410 = vmul.f32 %v2401, %v2408
    %2412 = vrot.lane.b32.xlu0 %v2410, 64
    %v2413 = vpop.permute.xlu0 %2412
    %v2415 = vadd.f32 %v2405, %v2413
    %v2416 = vtanh.pop %v2415
    %2418 = vrot.lane.b32.xlu0 %v2416, 64
    %v2419 = vpop.permute.xlu0 %2418
    %v2421 = vmul.f32 %v2403, %v2419
    %2422 = vst.msk [vmem:[#allocation3] sm:$0x3] %vm727, %v2421
    %2423 = vst.msk [vmem:[%s729] sm:$0x3] %vm727, %v2421
    %v2424 = vld [vmem:[%s1659] sm:$0x3]
    %v2425 = vld [vmem:[%s2096] sm:$0x3]
    %2427 = vrot.lane.b32.xlu0 %v2425, 64
    %v2428 = vpop.permute.xlu0 %2427
    %v2430 = vsel %vm562, %v2424, %v2428
    %v2431 = vpack.c.bf16 %v2430, %v2430
    %v2432 = vpack.c.bf16 %v2421, %v2421
    %v2434 = vsel %vm562, %v2432, 0
    %2436 = vmatprep.subr.bf16.mxu0 %v2318
    %2437 = vmatpush1.bf16.msra.mxu0 %v2317
    %2438 = vmatprep.subr.bf16.mxu0 %v2316
    %2439 = vmatpush1.bf16.msra.mxu0 %v2315
    %2440 = vmatprep.subr.bf16.mxu0 %v2314
    %2441 = vmatpush1.bf16.msra.mxu0 %v2313
    %2442 = vmatprep.subr.bf16.mxu0 %v2312
    %2443 = vmatpush1.bf16.msra.mxu0 %v2311
    %2444 = vmatprep.subr.bf16.mxu0 %v2310
    %2445 = vmatpush1.bf16.msra.mxu0 %v2309
    %2446 = vmatprep.subr.bf16.mxu0 %v2308
    %2447 = vmatpush1.bf16.msra.mxu0 %v2307
    %2448 = vmatprep.subr.bf16.mxu0 %v2306
    %2449 = vmatpush1.bf16.msra.mxu0 %v2305
    %2450 = vmatprep.subr.bf16.mxu0 %v2304
    %2451 = vmatpush1.bf16.msra.mxu0 %v2303
    %2452 = vmatprep.subr.bf16.mxu0 0
    %2453 = vmatpush2.bf16.msra.mxu0 0
    %2454 = vmatprep.subr.bf16.mxu0 0
    %2455 = vmatpush2.bf16.msra.mxu0 0
    %2456 = vmatprep.subr.bf16.mxu0 0
    %2457 = vmatpush2.bf16.msra.mxu0 0
    %2458 = vmatprep.subr.bf16.mxu0 0
    %2459 = vmatpush2.bf16.msra.mxu0 0
    %2460 = vmatprep.subr.bf16.mxu0 %v2326
    %2461 = vmatpush2.bf16.msra.mxu0 %v2325
    %2462 = vmatprep.subr.bf16.mxu0 %v2324
    %2463 = vmatpush2.bf16.msra.mxu0 %v2323
    %2464 = vmatprep.subr.bf16.mxu0 %v2322
    %2465 = vmatpush2.bf16.msra.mxu0 %v2321
    %2466 = vmatprep.subr.bf16.mxu0 %v2320
    %2467 = vmatpush2.bf16.msra.mxu0 %v2319
    %2468 = vmatprep.mubr.bf16.mxu0 %v2434
    %2469 = vmatmul.mubr.bf16.gmra.mxu0 %v2431
    %v2470 = vpop.f32.mrf.mxu0
    %v2471 = vadd.f32 %v2224, %v2470
    %v2472 = vpop.f32.mrf.mxu0
    %v2473 = vadd.f32 %v2228, %v2472
    %v2474 = vpop.f32.mrf.mxu0
    %v2475 = vpop.f32.mrf.mxu0
    %2476 = vdwg.mxu0
    %v2477 = vxor.u32 %v2471, 2147483648
    %v2478 = vxor.u32 %v2473, 2147483648
    %v2479 = vmul.f32 %v2477, 1.442695
    %v2480 = vpow.pop %v2479
    %v2481 = vmul.f32 %v2478, 1.442695
    %v2482 = vpow.pop %v2481
    %v2483 = vadd.f32 %v2480, 1.0
    %v2484 = vadd.f32 %v2482, 1.0
    %v2485 = vrcp.pop %v2483
    %v2486 = vmul.f32 1.0, %v2485
    %v2487 = vrcp.pop %v2484
    %v2488 = vmul.f32 1.0, %v2487
    %v2489 = vtanh.pop %v2473
    %v2490 = vmul.f32 %v2486, %v2415
    %2492 = vrot.lane.b32.xlu0 %v2489, 64
    %v2493 = vpop.permute.xlu0 %2492
    %v2495 = vmul.f32 %v2486, %v2493
    %2497 = vrot.lane.b32.xlu0 %v2495, 64
    %v2498 = vpop.permute.xlu0 %2497
    %v2500 = vadd.f32 %v2490, %v2498
    %v2501 = vtanh.pop %v2500
    %2503 = vrot.lane.b32.xlu0 %v2501, 64
    %v2504 = vpop.permute.xlu0 %2503
    %v2506 = vmul.f32 %v2488, %v2504
    %2507 = vst.msk [vmem:[%s813] sm:$0x3] %vm727, %v2506
    %2508 = vst.msk [vmem:[%s815] sm:$0x3] %vm727, %v2506
    %v2509 = vld [vmem:[%s1746] sm:$0x3]
    %v2510 = vld [vmem:[%s2009] sm:$0x3]
    %2512 = vrot.lane.b32.xlu0 %v2510, 64
    %v2513 = vpop.permute.xlu0 %2512
    %v2515 = vsel %vm562, %v2509, %v2513
    %v2516 = vpack.c.bf16 %v2515, %v2515
    %v2517 = vpack.c.bf16 %v2506, %v2506
    %v2519 = vsel %vm562, %v2517, 0
    %2521 = vmatprep.subr.bf16.mxu0 %v2318
    %2522 = vmatpush1.bf16.msra.mxu0 %v2317
    %2523 = vmatprep.subr.bf16.mxu0 %v2316
    %2524 = vmatpush1.bf16.msra.mxu0 %v2315
    %2525 = vmatprep.subr.bf16.mxu0 %v2314
    %2526 = vmatpush1.bf16.msra.mxu0 %v2313
    %2527 = vmatprep.subr.bf16.mxu0 %v2312
    %2528 = vmatpush1.bf16.msra.mxu0 %v2311
    %2529 = vmatprep.subr.bf16.mxu0 %v2310
    %2530 = vmatpush1.bf16.msra.mxu0 %v2309
    %2531 = vmatprep.subr.bf16.mxu0 %v2308
    %2532 = vmatpush1.bf16.msra.mxu0 %v2307
    %2533 = vmatprep.subr.bf16.mxu0 %v2306
    %2534 = vmatpush1.bf16.msra.mxu0 %v2305
    %2535 = vmatprep.subr.bf16.mxu0 %v2304
    %2536 = vmatpush1.bf16.msra.mxu0 %v2303
    %2537 = vmatprep.subr.bf16.mxu0 0
    %2538 = vmatpush2.bf16.msra.mxu0 0
    %2539 = vmatprep.subr.bf16.mxu0 0
    %2540 = vmatpush2.bf16.msra.mxu0 0
    %2541 = vmatprep.subr.bf16.mxu0 0
    %2542 = vmatpush2.bf16.msra.mxu0 0
    %2543 = vmatprep.subr.bf16.mxu0 0
    %2544 = vmatpush2.bf16.msra.mxu0 0
    %2545 = vmatprep.subr.bf16.mxu0 %v2326
    %2546 = vmatpush2.bf16.msra.mxu0 %v2325
    %2547 = vmatprep.subr.bf16.mxu0 %v2324
    %2548 = vmatpush2.bf16.msra.mxu0 %v2323
    %2549 = vmatprep.subr.bf16.mxu0 %v2322
    %2550 = vmatpush2.bf16.msra.mxu0 %v2321
    %2551 = vmatprep.subr.bf16.mxu0 %v2320
    %2552 = vmatpush2.bf16.msra.mxu0 %v2319
    %2553 = vmatprep.mubr.bf16.mxu0 %v2519
    %2554 = vmatmul.mubr.bf16.gmra.mxu0 %v2516
    %v2555 = vpop.f32.mrf.mxu0
    %v2556 = vadd.f32 %v2224, %v2555
    %v2557 = vpop.f32.mrf.mxu0
    %v2558 = vadd.f32 %v2228, %v2557
    %v2559 = vpop.f32.mrf.mxu0
    %v2560 = vpop.f32.mrf.mxu0
    %2561 = vdwg.mxu0
    %v2562 = vxor.u32 %v2556, 2147483648
    %v2563 = vxor.u32 %v2558, 2147483648
    %v2564 = vmul.f32 %v2562, 1.442695
    %v2565 = vpow.pop %v2564
    %v2566 = vmul.f32 %v2563, 1.442695
    %v2567 = vpow.pop %v2566
    %v2568 = vadd.f32 %v2565, 1.0
    %v2569 = vadd.f32 %v2567, 1.0
    %v2570 = vrcp.pop %v2568
    %v2571 = vmul.f32 1.0, %v2570
    %v2572 = vrcp.pop %v2569
    %v2573 = vmul.f32 1.0, %v2572
    %v2574 = vtanh.pop %v2558
    %v2575 = vmul.f32 %v2571, %v2500
    %2577 = vrot.lane.b32.xlu0 %v2574, 64
    %v2578 = vpop.permute.xlu0 %2577
    %v2580 = vmul.f32 %v2571, %v2578
    %2582 = vrot.lane.b32.xlu0 %v2580, 64
    %v2583 = vpop.permute.xlu0 %2582
    %v2585 = vadd.f32 %v2575, %v2583
    %v2586 = vtanh.pop %v2585
    %2588 = vrot.lane.b32.xlu0 %v2586, 64
    %v2589 = vpop.permute.xlu0 %2588
    %v2591 = vmul.f32 %v2573, %v2589
    %2592 = vst.msk [vmem:[%s899] sm:$0x3] %vm727, %v2591
    %2593 = vst.msk [vmem:[%s901] sm:$0x3] %vm727, %v2591
    %v2594 = vld [vmem:[%s1833] sm:$0x3]
    %v2595 = vld [vmem:[%s1922] sm:$0x3]
    %2597 = vrot.lane.b32.xlu0 %v2595, 64
    %v2598 = vpop.permute.xlu0 %2597
    %v2600 = vsel %vm562, %v2594, %v2598
    %v2601 = vpack.c.bf16 %v2600, %v2600
    %v2602 = vpack.c.bf16 %v2591, %v2591
    %v2604 = vsel %vm562, %v2602, 0
    %2606 = vmatprep.subr.bf16.mxu0 %v2318
    %2607 = vmatpush1.bf16.msra.mxu0 %v2317
    %2608 = vmatprep.subr.bf16.mxu0 %v2316
    %2609 = vmatpush1.bf16.msra.mxu0 %v2315
    %2610 = vmatprep.subr.bf16.mxu0 %v2314
    %2611 = vmatpush1.bf16.msra.mxu0 %v2313
    %2612 = vmatprep.subr.bf16.mxu0 %v2312
    %2613 = vmatpush1.bf16.msra.mxu0 %v2311
    %2614 = vmatprep.subr.bf16.mxu0 %v2310
    %2615 = vmatpush1.bf16.msra.mxu0 %v2309
    %2616 = vmatprep.subr.bf16.mxu0 %v2308
    %2617 = vmatpush1.bf16.msra.mxu0 %v2307
    %2618 = vmatprep.subr.bf16.mxu0 %v2306
    %2619 = vmatpush1.bf16.msra.mxu0 %v2305
    %2620 = vmatprep.subr.bf16.mxu0 %v2304
    %2621 = vmatpush1.bf16.msra.mxu0 %v2303
    %2622 = vmatprep.subr.bf16.mxu0 0
    %2623 = vmatpush2.bf16.msra.mxu0 0
    %2624 = vmatprep.subr.bf16.mxu0 0
    %2625 = vmatpush2.bf16.msra.mxu0 0
    %2626 = vmatprep.subr.bf16.mxu0 0
    %2627 = vmatpush2.bf16.msra.mxu0 0
    %2628 = vmatprep.subr.bf16.mxu0 0
    %2629 = vmatpush2.bf16.msra.mxu0 0
    %2630 = vmatprep.subr.bf16.mxu0 %v2326
    %2631 = vmatpush2.bf16.msra.mxu0 %v2325
    %2632 = vmatprep.subr.bf16.mxu0 %v2324
    %2633 = vmatpush2.bf16.msra.mxu0 %v2323
    %2634 = vmatprep.subr.bf16.mxu0 %v2322
    %2635 = vmatpush2.bf16.msra.mxu0 %v2321
    %2636 = vmatprep.subr.bf16.mxu0 %v2320
    %2637 = vmatpush2.bf16.msra.mxu0 %v2319
    %2638 = vmatprep.mubr.bf16.mxu0 %v2604
    %2639 = vmatmul.mubr.bf16.gmra.mxu0 %v2601
    %v2640 = vpop.f32.mrf.mxu0
    %v2641 = vadd.f32 %v2224, %v2640
    %v2642 = vpop.f32.mrf.mxu0
    %v2643 = vadd.f32 %v2228, %v2642
    %v2644 = vpop.f32.mrf.mxu0
    %v2645 = vpop.f32.mrf.mxu0
    %2646 = vdwg.mxu0
    %v2647 = vxor.u32 %v2641, 2147483648
    %v2648 = vxor.u32 %v2643, 2147483648
    %v2649 = vmul.f32 %v2647, 1.442695
    %v2650 = vpow.pop %v2649
    %v2651 = vmul.f32 %v2648, 1.442695
    %v2652 = vpow.pop %v2651
    %v2653 = vadd.f32 %v2650, 1.0
    %v2654 = vadd.f32 %v2652, 1.0
    %v2655 = vrcp.pop %v2653
    %v2656 = vmul.f32 1.0, %v2655
    %v2657 = vrcp.pop %v2654
    %v2658 = vmul.f32 1.0, %v2657
    %v2659 = vtanh.pop %v2643
    %v2660 = vmul.f32 %v2656, %v2585
    %2662 = vrot.lane.b32.xlu0 %v2659, 64
    %v2663 = vpop.permute.xlu0 %2662
    %v2665 = vmul.f32 %v2656, %v2663
    %2667 = vrot.lane.b32.xlu0 %v2665, 64
    %v2668 = vpop.permute.xlu0 %2667
    %v2670 = vadd.f32 %v2660, %v2668
    %v2671 = vtanh.pop %v2670
    %2673 = vrot.lane.b32.xlu0 %v2671, 64
    %v2674 = vpop.permute.xlu0 %2673
    %v2676 = vmul.f32 %v2658, %v2674
    %2677 = vst.msk [vmem:[%s985] sm:$0x3] %vm727, %v2676
    %2678 = vst.msk [vmem:[%s987] sm:$0x3] %vm727, %v2676
    %v2679 = vld [vmem:[%s1920] sm:$0x3]
    %v2680 = vld [vmem:[%s1835] sm:$0x3]
    %2682 = vrot.lane.b32.xlu0 %v2680, 64
    %v2683 = vpop.permute.xlu0 %2682
    %v2685 = vsel %vm562, %v2679, %v2683
    %v2686 = vpack.c.bf16 %v2685, %v2685
    %v2687 = vpack.c.bf16 %v2676, %v2676
    %v2689 = vsel %vm562, %v2687, 0
    %2691 = vmatprep.subr.bf16.mxu0 %v2318
    %2692 = vmatpush1.bf16.msra.mxu0 %v2317
    %2693 = vmatprep.subr.bf16.mxu0 %v2316
    %2694 = vmatpush1.bf16.msra.mxu0 %v2315
    %2695 = vmatprep.subr.bf16.mxu0 %v2314
    %2696 = vmatpush1.bf16.msra.mxu0 %v2313
    %2697 = vmatprep.subr.bf16.mxu0 %v2312
    %2698 = vmatpush1.bf16.msra.mxu0 %v2311
    %2699 = vmatprep.subr.bf16.mxu0 %v2310
    %2700 = vmatpush1.bf16.msra.mxu0 %v2309
    %2701 = vmatprep.subr.bf16.mxu0 %v2308
    %2702 = vmatpush1.bf16.msra.mxu0 %v2307
    %2703 = vmatprep.subr.bf16.mxu0 %v2306
    %2704 = vmatpush1.bf16.msra.mxu0 %v2305
    %2705 = vmatprep.subr.bf16.mxu0 %v2304
    %2706 = vmatpush1.bf16.msra.mxu0 %v2303
    %2707 = vmatprep.subr.bf16.mxu0 0
    %2708 = vmatpush2.bf16.msra.mxu0 0
    %2709 = vmatprep.subr.bf16.mxu0 0
    %2710 = vmatpush2.bf16.msra.mxu0 0
    %2711 = vmatprep.subr.bf16.mxu0 0
    %2712 = vmatpush2.bf16.msra.mxu0 0
    %2713 = vmatprep.subr.bf16.mxu0 0
    %2714 = vmatpush2.bf16.msra.mxu0 0
    %2715 = vmatprep.subr.bf16.mxu0 %v2326
    %2716 = vmatpush2.bf16.msra.mxu0 %v2325
    %2717 = vmatprep.subr.bf16.mxu0 %v2324
    %2718 = vmatpush2.bf16.msra.mxu0 %v2323
    %2719 = vmatprep.subr.bf16.mxu0 %v2322
    %2720 = vmatpush2.bf16.msra.mxu0 %v2321
    %2721 = vmatprep.subr.bf16.mxu0 %v2320
    %2722 = vmatpush2.bf16.msra.mxu0 %v2319
    %2723 = vmatprep.mubr.bf16.mxu0 %v2689
    %2724 = vmatmul.mubr.bf16.gmra.mxu0 %v2686
    %v2725 = vpop.f32.mrf.mxu0
    %v2726 = vadd.f32 %v2224, %v2725
    %v2727 = vpop.f32.mrf.mxu0
    %v2728 = vadd.f32 %v2228, %v2727
    %v2729 = vpop.f32.mrf.mxu0
    %v2730 = vpop.f32.mrf.mxu0
    %2731 = vdwg.mxu0
    %v2732 = vxor.u32 %v2726, 2147483648
    %v2733 = vxor.u32 %v2728, 2147483648
    %v2734 = vmul.f32 %v2732, 1.442695
    %v2735 = vpow.pop %v2734
    %v2736 = vmul.f32 %v2733, 1.442695
    %v2737 = vpow.pop %v2736
    %v2738 = vadd.f32 %v2735, 1.0
    %v2739 = vadd.f32 %v2737, 1.0
    %v2740 = vrcp.pop %v2738
    %v2741 = vmul.f32 1.0, %v2740
    %v2742 = vrcp.pop %v2739
    %v2743 = vmul.f32 1.0, %v2742
    %v2744 = vtanh.pop %v2728
    %v2745 = vmul.f32 %v2741, %v2670
    %2747 = vrot.lane.b32.xlu0 %v2744, 64
    %v2748 = vpop.permute.xlu0 %2747
    %v2750 = vmul.f32 %v2741, %v2748
    %2752 = vrot.lane.b32.xlu0 %v2750, 64
    %v2753 = vpop.permute.xlu0 %2752
    %v2755 = vadd.f32 %v2745, %v2753
    %v2756 = vtanh.pop %v2755
    %2758 = vrot.lane.b32.xlu0 %v2756, 64
    %v2759 = vpop.permute.xlu0 %2758
    %v2761 = vmul.f32 %v2743, %v2759
    %2762 = vst.msk [vmem:[%s1071] sm:$0x3] %vm727, %v2761
    %2763 = vst.msk [vmem:[%s1073] sm:$0x3] %vm727, %v2761
    %v2764 = vld [vmem:[%s2007] sm:$0x3]
    %v2765 = vld [vmem:[%s1748] sm:$0x3]
    %2767 = vrot.lane.b32.xlu0 %v2765, 64
    %v2768 = vpop.permute.xlu0 %2767
    %v2770 = vsel %vm562, %v2764, %v2768
    %v2771 = vpack.c.bf16 %v2770, %v2770
    %v2772 = vpack.c.bf16 %v2761, %v2761
    %v2774 = vsel %vm562, %v2772, 0
    %2776 = vmatprep.subr.bf16.mxu0 %v2318
    %2777 = vmatpush1.bf16.msra.mxu0 %v2317
    %2778 = vmatprep.subr.bf16.mxu0 %v2316
    %2779 = vmatpush1.bf16.msra.mxu0 %v2315
    %2780 = vmatprep.subr.bf16.mxu0 %v2314
    %2781 = vmatpush1.bf16.msra.mxu0 %v2313
    %2782 = vmatprep.subr.bf16.mxu0 %v2312
    %2783 = vmatpush1.bf16.msra.mxu0 %v2311
    %2784 = vmatprep.subr.bf16.mxu0 %v2310
    %2785 = vmatpush1.bf16.msra.mxu0 %v2309
    %2786 = vmatprep.subr.bf16.mxu0 %v2308
    %2787 = vmatpush1.bf16.msra.mxu0 %v2307
    %2788 = vmatprep.subr.bf16.mxu0 %v2306
    %2789 = vmatpush1.bf16.msra.mxu0 %v2305
    %2790 = vmatprep.subr.bf16.mxu0 %v2304
    %2791 = vmatpush1.bf16.msra.mxu0 %v2303
    %2792 = vmatprep.subr.bf16.mxu0 0
    %2793 = vmatpush2.bf16.msra.mxu0 0
    %2794 = vmatprep.subr.bf16.mxu0 0
    %2795 = vmatpush2.bf16.msra.mxu0 0
    %2796 = vmatprep.subr.bf16.mxu0 0
    %2797 = vmatpush2.bf16.msra.mxu0 0
    %2798 = vmatprep.subr.bf16.mxu0 0
    %2799 = vmatpush2.bf16.msra.mxu0 0
    %2800 = vmatprep.subr.bf16.mxu0 %v2326
    %2801 = vmatpush2.bf16.msra.mxu0 %v2325
    %2802 = vmatprep.subr.bf16.mxu0 %v2324
    %2803 = vmatpush2.bf16.msra.mxu0 %v2323
    %2804 = vmatprep.subr.bf16.mxu0 %v2322
    %2805 = vmatpush2.bf16.msra.mxu0 %v2321
    %2806 = vmatprep.subr.bf16.mxu0 %v2320
    %2807 = vmatpush2.bf16.msra.mxu0 %v2319
    %2808 = vmatprep.mubr.bf16.mxu0 %v2774
    %2809 = vmatmul.mubr.bf16.gmra.mxu0 %v2771
    %v2810 = vpop.f32.mrf.mxu0
    %v2811 = vadd.f32 %v2224, %v2810
    %v2812 = vpop.f32.mrf.mxu0
    %v2813 = vadd.f32 %v2228, %v2812
    %v2814 = vpop.f32.mrf.mxu0
    %v2815 = vpop.f32.mrf.mxu0
    %2816 = vdwg.mxu0
    %v2817 = vxor.u32 %v2811, 2147483648
    %v2818 = vxor.u32 %v2813, 2147483648
    %v2819 = vmul.f32 %v2817, 1.442695
    %v2820 = vpow.pop %v2819
    %v2821 = vmul.f32 %v2818, 1.442695
    %v2822 = vpow.pop %v2821
    %v2823 = vadd.f32 %v2820, 1.0
    %v2824 = vadd.f32 %v2822, 1.0
    %v2825 = vrcp.pop %v2823
    %v2826 = vmul.f32 1.0, %v2825
    %v2827 = vrcp.pop %v2824
    %v2828 = vmul.f32 1.0, %v2827
    %v2829 = vtanh.pop %v2813
    %v2830 = vmul.f32 %v2826, %v2755
    %2832 = vrot.lane.b32.xlu0 %v2829, 64
    %v2833 = vpop.permute.xlu0 %2832
    %v2835 = vmul.f32 %v2826, %v2833
    %2837 = vrot.lane.b32.xlu0 %v2835, 64
    %v2838 = vpop.permute.xlu0 %2837
    %v2840 = vadd.f32 %v2830, %v2838
    %v2841 = vtanh.pop %v2840
    %2843 = vrot.lane.b32.xlu0 %v2841, 64
    %v2844 = vpop.permute.xlu0 %2843
    %v2846 = vmul.f32 %v2828, %v2844
    %2847 = vst.msk [vmem:[%s1157] sm:$0x3] %vm727, %v2846
    %2848 = vst.msk [vmem:[%s1159] sm:$0x3] %vm727, %v2846
    %v2849 = vld [vmem:[%s2094] sm:$0x3]
    %v2850 = vld [vmem:[%s1661] sm:$0x3]
    %2852 = vrot.lane.b32.xlu0 %v2850, 64
    %v2853 = vpop.permute.xlu0 %2852
    %v2855 = vsel %vm562, %v2849, %v2853
    %v2856 = vpack.c.bf16 %v2855, %v2855
    %v2857 = vpack.c.bf16 %v2846, %v2846
    %v2859 = vsel %vm562, %v2857, 0
    %2861 = vmatprep.subr.bf16.mxu0 %v2318
    %2862 = vmatpush1.bf16.msra.mxu0 %v2317
    %2863 = vmatprep.subr.bf16.mxu0 %v2316
    %2864 = vmatpush1.bf16.msra.mxu0 %v2315
    %2865 = vmatprep.subr.bf16.mxu0 %v2314
    %2866 = vmatpush1.bf16.msra.mxu0 %v2313
    %2867 = vmatprep.subr.bf16.mxu0 %v2312
    %2868 = vmatpush1.bf16.msra.mxu0 %v2311
    %2869 = vmatprep.subr.bf16.mxu0 %v2310
    %2870 = vmatpush1.bf16.msra.mxu0 %v2309
    %2871 = vmatprep.subr.bf16.mxu0 %v2308
    %2872 = vmatpush1.bf16.msra.mxu0 %v2307
    %2873 = vmatprep.subr.bf16.mxu0 %v2306
    %2874 = vmatpush1.bf16.msra.mxu0 %v2305
    %2875 = vmatprep.subr.bf16.mxu0 %v2304
    %2876 = vmatpush1.bf16.msra.mxu0 %v2303
    %2877 = vmatprep.subr.bf16.mxu0 0
    %2878 = vmatpush2.bf16.msra.mxu0 0
    %2879 = vmatprep.subr.bf16.mxu0 0
    %2880 = vmatpush2.bf16.msra.mxu0 0
    %2881 = vmatprep.subr.bf16.mxu0 0
    %2882 = vmatpush2.bf16.msra.mxu0 0
    %2883 = vmatprep.subr.bf16.mxu0 0
    %2884 = vmatpush2.bf16.msra.mxu0 0
    %2885 = vmatprep.subr.bf16.mxu0 %v2326
    %2886 = vmatpush2.bf16.msra.mxu0 %v2325
    %2887 = vmatprep.subr.bf16.mxu0 %v2324
    %2888 = vmatpush2.bf16.msra.mxu0 %v2323
    %2889 = vmatprep.subr.bf16.mxu0 %v2322
    %2890 = vmatpush2.bf16.msra.mxu0 %v2321
    %2891 = vmatprep.subr.bf16.mxu0 %v2320
    %2892 = vmatpush2.bf16.msra.mxu0 %v2319
    %2893 = vmatprep.mubr.bf16.mxu0 %v2859
    %2894 = vmatmul.mubr.bf16.gmra.mxu0 %v2856
    %v2895 = vpop.f32.mrf.mxu0
    %v2896 = vadd.f32 %v2224, %v2895
    %v2897 = vpop.f32.mrf.mxu0
    %v2898 = vadd.f32 %v2228, %v2897
    %v2899 = vpop.f32.mrf.mxu0
    %v2900 = vpop.f32.mrf.mxu0
    %2901 = vdwg.mxu0
    %v2902 = vxor.u32 %v2896, 2147483648
    %v2903 = vxor.u32 %v2898, 2147483648
    %v2904 = vmul.f32 %v2902, 1.442695
    %v2905 = vpow.pop %v2904
    %v2906 = vmul.f32 %v2903, 1.442695
    %v2907 = vpow.pop %v2906
    %v2908 = vadd.f32 %v2905, 1.0
    %v2909 = vadd.f32 %v2907, 1.0
    %v2910 = vrcp.pop %v2908
    %v2911 = vmul.f32 1.0, %v2910
    %v2912 = vrcp.pop %v2909
    %v2913 = vmul.f32 1.0, %v2912
    %v2914 = vtanh.pop %v2898
    %v2915 = vmul.f32 %v2911, %v2840
    %2917 = vrot.lane.b32.xlu0 %v2914, 64
    %v2918 = vpop.permute.xlu0 %2917
    %v2920 = vmul.f32 %v2911, %v2918
    %2922 = vrot.lane.b32.xlu0 %v2920, 64
    %v2923 = vpop.permute.xlu0 %2922
    %v2925 = vadd.f32 %v2915, %v2923
    %v2926 = vtanh.pop %v2925
    %2928 = vrot.lane.b32.xlu0 %v2926, 64
    %v2929 = vpop.permute.xlu0 %2928
    %v2931 = vmul.f32 %v2913, %v2929
    %2932 = vst.msk [vmem:[%s1243] sm:$0x3] %vm727, %v2931
    %2933 = vst.msk [vmem:[%s1245] sm:$0x3] %vm727, %v2931
    %v2934 = vld [vmem:[%s2181] sm:$0x3]
    %v2935 = vld [vmem:[%s1574] sm:$0x3]
    %2937 = vrot.lane.b32.xlu0 %v2935, 64
    %v2938 = vpop.permute.xlu0 %2937
    %v2940 = vsel %vm562, %v2934, %v2938
    %v2941 = vpack.c.bf16 %v2940, %v2940
    %v2942 = vpack.c.bf16 %v2931, %v2931
    %v2944 = vsel %vm562, %v2942, 0
    %2946 = vmatprep.subr.bf16.mxu0 %v2318
    %2947 = vmatpush1.bf16.msra.mxu0 %v2317
    %2948 = vmatprep.subr.bf16.mxu0 %v2316
    %2949 = vmatpush1.bf16.msra.mxu0 %v2315
    %2950 = vmatprep.subr.bf16.mxu0 %v2314
    %2951 = vmatpush1.bf16.msra.mxu0 %v2313
    %2952 = vmatprep.subr.bf16.mxu0 %v2312
    %2953 = vmatpush1.bf16.msra.mxu0 %v2311
    %2954 = vmatprep.subr.bf16.mxu0 %v2310
    %2955 = vmatpush1.bf16.msra.mxu0 %v2309
    %2956 = vmatprep.subr.bf16.mxu0 %v2308
    %2957 = vmatpush1.bf16.msra.mxu0 %v2307
    %2958 = vmatprep.subr.bf16.mxu0 %v2306
    %2959 = vmatpush1.bf16.msra.mxu0 %v2305
    %2960 = vmatprep.subr.bf16.mxu0 %v2304
    %2961 = vmatpush1.bf16.msra.mxu0 %v2303
    %2962 = vmatprep.subr.bf16.mxu0 0
    %2963 = vmatpush2.bf16.msra.mxu0 0
    %2964 = vmatprep.subr.bf16.mxu0 0
    %2965 = vmatpush2.bf16.msra.mxu0 0
    %2966 = vmatprep.subr.bf16.mxu0 0
    %2967 = vmatpush2.bf16.msra.mxu0 0
    %2968 = vmatprep.subr.bf16.mxu0 0
    %2969 = vmatpush2.bf16.msra.mxu0 0
    %2970 = vmatprep.subr.bf16.mxu0 %v2326
    %2971 = vmatpush2.bf16.msra.mxu0 %v2325
    %2972 = vmatprep.subr.bf16.mxu0 %v2324
    %2973 = vmatpush2.bf16.msra.mxu0 %v2323
    %2974 = vmatprep.subr.bf16.mxu0 %v2322
    %2975 = vmatpush2.bf16.msra.mxu0 %v2321
    %2976 = vmatprep.subr.bf16.mxu0 %v2320
    %2977 = vmatpush2.bf16.msra.mxu0 %v2319
    %2978 = vmatprep.mubr.bf16.mxu0 %v2944
    %2979 = vmatmul.mubr.bf16.gmra.mxu0 %v2941
    %v2980 = vpop.f32.mrf.mxu0
    %v2981 = vadd.f32 %v2224, %v2980
    %v2982 = vpop.f32.mrf.mxu0
    %v2983 = vadd.f32 %v2228, %v2982
    %v2984 = vpop.f32.mrf.mxu0
    %v2985 = vpop.f32.mrf.mxu0
    %2986 = vdwg.mxu0
    %v2987 = vxor.u32 %v2981, 2147483648
    %v2988 = vxor.u32 %v2983, 2147483648
    %v2989 = vmul.f32 %v2987, 1.442695
    %v2990 = vpow.pop %v2989
    %v2991 = vmul.f32 %v2988, 1.442695
    %v2992 = vpow.pop %v2991
    %v2993 = vadd.f32 %v2990, 1.0
    %v2994 = vadd.f32 %v2992, 1.0
    %v2995 = vrcp.pop %v2993
    %v2996 = vmul.f32 1.0, %v2995
    %v2997 = vrcp.pop %v2994
    %v2998 = vmul.f32 1.0, %v2997
    %v2999 = vtanh.pop %v2983
    %v3000 = vmul.f32 %v2996, %v2925
    %3002 = vrot.lane.b32.xlu0 %v2999, 64
    %v3003 = vpop.permute.xlu0 %3002
    %v3005 = vmul.f32 %v2996, %v3003
    %3007 = vrot.lane.b32.xlu0 %v3005, 64
    %v3008 = vpop.permute.xlu0 %3007
    %v3010 = vadd.f32 %v3000, %v3008
    %v3011 = vtanh.pop %v3010
    %3013 = vrot.lane.b32.xlu0 %v3011, 64
    %v3014 = vpop.permute.xlu0 %3013
    %v3016 = vmul.f32 %v2998, %v3014
    %3017 = vst.msk [vmem:[%s1329] sm:$0x3] %vm727, %v3016
    %3018 = vst.msk [vmem:[%s1331] sm:$0x3] %vm727, %v3016
    %s3019 = scalar_lea.vmem [#allocation6], 384
    %v3020 = vld [vmem:[%s3019] sm:$0xff]
    %v3021 = vld [vmem:[%s3019 + $0x8] sm:$0xff]
    %v3022 = vld [vmem:[%s3019 + $0x10] sm:$0xff]
    %v3023 = vld [vmem:[%s3019 + $0x18] sm:$0xff]
    %v3024 = vld [vmem:[%s3019 + $0x20] sm:$0xff]
    %v3025 = vld [vmem:[%s3019 + $0x28] sm:$0xff]
    %v3026 = vld [vmem:[%s3019 + $0x30] sm:$0xff]
    %v3027 = vld [vmem:[%s3019 + $0x38] sm:$0xff]
    %v3028 = vld [vmem:[%s3019 + $0x40] sm:$0xff]
    %v3029 = vld [vmem:[%s3019 + $0x48] sm:$0xff]
    %v3030 = vld [vmem:[%s3019 + $0x50] sm:$0xff]
    %v3031 = vld [vmem:[%s3019 + $0x58] sm:$0xff]
    %v3032 = vld [vmem:[%s3019 + $0x60] sm:$0xff]
    %v3033 = vld [vmem:[%s3019 + $0x68] sm:$0xff]
    %v3034 = vld [vmem:[%s3019 + $0x70] sm:$0xff]
    %v3035 = vld [vmem:[%s3019 + $0x78] sm:$0xff]
    %v3036 = vld [vmem:[%s3019 + $0x80] sm:$0xff]
    %v3037 = vld [vmem:[%s3019 + $0x88] sm:$0xff]
    %v3038 = vld [vmem:[%s3019 + $0x90] sm:$0xff]
    %v3039 = vld [vmem:[%s3019 + $0x98] sm:$0xff]
    %v3040 = vld [vmem:[%s3019 + $0xa0] sm:$0xff]
    %v3041 = vld [vmem:[%s3019 + $0xa8] sm:$0xff]
    %v3042 = vld [vmem:[%s3019 + $0xb0] sm:$0xff]
    %v3043 = vld [vmem:[%s3019 + $0xb8] sm:$0xff]
    %s3044 = scalar_lea.vmem %s4, 6
    %v3045 = vld [vmem:[%s3044] sm:$0x3]
    %v3046 = vld [vmem:[#allocation3] sm:$0x3]
    %v3047 = vld [vmem:[%s1331] sm:$0x3]
    %3049 = vrot.lane.b32.xlu0 %v3047, 64
    %v3050 = vpop.permute.xlu0 %3049
    %v3052 = vsel %vm562, %v3046, %v3050
    %v3053 = vpack.c.bf16 %v3052, %v3052
    %v3055 = vlaneseq
    %v3056 = vshrl.u32 %v3055, 7
    %v3057 = vsub.s32 0, %v3056
    %v3058 = vrot.slane %v3045, %v3057
    %v3059 = vlaneseq
    %v3060 = vshrl.u32 %v3059, 7
    %v3061 = vsub.s32 1, %v3060
    %v3062 = vrot.slane %v3045, %v3061
    %v3089 = vunpack.c.l.b16 %v3020
    %v3090 = vunpack.c.h.b16 %v3020
    %v3091 = vunpack.c.l.b16 %v3021
    %v3092 = vunpack.c.h.b16 %v3021
    %v3093 = vunpack.c.l.b16 %v3022
    %v3094 = vunpack.c.h.b16 %v3022
    %v3095 = vunpack.c.l.b16 %v3023
    %v3096 = vunpack.c.h.b16 %v3023
    %v3097 = vunpack.c.l.b16 %v3024
    %v3098 = vunpack.c.h.b16 %v3024
    %v3099 = vunpack.c.l.b16 %v3025
    %v3100 = vunpack.c.h.b16 %v3025
    %v3101 = vunpack.c.l.b16 %v3026
    %v3102 = vunpack.c.h.b16 %v3026
    %v3103 = vunpack.c.l.b16 %v3027
    %v3104 = vunpack.c.h.b16 %v3027
    %v3105 = vunpack.c.l.b16 %v3028
    %v3106 = vunpack.c.h.b16 %v3028
    %v3107 = vunpack.c.l.b16 %v3029
    %v3108 = vunpack.c.h.b16 %v3029
    %v3109 = vunpack.c.l.b16 %v3030
    %v3110 = vunpack.c.h.b16 %v3030
    %v3111 = vunpack.c.l.b16 %v3031
    %v3112 = vunpack.c.h.b16 %v3031
    %v3113 = vunpack.c.l.b16 %v3032
    %v3114 = vunpack.c.h.b16 %v3032
    %v3115 = vunpack.c.l.b16 %v3033
    %v3116 = vunpack.c.h.b16 %v3033
    %v3117 = vunpack.c.l.b16 %v3034
    %v3118 = vunpack.c.h.b16 %v3034
    %v3119 = vunpack.c.l.b16 %v3035
    %v3120 = vunpack.c.h.b16 %v3035
    %v3121 = vunpack.c.l.b16 %v3036
    %v3122 = vunpack.c.h.b16 %v3036
    %v3123 = vunpack.c.l.b16 %v3037
    %v3124 = vunpack.c.h.b16 %v3037
    %v3125 = vunpack.c.l.b16 %v3038
    %v3126 = vunpack.c.h.b16 %v3038
    %v3127 = vunpack.c.l.b16 %v3039
    %v3128 = vunpack.c.h.b16 %v3039
    %v3129 = vunpack.c.l.b16 %v3040
    %v3130 = vunpack.c.h.b16 %v3040
    %v3131 = vunpack.c.l.b16 %v3041
    %v3132 = vunpack.c.h.b16 %v3041
    %v3133 = vunpack.c.l.b16 %v3042
    %v3134 = vunpack.c.h.b16 %v3042
    %v3135 = vunpack.c.l.b16 %v3043
    %v3136 = vunpack.c.h.b16 %v3043
    %v3137 = vpack.c.b16 %v3091, %v3089
    %v3138 = vpack.c.b16 %v3092, %v3090
    %v3139 = vpack.c.b16 %v3095, %v3093
    %v3140 = vpack.c.b16 %v3096, %v3094
    %v3141 = vpack.c.b16 %v3099, %v3097
    %v3142 = vpack.c.b16 %v3100, %v3098
    %v3143 = vpack.c.b16 %v3103, %v3101
    %v3144 = vpack.c.b16 %v3104, %v3102
    %v3145 = vpack.c.b16 %v3107, %v3105
    %v3146 = vpack.c.b16 %v3108, %v3106
    %v3147 = vpack.c.b16 %v3111, %v3109
    %v3148 = vpack.c.b16 %v3112, %v3110
    %v3149 = vpack.c.b16 %v3115, %v3113
    %v3150 = vpack.c.b16 %v3116, %v3114
    %v3151 = vpack.c.b16 %v3119, %v3117
    %v3152 = vpack.c.b16 %v3120, %v3118
    %v3153 = vpack.c.b16 %v3123, %v3121
    %v3154 = vpack.c.b16 %v3124, %v3122
    %v3155 = vpack.c.b16 %v3127, %v3125
    %v3156 = vpack.c.b16 %v3128, %v3126
    %v3157 = vpack.c.b16 %v3131, %v3129
    %v3158 = vpack.c.b16 %v3132, %v3130
    %v3159 = vpack.c.b16 %v3135, %v3133
    %v3160 = vpack.c.b16 %v3136, %v3134
    %3185 = vmatprep.subr.bf16.mxu0 %v3152
    %3186 = vmatpush1.bf16.msra.mxu0 %v3151
    %3187 = vmatprep.subr.bf16.mxu0 %v3150
    %3188 = vmatpush1.bf16.msra.mxu0 %v3149
    %3189 = vmatprep.subr.bf16.mxu0 %v3148
    %3190 = vmatpush1.bf16.msra.mxu0 %v3147
    %3191 = vmatprep.subr.bf16.mxu0 %v3146
    %3192 = vmatpush1.bf16.msra.mxu0 %v3145
    %3193 = vmatprep.subr.bf16.mxu0 %v3144
    %3194 = vmatpush1.bf16.msra.mxu0 %v3143
    %3195 = vmatprep.subr.bf16.mxu0 %v3142
    %3196 = vmatpush1.bf16.msra.mxu0 %v3141
    %3197 = vmatprep.subr.bf16.mxu0 %v3140
    %3198 = vmatpush1.bf16.msra.mxu0 %v3139
    %3199 = vmatprep.subr.bf16.mxu0 %v3138
    %3200 = vmatpush1.bf16.msra.mxu0 %v3137
    %3201 = vmatprep.subr.bf16.mxu0 0
    %3202 = vmatpush2.bf16.msra.mxu0 0
    %3203 = vmatprep.subr.bf16.mxu0 0
    %3204 = vmatpush2.bf16.msra.mxu0 0
    %3205 = vmatprep.subr.bf16.mxu0 0
    %3206 = vmatpush2.bf16.msra.mxu0 0
    %3207 = vmatprep.subr.bf16.mxu0 0
    %3208 = vmatpush2.bf16.msra.mxu0 0
    %3209 = vmatprep.subr.bf16.mxu0 %v3160
    %3210 = vmatpush2.bf16.msra.mxu0 %v3159
    %3211 = vmatprep.subr.bf16.mxu0 %v3158
    %3212 = vmatpush2.bf16.msra.mxu0 %v3157
    %3213 = vmatprep.subr.bf16.mxu0 %v3156
    %3214 = vmatpush2.bf16.msra.mxu0 %v3155
    %3215 = vmatprep.subr.bf16.mxu0 %v3154
    %3216 = vmatpush2.bf16.msra.mxu0 %v3153
    %3217 = vmatprep.mubr.bf16.mxu0 %v1500
    %3218 = vmatmul.mubr.bf16.gmra.mxu0 %v3053
    %v3219 = vpop.f32.mrf.mxu0
    %v3220 = vadd.f32 %v3058, %v3219
    %v3221 = vpop.f32.mrf.mxu0
    %v3222 = vadd.f32 %v3062, %v3221
    %v3223 = vpop.f32.mrf.mxu0
    %v3224 = vpop.f32.mrf.mxu0
    %3225 = vdwg.mxu0
    %v3226 = vxor.u32 %v3220, 2147483648
    %v3227 = vxor.u32 %v3222, 2147483648
    %v3228 = vmul.f32 %v3226, 1.442695
    %v3229 = vpow.pop %v3228
    %v3230 = vmul.f32 %v3227, 1.442695
    %v3231 = vpow.pop %v3230
    %v3232 = vadd.f32 %v3229, 1.0
    %v3233 = vadd.f32 %v3231, 1.0
    %v3234 = vrcp.pop %v3232
    %v3235 = vmul.f32 1.0, %v3234
    %v3236 = vrcp.pop %v3233
    %v3237 = vmul.f32 1.0, %v3236
    %v3238 = vtanh.pop %v3222
    %v3239 = vmul.f32 %v3235, 0.0
    %3241 = vrot.lane.b32.xlu0 %v3238, 64
    %v3242 = vpop.permute.xlu0 %3241
    %v3244 = vmul.f32 %v3235, %v3242
    %3246 = vrot.lane.b32.xlu0 %v3244, 64
    %v3247 = vpop.permute.xlu0 %3246
    %v3249 = vadd.f32 %v3239, %v3247
    %v3250 = vtanh.pop %v3249
    %3252 = vrot.lane.b32.xlu0 %v3250, 64
    %v3253 = vpop.permute.xlu0 %3252
    %v3255 = vmul.f32 %v3237, %v3253
    %v3256 = vld [vmem:[%s813] sm:$0x3]
    %v3257 = vld [vmem:[%s1245] sm:$0x3]
    %3259 = vrot.lane.b32.xlu0 %v3257, 64
    %v3260 = vpop.permute.xlu0 %3259
    %v3262 = vsel %vm562, %v3256, %v3260
    %v3263 = vpack.c.bf16 %v3262, %v3262
    %v3264 = vpack.c.bf16 %v3255, %v3255
    %v3266 = vsel %vm562, %v3264, 0
    %3268 = vmatprep.subr.bf16.mxu0 %v3152
    %3269 = vmatpush1.bf16.msra.mxu0 %v3151
    %3270 = vmatprep.subr.bf16.mxu0 %v3150
    %3271 = vmatpush1.bf16.msra.mxu0 %v3149
    %3272 = vmatprep.subr.bf16.mxu0 %v3148
    %3273 = vmatpush1.bf16.msra.mxu0 %v3147
    %3274 = vmatprep.subr.bf16.mxu0 %v3146
    %3275 = vmatpush1.bf16.msra.mxu0 %v3145
    %3276 = vmatprep.subr.bf16.mxu0 %v3144
    %3277 = vmatpush1.bf16.msra.mxu0 %v3143
    %3278 = vmatprep.subr.bf16.mxu0 %v3142
    %3279 = vmatpush1.bf16.msra.mxu0 %v3141
    %3280 = vmatprep.subr.bf16.mxu0 %v3140
    %3281 = vmatpush1.bf16.msra.mxu0 %v3139
    %3282 = vmatprep.subr.bf16.mxu0 %v3138
    %3283 = vmatpush1.bf16.msra.mxu0 %v3137
    %3284 = vmatprep.subr.bf16.mxu0 0
    %3285 = vmatpush2.bf16.msra.mxu0 0
    %3286 = vmatprep.subr.bf16.mxu0 0
    %3287 = vmatpush2.bf16.msra.mxu0 0
    %3288 = vmatprep.subr.bf16.mxu0 0
    %3289 = vmatpush2.bf16.msra.mxu0 0
    %3290 = vmatprep.subr.bf16.mxu0 0
    %3291 = vmatpush2.bf16.msra.mxu0 0
    %3292 = vmatprep.subr.bf16.mxu0 %v3160
    %3293 = vmatpush2.bf16.msra.mxu0 %v3159
    %3294 = vmatprep.subr.bf16.mxu0 %v3158
    %3295 = vmatpush2.bf16.msra.mxu0 %v3157
    %3296 = vmatprep.subr.bf16.mxu0 %v3156
    %3297 = vmatpush2.bf16.msra.mxu0 %v3155
    %3298 = vmatprep.subr.bf16.mxu0 %v3154
    %3299 = vmatpush2.bf16.msra.mxu0 %v3153
    %3300 = vmatprep.mubr.bf16.mxu0 %v3266
    %3301 = vmatmul.mubr.bf16.gmra.mxu0 %v3263
    %v3302 = vpop.f32.mrf.mxu0
    %v3303 = vadd.f32 %v3058, %v3302
    %v3304 = vpop.f32.mrf.mxu0
    %v3305 = vadd.f32 %v3062, %v3304
    %v3306 = vpop.f32.mrf.mxu0
    %v3307 = vpop.f32.mrf.mxu0
    %3308 = vdwg.mxu0
    %v3309 = vxor.u32 %v3303, 2147483648
    %v3310 = vxor.u32 %v3305, 2147483648
    %v3311 = vmul.f32 %v3309, 1.442695
    %v3312 = vpow.pop %v3311
    %v3313 = vmul.f32 %v3310, 1.442695
    %v3314 = vpow.pop %v3313
    %v3315 = vadd.f32 %v3312, 1.0
    %v3316 = vadd.f32 %v3314, 1.0
    %v3317 = vrcp.pop %v3315
    %v3318 = vmul.f32 1.0, %v3317
    %v3319 = vrcp.pop %v3316
    %v3320 = vmul.f32 1.0, %v3319
    %v3321 = vtanh.pop %v3305
    %v3322 = vmul.f32 %v3318, %v3249
    %3324 = vrot.lane.b32.xlu0 %v3321, 64
    %v3325 = vpop.permute.xlu0 %3324
    %v3327 = vmul.f32 %v3318, %v3325
    %3329 = vrot.lane.b32.xlu0 %v3327, 64
    %v3330 = vpop.permute.xlu0 %3329
    %v3332 = vadd.f32 %v3322, %v3330
    %v3333 = vtanh.pop %v3332
    %3335 = vrot.lane.b32.xlu0 %v3333, 64
    %v3336 = vpop.permute.xlu0 %3335
    %v3338 = vmul.f32 %v3320, %v3336
    %v3339 = vld [vmem:[%s899] sm:$0x3]
    %v3340 = vld [vmem:[%s1159] sm:$0x3]
    %3342 = vrot.lane.b32.xlu0 %v3340, 64
    %v3343 = vpop.permute.xlu0 %3342
    %v3345 = vsel %vm562, %v3339, %v3343
    %v3346 = vpack.c.bf16 %v3345, %v3345
    %v3347 = vpack.c.bf16 %v3338, %v3338
    %v3349 = vsel %vm562, %v3347, 0
    %3351 = vmatprep.subr.bf16.mxu0 %v3152
    %3352 = vmatpush1.bf16.msra.mxu0 %v3151
    %3353 = vmatprep.subr.bf16.mxu0 %v3150
    %3354 = vmatpush1.bf16.msra.mxu0 %v3149
    %3355 = vmatprep.subr.bf16.mxu0 %v3148
    %3356 = vmatpush1.bf16.msra.mxu0 %v3147
    %3357 = vmatprep.subr.bf16.mxu0 %v3146
    %3358 = vmatpush1.bf16.msra.mxu0 %v3145
    %3359 = vmatprep.subr.bf16.mxu0 %v3144
    %3360 = vmatpush1.bf16.msra.mxu0 %v3143
    %3361 = vmatprep.subr.bf16.mxu0 %v3142
    %3362 = vmatpush1.bf16.msra.mxu0 %v3141
    %3363 = vmatprep.subr.bf16.mxu0 %v3140
    %3364 = vmatpush1.bf16.msra.mxu0 %v3139
    %3365 = vmatprep.subr.bf16.mxu0 %v3138
    %3366 = vmatpush1.bf16.msra.mxu0 %v3137
    %3367 = vmatprep.subr.bf16.mxu0 0
    %3368 = vmatpush2.bf16.msra.mxu0 0
    %3369 = vmatprep.subr.bf16.mxu0 0
    %3370 = vmatpush2.bf16.msra.mxu0 0
    %3371 = vmatprep.subr.bf16.mxu0 0
    %3372 = vmatpush2.bf16.msra.mxu0 0
    %3373 = vmatprep.subr.bf16.mxu0 0
    %3374 = vmatpush2.bf16.msra.mxu0 0
    %3375 = vmatprep.subr.bf16.mxu0 %v3160
    %3376 = vmatpush2.bf16.msra.mxu0 %v3159
    %3377 = vmatprep.subr.bf16.mxu0 %v3158
    %3378 = vmatpush2.bf16.msra.mxu0 %v3157
    %3379 = vmatprep.subr.bf16.mxu0 %v3156
    %3380 = vmatpush2.bf16.msra.mxu0 %v3155
    %3381 = vmatprep.subr.bf16.mxu0 %v3154
    %3382 = vmatpush2.bf16.msra.mxu0 %v3153
    %3383 = vmatprep.mubr.bf16.mxu0 %v3349
    %3384 = vmatmul.mubr.bf16.gmra.mxu0 %v3346
    %v3385 = vpop.f32.mrf.mxu0
    %v3386 = vadd.f32 %v3058, %v3385
    %v3387 = vpop.f32.mrf.mxu0
    %v3388 = vadd.f32 %v3062, %v3387
    %v3389 = vpop.f32.mrf.mxu0
    %v3390 = vpop.f32.mrf.mxu0
    %3391 = vdwg.mxu0
    %v3392 = vxor.u32 %v3386, 2147483648
    %v3393 = vxor.u32 %v3388, 2147483648
    %v3394 = vmul.f32 %v3392, 1.442695
    %v3395 = vpow.pop %v3394
    %v3396 = vmul.f32 %v3393, 1.442695
    %v3397 = vpow.pop %v3396
    %v3398 = vadd.f32 %v3395, 1.0
    %v3399 = vadd.f32 %v3397, 1.0
    %v3400 = vrcp.pop %v3398
    %v3401 = vmul.f32 1.0, %v3400
    %v3402 = vrcp.pop %v3399
    %v3403 = vmul.f32 1.0, %v3402
    %v3404 = vtanh.pop %v3388
    %v3405 = vmul.f32 %v3401, %v3332
    %3407 = vrot.lane.b32.xlu0 %v3404, 64
    %v3408 = vpop.permute.xlu0 %3407
    %v3410 = vmul.f32 %v3401, %v3408
    %3412 = vrot.lane.b32.xlu0 %v3410, 64
    %v3413 = vpop.permute.xlu0 %3412
    %v3415 = vadd.f32 %v3405, %v3413
    %v3416 = vtanh.pop %v3415
    %3418 = vrot.lane.b32.xlu0 %v3416, 64
    %v3419 = vpop.permute.xlu0 %3418
    %v3421 = vmul.f32 %v3403, %v3419
    %v3422 = vld [vmem:[%s985] sm:$0x3]
    %v3423 = vld [vmem:[%s1073] sm:$0x3]
    %3425 = vrot.lane.b32.xlu0 %v3423, 64
    %v3426 = vpop.permute.xlu0 %3425
    %v3428 = vsel %vm562, %v3422, %v3426
    %v3429 = vpack.c.bf16 %v3428, %v3428
    %v3430 = vpack.c.bf16 %v3421, %v3421
    %v3432 = vsel %vm562, %v3430, 0
    %3434 = vmatprep.subr.bf16.mxu0 %v3152
    %3435 = vmatpush1.bf16.msra.mxu0 %v3151
    %3436 = vmatprep.subr.bf16.mxu0 %v3150
    %3437 = vmatpush1.bf16.msra.mxu0 %v3149
    %3438 = vmatprep.subr.bf16.mxu0 %v3148
    %3439 = vmatpush1.bf16.msra.mxu0 %v3147
    %3440 = vmatprep.subr.bf16.mxu0 %v3146
    %3441 = vmatpush1.bf16.msra.mxu0 %v3145
    %3442 = vmatprep.subr.bf16.mxu0 %v3144
    %3443 = vmatpush1.bf16.msra.mxu0 %v3143
    %3444 = vmatprep.subr.bf16.mxu0 %v3142
    %3445 = vmatpush1.bf16.msra.mxu0 %v3141
    %3446 = vmatprep.subr.bf16.mxu0 %v3140
    %3447 = vmatpush1.bf16.msra.mxu0 %v3139
    %3448 = vmatprep.subr.bf16.mxu0 %v3138
    %3449 = vmatpush1.bf16.msra.mxu0 %v3137
    %3450 = vmatprep.subr.bf16.mxu0 0
    %3451 = vmatpush2.bf16.msra.mxu0 0
    %3452 = vmatprep.subr.bf16.mxu0 0
    %3453 = vmatpush2.bf16.msra.mxu0 0
    %3454 = vmatprep.subr.bf16.mxu0 0
    %3455 = vmatpush2.bf16.msra.mxu0 0
    %3456 = vmatprep.subr.bf16.mxu0 0
    %3457 = vmatpush2.bf16.msra.mxu0 0
    %3458 = vmatprep.subr.bf16.mxu0 %v3160
    %3459 = vmatpush2.bf16.msra.mxu0 %v3159
    %3460 = vmatprep.subr.bf16.mxu0 %v3158
    %3461 = vmatpush2.bf16.msra.mxu0 %v3157
    %3462 = vmatprep.subr.bf16.mxu0 %v3156
    %3463 = vmatpush2.bf16.msra.mxu0 %v3155
    %3464 = vmatprep.subr.bf16.mxu0 %v3154
    %3465 = vmatpush2.bf16.msra.mxu0 %v3153
    %3466 = vmatprep.mubr.bf16.mxu0 %v3432
    %3467 = vmatmul.mubr.bf16.gmra.mxu0 %v3429
    %v3468 = vpop.f32.mrf.mxu0
    %v3469 = vadd.f32 %v3058, %v3468
    %v3470 = vpop.f32.mrf.mxu0
    %v3471 = vadd.f32 %v3062, %v3470
    %v3472 = vpop.f32.mrf.mxu0
    %v3473 = vpop.f32.mrf.mxu0
    %3474 = vdwg.mxu0
    %v3475 = vxor.u32 %v3469, 2147483648
    %v3476 = vxor.u32 %v3471, 2147483648
    %v3477 = vmul.f32 %v3475, 1.442695
    %v3478 = vpow.pop %v3477
    %v3479 = vmul.f32 %v3476, 1.442695
    %v3480 = vpow.pop %v3479
    %v3481 = vadd.f32 %v3478, 1.0
    %v3482 = vadd.f32 %v3480, 1.0
    %v3483 = vrcp.pop %v3481
    %v3484 = vmul.f32 1.0, %v3483
    %v3485 = vrcp.pop %v3482
    %v3486 = vmul.f32 1.0, %v3485
    %v3487 = vtanh.pop %v3471
    %v3488 = vmul.f32 %v3484, %v3415
    %3490 = vrot.lane.b32.xlu0 %v3487, 64
    %v3491 = vpop.permute.xlu0 %3490
    %v3493 = vmul.f32 %v3484, %v3491
    %3495 = vrot.lane.b32.xlu0 %v3493, 64
    %v3496 = vpop.permute.xlu0 %3495
    %v3498 = vadd.f32 %v3488, %v3496
    %v3499 = vtanh.pop %v3498
    %3501 = vrot.lane.b32.xlu0 %v3499, 64
    %v3502 = vpop.permute.xlu0 %3501
    %v3504 = vmul.f32 %v3486, %v3502
    %v3505 = vld [vmem:[%s1071] sm:$0x3]
    %v3506 = vld [vmem:[%s987] sm:$0x3]
    %3508 = vrot.lane.b32.xlu0 %v3506, 64
    %v3509 = vpop.permute.xlu0 %3508
    %v3511 = vsel %vm562, %v3505, %v3509
    %v3512 = vpack.c.bf16 %v3511, %v3511
    %v3513 = vpack.c.bf16 %v3504, %v3504
    %v3515 = vsel %vm562, %v3513, 0
    %3517 = vmatprep.subr.bf16.mxu0 %v3152
    %3518 = vmatpush1.bf16.msra.mxu0 %v3151
    %3519 = vmatprep.subr.bf16.mxu0 %v3150
    %3520 = vmatpush1.bf16.msra.mxu0 %v3149
    %3521 = vmatprep.subr.bf16.mxu0 %v3148
    %3522 = vmatpush1.bf16.msra.mxu0 %v3147
    %3523 = vmatprep.subr.bf16.mxu0 %v3146
    %3524 = vmatpush1.bf16.msra.mxu0 %v3145
    %3525 = vmatprep.subr.bf16.mxu0 %v3144
    %3526 = vmatpush1.bf16.msra.mxu0 %v3143
    %3527 = vmatprep.subr.bf16.mxu0 %v3142
    %3528 = vmatpush1.bf16.msra.mxu0 %v3141
    %3529 = vmatprep.subr.bf16.mxu0 %v3140
    %3530 = vmatpush1.bf16.msra.mxu0 %v3139
    %3531 = vmatprep.subr.bf16.mxu0 %v3138
    %3532 = vmatpush1.bf16.msra.mxu0 %v3137
    %3533 = vmatprep.subr.bf16.mxu0 0
    %3534 = vmatpush2.bf16.msra.mxu0 0
    %3535 = vmatprep.subr.bf16.mxu0 0
    %3536 = vmatpush2.bf16.msra.mxu0 0
    %3537 = vmatprep.subr.bf16.mxu0 0
    %3538 = vmatpush2.bf16.msra.mxu0 0
    %3539 = vmatprep.subr.bf16.mxu0 0
    %3540 = vmatpush2.bf16.msra.mxu0 0
    %3541 = vmatprep.subr.bf16.mxu0 %v3160
    %3542 = vmatpush2.bf16.msra.mxu0 %v3159
    %3543 = vmatprep.subr.bf16.mxu0 %v3158
    %3544 = vmatpush2.bf16.msra.mxu0 %v3157
    %3545 = vmatprep.subr.bf16.mxu0 %v3156
    %3546 = vmatpush2.bf16.msra.mxu0 %v3155
    %3547 = vmatprep.subr.bf16.mxu0 %v3154
    %3548 = vmatpush2.bf16.msra.mxu0 %v3153
    %3549 = vmatprep.mubr.bf16.mxu0 %v3515
    %3550 = vmatmul.mubr.bf16.gmra.mxu0 %v3512
    %v3551 = vpop.f32.mrf.mxu0
    %v3552 = vadd.f32 %v3058, %v3551
    %v3553 = vpop.f32.mrf.mxu0
    %v3554 = vadd.f32 %v3062, %v3553
    %v3555 = vpop.f32.mrf.mxu0
    %v3556 = vpop.f32.mrf.mxu0
    %3557 = vdwg.mxu0
    %v3558 = vxor.u32 %v3552, 2147483648
    %v3559 = vxor.u32 %v3554, 2147483648
    %v3560 = vmul.f32 %v3558, 1.442695
    %v3561 = vpow.pop %v3560
    %v3562 = vmul.f32 %v3559, 1.442695
    %v3563 = vpow.pop %v3562
    %v3564 = vadd.f32 %v3561, 1.0
    %v3565 = vadd.f32 %v3563, 1.0
    %v3566 = vrcp.pop %v3564
    %v3567 = vmul.f32 1.0, %v3566
    %v3568 = vrcp.pop %v3565
    %v3569 = vmul.f32 1.0, %v3568
    %v3570 = vtanh.pop %v3554
    %v3571 = vmul.f32 %v3567, %v3498
    %3573 = vrot.lane.b32.xlu0 %v3570, 64
    %v3574 = vpop.permute.xlu0 %3573
    %v3576 = vmul.f32 %v3567, %v3574
    %3578 = vrot.lane.b32.xlu0 %v3576, 64
    %v3579 = vpop.permute.xlu0 %3578
    %v3581 = vadd.f32 %v3571, %v3579
    %v3582 = vtanh.pop %v3581
    %3584 = vrot.lane.b32.xlu0 %v3582, 64
    %v3585 = vpop.permute.xlu0 %3584
    %v3587 = vmul.f32 %v3569, %v3585
    %v3588 = vld [vmem:[%s1157] sm:$0x3]
    %v3589 = vld [vmem:[%s901] sm:$0x3]
    %3591 = vrot.lane.b32.xlu0 %v3589, 64
    %v3592 = vpop.permute.xlu0 %3591
    %v3594 = vsel %vm562, %v3588, %v3592
    %v3595 = vpack.c.bf16 %v3594, %v3594
    %v3596 = vpack.c.bf16 %v3587, %v3587
    %v3598 = vsel %vm562, %v3596, 0
    %3600 = vmatprep.subr.bf16.mxu0 %v3152
    %3601 = vmatpush1.bf16.msra.mxu0 %v3151
    %3602 = vmatprep.subr.bf16.mxu0 %v3150
    %3603 = vmatpush1.bf16.msra.mxu0 %v3149
    %3604 = vmatprep.subr.bf16.mxu0 %v3148
    %3605 = vmatpush1.bf16.msra.mxu0 %v3147
    %3606 = vmatprep.subr.bf16.mxu0 %v3146
    %3607 = vmatpush1.bf16.msra.mxu0 %v3145
    %3608 = vmatprep.subr.bf16.mxu0 %v3144
    %3609 = vmatpush1.bf16.msra.mxu0 %v3143
    %3610 = vmatprep.subr.bf16.mxu0 %v3142
    %3611 = vmatpush1.bf16.msra.mxu0 %v3141
    %3612 = vmatprep.subr.bf16.mxu0 %v3140
    %3613 = vmatpush1.bf16.msra.mxu0 %v3139
    %3614 = vmatprep.subr.bf16.mxu0 %v3138
    %3615 = vmatpush1.bf16.msra.mxu0 %v3137
    %3616 = vmatprep.subr.bf16.mxu0 0
    %3617 = vmatpush2.bf16.msra.mxu0 0
    %3618 = vmatprep.subr.bf16.mxu0 0
    %3619 = vmatpush2.bf16.msra.mxu0 0
    %3620 = vmatprep.subr.bf16.mxu0 0
    %3621 = vmatpush2.bf16.msra.mxu0 0
    %3622 = vmatprep.subr.bf16.mxu0 0
    %3623 = vmatpush2.bf16.msra.mxu0 0
    %3624 = vmatprep.subr.bf16.mxu0 %v3160
    %3625 = vmatpush2.bf16.msra.mxu0 %v3159
    %3626 = vmatprep.subr.bf16.mxu0 %v3158
    %3627 = vmatpush2.bf16.msra.mxu0 %v3157
    %3628 = vmatprep.subr.bf16.mxu0 %v3156
    %3629 = vmatpush2.bf16.msra.mxu0 %v3155
    %3630 = vmatprep.subr.bf16.mxu0 %v3154
    %3631 = vmatpush2.bf16.msra.mxu0 %v3153
    %3632 = vmatprep.mubr.bf16.mxu0 %v3598
    %3633 = vmatmul.mubr.bf16.gmra.mxu0 %v3595
    %v3634 = vpop.f32.mrf.mxu0
    %v3635 = vadd.f32 %v3058, %v3634
    %v3636 = vpop.f32.mrf.mxu0
    %v3637 = vadd.f32 %v3062, %v3636
    %v3638 = vpop.f32.mrf.mxu0
    %v3639 = vpop.f32.mrf.mxu0
    %3640 = vdwg.mxu0
    %v3641 = vxor.u32 %v3635, 2147483648
    %v3642 = vxor.u32 %v3637, 2147483648
    %v3643 = vmul.f32 %v3641, 1.442695
    %v3644 = vpow.pop %v3643
    %v3645 = vmul.f32 %v3642, 1.442695
    %v3646 = vpow.pop %v3645
    %v3647 = vadd.f32 %v3644, 1.0
    %v3648 = vadd.f32 %v3646, 1.0
    %v3649 = vrcp.pop %v3647
    %v3650 = vmul.f32 1.0, %v3649
    %v3651 = vrcp.pop %v3648
    %v3652 = vmul.f32 1.0, %v3651
    %v3653 = vtanh.pop %v3637
    %v3654 = vmul.f32 %v3650, %v3581
    %3656 = vrot.lane.b32.xlu0 %v3653, 64
    %v3657 = vpop.permute.xlu0 %3656
    %v3659 = vmul.f32 %v3650, %v3657
    %3661 = vrot.lane.b32.xlu0 %v3659, 64
    %v3662 = vpop.permute.xlu0 %3661
    %v3664 = vadd.f32 %v3654, %v3662
    %v3665 = vtanh.pop %v3664
    %3667 = vrot.lane.b32.xlu0 %v3665, 64
    %v3668 = vpop.permute.xlu0 %3667
    %v3670 = vmul.f32 %v3652, %v3668
    %v3671 = vld [vmem:[%s1243] sm:$0x3]
    %v3672 = vld [vmem:[%s815] sm:$0x3]
    %3674 = vrot.lane.b32.xlu0 %v3672, 64
    %v3675 = vpop.permute.xlu0 %3674
    %v3677 = vsel %vm562, %v3671, %v3675
    %v3678 = vpack.c.bf16 %v3677, %v3677
    %v3679 = vpack.c.bf16 %v3670, %v3670
    %v3681 = vsel %vm562, %v3679, 0
    %3683 = vmatprep.subr.bf16.mxu0 %v3152
    %3684 = vmatpush1.bf16.msra.mxu0 %v3151
    %3685 = vmatprep.subr.bf16.mxu0 %v3150
    %3686 = vmatpush1.bf16.msra.mxu0 %v3149
    %3687 = vmatprep.subr.bf16.mxu0 %v3148
    %3688 = vmatpush1.bf16.msra.mxu0 %v3147
    %3689 = vmatprep.subr.bf16.mxu0 %v3146
    %3690 = vmatpush1.bf16.msra.mxu0 %v3145
    %3691 = vmatprep.subr.bf16.mxu0 %v3144
    %3692 = vmatpush1.bf16.msra.mxu0 %v3143
    %3693 = vmatprep.subr.bf16.mxu0 %v3142
    %3694 = vmatpush1.bf16.msra.mxu0 %v3141
    %3695 = vmatprep.subr.bf16.mxu0 %v3140
    %3696 = vmatpush1.bf16.msra.mxu0 %v3139
    %3697 = vmatprep.subr.bf16.mxu0 %v3138
    %3698 = vmatpush1.bf16.msra.mxu0 %v3137
    %3699 = vmatprep.subr.bf16.mxu0 0
    %3700 = vmatpush2.bf16.msra.mxu0 0
    %3701 = vmatprep.subr.bf16.mxu0 0
    %3702 = vmatpush2.bf16.msra.mxu0 0
    %3703 = vmatprep.subr.bf16.mxu0 0
    %3704 = vmatpush2.bf16.msra.mxu0 0
    %3705 = vmatprep.subr.bf16.mxu0 0
    %3706 = vmatpush2.bf16.msra.mxu0 0
    %3707 = vmatprep.subr.bf16.mxu0 %v3160
    %3708 = vmatpush2.bf16.msra.mxu0 %v3159
    %3709 = vmatprep.subr.bf16.mxu0 %v3158
    %3710 = vmatpush2.bf16.msra.mxu0 %v3157
    %3711 = vmatprep.subr.bf16.mxu0 %v3156
    %3712 = vmatpush2.bf16.msra.mxu0 %v3155
    %3713 = vmatprep.subr.bf16.mxu0 %v3154
    %3714 = vmatpush2.bf16.msra.mxu0 %v3153
    %3715 = vmatprep.mubr.bf16.mxu0 %v3681
    %3716 = vmatmul.mubr.bf16.gmra.mxu0 %v3678
    %v3717 = vpop.f32.mrf.mxu0
    %v3718 = vadd.f32 %v3058, %v3717
    %v3719 = vpop.f32.mrf.mxu0
    %v3720 = vadd.f32 %v3062, %v3719
    %v3721 = vpop.f32.mrf.mxu0
    %v3722 = vpop.f32.mrf.mxu0
    %3723 = vdwg.mxu0
    %v3724 = vxor.u32 %v3718, 2147483648
    %v3725 = vxor.u32 %v3720, 2147483648
    %v3726 = vmul.f32 %v3724, 1.442695
    %v3727 = vpow.pop %v3726
    %v3728 = vmul.f32 %v3725, 1.442695
    %v3729 = vpow.pop %v3728
    %v3730 = vadd.f32 %v3727, 1.0
    %v3731 = vadd.f32 %v3729, 1.0
    %v3732 = vrcp.pop %v3730
    %v3733 = vmul.f32 1.0, %v3732
    %v3734 = vrcp.pop %v3731
    %v3735 = vmul.f32 1.0, %v3734
    %v3736 = vtanh.pop %v3720
    %v3737 = vmul.f32 %v3733, %v3664
    %3739 = vrot.lane.b32.xlu0 %v3736, 64
    %v3740 = vpop.permute.xlu0 %3739
    %v3742 = vmul.f32 %v3733, %v3740
    %3744 = vrot.lane.b32.xlu0 %v3742, 64
    %v3745 = vpop.permute.xlu0 %3744
    %v3747 = vadd.f32 %v3737, %v3745
    %v3748 = vtanh.pop %v3747
    %3750 = vrot.lane.b32.xlu0 %v3748, 64
    %v3751 = vpop.permute.xlu0 %3750
    %v3753 = vmul.f32 %v3735, %v3751
    %v3754 = vld [vmem:[%s1329] sm:$0x3]
    %v3755 = vld [vmem:[%s729] sm:$0x3]
    %3757 = vrot.lane.b32.xlu0 %v3755, 64
    %v3758 = vpop.permute.xlu0 %3757
    %v3760 = vsel %vm562, %v3754, %v3758
    %v3761 = vpack.c.bf16 %v3760, %v3760
    %v3762 = vpack.c.bf16 %v3753, %v3753
    %v3764 = vsel %vm562, %v3762, 0
    %3766 = vmatprep.subr.bf16.mxu0 %v3152
    %3767 = vmatpush1.bf16.msra.mxu0 %v3151
    %3768 = vmatprep.subr.bf16.mxu0 %v3150
    %3769 = vmatpush1.bf16.msra.mxu0 %v3149
    %3770 = vmatprep.subr.bf16.mxu0 %v3148
    %3771 = vmatpush1.bf16.msra.mxu0 %v3147
    %3772 = vmatprep.subr.bf16.mxu0 %v3146
    %3773 = vmatpush1.bf16.msra.mxu0 %v3145
    %3774 = vmatprep.subr.bf16.mxu0 %v3144
    %3775 = vmatpush1.bf16.msra.mxu0 %v3143
    %3776 = vmatprep.subr.bf16.mxu0 %v3142
    %3777 = vmatpush1.bf16.msra.mxu0 %v3141
    %3778 = vmatprep.subr.bf16.mxu0 %v3140
    %3779 = vmatpush1.bf16.msra.mxu0 %v3139
    %3780 = vmatprep.subr.bf16.mxu0 %v3138
    %3781 = vmatpush1.bf16.msra.mxu0 %v3137
    %3782 = vmatprep.subr.bf16.mxu0 0
    %3783 = vmatpush2.bf16.msra.mxu0 0
    %3784 = vmatprep.subr.bf16.mxu0 0
    %3785 = vmatpush2.bf16.msra.mxu0 0
    %3786 = vmatprep.subr.bf16.mxu0 0
    %3787 = vmatpush2.bf16.msra.mxu0 0
    %3788 = vmatprep.subr.bf16.mxu0 0
    %3789 = vmatpush2.bf16.msra.mxu0 0
    %3790 = vmatprep.subr.bf16.mxu0 %v3160
    %3791 = vmatpush2.bf16.msra.mxu0 %v3159
    %3792 = vmatprep.subr.bf16.mxu0 %v3158
    %3793 = vmatpush2.bf16.msra.mxu0 %v3157
    %3794 = vmatprep.subr.bf16.mxu0 %v3156
    %3795 = vmatpush2.bf16.msra.mxu0 %v3155
    %3796 = vmatprep.subr.bf16.mxu0 %v3154
    %3797 = vmatpush2.bf16.msra.mxu0 %v3153
    %3798 = vmatprep.mubr.bf16.mxu0 %v3764
    %3799 = vmatmul.mubr.bf16.gmra.mxu0 %v3761
    %v3800 = vpop.f32.mrf.mxu0
    %v3801 = vadd.f32 %v3058, %v3800
    %v3802 = vpop.f32.mrf.mxu0
    %v3803 = vadd.f32 %v3062, %v3802
    %v3804 = vpop.f32.mrf.mxu0
    %v3805 = vpop.f32.mrf.mxu0
    %3806 = vdwg.mxu0
    %v3807 = vxor.u32 %v3801, 2147483648
    %v3808 = vxor.u32 %v3803, 2147483648
    %v3809 = vmul.f32 %v3807, 1.442695
    %v3810 = vpow.pop %v3809
    %v3811 = vmul.f32 %v3808, 1.442695
    %v3812 = vpow.pop %v3811
    %v3813 = vadd.f32 %v3810, 1.0
    %v3814 = vadd.f32 %v3812, 1.0
    %v3815 = vrcp.pop %v3813
    %v3816 = vmul.f32 1.0, %v3815
    %v3817 = vrcp.pop %v3814
    %v3818 = vmul.f32 1.0, %v3817
    %v3819 = vtanh.pop %v3803
    %v3820 = vmul.f32 %v3816, %v3747
    %3822 = vrot.lane.b32.xlu0 %v3819, 64
    %v3823 = vpop.permute.xlu0 %3822
    %v3825 = vmul.f32 %v3816, %v3823
    %3827 = vrot.lane.b32.xlu0 %v3825, 64
    %v3828 = vpop.permute.xlu0 %3827
    %v3830 = vadd.f32 %v3820, %v3828
    %v3831 = vtanh.pop %v3830
    %3833 = vrot.lane.b32.xlu0 %v3831, 64
    %v3834 = vpop.permute.xlu0 %3833
    %v3836 = vmul.f32 %v3818, %v3834
    %v3837 = vld [vmem:[#allocation8] sm:$0xff]
    %v3838 = vld [vmem:[#allocation8 + $0x8] sm:$0xff]
    %v3839 = vld [vmem:[#allocation8 + $0x10] sm:$0xff]
    %v3840 = vld [vmem:[#allocation8 + $0x18] sm:$0xff]
    %v3841 = vld [vmem:[#allocation8 + $0x20] sm:$0xff]
    %v3842 = vld [vmem:[#allocation8 + $0x28] sm:$0xff]
    %v3843 = vld [vmem:[#allocation8 + $0x30] sm:$0xff]
    %v3844 = vld [vmem:[#allocation8 + $0x38] sm:$0xff]
    %v3845 = vld [vmem:[#allocation8 + $0x40] sm:$0xff]
    %v3846 = vld [vmem:[#allocation8 + $0x48] sm:$0xff]
    %v3847 = vld [vmem:[#allocation8 + $0x50] sm:$0xff]
    %v3848 = vld [vmem:[#allocation8 + $0x58] sm:$0xff]
    %v3849 = vld [vmem:[#allocation9] sm:$0xff]
    %v3850 = vld [vmem:[#allocation9 + $0x8] sm:$0xff]
    %v3851 = vld [vmem:[#allocation9 + $0x10] sm:$0xff]
    %v3852 = vld [vmem:[#allocation9 + $0x18] sm:$0xff]
    %v3853 = vld [vmem:[#allocation9 + $0x20] sm:$0xff]
    %v3854 = vld [vmem:[#allocation9 + $0x28] sm:$0xff]
    %v3855 = vld [vmem:[#allocation9 + $0x30] sm:$0xff]
    %v3856 = vld [vmem:[#allocation9 + $0x38] sm:$0xff]
    %v3857 = vld [vmem:[#allocation9 + $0x40] sm:$0xff]
    %v3858 = vld [vmem:[#allocation9 + $0x48] sm:$0xff]
    %v3859 = vld [vmem:[#allocation9 + $0x50] sm:$0xff]
    %v3860 = vld [vmem:[#allocation9 + $0x58] sm:$0xff]
    %v3861 = vld [vmem:[#allocation9 + $0x60] sm:$0xff]
    %v3862 = vld [vmem:[#allocation9 + $0x68] sm:$0xff]
    %v3863 = vld [vmem:[#allocation9 + $0x70] sm:$0xff]
    %v3864 = vld [vmem:[#allocation9 + $0x78] sm:$0xff]
    %s3865 = scalar_lea.vmem [#allocation9], 128
    %v3866 = vld [vmem:[%s3865] sm:$0xff]
    %v3867 = vld [vmem:[%s3865 + $0x8] sm:$0xff]
    %v3868 = vld [vmem:[%s3865 + $0x10] sm:$0xff]
    %v3869 = vld [vmem:[%s3865 + $0x18] sm:$0xff]
    %v3870 = vld [vmem:[%s3865 + $0x20] sm:$0xff]
    %v3871 = vld [vmem:[%s3865 + $0x28] sm:$0xff]
    %v3872 = vld [vmem:[%s3865 + $0x30] sm:$0xff]
    %v3873 = vld [vmem:[%s3865 + $0x38] sm:$0xff]
    %v3874 = vld [vmem:[%s3865 + $0x40] sm:$0xff]
    %v3875 = vld [vmem:[%s3865 + $0x48] sm:$0xff]
    %v3876 = vld [vmem:[%s3865 + $0x50] sm:$0xff]
    %v3877 = vld [vmem:[%s3865 + $0x58] sm:$0xff]
    %v3878 = vld [vmem:[%s3865 + $0x60] sm:$0xff]
    %v3879 = vld [vmem:[%s3865 + $0x68] sm:$0xff]
    %v3880 = vld [vmem:[%s3865 + $0x70] sm:$0xff]
    %v3881 = vld [vmem:[%s3865 + $0x78] sm:$0xff]
    %s3882 = scalar_lea.vmem [#allocation9], 256
    %v3883 = vld [vmem:[%s3882] sm:$0xff]
    %v3884 = vld [vmem:[%s3882 + $0x8] sm:$0xff]
    %v3885 = vld [vmem:[%s3882 + $0x10] sm:$0xff]
    %v3886 = vld [vmem:[%s3882 + $0x18] sm:$0xff]
    %v3887 = vld [vmem:[%s3882 + $0x20] sm:$0xff]
    %v3888 = vld [vmem:[%s3882 + $0x28] sm:$0xff]
    %v3889 = vld [vmem:[%s3882 + $0x30] sm:$0xff]
    %v3890 = vld [vmem:[%s3882 + $0x38] sm:$0xff]
    %v3891 = vld [vmem:[%s3882 + $0x40] sm:$0xff]
    %v3892 = vld [vmem:[%s3882 + $0x48] sm:$0xff]
    %v3893 = vld [vmem:[%s3882 + $0x50] sm:$0xff]
    %v3894 = vld [vmem:[%s3882 + $0x58] sm:$0xff]
    %v3895 = vld [vmem:[%s3882 + $0x60] sm:$0xff]
    %v3896 = vld [vmem:[%s3882 + $0x68] sm:$0xff]
    %v3897 = vld [vmem:[%s3882 + $0x70] sm:$0xff]
    %v3898 = vld [vmem:[%s3882 + $0x78] sm:$0xff]
    %v3899 = vld [vmem:[%s7] sm:$0x3]
    %s3900 = scalar_lea.vmem %s7, 2
    %v3901 = vld [vmem:[%s3900] sm:$0x3]
    %s3902 = scalar_lea.vmem %s7, 4
    %v3903 = vld [vmem:[%s3902] sm:$0x3]
    %s3904 = scalar_lea.vmem %s7, 6
    %v3905 = vld [vmem:[%s3904] sm:$0x3]
    %v3906 = vld [vmem:[%s8] sm:$0xf]
    %v3907 = vld [vmem:[%s8 + $0x4] sm:$0xf]
    %v3908 = vld [vmem:[%s8 + $0x8] sm:$0xf]
    %v3909 = vld [vmem:[%s8 + $0xc] sm:$0xf]
    %v3910 = vld [vmem:[%s8 + $0x10] sm:$0xf]
    %v3911 = vld [vmem:[%s8 + $0x14] sm:$0xf]
    %v3912 = vld [vmem:[%s8 + $0x18] sm:$0xf]
    %v3913 = vld [vmem:[%s8 + $0x1c] sm:$0xf]
    %v3914 = vld [vmem:[%s9] sm:$0x1]
    %3916 = vrot.lane.b32.xlu0 %v1328, 32
    %v3917 = vpop.permute.xlu0 %3916
    %v3919 = vsel %vm560, %v205, %v3917
    %v3920 = vpack.c.bf16 %v3919, %v3919
    %v3922 = vlaneseq
    %v3923 = vshrl.u32 %v3922, 7
    %v3924 = vsub.s32 0, %v3923
    %v3925 = vrot.slane %v3899, %v3924
    %v3926 = vlaneseq
    %v3927 = vshrl.u32 %v3926, 7
    %v3928 = vsub.s32 1, %v3927
    %v3929 = vrot.slane %v3899, %v3928
    %v3944 = vunpack.c.l.b16 %v3837
    %v3945 = vunpack.c.h.b16 %v3837
    %v3946 = vunpack.c.l.b16 %v3838
    %v3947 = vunpack.c.h.b16 %v3838
    %v3948 = vunpack.c.l.b16 %v3839
    %v3949 = vunpack.c.h.b16 %v3839
    %v3950 = vunpack.c.l.b16 %v3840
    %v3951 = vunpack.c.h.b16 %v3840
    %v3952 = vunpack.c.l.b16 %v3841
    %v3953 = vunpack.c.h.b16 %v3841
    %v3954 = vunpack.c.l.b16 %v3842
    %v3955 = vunpack.c.h.b16 %v3842
    %v3956 = vunpack.c.l.b16 %v3843
    %v3957 = vunpack.c.h.b16 %v3843
    %v3958 = vunpack.c.l.b16 %v3844
    %v3959 = vunpack.c.h.b16 %v3844
    %v3960 = vunpack.c.l.b16 %v3845
    %v3961 = vunpack.c.h.b16 %v3845
    %v3962 = vunpack.c.l.b16 %v3846
    %v3963 = vunpack.c.h.b16 %v3846
    %v3964 = vunpack.c.l.b16 %v3847
    %v3965 = vunpack.c.h.b16 %v3847
    %v3966 = vunpack.c.l.b16 %v3848
    %v3967 = vunpack.c.h.b16 %v3848
    %v3968 = vpack.c.b16 %v3946, %v3944
    %v3969 = vpack.c.b16 %v3947, %v3945
    %v3970 = vpack.c.b16 %v3950, %v3948
    %v3971 = vpack.c.b16 %v3951, %v3949
    %v3972 = vpack.c.b16 %v3954, %v3952
    %v3973 = vpack.c.b16 %v3955, %v3953
    %v3974 = vpack.c.b16 %v3958, %v3956
    %v3975 = vpack.c.b16 %v3959, %v3957
    %v3976 = vpack.c.b16 %v3962, %v3960
    %v3977 = vpack.c.b16 %v3963, %v3961
    %v3978 = vpack.c.b16 %v3966, %v3964
    %v3979 = vpack.c.b16 %v3967, %v3965
    %vm3992 = vcmask 785408
    %v3994 = vsel %vm3992, %v3920, 0
    %3996 = vmatprep.subr.bf16.mxu0 0
    %3997 = vmatpush1.bf16.msra.mxu0 0
    %3998 = vmatprep.subr.bf16.mxu0 0
    %3999 = vmatpush1.bf16.msra.mxu0 0
    %4000 = vmatprep.subr.bf16.mxu0 %v3979
    %4001 = vmatpush1.bf16.msra.mxu0 %v3978
    %4002 = vmatprep.subr.bf16.mxu0 %v3977
    %4003 = vmatpush1.bf16.msra.mxu0 %v3976
    %4004 = vmatprep.subr.bf16.mxu0 %v3975
    %4005 = vmatpush1.bf16.msra.mxu0 %v3974
    %4006 = vmatprep.subr.bf16.mxu0 %v3973
    %4007 = vmatpush1.bf16.msra.mxu0 %v3972
    %4008 = vmatprep.subr.bf16.mxu0 %v3971
    %4009 = vmatpush1.bf16.msra.mxu0 %v3970
    %4010 = vmatprep.subr.bf16.mxu0 %v3969
    %4011 = vmatpush1.bf16.msra.mxu0 %v3968
    %4012 = vmatprep.subr.bf16.mxu0 0
    %4013 = vmatpush2.bf16.msra.mxu0 0
    %4014 = vmatprep.subr.bf16.mxu0 0
    %4015 = vmatpush2.bf16.msra.mxu0 0
    %4016 = vmatprep.subr.bf16.mxu0 0
    %4017 = vmatpush2.bf16.msra.mxu0 0
    %4018 = vmatprep.subr.bf16.mxu0 0
    %4019 = vmatpush2.bf16.msra.mxu0 0
    %4020 = vmatprep.subr.bf16.mxu0 0
    %4021 = vmatpush2.bf16.msra.mxu0 0
    %4022 = vmatprep.subr.bf16.mxu0 0
    %4023 = vmatpush2.bf16.msra.mxu0 0
    %4024 = vmatprep.subr.bf16.mxu0 0
    %4025 = vmatpush2.bf16.msra.mxu0 0
    %4026 = vmatprep.subr.bf16.mxu0 0
    %4027 = vmatpush2.bf16.msra.mxu0 0
    %4028 = vmatprep.mubr.bf16.mxu0 0
    %4029 = vmatmul.mubr.bf16.gmra.mxu0 %v3994
    %v4030 = vpop.f32.mrf.mxu0
    %v4031 = vadd.f32 %v3925, %v4030
    %v4032 = vpop.f32.mrf.mxu0
    %v4033 = vadd.f32 %v3929, %v4032
    %v4034 = vpop.f32.mrf.mxu0
    %v4035 = vpop.f32.mrf.mxu0
    %4036 = vdwg.mxu0
    %v4037 = vxor.u32 %v4031, 2147483648
    %v4038 = vxor.u32 %v4033, 2147483648
    %v4039 = vmul.f32 %v4037, 1.442695
    %v4040 = vpow.pop %v4039
    %v4041 = vmul.f32 %v4038, 1.442695
    %v4042 = vpow.pop %v4041
    %v4043 = vadd.f32 %v4040, 1.0
    %v4044 = vadd.f32 %v4042, 1.0
    %v4045 = vrcp.pop %v4043
    %v4046 = vmul.f32 1.0, %v4045
    %v4047 = vrcp.pop %v4044
    %v4048 = vmul.f32 1.0, %v4047
    %v4049 = vtanh.pop %v4033
    %v4050 = vmul.f32 %v4046, %v1322
    %4052 = vrot.lane.b32.xlu0 %v4049, 64
    %v4053 = vpop.permute.xlu0 %4052
    %v4055 = vmul.f32 %v4046, %v4053
    %4057 = vrot.lane.b32.xlu0 %v4055, 64
    %v4058 = vpop.permute.xlu0 %4057
    %v4060 = vadd.f32 %v4050, %v4058
    %v4061 = vtanh.pop %v4060
    %4063 = vrot.lane.b32.xlu0 %v4061, 64
    %v4064 = vpop.permute.xlu0 %4063
    %v4066 = vmul.f32 %v4048, %v4064
    %4068 = vrot.lane.b32.xlu0 %v2180, 64
    %v4069 = vpop.permute.xlu0 %4068
    %v4071 = vsel %vm562, %v4066, %v4069
    %v4072 = vpack.c.bf16 %v4071, %v4071
    %v4074 = vlaneseq
    %v4075 = vshrl.u32 %v4074, 7
    %v4076 = vsub.s32 0, %v4075
    %v4077 = vrot.slane %v3901, %v4076
    %v4078 = vlaneseq
    %v4079 = vshrl.u32 %v4078, 7
    %v4080 = vsub.s32 1, %v4079
    %v4081 = vrot.slane %v3901, %v4080
    %v4100 = vunpack.c.l.b16 %v3849
    %v4101 = vunpack.c.h.b16 %v3849
    %v4102 = vunpack.c.l.b16 %v3850
    %v4103 = vunpack.c.h.b16 %v3850
    %v4104 = vunpack.c.l.b16 %v3851
    %v4105 = vunpack.c.h.b16 %v3851
    %v4106 = vunpack.c.l.b16 %v3852
    %v4107 = vunpack.c.h.b16 %v3852
    %v4108 = vunpack.c.l.b16 %v3853
    %v4109 = vunpack.c.h.b16 %v3853
    %v4110 = vunpack.c.l.b16 %v3854
    %v4111 = vunpack.c.h.b16 %v3854
    %v4112 = vunpack.c.l.b16 %v3855
    %v4113 = vunpack.c.h.b16 %v3855
    %v4114 = vunpack.c.l.b16 %v3856
    %v4115 = vunpack.c.h.b16 %v3856
    %v4116 = vunpack.c.l.b16 %v3857
    %v4117 = vunpack.c.h.b16 %v3857
    %v4118 = vunpack.c.l.b16 %v3858
    %v4119 = vunpack.c.h.b16 %v3858
    %v4120 = vunpack.c.l.b16 %v3859
    %v4121 = vunpack.c.h.b16 %v3859
    %v4122 = vunpack.c.l.b16 %v3860
    %v4123 = vunpack.c.h.b16 %v3860
    %v4124 = vunpack.c.l.b16 %v3861
    %v4125 = vunpack.c.h.b16 %v3861
    %v4126 = vunpack.c.l.b16 %v3862
    %v4127 = vunpack.c.h.b16 %v3862
    %v4128 = vunpack.c.l.b16 %v3863
    %v4129 = vunpack.c.h.b16 %v3863
    %v4130 = vunpack.c.l.b16 %v3864
    %v4131 = vunpack.c.h.b16 %v3864
    %v4132 = vpack.c.b16 %v4102, %v4100
    %v4133 = vpack.c.b16 %v4103, %v4101
    %v4134 = vpack.c.b16 %v4106, %v4104
    %v4135 = vpack.c.b16 %v4107, %v4105
    %v4136 = vpack.c.b16 %v4110, %v4108
    %v4137 = vpack.c.b16 %v4111, %v4109
    %v4138 = vpack.c.b16 %v4114, %v4112
    %v4139 = vpack.c.b16 %v4115, %v4113
    %v4140 = vpack.c.b16 %v4118, %v4116
    %v4141 = vpack.c.b16 %v4119, %v4117
    %v4142 = vpack.c.b16 %v4122, %v4120
    %v4143 = vpack.c.b16 %v4123, %v4121
    %v4144 = vpack.c.b16 %v4126, %v4124
    %v4145 = vpack.c.b16 %v4127, %v4125
    %v4146 = vpack.c.b16 %v4130, %v4128
    %v4147 = vpack.c.b16 %v4131, %v4129
    %4164 = vmatprep.subr.bf16.mxu0 %v4147
    %4165 = vmatpush1.bf16.msra.mxu0 %v4146
    %4166 = vmatprep.subr.bf16.mxu0 %v4145
    %4167 = vmatpush1.bf16.msra.mxu0 %v4144
    %4168 = vmatprep.subr.bf16.mxu0 %v4143
    %4169 = vmatpush1.bf16.msra.mxu0 %v4142
    %4170 = vmatprep.subr.bf16.mxu0 %v4141
    %4171 = vmatpush1.bf16.msra.mxu0 %v4140
    %4172 = vmatprep.subr.bf16.mxu0 %v4139
    %4173 = vmatpush1.bf16.msra.mxu0 %v4138
    %4174 = vmatprep.subr.bf16.mxu0 %v4137
    %4175 = vmatpush1.bf16.msra.mxu0 %v4136
    %4176 = vmatprep.subr.bf16.mxu0 %v4135
    %4177 = vmatpush1.bf16.msra.mxu0 %v4134
    %4178 = vmatprep.subr.bf16.mxu0 %v4133
    %4179 = vmatpush1.bf16.msra.mxu0 %v4132
    %4180 = vmatprep.subr.bf16.mxu0 0
    %4181 = vmatpush2.bf16.msra.mxu0 0
    %4182 = vmatprep.subr.bf16.mxu0 0
    %4183 = vmatpush2.bf16.msra.mxu0 0
    %4184 = vmatprep.subr.bf16.mxu0 0
    %4185 = vmatpush2.bf16.msra.mxu0 0
    %4186 = vmatprep.subr.bf16.mxu0 0
    %4187 = vmatpush2.bf16.msra.mxu0 0
    %4188 = vmatprep.subr.bf16.mxu0 0
    %4189 = vmatpush2.bf16.msra.mxu0 0
    %4190 = vmatprep.subr.bf16.mxu0 0
    %4191 = vmatpush2.bf16.msra.mxu0 0
    %4192 = vmatprep.subr.bf16.mxu0 0
    %4193 = vmatpush2.bf16.msra.mxu0 0
    %4194 = vmatprep.subr.bf16.mxu0 0
    %4195 = vmatpush2.bf16.msra.mxu0 0
    %4196 = vmatprep.mubr.bf16.mxu0 0
    %4197 = vmatmul.mubr.bf16.gmra.mxu0 %v4072
    %v4198 = vpop.f32.mrf.mxu0
    %v4199 = vadd.f32 %v4077, %v4198
    %v4200 = vpop.f32.mrf.mxu0
    %v4201 = vadd.f32 %v4081, %v4200
    %v4202 = vpop.f32.mrf.mxu0
    %v4203 = vpop.f32.mrf.mxu0
    %4204 = vdwg.mxu0
    %v4205 = vxor.u32 %v4199, 2147483648
    %v4206 = vxor.u32 %v4201, 2147483648
    %v4207 = vmul.f32 %v4205, 1.442695
    %v4208 = vpow.pop %v4207
    %v4209 = vmul.f32 %v4206, 1.442695
    %v4210 = vpow.pop %v4209
    %v4211 = vadd.f32 %v4208, 1.0
    %v4212 = vadd.f32 %v4210, 1.0
    %v4213 = vrcp.pop %v4211
    %v4214 = vmul.f32 1.0, %v4213
    %v4215 = vrcp.pop %v4212
    %v4216 = vmul.f32 1.0, %v4215
    %v4217 = vtanh.pop %v4201
    %v4218 = vmul.f32 %v4214, %v2174
    %4220 = vrot.lane.b32.xlu0 %v4217, 64
    %v4221 = vpop.permute.xlu0 %4220
    %v4223 = vmul.f32 %v4214, %v4221
    %4225 = vrot.lane.b32.xlu0 %v4223, 64
    %v4226 = vpop.permute.xlu0 %4225
    %v4228 = vadd.f32 %v4218, %v4226
    %v4229 = vtanh.pop %v4228
    %4231 = vrot.lane.b32.xlu0 %v4229, 64
    %v4232 = vpop.permute.xlu0 %4231
    %v4234 = vmul.f32 %v4216, %v4232
    %4236 = vrot.lane.b32.xlu0 %v3016, 64
    %v4237 = vpop.permute.xlu0 %4236
    %v4239 = vsel %vm562, %v4234, %v4237
    %v4240 = vpack.c.bf16 %v4239, %v4239
    %v4242 = vlaneseq
    %v4243 = vshrl.u32 %v4242, 7
    %v4244 = vsub.s32 0, %v4243
    %v4245 = vrot.slane %v3903, %v4244
    %v4246 = vlaneseq
    %v4247 = vshrl.u32 %v4246, 7
    %v4248 = vsub.s32 1, %v4247
    %v4249 = vrot.slane %v3903, %v4248
    %v4268 = vunpack.c.l.b16 %v3866
    %v4269 = vunpack.c.h.b16 %v3866
    %v4270 = vunpack.c.l.b16 %v3867
    %v4271 = vunpack.c.h.b16 %v3867
    %v4272 = vunpack.c.l.b16 %v3868
    %v4273 = vunpack.c.h.b16 %v3868
    %v4274 = vunpack.c.l.b16 %v3869
    %v4275 = vunpack.c.h.b16 %v3869
    %v4276 = vunpack.c.l.b16 %v3870
    %v4277 = vunpack.c.h.b16 %v3870
    %v4278 = vunpack.c.l.b16 %v3871
    %v4279 = vunpack.c.h.b16 %v3871
    %v4280 = vunpack.c.l.b16 %v3872
    %v4281 = vunpack.c.h.b16 %v3872
    %v4282 = vunpack.c.l.b16 %v3873
    %v4283 = vunpack.c.h.b16 %v3873
    %v4284 = vunpack.c.l.b16 %v3874
    %v4285 = vunpack.c.h.b16 %v3874
    %v4286 = vunpack.c.l.b16 %v3875
    %v4287 = vunpack.c.h.b16 %v3875
    %v4288 = vunpack.c.l.b16 %v3876
    %v4289 = vunpack.c.h.b16 %v3876
    %v4290 = vunpack.c.l.b16 %v3877
    %v4291 = vunpack.c.h.b16 %v3877
    %v4292 = vunpack.c.l.b16 %v3878
    %v4293 = vunpack.c.h.b16 %v3878
    %v4294 = vunpack.c.l.b16 %v3879
    %v4295 = vunpack.c.h.b16 %v3879
    %v4296 = vunpack.c.l.b16 %v3880
    %v4297 = vunpack.c.h.b16 %v3880
    %v4298 = vunpack.c.l.b16 %v3881
    %v4299 = vunpack.c.h.b16 %v3881
    %v4300 = vpack.c.b16 %v4270, %v4268
    %v4301 = vpack.c.b16 %v4271, %v4269
    %v4302 = vpack.c.b16 %v4274, %v4272
    %v4303 = vpack.c.b16 %v4275, %v4273
    %v4304 = vpack.c.b16 %v4278, %v4276
    %v4305 = vpack.c.b16 %v4279, %v4277
    %v4306 = vpack.c.b16 %v4282, %v4280
    %v4307 = vpack.c.b16 %v4283, %v4281
    %v4308 = vpack.c.b16 %v4286, %v4284
    %v4309 = vpack.c.b16 %v4287, %v4285
    %v4310 = vpack.c.b16 %v4290, %v4288
    %v4311 = vpack.c.b16 %v4291, %v4289
    %v4312 = vpack.c.b16 %v4294, %v4292
    %v4313 = vpack.c.b16 %v4295, %v4293
    %v4314 = vpack.c.b16 %v4298, %v4296
    %v4315 = vpack.c.b16 %v4299, %v4297
    %4332 = vmatprep.subr.bf16.mxu0 %v4315
    %4333 = vmatpush1.bf16.msra.mxu0 %v4314
    %4334 = vmatprep.subr.bf16.mxu0 %v4313
    %4335 = vmatpush1.bf16.msra.mxu0 %v4312
    %4336 = vmatprep.subr.bf16.mxu0 %v4311
    %4337 = vmatpush1.bf16.msra.mxu0 %v4310
    %4338 = vmatprep.subr.bf16.mxu0 %v4309
    %4339 = vmatpush1.bf16.msra.mxu0 %v4308
    %4340 = vmatprep.subr.bf16.mxu0 %v4307
    %4341 = vmatpush1.bf16.msra.mxu0 %v4306
    %4342 = vmatprep.subr.bf16.mxu0 %v4305
    %4343 = vmatpush1.bf16.msra.mxu0 %v4304
    %4344 = vmatprep.subr.bf16.mxu0 %v4303
    %4345 = vmatpush1.bf16.msra.mxu0 %v4302
    %4346 = vmatprep.subr.bf16.mxu0 %v4301
    %4347 = vmatpush1.bf16.msra.mxu0 %v4300
    %4348 = vmatprep.subr.bf16.mxu0 0
    %4349 = vmatpush2.bf16.msra.mxu0 0
    %4350 = vmatprep.subr.bf16.mxu0 0
    %4351 = vmatpush2.bf16.msra.mxu0 0
    %4352 = vmatprep.subr.bf16.mxu0 0
    %4353 = vmatpush2.bf16.msra.mxu0 0
    %4354 = vmatprep.subr.bf16.mxu0 0
    %4355 = vmatpush2.bf16.msra.mxu0 0
    %4356 = vmatprep.subr.bf16.mxu0 0
    %4357 = vmatpush2.bf16.msra.mxu0 0
    %4358 = vmatprep.subr.bf16.mxu0 0
    %4359 = vmatpush2.bf16.msra.mxu0 0
    %4360 = vmatprep.subr.bf16.mxu0 0
    %4361 = vmatpush2.bf16.msra.mxu0 0
    %4362 = vmatprep.subr.bf16.mxu0 0
    %4363 = vmatpush2.bf16.msra.mxu0 0
    %4364 = vmatprep.mubr.bf16.mxu0 0
    %4365 = vmatmul.mubr.bf16.gmra.mxu0 %v4240
    %v4366 = vpop.f32.mrf.mxu0
    %v4367 = vadd.f32 %v4245, %v4366
    %v4368 = vpop.f32.mrf.mxu0
    %v4369 = vadd.f32 %v4249, %v4368
    %v4370 = vpop.f32.mrf.mxu0
    %v4371 = vpop.f32.mrf.mxu0
    %4372 = vdwg.mxu0
    %v4373 = vxor.u32 %v4367, 2147483648
    %v4374 = vxor.u32 %v4369, 2147483648
    %v4375 = vmul.f32 %v4373, 1.442695
    %v4376 = vpow.pop %v4375
    %v4377 = vmul.f32 %v4374, 1.442695
    %v4378 = vpow.pop %v4377
    %v4379 = vadd.f32 %v4376, 1.0
    %v4380 = vadd.f32 %v4378, 1.0
    %v4381 = vrcp.pop %v4379
    %v4382 = vmul.f32 1.0, %v4381
    %v4383 = vrcp.pop %v4380
    %v4384 = vmul.f32 1.0, %v4383
    %v4385 = vtanh.pop %v4369
    %v4386 = vmul.f32 %v4382, %v3010
    %4388 = vrot.lane.b32.xlu0 %v4385, 64
    %v4389 = vpop.permute.xlu0 %4388
    %v4391 = vmul.f32 %v4382, %v4389
    %4393 = vrot.lane.b32.xlu0 %v4391, 64
    %v4394 = vpop.permute.xlu0 %4393
    %v4396 = vadd.f32 %v4386, %v4394
    %v4397 = vtanh.pop %v4396
    %4399 = vrot.lane.b32.xlu0 %v4397, 64
    %v4400 = vpop.permute.xlu0 %4399
    %v4402 = vmul.f32 %v4384, %v4400
    %4404 = vrot.lane.b32.xlu0 %v3836, 64
    %v4405 = vpop.permute.xlu0 %4404
    %v4407 = vsel %vm562, %v4402, %v4405
    %v4408 = vpack.c.bf16 %v4407, %v4407
    %v4410 = vlaneseq
    %v4411 = vshrl.u32 %v4410, 7
    %v4412 = vsub.s32 0, %v4411
    %v4413 = vrot.slane %v3905, %v4412
    %v4414 = vlaneseq
    %v4415 = vshrl.u32 %v4414, 7
    %v4416 = vsub.s32 1, %v4415
    %v4417 = vrot.slane %v3905, %v4416
    %v4436 = vunpack.c.l.b16 %v3883
    %v4437 = vunpack.c.h.b16 %v3883
    %v4438 = vunpack.c.l.b16 %v3884
    %v4439 = vunpack.c.h.b16 %v3884
    %v4440 = vunpack.c.l.b16 %v3885
    %v4441 = vunpack.c.h.b16 %v3885
    %v4442 = vunpack.c.l.b16 %v3886
    %v4443 = vunpack.c.h.b16 %v3886
    %v4444 = vunpack.c.l.b16 %v3887
    %v4445 = vunpack.c.h.b16 %v3887
    %v4446 = vunpack.c.l.b16 %v3888
    %v4447 = vunpack.c.h.b16 %v3888
    %v4448 = vunpack.c.l.b16 %v3889
    %v4449 = vunpack.c.h.b16 %v3889
    %v4450 = vunpack.c.l.b16 %v3890
    %v4451 = vunpack.c.h.b16 %v3890
    %v4452 = vunpack.c.l.b16 %v3891
    %v4453 = vunpack.c.h.b16 %v3891
    %v4454 = vunpack.c.l.b16 %v3892
    %v4455 = vunpack.c.h.b16 %v3892
    %v4456 = vunpack.c.l.b16 %v3893
    %v4457 = vunpack.c.h.b16 %v3893
    %v4458 = vunpack.c.l.b16 %v3894
    %v4459 = vunpack.c.h.b16 %v3894
    %v4460 = vunpack.c.l.b16 %v3895
    %v4461 = vunpack.c.h.b16 %v3895
    %v4462 = vunpack.c.l.b16 %v3896
    %v4463 = vunpack.c.h.b16 %v3896
    %v4464 = vunpack.c.l.b16 %v3897
    %v4465 = vunpack.c.h.b16 %v3897
    %v4466 = vunpack.c.l.b16 %v3898
    %v4467 = vunpack.c.h.b16 %v3898
    %v4468 = vpack.c.b16 %v4438, %v4436
    %v4469 = vpack.c.b16 %v4439, %v4437
    %v4470 = vpack.c.b16 %v4442, %v4440
    %v4471 = vpack.c.b16 %v4443, %v4441
    %v4472 = vpack.c.b16 %v4446, %v4444
    %v4473 = vpack.c.b16 %v4447, %v4445
    %v4474 = vpack.c.b16 %v4450, %v4448
    %v4475 = vpack.c.b16 %v4451, %v4449
    %v4476 = vpack.c.b16 %v4454, %v4452
    %v4477 = vpack.c.b16 %v4455, %v4453
    %v4478 = vpack.c.b16 %v4458, %v4456
    %v4479 = vpack.c.b16 %v4459, %v4457
    %v4480 = vpack.c.b16 %v4462, %v4460
    %v4481 = vpack.c.b16 %v4463, %v4461
    %v4482 = vpack.c.b16 %v4466, %v4464
    %v4483 = vpack.c.b16 %v4467, %v4465
    %4500 = vmatprep.subr.bf16.mxu0 %v4483
    %4501 = vmatpush1.bf16.msra.mxu0 %v4482
    %4502 = vmatprep.subr.bf16.mxu0 %v4481
    %4503 = vmatpush1.bf16.msra.mxu0 %v4480
    %4504 = vmatprep.subr.bf16.mxu0 %v4479
    %4505 = vmatpush1.bf16.msra.mxu0 %v4478
    %4506 = vmatprep.subr.bf16.mxu0 %v4477
    %4507 = vmatpush1.bf16.msra.mxu0 %v4476
    %4508 = vmatprep.subr.bf16.mxu0 %v4475
    %4509 = vmatpush1.bf16.msra.mxu0 %v4474
    %4510 = vmatprep.subr.bf16.mxu0 %v4473
    %4511 = vmatpush1.bf16.msra.mxu0 %v4472
    %4512 = vmatprep.subr.bf16.mxu0 %v4471
    %4513 = vmatpush1.bf16.msra.mxu0 %v4470
    %4514 = vmatprep.subr.bf16.mxu0 %v4469
    %4515 = vmatpush1.bf16.msra.mxu0 %v4468
    %4516 = vmatprep.subr.bf16.mxu0 0
    %4517 = vmatpush2.bf16.msra.mxu0 0
    %4518 = vmatprep.subr.bf16.mxu0 0
    %4519 = vmatpush2.bf16.msra.mxu0 0
    %4520 = vmatprep.subr.bf16.mxu0 0
    %4521 = vmatpush2.bf16.msra.mxu0 0
    %4522 = vmatprep.subr.bf16.mxu0 0
    %4523 = vmatpush2.bf16.msra.mxu0 0
    %4524 = vmatprep.subr.bf16.mxu0 0
    %4525 = vmatpush2.bf16.msra.mxu0 0
    %4526 = vmatprep.subr.bf16.mxu0 0
    %4527 = vmatpush2.bf16.msra.mxu0 0
    %4528 = vmatprep.subr.bf16.mxu0 0
    %4529 = vmatpush2.bf16.msra.mxu0 0
    %4530 = vmatprep.subr.bf16.mxu0 0
    %4531 = vmatpush2.bf16.msra.mxu0 0
    %4532 = vmatprep.mubr.bf16.mxu0 0
    %4533 = vmatmul.mubr.bf16.gmra.mxu0 %v4408
    %v4534 = vpop.f32.mrf.mxu0
    %v4535 = vadd.f32 %v4413, %v4534
    %v4536 = vpop.f32.mrf.mxu0
    %v4537 = vadd.f32 %v4417, %v4536
    %v4538 = vpop.f32.mrf.mxu0
    %v4539 = vpop.f32.mrf.mxu0
    %4540 = vdwg.mxu0
    %v4541 = vxor.u32 %v4535, 2147483648
    %v4542 = vxor.u32 %v4537, 2147483648
    %v4543 = vmul.f32 %v4541, 1.442695
    %v4544 = vpow.pop %v4543
    %v4545 = vmul.f32 %v4542, 1.442695
    %v4546 = vpow.pop %v4545
    %v4547 = vadd.f32 %v4544, 1.0
    %v4548 = vadd.f32 %v4546, 1.0
    %v4549 = vrcp.pop %v4547
    %v4550 = vmul.f32 1.0, %v4549
    %v4551 = vrcp.pop %v4548
    %v4552 = vmul.f32 1.0, %v4551
    %v4553 = vtanh.pop %v4537
    %v4554 = vmul.f32 %v4550, %v3830
    %4556 = vrot.lane.b32.xlu0 %v4553, 64
    %v4557 = vpop.permute.xlu0 %4556
    %v4559 = vmul.f32 %v4550, %v4557
    %4561 = vrot.lane.b32.xlu0 %v4559, 64
    %v4562 = vpop.permute.xlu0 %4561
    %v4564 = vadd.f32 %v4554, %v4562
    %v4565 = vtanh.pop %v4564
    %4567 = vrot.lane.b32.xlu0 %v4565, 64
    %v4568 = vpop.permute.xlu0 %4567
    %v4570 = vmul.f32 %v4552, %v4568
    %v4571 = vpack.c.bf16 %v4570, %v4570
    %v4573 = vlaneseq
    %v4574 = vshrl.u32 %v4573, 7
    %v4575 = vsub.s32 0, %v4574
    %v4576 = vrot.slane %v3914, %v4575
    %v4586 = vunpack.c.l.b16 %v3906
    %v4587 = vunpack.c.l.b16 %v3907
    %v4588 = vunpack.c.l.b16 %v3908
    %v4589 = vunpack.c.l.b16 %v3909
    %v4590 = vunpack.c.l.b16 %v3910
    %v4591 = vunpack.c.l.b16 %v3911
    %v4592 = vunpack.c.l.b16 %v3912
    %v4593 = vunpack.c.l.b16 %v3913
    %v4594 = vpack.c.b16 %v4587, %v4586
    %v4595 = vpack.c.b16 %v4589, %v4588
    %v4596 = vpack.c.b16 %v4591, %v4590
    %v4597 = vpack.c.b16 %v4593, %v4592
    %v4603 = vsel %vm562, %v4571, 0
    %4605 = vmatprep.subr.bf16.mxu0 0
    %4606 = vmatpush1.bf16.msra.mxu0 0
    %4607 = vmatprep.subr.bf16.mxu0 0
    %4608 = vmatpush1.bf16.msra.mxu0 0
    %4609 = vmatprep.subr.bf16.mxu0 0
    %4610 = vmatpush1.bf16.msra.mxu0 0
    %4611 = vmatprep.subr.bf16.mxu0 0
    %4612 = vmatpush1.bf16.msra.mxu0 0
    %4613 = vmatprep.subr.bf16.mxu0 0
    %4614 = vmatpush1.bf16.msra.mxu0 %v4597
    %4615 = vmatprep.subr.bf16.mxu0 0
    %4616 = vmatpush1.bf16.msra.mxu0 %v4596
    %4617 = vmatprep.subr.bf16.mxu0 0
    %4618 = vmatpush1.bf16.msra.mxu0 %v4595
    %4619 = vmatprep.subr.bf16.mxu0 0
    %4620 = vmatpush1.bf16.msra.mxu0 %v4594
    %4621 = vmatprep.subr.bf16.mxu0 0
    %4622 = vmatpush2.bf16.msra.mxu0 0
    %4623 = vmatprep.subr.bf16.mxu0 0
    %4624 = vmatpush2.bf16.msra.mxu0 0
    %4625 = vmatprep.subr.bf16.mxu0 0
    %4626 = vmatpush2.bf16.msra.mxu0 0
    %4627 = vmatprep.subr.bf16.mxu0 0
    %4628 = vmatpush2.bf16.msra.mxu0 0
    %4629 = vmatprep.subr.bf16.mxu0 0
    %4630 = vmatpush2.bf16.msra.mxu0 0
    %4631 = vmatprep.subr.bf16.mxu0 0
    %4632 = vmatpush2.bf16.msra.mxu0 0
    %4633 = vmatprep.subr.bf16.mxu0 0
    %4634 = vmatpush2.bf16.msra.mxu0 0
    %4635 = vmatprep.subr.bf16.mxu0 0
    %4636 = vmatpush2.bf16.msra.mxu0 0
    %4637 = vmatprep.mubr.bf16.mxu0 0
    %4638 = vmatmul.mubr.bf16.gmra.mxu0 %v4603
    %v4639 = vpop.f32.mrf.mxu0
    %v4640 = vadd.f32 %v4576, %v4639
    %v4641 = vpop.f32.mrf.mxu0
    %v4642 = vpop.f32.mrf.mxu0
    %v4643 = vpop.f32.mrf.mxu0
    %4644 = vdwg.mxu0
    %s4645 = scalar_lea.vmem %s10, 2
    %4646 = vst [vmem:[%s4645] sm:$0x3] %v4640
    %vm4647 = vcmask 1041408
    %v4648 = vsel %vm4647, %v4640, -inf
    %4649 = vmax.xlane.f32.xlu0 %v4648
    %v4650 = vpop.xlane.xlu0 %4649
    %vm4651 = vcmp.eq.f32.partialorder %v4640, %v4650
    %v4652 = vsel %vm4651, %v109, 128
    %v4653 = vsel %vm4647, %v4652, 2147483647
    %v4654 = vand.u32 %v4653, 65535
    %v4655 = vshra.s32 %v4653, 16
    %v4656 = vcvt.s32.f32 %v4654
    %v4657 = vcvt.s32.f32 %v4655
    %4658 = vmin.xlane.f32.xlu0 %v4657
    %v4659 = vpop.xlane.xlu0 %4658
    %vm4660 = vcmp.eq.f32.partialorder %v4657, %v4659
    %v4661 = vsel %vm4660, %v4656, inf
    %4662 = vmin.xlane.f32.xlu0 %v4661
    %v4663 = vpop.xlane.xlu0 %4662
    %v4664 = vcvt.f32.s32 %v4663
    %v4665 = vcvt.f32.s32 %v4659
    %v4666 = vshll.u32 %v4665, 16
    %v4667 = vadd.s32 %v4666, %v4664
    %vm4668 = vcmp.eq.s32.totalorder %v109, %v4667
    %v4669 = vsel %vm4668, 1, 0
    %v4670 = vcvt.s32.f32 %v4669
    %v4671 = vpack.c.bf16 %v4670, %v4670
    %4672 = vmatprep.subr.bf16.mxu0 0
    %4673 = vmatpush1.bf16.msra.mxu0 %v161
    %4674 = vmatprep.subr.bf16.mxu0 0
    %4675 = vmatpush1.bf16.msra.mxu0 %v160
    %4676 = vmatprep.subr.bf16.mxu0 0
    %4677 = vmatpush1.bf16.msra.mxu0 %v159
    %4678 = vmatprep.subr.bf16.mxu0 0
    %4679 = vmatpush1.bf16.msra.mxu0 %v158
    %4680 = vmatprep.subr.bf16.mxu0 0
    %4681 = vmatpush1.bf16.msra.mxu0 %v157
    %4682 = vmatprep.subr.bf16.mxu0 0
    %4683 = vmatpush1.bf16.msra.mxu0 %v156
    %4684 = vmatprep.subr.bf16.mxu0 0
    %4685 = vmatpush1.bf16.msra.mxu0 %v155
    %4686 = vmatprep.subr.bf16.mxu0 0
    %4687 = vmatpush1.bf16.msra.mxu0 %v154
    %4688 = vmatprep.subr.bf16.mxu0 0
    %4689 = vmatpush2.bf16.msra.mxu0 0
    %4690 = vmatprep.subr.bf16.mxu0 0
    %4691 = vmatpush2.bf16.msra.mxu0 0
    %4692 = vmatprep.subr.bf16.mxu0 0
    %4693 = vmatpush2.bf16.msra.mxu0 0
    %4694 = vmatprep.subr.bf16.mxu0 0
    %4695 = vmatpush2.bf16.msra.mxu0 0
    %4696 = vmatprep.subr.bf16.mxu0 0
    %4697 = vmatpush2.bf16.msra.mxu0 0
    %4698 = vmatprep.subr.bf16.mxu0 0
    %4699 = vmatpush2.bf16.msra.mxu0 0
    %4700 = vmatprep.subr.bf16.mxu0 0
    %4701 = vmatpush2.bf16.msra.mxu0 0
    %4702 = vmatprep.subr.bf16.mxu0 0
    %4703 = vmatpush2.bf16.msra.mxu0 0
    %4704 = vmatprep.mubr.bf16.mxu0 0
    %4705 = vmatmul.mubr.bf16.gmra.mxu0 %v4671
    %v4706 = vpop.f32.mrf.mxu0
    %v4707 = vadd.f32 0.0, %v4706
    %v4708 = vpop.f32.mrf.mxu0
    %v4709 = vpop.f32.mrf.mxu0
    %v4710 = vpop.f32.mrf.mxu0
    %4711 = vdwg.mxu0
    %4713 = vrot.lane.b32.xlu0 %v4066, 32
    %v4714 = vpop.permute.xlu0 %4713
    %v4716 = vsel %vm560, %v4707, %v4714
    %v4717 = vpack.c.bf16 %v4716, %v4716
    %v4719 = vsel %vm3992, %v4717, 0
    %4721 = vmatprep.subr.bf16.mxu0 0
    %4722 = vmatpush1.bf16.msra.mxu0 0
    %4723 = vmatprep.subr.bf16.mxu0 0
    %4724 = vmatpush1.bf16.msra.mxu0 0
    %4725 = vmatprep.subr.bf16.mxu0 %v3979
    %4726 = vmatpush1.bf16.msra.mxu0 %v3978
    %4727 = vmatprep.subr.bf16.mxu0 %v3977
    %4728 = vmatpush1.bf16.msra.mxu0 %v3976
    %4729 = vmatprep.subr.bf16.mxu0 %v3975
    %4730 = vmatpush1.bf16.msra.mxu0 %v3974
    %4731 = vmatprep.subr.bf16.mxu0 %v3973
    %4732 = vmatpush1.bf16.msra.mxu0 %v3972
    %4733 = vmatprep.subr.bf16.mxu0 %v3971
    %4734 = vmatpush1.bf16.msra.mxu0 %v3970
    %4735 = vmatprep.subr.bf16.mxu0 %v3969
    %4736 = vmatpush1.bf16.msra.mxu0 %v3968
    %4737 = vmatprep.subr.bf16.mxu0 0
    %4738 = vmatpush2.bf16.msra.mxu0 0
    %4739 = vmatprep.subr.bf16.mxu0 0
    %4740 = vmatpush2.bf16.msra.mxu0 0
    %4741 = vmatprep.subr.bf16.mxu0 0
    %4742 = vmatpush2.bf16.msra.mxu0 0
    %4743 = vmatprep.subr.bf16.mxu0 0
    %4744 = vmatpush2.bf16.msra.mxu0 0
    %4745 = vmatprep.subr.bf16.mxu0 0
    %4746 = vmatpush2.bf16.msra.mxu0 0
    %4747 = vmatprep.subr.bf16.mxu0 0
    %4748 = vmatpush2.bf16.msra.mxu0 0
    %4749 = vmatprep.subr.bf16.mxu0 0
    %4750 = vmatpush2.bf16.msra.mxu0 0
    %4751 = vmatprep.subr.bf16.mxu0 0
    %4752 = vmatpush2.bf16.msra.mxu0 0
    %4753 = vmatprep.mubr.bf16.mxu0 0
    %4754 = vmatmul.mubr.bf16.gmra.mxu0 %v4719
    %v4755 = vpop.f32.mrf.mxu0
    %v4756 = vadd.f32 %v3925, %v4755
    %v4757 = vpop.f32.mrf.mxu0
    %v4758 = vadd.f32 %v3929, %v4757
    %v4759 = vpop.f32.mrf.mxu0
    %v4760 = vpop.f32.mrf.mxu0
    %4761 = vdwg.mxu0
    %v4762 = vxor.u32 %v4756, 2147483648
    %v4763 = vxor.u32 %v4758, 2147483648
    %v4764 = vmul.f32 %v4762, 1.442695
    %v4765 = vpow.pop %v4764
    %v4766 = vmul.f32 %v4763, 1.442695
    %v4767 = vpow.pop %v4766
    %v4768 = vadd.f32 %v4765, 1.0
    %v4769 = vadd.f32 %v4767, 1.0
    %v4770 = vrcp.pop %v4768
    %v4771 = vmul.f32 1.0, %v4770
    %v4772 = vrcp.pop %v4769
    %v4773 = vmul.f32 1.0, %v4772
    %v4774 = vtanh.pop %v4758
    %v4775 = vmul.f32 %v4771, %v4060
    %4777 = vrot.lane.b32.xlu0 %v4774, 64
    %v4778 = vpop.permute.xlu0 %4777
    %v4780 = vmul.f32 %v4771, %v4778
    %4782 = vrot.lane.b32.xlu0 %v4780, 64
    %v4783 = vpop.permute.xlu0 %4782
    %v4785 = vadd.f32 %v4775, %v4783
    %v4786 = vtanh.pop %v4785
    %4788 = vrot.lane.b32.xlu0 %v4786, 64
    %v4789 = vpop.permute.xlu0 %4788
    %v4791 = vmul.f32 %v4773, %v4789
    %4793 = vrot.lane.b32.xlu0 %v4234, 64
    %v4794 = vpop.permute.xlu0 %4793
    %v4796 = vsel %vm562, %v4791, %v4794
    %v4797 = vpack.c.bf16 %v4796, %v4796
    %4798 = vmatprep.subr.bf16.mxu0 %v4147
    %4799 = vmatpush1.bf16.msra.mxu0 %v4146
    %4800 = vmatprep.subr.bf16.mxu0 %v4145
    %4801 = vmatpush1.bf16.msra.mxu0 %v4144
    %4802 = vmatprep.subr.bf16.mxu0 %v4143
    %4803 = vmatpush1.bf16.msra.mxu0 %v4142
    %4804 = vmatprep.subr.bf16.mxu0 %v4141
    %4805 = vmatpush1.bf16.msra.mxu0 %v4140
    %4806 = vmatprep.subr.bf16.mxu0 %v4139
    %4807 = vmatpush1.bf16.msra.mxu0 %v4138
    %4808 = vmatprep.subr.bf16.mxu0 %v4137
    %4809 = vmatpush1.bf16.msra.mxu0 %v4136
    %4810 = vmatprep.subr.bf16.mxu0 %v4135
    %4811 = vmatpush1.bf16.msra.mxu0 %v4134
    %4812 = vmatprep.subr.bf16.mxu0 %v4133
    %4813 = vmatpush1.bf16.msra.mxu0 %v4132
    %4814 = vmatprep.subr.bf16.mxu0 0
    %4815 = vmatpush2.bf16.msra.mxu0 0
    %4816 = vmatprep.subr.bf16.mxu0 0
    %4817 = vmatpush2.bf16.msra.mxu0 0
    %4818 = vmatprep.subr.bf16.mxu0 0
    %4819 = vmatpush2.bf16.msra.mxu0 0
    %4820 = vmatprep.subr.bf16.mxu0 0
    %4821 = vmatpush2.bf16.msra.mxu0 0
    %4822 = vmatprep.subr.bf16.mxu0 0
    %4823 = vmatpush2.bf16.msra.mxu0 0
    %4824 = vmatprep.subr.bf16.mxu0 0
    %4825 = vmatpush2.bf16.msra.mxu0 0
    %4826 = vmatprep.subr.bf16.mxu0 0
    %4827 = vmatpush2.bf16.msra.mxu0 0
    %4828 = vmatprep.subr.bf16.mxu0 0
    %4829 = vmatpush2.bf16.msra.mxu0 0
    %4830 = vmatprep.mubr.bf16.mxu0 0
    %4831 = vmatmul.mubr.bf16.gmra.mxu0 %v4797
    %v4832 = vpop.f32.mrf.mxu0
    %v4833 = vadd.f32 %v4077, %v4832
    %v4834 = vpop.f32.mrf.mxu0
    %v4835 = vadd.f32 %v4081, %v4834
    %v4836 = vpop.f32.mrf.mxu0
    %v4837 = vpop.f32.mrf.mxu0
    %4838 = vdwg.mxu0
    %v4839 = vxor.u32 %v4833, 2147483648
    %v4840 = vxor.u32 %v4835, 2147483648
    %v4841 = vmul.f32 %v4839, 1.442695
    %v4842 = vpow.pop %v4841
    %v4843 = vmul.f32 %v4840, 1.442695
    %v4844 = vpow.pop %v4843
    %v4845 = vadd.f32 %v4842, 1.0
    %v4846 = vadd.f32 %v4844, 1.0
    %v4847 = vrcp.pop %v4845
    %v4848 = vmul.f32 1.0, %v4847
    %v4849 = vrcp.pop %v4846
    %v4850 = vmul.f32 1.0, %v4849
    %v4851 = vtanh.pop %v4835
    %v4852 = vmul.f32 %v4848, %v4228
    %4854 = vrot.lane.b32.xlu0 %v4851, 64
    %v4855 = vpop.permute.xlu0 %4854
    %v4857 = vmul.f32 %v4848, %v4855
    %4859 = vrot.lane.b32.xlu0 %v4857, 64
    %v4860 = vpop.permute.xlu0 %4859
    %v4862 = vadd.f32 %v4852, %v4860
    %v4863 = vtanh.pop %v4862
    %4865 = vrot.lane.b32.xlu0 %v4863, 64
    %v4866 = vpop.permute.xlu0 %4865
    %v4868 = vmul.f32 %v4850, %v4866
    %4870 = vrot.lane.b32.xlu0 %v4402, 64
    %v4871 = vpop.permute.xlu0 %4870
    %v4873 = vsel %vm562, %v4868, %v4871
    %v4874 = vpack.c.bf16 %v4873, %v4873
    %4875 = vmatprep.subr.bf16.mxu0 %v4315
    %4876 = vmatpush1.bf16.msra.mxu0 %v4314
    %4877 = vmatprep.subr.bf16.mxu0 %v4313
    %4878 = vmatpush1.bf16.msra.mxu0 %v4312
    %4879 = vmatprep.subr.bf16.mxu0 %v4311
    %4880 = vmatpush1.bf16.msra.mxu0 %v4310
    %4881 = vmatprep.subr.bf16.mxu0 %v4309
    %4882 = vmatpush1.bf16.msra.mxu0 %v4308
    %4883 = vmatprep.subr.bf16.mxu0 %v4307
    %4884 = vmatpush1.bf16.msra.mxu0 %v4306
    %4885 = vmatprep.subr.bf16.mxu0 %v4305
    %4886 = vmatpush1.bf16.msra.mxu0 %v4304
    %4887 = vmatprep.subr.bf16.mxu0 %v4303
    %4888 = vmatpush1.bf16.msra.mxu0 %v4302
    %4889 = vmatprep.subr.bf16.mxu0 %v4301
    %4890 = vmatpush1.bf16.msra.mxu0 %v4300
    %4891 = vmatprep.subr.bf16.mxu0 0
    %4892 = vmatpush2.bf16.msra.mxu0 0
    %4893 = vmatprep.subr.bf16.mxu0 0
    %4894 = vmatpush2.bf16.msra.mxu0 0
    %4895 = vmatprep.subr.bf16.mxu0 0
    %4896 = vmatpush2.bf16.msra.mxu0 0
    %4897 = vmatprep.subr.bf16.mxu0 0
    %4898 = vmatpush2.bf16.msra.mxu0 0
    %4899 = vmatprep.subr.bf16.mxu0 0
    %4900 = vmatpush2.bf16.msra.mxu0 0
    %4901 = vmatprep.subr.bf16.mxu0 0
    %4902 = vmatpush2.bf16.msra.mxu0 0
    %4903 = vmatprep.subr.bf16.mxu0 0
    %4904 = vmatpush2.bf16.msra.mxu0 0
    %4905 = vmatprep.subr.bf16.mxu0 0
    %4906 = vmatpush2.bf16.msra.mxu0 0
    %4907 = vmatprep.mubr.bf16.mxu0 0
    %4908 = vmatmul.mubr.bf16.gmra.mxu0 %v4874
    %v4909 = vpop.f32.mrf.mxu0
    %v4910 = vadd.f32 %v4245, %v4909
    %v4911 = vpop.f32.mrf.mxu0
    %v4912 = vadd.f32 %v4249, %v4911
    %v4913 = vpop.f32.mrf.mxu0
    %v4914 = vpop.f32.mrf.mxu0
    %4915 = vdwg.mxu0
    %v4916 = vxor.u32 %v4910, 2147483648
    %v4917 = vxor.u32 %v4912, 2147483648
    %v4918 = vmul.f32 %v4916, 1.442695
    %v4919 = vpow.pop %v4918
    %v4920 = vmul.f32 %v4917, 1.442695
    %v4921 = vpow.pop %v4920
    %v4922 = vadd.f32 %v4919, 1.0
    %v4923 = vadd.f32 %v4921, 1.0
    %v4924 = vrcp.pop %v4922
    %v4925 = vmul.f32 1.0, %v4924
    %v4926 = vrcp.pop %v4923
    %v4927 = vmul.f32 1.0, %v4926
    %v4928 = vtanh.pop %v4912
    %v4929 = vmul.f32 %v4925, %v4396
    %4931 = vrot.lane.b32.xlu0 %v4928, 64
    %v4932 = vpop.permute.xlu0 %4931
    %v4934 = vmul.f32 %v4925, %v4932
    %4936 = vrot.lane.b32.xlu0 %v4934, 64
    %v4937 = vpop.permute.xlu0 %4936
    %v4939 = vadd.f32 %v4929, %v4937
    %v4940 = vtanh.pop %v4939
    %4942 = vrot.lane.b32.xlu0 %v4940, 64
    %v4943 = vpop.permute.xlu0 %4942
    %v4945 = vmul.f32 %v4927, %v4943
    %4947 = vrot.lane.b32.xlu0 %v4570, 64
    %v4948 = vpop.permute.xlu0 %4947
    %v4950 = vsel %vm562, %v4945, %v4948
    %v4951 = vpack.c.bf16 %v4950, %v4950
    %4952 = vmatprep.subr.bf16.mxu0 %v4483
    %4953 = vmatpush1.bf16.msra.mxu0 %v4482
    %4954 = vmatprep.subr.bf16.mxu0 %v4481
    %4955 = vmatpush1.bf16.msra.mxu0 %v4480
    %4956 = vmatprep.subr.bf16.mxu0 %v4479
    %4957 = vmatpush1.bf16.msra.mxu0 %v4478
    %4958 = vmatprep.subr.bf16.mxu0 %v4477
    %4959 = vmatpush1.bf16.msra.mxu0 %v4476
    %4960 = vmatprep.subr.bf16.mxu0 %v4475
    %4961 = vmatpush1.bf16.msra.mxu0 %v4474
    %4962 = vmatprep.subr.bf16.mxu0 %v4473
    %4963 = vmatpush1.bf16.msra.mxu0 %v4472
    %4964 = vmatprep.subr.bf16.mxu0 %v4471
    %4965 = vmatpush1.bf16.msra.mxu0 %v4470
    %4966 = vmatprep.subr.bf16.mxu0 %v4469
    %4967 = vmatpush1.bf16.msra.mxu0 %v4468
    %4968 = vmatprep.subr.bf16.mxu0 0
    %4969 = vmatpush2.bf16.msra.mxu0 0
    %4970 = vmatprep.subr.bf16.mxu0 0
    %4971 = vmatpush2.bf16.msra.mxu0 0
    %4972 = vmatprep.subr.bf16.mxu0 0
    %4973 = vmatpush2.bf16.msra.mxu0 0
    %4974 = vmatprep.subr.bf16.mxu0 0
    %4975 = vmatpush2.bf16.msra.mxu0 0
    %4976 = vmatprep.subr.bf16.mxu0 0
    %4977 = vmatpush2.bf16.msra.mxu0 0
    %4978 = vmatprep.subr.bf16.mxu0 0
    %4979 = vmatpush2.bf16.msra.mxu0 0
    %4980 = vmatprep.subr.bf16.mxu0 0
    %4981 = vmatpush2.bf16.msra.mxu0 0
    %4982 = vmatprep.subr.bf16.mxu0 0
    %4983 = vmatpush2.bf16.msra.mxu0 0
    %4984 = vmatprep.mubr.bf16.mxu0 0
    %4985 = vmatmul.mubr.bf16.gmra.mxu0 %v4951
    %v4986 = vpop.f32.mrf.mxu0
    %v4987 = vadd.f32 %v4413, %v4986
    %v4988 = vpop.f32.mrf.mxu0
    %v4989 = vadd.f32 %v4417, %v4988
    %v4990 = vpop.f32.mrf.mxu0
    %v4991 = vpop.f32.mrf.mxu0
    %4992 = vdwg.mxu0
    %v4993 = vxor.u32 %v4987, 2147483648
    %v4994 = vxor.u32 %v4989, 2147483648
    %v4995 = vmul.f32 %v4993, 1.442695
    %v4996 = vpow.pop %v4995
    %v4997 = vmul.f32 %v4994, 1.442695
    %v4998 = vpow.pop %v4997
    %v4999 = vadd.f32 %v4996, 1.0
    %v5000 = vadd.f32 %v4998, 1.0
    %v5001 = vrcp.pop %v4999
    %v5002 = vmul.f32 1.0, %v5001
    %v5003 = vrcp.pop %v5000
    %v5004 = vmul.f32 1.0, %v5003
    %v5005 = vtanh.pop %v4989
    %v5006 = vmul.f32 %v5002, %v4564
    %5008 = vrot.lane.b32.xlu0 %v5005, 64
    %v5009 = vpop.permute.xlu0 %5008
    %v5011 = vmul.f32 %v5002, %v5009
    %5013 = vrot.lane.b32.xlu0 %v5011, 64
    %v5014 = vpop.permute.xlu0 %5013
    %v5016 = vadd.f32 %v5006, %v5014
    %v5017 = vtanh.pop %v5016
    %5019 = vrot.lane.b32.xlu0 %v5017, 64
    %v5020 = vpop.permute.xlu0 %5019
    %v5022 = vmul.f32 %v5004, %v5020
    %v5023 = vpack.c.bf16 %v5022, %v5022
    %v5025 = vsel %vm562, %v5023, 0
    %5027 = vmatprep.subr.bf16.mxu0 0
    %5028 = vmatpush1.bf16.msra.mxu0 0
    %5029 = vmatprep.subr.bf16.mxu0 0
    %5030 = vmatpush1.bf16.msra.mxu0 0
    %5031 = vmatprep.subr.bf16.mxu0 0
    %5032 = vmatpush1.bf16.msra.mxu0 0
    %5033 = vmatprep.subr.bf16.mxu0 0
    %5034 = vmatpush1.bf16.msra.mxu0 0
    %5035 = vmatprep.subr.bf16.mxu0 0
    %5036 = vmatpush1.bf16.msra.mxu0 %v4597
    %5037 = vmatprep.subr.bf16.mxu0 0
    %5038 = vmatpush1.bf16.msra.mxu0 %v4596
    %5039 = vmatprep.subr.bf16.mxu0 0
    %5040 = vmatpush1.bf16.msra.mxu0 %v4595
    %5041 = vmatprep.subr.bf16.mxu0 0
    %5042 = vmatpush1.bf16.msra.mxu0 %v4594
    %5043 = vmatprep.subr.bf16.mxu0 0
    %5044 = vmatpush2.bf16.msra.mxu0 0
    %5045 = vmatprep.subr.bf16.mxu0 0
    %5046 = vmatpush2.bf16.msra.mxu0 0
    %5047 = vmatprep.subr.bf16.mxu0 0
    %5048 = vmatpush2.bf16.msra.mxu0 0
    %5049 = vmatprep.subr.bf16.mxu0 0
    %5050 = vmatpush2.bf16.msra.mxu0 0
    %5051 = vmatprep.subr.bf16.mxu0 0
    %5052 = vmatpush2.bf16.msra.mxu0 0
    %5053 = vmatprep.subr.bf16.mxu0 0
    %5054 = vmatpush2.bf16.msra.mxu0 0
    %5055 = vmatprep.subr.bf16.mxu0 0
    %5056 = vmatpush2.bf16.msra.mxu0 0
    %5057 = vmatprep.subr.bf16.mxu0 0
    %5058 = vmatpush2.bf16.msra.mxu0 0
    %5059 = vmatprep.mubr.bf16.mxu0 0
    %5060 = vmatmul.mubr.bf16.gmra.mxu0 %v5025
    %v5061 = vpop.f32.mrf.mxu0
    %v5062 = vadd.f32 %v4576, %v5061
    %v5063 = vpop.f32.mrf.mxu0
    %v5064 = vpop.f32.mrf.mxu0
    %v5065 = vpop.f32.mrf.mxu0
    %5066 = vdwg.mxu0
    %s5067 = scalar_lea.vmem %s10, 4
    %5068 = vst [vmem:[%s5067] sm:$0x3] %v5062
    %v5069 = vsel %vm4647, %v5062, -inf
    %5070 = vmax.xlane.f32.xlu0 %v5069
    %v5071 = vpop.xlane.xlu0 %5070
    %vm5072 = vcmp.eq.f32.partialorder %v5062, %v5071
    %v5073 = vsel %vm5072, %v109, 128
    %v5074 = vsel %vm4647, %v5073, 2147483647
    %v5075 = vand.u32 %v5074, 65535
    %v5076 = vshra.s32 %v5074, 16
    %v5077 = vcvt.s32.f32 %v5075
    %v5078 = vcvt.s32.f32 %v5076
    %5079 = vmin.xlane.f32.xlu0 %v5078
    %v5080 = vpop.xlane.xlu0 %5079
    %vm5081 = vcmp.eq.f32.partialorder %v5078, %v5080
    %v5082 = vsel %vm5081, %v5077, inf
    %5083 = vmin.xlane.f32.xlu0 %v5082
    %v5084 = vpop.xlane.xlu0 %5083
    %v5085 = vcvt.f32.s32 %v5084
    %v5086 = vcvt.f32.s32 %v5080
    %v5087 = vshll.u32 %v5086, 16
    %v5088 = vadd.s32 %v5087, %v5085
    %vm5089 = vcmp.eq.s32.totalorder %v109, %v5088
    %v5090 = vsel %vm5089, 1, 0
    %v5091 = vcvt.s32.f32 %v5090
    %v5092 = vpack.c.bf16 %v5091, %v5091
    %5093 = vmatprep.subr.bf16.mxu0 0
    %5094 = vmatpush1.bf16.msra.mxu0 %v161
    %5095 = vmatprep.subr.bf16.mxu0 0
    %5096 = vmatpush1.bf16.msra.mxu0 %v160
    %5097 = vmatprep.subr.bf16.mxu0 0
    %5098 = vmatpush1.bf16.msra.mxu0 %v159
    %5099 = vmatprep.subr.bf16.mxu0 0
    %5100 = vmatpush1.bf16.msra.mxu0 %v158
    %5101 = vmatprep.subr.bf16.mxu0 0
    %5102 = vmatpush1.bf16.msra.mxu0 %v157
    %5103 = vmatprep.subr.bf16.mxu0 0
    %5104 = vmatpush1.bf16.msra.mxu0 %v156
    %5105 = vmatprep.subr.bf16.mxu0 0
    %5106 = vmatpush1.bf16.msra.mxu0 %v155
    %5107 = vmatprep.subr.bf16.mxu0 0
    %5108 = vmatpush1.bf16.msra.mxu0 %v154
    %5109 = vmatprep.subr.bf16.mxu0 0
    %5110 = vmatpush2.bf16.msra.mxu0 0
    %5111 = vmatprep.subr.bf16.mxu0 0
    %5112 = vmatpush2.bf16.msra.mxu0 0
    %5113 = vmatprep.subr.bf16.mxu0 0
    %5114 = vmatpush2.bf16.msra.mxu0 0
    %5115 = vmatprep.subr.bf16.mxu0 0
    %5116 = vmatpush2.bf16.msra.mxu0 0
    %5117 = vmatprep.subr.bf16.mxu0 0
    %5118 = vmatpush2.bf16.msra.mxu0 0
    %5119 = vmatprep.subr.bf16.mxu0 0
    %5120 = vmatpush2.bf16.msra.mxu0 0
    %5121 = vmatprep.subr.bf16.mxu0 0
    %5122 = vmatpush2.bf16.msra.mxu0 0
    %5123 = vmatprep.subr.bf16.mxu0 0
    %5124 = vmatpush2.bf16.msra.mxu0 0
    %5125 = vmatprep.mubr.bf16.mxu0 0
    %5126 = vmatmul.mubr.bf16.gmra.mxu0 %v5092
    %v5127 = vpop.f32.mrf.mxu0
    %v5128 = vadd.f32 0.0, %v5127
    %v5129 = vpop.f32.mrf.mxu0
    %v5130 = vpop.f32.mrf.mxu0
    %v5131 = vpop.f32.mrf.mxu0
    %5132 = vdwg.mxu0
    %5134 = vrot.lane.b32.xlu0 %v4791, 32
    %v5135 = vpop.permute.xlu0 %5134
    %v5137 = vsel %vm560, %v5128, %v5135
    %v5138 = vpack.c.bf16 %v5137, %v5137
    %v5140 = vsel %vm3992, %v5138, 0
    %5142 = vmatprep.subr.bf16.mxu0 0
    %5143 = vmatpush1.bf16.msra.mxu0 0
    %5144 = vmatprep.subr.bf16.mxu0 0
    %5145 = vmatpush1.bf16.msra.mxu0 0
    %5146 = vmatprep.subr.bf16.mxu0 %v3979
    %5147 = vmatpush1.bf16.msra.mxu0 %v3978
    %5148 = vmatprep.subr.bf16.mxu0 %v3977
    %5149 = vmatpush1.bf16.msra.mxu0 %v3976
    %5150 = vmatprep.subr.bf16.mxu0 %v3975
    %5151 = vmatpush1.bf16.msra.mxu0 %v3974
    %5152 = vmatprep.subr.bf16.mxu0 %v3973
    %5153 = vmatpush1.bf16.msra.mxu0 %v3972
    %5154 = vmatprep.subr.bf16.mxu0 %v3971
    %5155 = vmatpush1.bf16.msra.mxu0 %v3970
    %5156 = vmatprep.subr.bf16.mxu0 %v3969
    %5157 = vmatpush1.bf16.msra.mxu0 %v3968
    %5158 = vmatprep.subr.bf16.mxu0 0
    %5159 = vmatpush2.bf16.msra.mxu0 0
    %5160 = vmatprep.subr.bf16.mxu0 0
    %5161 = vmatpush2.bf16.msra.mxu0 0
    %5162 = vmatprep.subr.bf16.mxu0 0
    %5163 = vmatpush2.bf16.msra.mxu0 0
    %5164 = vmatprep.subr.bf16.mxu0 0
    %5165 = vmatpush2.bf16.msra.mxu0 0
    %5166 = vmatprep.subr.bf16.mxu0 0
    %5167 = vmatpush2.bf16.msra.mxu0 0
    %5168 = vmatprep.subr.bf16.mxu0 0
    %5169 = vmatpush2.bf16.msra.mxu0 0
    %5170 = vmatprep.subr.bf16.mxu0 0
    %5171 = vmatpush2.bf16.msra.mxu0 0
    %5172 = vmatprep.subr.bf16.mxu0 0
    %5173 = vmatpush2.bf16.msra.mxu0 0
    %5174 = vmatprep.mubr.bf16.mxu0 0
    %5175 = vmatmul.mubr.bf16.gmra.mxu0 %v5140
    %v5176 = vpop.f32.mrf.mxu0
    %v5177 = vadd.f32 %v3925, %v5176
    %v5178 = vpop.f32.mrf.mxu0
    %v5179 = vadd.f32 %v3929, %v5178
    %v5180 = vpop.f32.mrf.mxu0
    %v5181 = vpop.f32.mrf.mxu0
    %5182 = vdwg.mxu0
    %v5183 = vxor.u32 %v5177, 2147483648
    %v5184 = vxor.u32 %v5179, 2147483648
    %v5185 = vmul.f32 %v5183, 1.442695
    %v5186 = vpow.pop %v5185
    %v5187 = vmul.f32 %v5184, 1.442695
    %v5188 = vpow.pop %v5187
    %v5189 = vadd.f32 %v5186, 1.0
    %v5190 = vadd.f32 %v5188, 1.0
    %v5191 = vrcp.pop %v5189
    %v5192 = vmul.f32 1.0, %v5191
    %v5193 = vrcp.pop %v5190
    %v5194 = vmul.f32 1.0, %v5193
    %v5195 = vtanh.pop %v5179
    %v5196 = vmul.f32 %v5192, %v4785
    %5198 = vrot.lane.b32.xlu0 %v5195, 64
    %v5199 = vpop.permute.xlu0 %5198
    %v5201 = vmul.f32 %v5192, %v5199
    %5203 = vrot.lane.b32.xlu0 %v5201, 64
    %v5204 = vpop.permute.xlu0 %5203
    %v5206 = vadd.f32 %v5196, %v5204
    %v5207 = vtanh.pop %v5206
    %5209 = vrot.lane.b32.xlu0 %v5207, 64
    %v5210 = vpop.permute.xlu0 %5209
    %v5212 = vmul.f32 %v5194, %v5210
    %5214 = vrot.lane.b32.xlu0 %v4868, 64
    %v5215 = vpop.permute.xlu0 %5214
    %v5217 = vsel %vm562, %v5212, %v5215
    %v5218 = vpack.c.bf16 %v5217, %v5217
    %5219 = vmatprep.subr.bf16.mxu0 %v4147
    %5220 = vmatpush1.bf16.msra.mxu0 %v4146
    %5221 = vmatprep.subr.bf16.mxu0 %v4145
    %5222 = vmatpush1.bf16.msra.mxu0 %v4144
    %5223 = vmatprep.subr.bf16.mxu0 %v4143
    %5224 = vmatpush1.bf16.msra.mxu0 %v4142
    %5225 = vmatprep.subr.bf16.mxu0 %v4141
    %5226 = vmatpush1.bf16.msra.mxu0 %v4140
    %5227 = vmatprep.subr.bf16.mxu0 %v4139
    %5228 = vmatpush1.bf16.msra.mxu0 %v4138
    %5229 = vmatprep.subr.bf16.mxu0 %v4137
    %5230 = vmatpush1.bf16.msra.mxu0 %v4136
    %5231 = vmatprep.subr.bf16.mxu0 %v4135
    %5232 = vmatpush1.bf16.msra.mxu0 %v4134
    %5233 = vmatprep.subr.bf16.mxu0 %v4133
    %5234 = vmatpush1.bf16.msra.mxu0 %v4132
    %5235 = vmatprep.subr.bf16.mxu0 0
    %5236 = vmatpush2.bf16.msra.mxu0 0
    %5237 = vmatprep.subr.bf16.mxu0 0
    %5238 = vmatpush2.bf16.msra.mxu0 0
    %5239 = vmatprep.subr.bf16.mxu0 0
    %5240 = vmatpush2.bf16.msra.mxu0 0
    %5241 = vmatprep.subr.bf16.mxu0 0
    %5242 = vmatpush2.bf16.msra.mxu0 0
    %5243 = vmatprep.subr.bf16.mxu0 0
    %5244 = vmatpush2.bf16.msra.mxu0 0
    %5245 = vmatprep.subr.bf16.mxu0 0
    %5246 = vmatpush2.bf16.msra.mxu0 0
    %5247 = vmatprep.subr.bf16.mxu0 0
    %5248 = vmatpush2.bf16.msra.mxu0 0
    %5249 = vmatprep.subr.bf16.mxu0 0
    %5250 = vmatpush2.bf16.msra.mxu0 0
    %5251 = vmatprep.mubr.bf16.mxu0 0
    %5252 = vmatmul.mubr.bf16.gmra.mxu0 %v5218
    %v5253 = vpop.f32.mrf.mxu0
    %v5254 = vadd.f32 %v4077, %v5253
    %v5255 = vpop.f32.mrf.mxu0
    %v5256 = vadd.f32 %v4081, %v5255
    %v5257 = vpop.f32.mrf.mxu0
    %v5258 = vpop.f32.mrf.mxu0
    %5259 = vdwg.mxu0
    %v5260 = vxor.u32 %v5254, 2147483648
    %v5261 = vxor.u32 %v5256, 2147483648
    %v5262 = vmul.f32 %v5260, 1.442695
    %v5263 = vpow.pop %v5262
    %v5264 = vmul.f32 %v5261, 1.442695
    %v5265 = vpow.pop %v5264
    %v5266 = vadd.f32 %v5263, 1.0
    %v5267 = vadd.f32 %v5265, 1.0
    %v5268 = vrcp.pop %v5266
    %v5269 = vmul.f32 1.0, %v5268
    %v5270 = vrcp.pop %v5267
    %v5271 = vmul.f32 1.0, %v5270
    %v5272 = vtanh.pop %v5256
    %v5273 = vmul.f32 %v5269, %v4862
    %5275 = vrot.lane.b32.xlu0 %v5272, 64
    %v5276 = vpop.permute.xlu0 %5275
    %v5278 = vmul.f32 %v5269, %v5276
    %5280 = vrot.lane.b32.xlu0 %v5278, 64
    %v5281 = vpop.permute.xlu0 %5280
    %v5283 = vadd.f32 %v5273, %v5281
    %v5284 = vtanh.pop %v5283
    %5286 = vrot.lane.b32.xlu0 %v5284, 64
    %v5287 = vpop.permute.xlu0 %5286
    %v5289 = vmul.f32 %v5271, %v5287
    %5291 = vrot.lane.b32.xlu0 %v4945, 64
    %v5292 = vpop.permute.xlu0 %5291
    %v5294 = vsel %vm562, %v5289, %v5292
    %v5295 = vpack.c.bf16 %v5294, %v5294
    %5296 = vmatprep.subr.bf16.mxu0 %v4315
    %5297 = vmatpush1.bf16.msra.mxu0 %v4314
    %5298 = vmatprep.subr.bf16.mxu0 %v4313
    %5299 = vmatpush1.bf16.msra.mxu0 %v4312
    %5300 = vmatprep.subr.bf16.mxu0 %v4311
    %5301 = vmatpush1.bf16.msra.mxu0 %v4310
    %5302 = vmatprep.subr.bf16.mxu0 %v4309
    %5303 = vmatpush1.bf16.msra.mxu0 %v4308
    %5304 = vmatprep.subr.bf16.mxu0 %v4307
    %5305 = vmatpush1.bf16.msra.mxu0 %v4306
    %5306 = vmatprep.subr.bf16.mxu0 %v4305
    %5307 = vmatpush1.bf16.msra.mxu0 %v4304
    %5308 = vmatprep.subr.bf16.mxu0 %v4303
    %5309 = vmatpush1.bf16.msra.mxu0 %v4302
    %5310 = vmatprep.subr.bf16.mxu0 %v4301
    %5311 = vmatpush1.bf16.msra.mxu0 %v4300
    %5312 = vmatprep.subr.bf16.mxu0 0
    %5313 = vmatpush2.bf16.msra.mxu0 0
    %5314 = vmatprep.subr.bf16.mxu0 0
    %5315 = vmatpush2.bf16.msra.mxu0 0
    %5316 = vmatprep.subr.bf16.mxu0 0
    %5317 = vmatpush2.bf16.msra.mxu0 0
    %5318 = vmatprep.subr.bf16.mxu0 0
    %5319 = vmatpush2.bf16.msra.mxu0 0
    %5320 = vmatprep.subr.bf16.mxu0 0
    %5321 = vmatpush2.bf16.msra.mxu0 0
    %5322 = vmatprep.subr.bf16.mxu0 0
    %5323 = vmatpush2.bf16.msra.mxu0 0
    %5324 = vmatprep.subr.bf16.mxu0 0
    %5325 = vmatpush2.bf16.msra.mxu0 0
    %5326 = vmatprep.subr.bf16.mxu0 0
    %5327 = vmatpush2.bf16.msra.mxu0 0
    %5328 = vmatprep.mubr.bf16.mxu0 0
    %5329 = vmatmul.mubr.bf16.gmra.mxu0 %v5295
    %v5330 = vpop.f32.mrf.mxu0
    %v5331 = vadd.f32 %v4245, %v5330
    %v5332 = vpop.f32.mrf.mxu0
    %v5333 = vadd.f32 %v4249, %v5332
    %v5334 = vpop.f32.mrf.mxu0
    %v5335 = vpop.f32.mrf.mxu0
    %5336 = vdwg.mxu0
    %v5337 = vxor.u32 %v5331, 2147483648
    %v5338 = vxor.u32 %v5333, 2147483648
    %v5339 = vmul.f32 %v5337, 1.442695
    %v5340 = vpow.pop %v5339
    %v5341 = vmul.f32 %v5338, 1.442695
    %v5342 = vpow.pop %v5341
    %v5343 = vadd.f32 %v5340, 1.0
    %v5344 = vadd.f32 %v5342, 1.0
    %v5345 = vrcp.pop %v5343
    %v5346 = vmul.f32 1.0, %v5345
    %v5347 = vrcp.pop %v5344
    %v5348 = vmul.f32 1.0, %v5347
    %v5349 = vtanh.pop %v5333
    %v5350 = vmul.f32 %v5346, %v4939
    %5352 = vrot.lane.b32.xlu0 %v5349, 64
    %v5353 = vpop.permute.xlu0 %5352
    %v5355 = vmul.f32 %v5346, %v5353
    %5357 = vrot.lane.b32.xlu0 %v5355, 64
    %v5358 = vpop.permute.xlu0 %5357
    %v5360 = vadd.f32 %v5350, %v5358
    %v5361 = vtanh.pop %v5360
    %5363 = vrot.lane.b32.xlu0 %v5361, 64
    %v5364 = vpop.permute.xlu0 %5363
    %v5366 = vmul.f32 %v5348, %v5364
    %5368 = vrot.lane.b32.xlu0 %v5022, 64
    %v5369 = vpop.permute.xlu0 %5368
    %v5371 = vsel %vm562, %v5366, %v5369
    %v5372 = vpack.c.bf16 %v5371, %v5371
    %5373 = vmatprep.subr.bf16.mxu0 %v4483
    %5374 = vmatpush1.bf16.msra.mxu0 %v4482
    %5375 = vmatprep.subr.bf16.mxu0 %v4481
    %5376 = vmatpush1.bf16.msra.mxu0 %v4480
    %5377 = vmatprep.subr.bf16.mxu0 %v4479
    %5378 = vmatpush1.bf16.msra.mxu0 %v4478
    %5379 = vmatprep.subr.bf16.mxu0 %v4477
    %5380 = vmatpush1.bf16.msra.mxu0 %v4476
    %5381 = vmatprep.subr.bf16.mxu0 %v4475
    %5382 = vmatpush1.bf16.msra.mxu0 %v4474
    %5383 = vmatprep.subr.bf16.mxu0 %v4473
    %5384 = vmatpush1.bf16.msra.mxu0 %v4472
    %5385 = vmatprep.subr.bf16.mxu0 %v4471
    %5386 = vmatpush1.bf16.msra.mxu0 %v4470
    %5387 = vmatprep.subr.bf16.mxu0 %v4469
    %5388 = vmatpush1.bf16.msra.mxu0 %v4468
    %5389 = vmatprep.subr.bf16.mxu0 0
    %5390 = vmatpush2.bf16.msra.mxu0 0
    %5391 = vmatprep.subr.bf16.mxu0 0
    %5392 = vmatpush2.bf16.msra.mxu0 0
    %5393 = vmatprep.subr.bf16.mxu0 0
    %5394 = vmatpush2.bf16.msra.mxu0 0
    %5395 = vmatprep.subr.bf16.mxu0 0
    %5396 = vmatpush2.bf16.msra.mxu0 0
    %5397 = vmatprep.subr.bf16.mxu0 0
    %5398 = vmatpush2.bf16.msra.mxu0 0
    %5399 = vmatprep.subr.bf16.mxu0 0
    %5400 = vmatpush2.bf16.msra.mxu0 0
    %5401 = vmatprep.subr.bf16.mxu0 0
    %5402 = vmatpush2.bf16.msra.mxu0 0
    %5403 = vmatprep.subr.bf16.mxu0 0
    %5404 = vmatpush2.bf16.msra.mxu0 0
    %5405 = vmatprep.mubr.bf16.mxu0 0
    %5406 = vmatmul.mubr.bf16.gmra.mxu0 %v5372
    %v5407 = vpop.f32.mrf.mxu0
    %v5408 = vadd.f32 %v4413, %v5407
    %v5409 = vpop.f32.mrf.mxu0
    %v5410 = vadd.f32 %v4417, %v5409
    %v5411 = vpop.f32.mrf.mxu0
    %v5412 = vpop.f32.mrf.mxu0
    %5413 = vdwg.mxu0
    %v5414 = vxor.u32 %v5408, 2147483648
    %v5415 = vxor.u32 %v5410, 2147483648
    %v5416 = vmul.f32 %v5414, 1.442695
    %v5417 = vpow.pop %v5416
    %v5418 = vmul.f32 %v5415, 1.442695
    %v5419 = vpow.pop %v5418
    %v5420 = vadd.f32 %v5417, 1.0
    %v5421 = vadd.f32 %v5419, 1.0
    %v5422 = vrcp.pop %v5420
    %v5423 = vmul.f32 1.0, %v5422
    %v5424 = vrcp.pop %v5421
    %v5425 = vmul.f32 1.0, %v5424
    %v5426 = vtanh.pop %v5410
    %v5427 = vmul.f32 %v5423, %v5016
    %5429 = vrot.lane.b32.xlu0 %v5426, 64
    %v5430 = vpop.permute.xlu0 %5429
    %v5432 = vmul.f32 %v5423, %v5430
    %5434 = vrot.lane.b32.xlu0 %v5432, 64
    %v5435 = vpop.permute.xlu0 %5434
    %v5437 = vadd.f32 %v5427, %v5435
    %v5438 = vtanh.pop %v5437
    %5440 = vrot.lane.b32.xlu0 %v5438, 64
    %v5441 = vpop.permute.xlu0 %5440
    %v5443 = vmul.f32 %v5425, %v5441
    %v5444 = vpack.c.bf16 %v5443, %v5443
    %v5446 = vsel %vm562, %v5444, 0
    %5448 = vmatprep.subr.bf16.mxu0 0
    %5449 = vmatpush1.bf16.msra.mxu0 0
    %5450 = vmatprep.subr.bf16.mxu0 0
    %5451 = vmatpush1.bf16.msra.mxu0 0
    %5452 = vmatprep.subr.bf16.mxu0 0
    %5453 = vmatpush1.bf16.msra.mxu0 0
    %5454 = vmatprep.subr.bf16.mxu0 0
    %5455 = vmatpush1.bf16.msra.mxu0 0
    %5456 = vmatprep.subr.bf16.mxu0 0
    %5457 = vmatpush1.bf16.msra.mxu0 %v4597
    %5458 = vmatprep.subr.bf16.mxu0 0
    %5459 = vmatpush1.bf16.msra.mxu0 %v4596
    %5460 = vmatprep.subr.bf16.mxu0 0
    %5461 = vmatpush1.bf16.msra.mxu0 %v4595
    %5462 = vmatprep.subr.bf16.mxu0 0
    %5463 = vmatpush1.bf16.msra.mxu0 %v4594
    %5464 = vmatprep.subr.bf16.mxu0 0
    %5465 = vmatpush2.bf16.msra.mxu0 0
    %5466 = vmatprep.subr.bf16.mxu0 0
    %5467 = vmatpush2.bf16.msra.mxu0 0
    %5468 = vmatprep.subr.bf16.mxu0 0
    %5469 = vmatpush2.bf16.msra.mxu0 0
    %5470 = vmatprep.subr.bf16.mxu0 0
    %5471 = vmatpush2.bf16.msra.mxu0 0
    %5472 = vmatprep.subr.bf16.mxu0 0
    %5473 = vmatpush2.bf16.msra.mxu0 0
    %5474 = vmatprep.subr.bf16.mxu0 0
    %5475 = vmatpush2.bf16.msra.mxu0 0
    %5476 = vmatprep.subr.bf16.mxu0 0
    %5477 = vmatpush2.bf16.msra.mxu0 0
    %5478 = vmatprep.subr.bf16.mxu0 0
    %5479 = vmatpush2.bf16.msra.mxu0 0
    %5480 = vmatprep.mubr.bf16.mxu0 0
    %5481 = vmatmul.mubr.bf16.gmra.mxu0 %v5446
    %v5482 = vpop.f32.mrf.mxu0
    %v5483 = vadd.f32 %v4576, %v5482
    %v5484 = vpop.f32.mrf.mxu0
    %v5485 = vpop.f32.mrf.mxu0
    %v5486 = vpop.f32.mrf.mxu0
    %5487 = vdwg.mxu0
    %s5488 = scalar_lea.vmem %s10, 6
    %5489 = vst [vmem:[%s5488] sm:$0x3] %v5483
    %v5490 = vsel %vm4647, %v5483, -inf
    %5491 = vmax.xlane.f32.xlu0 %v5490
    %v5492 = vpop.xlane.xlu0 %5491
    %vm5493 = vcmp.eq.f32.partialorder %v5483, %v5492
    %v5494 = vsel %vm5493, %v109, 128
    %v5495 = vsel %vm4647, %v5494, 2147483647
    %v5496 = vand.u32 %v5495, 65535
    %v5497 = vshra.s32 %v5495, 16
    %v5498 = vcvt.s32.f32 %v5496
    %v5499 = vcvt.s32.f32 %v5497
    %5500 = vmin.xlane.f32.xlu0 %v5499
    %v5501 = vpop.xlane.xlu0 %5500
    %vm5502 = vcmp.eq.f32.partialorder %v5499, %v5501
    %v5503 = vsel %vm5502, %v5498, inf
    %5504 = vmin.xlane.f32.xlu0 %v5503
    %v5505 = vpop.xlane.xlu0 %5504
    %v5506 = vcvt.f32.s32 %v5505
    %v5507 = vcvt.f32.s32 %v5501
    %v5508 = vshll.u32 %v5507, 16
    %v5509 = vadd.s32 %v5508, %v5506
    %vm5510 = vcmp.eq.s32.totalorder %v109, %v5509
    %v5511 = vsel %vm5510, 1, 0
    %v5512 = vcvt.s32.f32 %v5511
    %v5513 = vpack.c.bf16 %v5512, %v5512
    %5514 = vmatprep.subr.bf16.mxu0 0
    %5515 = vmatpush1.bf16.msra.mxu0 %v161
    %5516 = vmatprep.subr.bf16.mxu0 0
    %5517 = vmatpush1.bf16.msra.mxu0 %v160
    %5518 = vmatprep.subr.bf16.mxu0 0
    %5519 = vmatpush1.bf16.msra.mxu0 %v159
    %5520 = vmatprep.subr.bf16.mxu0 0
    %5521 = vmatpush1.bf16.msra.mxu0 %v158
    %5522 = vmatprep.subr.bf16.mxu0 0
    %5523 = vmatpush1.bf16.msra.mxu0 %v157
    %5524 = vmatprep.subr.bf16.mxu0 0
    %5525 = vmatpush1.bf16.msra.mxu0 %v156
    %5526 = vmatprep.subr.bf16.mxu0 0
    %5527 = vmatpush1.bf16.msra.mxu0 %v155
    %5528 = vmatprep.subr.bf16.mxu0 0
    %5529 = vmatpush1.bf16.msra.mxu0 %v154
    %5530 = vmatprep.subr.bf16.mxu0 0
    %5531 = vmatpush2.bf16.msra.mxu0 0
    %5532 = vmatprep.subr.bf16.mxu0 0
    %5533 = vmatpush2.bf16.msra.mxu0 0
    %5534 = vmatprep.subr.bf16.mxu0 0
    %5535 = vmatpush2.bf16.msra.mxu0 0
    %5536 = vmatprep.subr.bf16.mxu0 0
    %5537 = vmatpush2.bf16.msra.mxu0 0
    %5538 = vmatprep.subr.bf16.mxu0 0
    %5539 = vmatpush2.bf16.msra.mxu0 0
    %5540 = vmatprep.subr.bf16.mxu0 0
    %5541 = vmatpush2.bf16.msra.mxu0 0
    %5542 = vmatprep.subr.bf16.mxu0 0
    %5543 = vmatpush2.bf16.msra.mxu0 0
    %5544 = vmatprep.subr.bf16.mxu0 0
    %5545 = vmatpush2.bf16.msra.mxu0 0
    %5546 = vmatprep.mubr.bf16.mxu0 0
    %5547 = vmatmul.mubr.bf16.gmra.mxu0 %v5513
    %v5548 = vpop.f32.mrf.mxu0
    %v5549 = vadd.f32 0.0, %v5548
    %v5550 = vpop.f32.mrf.mxu0
    %v5551 = vpop.f32.mrf.mxu0
    %v5552 = vpop.f32.mrf.mxu0
    %5553 = vdwg.mxu0
    %5555 = vrot.lane.b32.xlu0 %v5212, 32
    %v5556 = vpop.permute.xlu0 %5555
    %v5558 = vsel %vm560, %v5549, %v5556
    %v5559 = vpack.c.bf16 %v5558, %v5558
    %v5561 = vsel %vm3992, %v5559, 0
    %5563 = vmatprep.subr.bf16.mxu0 0
    %5564 = vmatpush1.bf16.msra.mxu0 0
    %5565 = vmatprep.subr.bf16.mxu0 0
    %5566 = vmatpush1.bf16.msra.mxu0 0
    %5567 = vmatprep.subr.bf16.mxu0 %v3979
    %5568 = vmatpush1.bf16.msra.mxu0 %v3978
    %5569 = vmatprep.subr.bf16.mxu0 %v3977
    %5570 = vmatpush1.bf16.msra.mxu0 %v3976
    %5571 = vmatprep.subr.bf16.mxu0 %v3975
    %5572 = vmatpush1.bf16.msra.mxu0 %v3974
    %5573 = vmatprep.subr.bf16.mxu0 %v3973
    %5574 = vmatpush1.bf16.msra.mxu0 %v3972
    %5575 = vmatprep.subr.bf16.mxu0 %v3971
    %5576 = vmatpush1.bf16.msra.mxu0 %v3970
    %5577 = vmatprep.subr.bf16.mxu0 %v3969
    %5578 = vmatpush1.bf16.msra.mxu0 %v3968
    %5579 = vmatprep.subr.bf16.mxu0 0
    %5580 = vmatpush2.bf16.msra.mxu0 0
    %5581 = vmatprep.subr.bf16.mxu0 0
    %5582 = vmatpush2.bf16.msra.mxu0 0
    %5583 = vmatprep.subr.bf16.mxu0 0
    %5584 = vmatpush2.bf16.msra.mxu0 0
    %5585 = vmatprep.subr.bf16.mxu0 0
    %5586 = vmatpush2.bf16.msra.mxu0 0
    %5587 = vmatprep.subr.bf16.mxu0 0
    %5588 = vmatpush2.bf16.msra.mxu0 0
    %5589 = vmatprep.subr.bf16.mxu0 0
    %5590 = vmatpush2.bf16.msra.mxu0 0
    %5591 = vmatprep.subr.bf16.mxu0 0
    %5592 = vmatpush2.bf16.msra.mxu0 0
    %5593 = vmatprep.subr.bf16.mxu0 0
    %5594 = vmatpush2.bf16.msra.mxu0 0
    %5595 = vmatprep.mubr.bf16.mxu0 0
    %5596 = vmatmul.mubr.bf16.gmra.mxu0 %v5561
    %v5597 = vpop.f32.mrf.mxu0
    %v5598 = vadd.f32 %v3925, %v5597
    %v5599 = vpop.f32.mrf.mxu0
    %v5600 = vadd.f32 %v3929, %v5599
    %v5601 = vpop.f32.mrf.mxu0
    %v5602 = vpop.f32.mrf.mxu0
    %5603 = vdwg.mxu0
    %v5604 = vxor.u32 %v5598, 2147483648
    %v5605 = vxor.u32 %v5600, 2147483648
    %v5606 = vmul.f32 %v5604, 1.442695
    %v5607 = vpow.pop %v5606
    %v5608 = vmul.f32 %v5605, 1.442695
    %v5609 = vpow.pop %v5608
    %v5610 = vadd.f32 %v5607, 1.0
    %v5611 = vadd.f32 %v5609, 1.0
    %v5612 = vrcp.pop %v5610
    %v5613 = vmul.f32 1.0, %v5612
    %v5614 = vrcp.pop %v5611
    %v5615 = vmul.f32 1.0, %v5614
    %v5616 = vtanh.pop %v5600
    %v5617 = vmul.f32 %v5613, %v5206
    %5619 = vrot.lane.b32.xlu0 %v5616, 64
    %v5620 = vpop.permute.xlu0 %5619
    %v5622 = vmul.f32 %v5613, %v5620
    %5624 = vrot.lane.b32.xlu0 %v5622, 64
    %v5625 = vpop.permute.xlu0 %5624
    %v5627 = vadd.f32 %v5617, %v5625
    %v5628 = vtanh.pop %v5627
    %5630 = vrot.lane.b32.xlu0 %v5628, 64
    %v5631 = vpop.permute.xlu0 %5630
    %v5633 = vmul.f32 %v5615, %v5631
    %5635 = vrot.lane.b32.xlu0 %v5289, 64
    %v5636 = vpop.permute.xlu0 %5635
    %v5638 = vsel %vm562, %v5633, %v5636
    %v5639 = vpack.c.bf16 %v5638, %v5638
    %5640 = vmatprep.subr.bf16.mxu0 %v4147
    %5641 = vmatpush1.bf16.msra.mxu0 %v4146
    %5642 = vmatprep.subr.bf16.mxu0 %v4145
    %5643 = vmatpush1.bf16.msra.mxu0 %v4144
    %5644 = vmatprep.subr.bf16.mxu0 %v4143
    %5645 = vmatpush1.bf16.msra.mxu0 %v4142
    %5646 = vmatprep.subr.bf16.mxu0 %v4141
    %5647 = vmatpush1.bf16.msra.mxu0 %v4140
    %5648 = vmatprep.subr.bf16.mxu0 %v4139
    %5649 = vmatpush1.bf16.msra.mxu0 %v4138
    %5650 = vmatprep.subr.bf16.mxu0 %v4137
    %5651 = vmatpush1.bf16.msra.mxu0 %v4136
    %5652 = vmatprep.subr.bf16.mxu0 %v4135
    %5653 = vmatpush1.bf16.msra.mxu0 %v4134
    %5654 = vmatprep.subr.bf16.mxu0 %v4133
    %5655 = vmatpush1.bf16.msra.mxu0 %v4132
    %5656 = vmatprep.subr.bf16.mxu0 0
    %5657 = vmatpush2.bf16.msra.mxu0 0
    %5658 = vmatprep.subr.bf16.mxu0 0
    %5659 = vmatpush2.bf16.msra.mxu0 0
    %5660 = vmatprep.subr.bf16.mxu0 0
    %5661 = vmatpush2.bf16.msra.mxu0 0
    %5662 = vmatprep.subr.bf16.mxu0 0
    %5663 = vmatpush2.bf16.msra.mxu0 0
    %5664 = vmatprep.subr.bf16.mxu0 0
    %5665 = vmatpush2.bf16.msra.mxu0 0
    %5666 = vmatprep.subr.bf16.mxu0 0
    %5667 = vmatpush2.bf16.msra.mxu0 0
    %5668 = vmatprep.subr.bf16.mxu0 0
    %5669 = vmatpush2.bf16.msra.mxu0 0
    %5670 = vmatprep.subr.bf16.mxu0 0
    %5671 = vmatpush2.bf16.msra.mxu0 0
    %5672 = vmatprep.mubr.bf16.mxu0 0
    %5673 = vmatmul.mubr.bf16.gmra.mxu0 %v5639
    %v5674 = vpop.f32.mrf.mxu0
    %v5675 = vadd.f32 %v4077, %v5674
    %v5676 = vpop.f32.mrf.mxu0
    %v5677 = vadd.f32 %v4081, %v5676
    %v5678 = vpop.f32.mrf.mxu0
    %v5679 = vpop.f32.mrf.mxu0
    %5680 = vdwg.mxu0
    %v5681 = vxor.u32 %v5675, 2147483648
    %v5682 = vxor.u32 %v5677, 2147483648
    %v5683 = vmul.f32 %v5681, 1.442695
    %v5684 = vpow.pop %v5683
    %v5685 = vmul.f32 %v5682, 1.442695
    %v5686 = vpow.pop %v5685
    %v5687 = vadd.f32 %v5684, 1.0
    %v5688 = vadd.f32 %v5686, 1.0
    %v5689 = vrcp.pop %v5687
    %v5690 = vmul.f32 1.0, %v5689
    %v5691 = vrcp.pop %v5688
    %v5692 = vmul.f32 1.0, %v5691
    %v5693 = vtanh.pop %v5677
    %v5694 = vmul.f32 %v5690, %v5283
    %5696 = vrot.lane.b32.xlu0 %v5693, 64
    %v5697 = vpop.permute.xlu0 %5696
    %v5699 = vmul.f32 %v5690, %v5697
    %5701 = vrot.lane.b32.xlu0 %v5699, 64
    %v5702 = vpop.permute.xlu0 %5701
    %v5704 = vadd.f32 %v5694, %v5702
    %v5705 = vtanh.pop %v5704
    %5707 = vrot.lane.b32.xlu0 %v5705, 64
    %v5708 = vpop.permute.xlu0 %5707
    %v5710 = vmul.f32 %v5692, %v5708
    %5712 = vrot.lane.b32.xlu0 %v5366, 64
    %v5713 = vpop.permute.xlu0 %5712
    %v5715 = vsel %vm562, %v5710, %v5713
    %v5716 = vpack.c.bf16 %v5715, %v5715
    %5717 = vmatprep.subr.bf16.mxu0 %v4315
    %5718 = vmatpush1.bf16.msra.mxu0 %v4314
    %5719 = vmatprep.subr.bf16.mxu0 %v4313
    %5720 = vmatpush1.bf16.msra.mxu0 %v4312
    %5721 = vmatprep.subr.bf16.mxu0 %v4311
    %5722 = vmatpush1.bf16.msra.mxu0 %v4310
    %5723 = vmatprep.subr.bf16.mxu0 %v4309
    %5724 = vmatpush1.bf16.msra.mxu0 %v4308
    %5725 = vmatprep.subr.bf16.mxu0 %v4307
    %5726 = vmatpush1.bf16.msra.mxu0 %v4306
    %5727 = vmatprep.subr.bf16.mxu0 %v4305
    %5728 = vmatpush1.bf16.msra.mxu0 %v4304
    %5729 = vmatprep.subr.bf16.mxu0 %v4303
    %5730 = vmatpush1.bf16.msra.mxu0 %v4302
    %5731 = vmatprep.subr.bf16.mxu0 %v4301
    %5732 = vmatpush1.bf16.msra.mxu0 %v4300
    %5733 = vmatprep.subr.bf16.mxu0 0
    %5734 = vmatpush2.bf16.msra.mxu0 0
    %5735 = vmatprep.subr.bf16.mxu0 0
    %5736 = vmatpush2.bf16.msra.mxu0 0
    %5737 = vmatprep.subr.bf16.mxu0 0
    %5738 = vmatpush2.bf16.msra.mxu0 0
    %5739 = vmatprep.subr.bf16.mxu0 0
    %5740 = vmatpush2.bf16.msra.mxu0 0
    %5741 = vmatprep.subr.bf16.mxu0 0
    %5742 = vmatpush2.bf16.msra.mxu0 0
    %5743 = vmatprep.subr.bf16.mxu0 0
    %5744 = vmatpush2.bf16.msra.mxu0 0
    %5745 = vmatprep.subr.bf16.mxu0 0
    %5746 = vmatpush2.bf16.msra.mxu0 0
    %5747 = vmatprep.subr.bf16.mxu0 0
    %5748 = vmatpush2.bf16.msra.mxu0 0
    %5749 = vmatprep.mubr.bf16.mxu0 0
    %5750 = vmatmul.mubr.bf16.gmra.mxu0 %v5716
    %v5751 = vpop.f32.mrf.mxu0
    %v5752 = vadd.f32 %v4245, %v5751
    %v5753 = vpop.f32.mrf.mxu0
    %v5754 = vadd.f32 %v4249, %v5753
    %v5755 = vpop.f32.mrf.mxu0
    %v5756 = vpop.f32.mrf.mxu0
    %5757 = vdwg.mxu0
    %v5758 = vxor.u32 %v5752, 2147483648
    %v5759 = vxor.u32 %v5754, 2147483648
    %v5760 = vmul.f32 %v5758, 1.442695
    %v5761 = vpow.pop %v5760
    %v5762 = vmul.f32 %v5759, 1.442695
    %v5763 = vpow.pop %v5762
    %v5764 = vadd.f32 %v5761, 1.0
    %v5765 = vadd.f32 %v5763, 1.0
    %v5766 = vrcp.pop %v5764
    %v5767 = vmul.f32 1.0, %v5766
    %v5768 = vrcp.pop %v5765
    %v5769 = vmul.f32 1.0, %v5768
    %v5770 = vtanh.pop %v5754
    %v5771 = vmul.f32 %v5767, %v5360
    %5773 = vrot.lane.b32.xlu0 %v5770, 64
    %v5774 = vpop.permute.xlu0 %5773
    %v5776 = vmul.f32 %v5767, %v5774
    %5778 = vrot.lane.b32.xlu0 %v5776, 64
    %v5779 = vpop.permute.xlu0 %5778
    %v5781 = vadd.f32 %v5771, %v5779
    %v5782 = vtanh.pop %v5781
    %5784 = vrot.lane.b32.xlu0 %v5782, 64
    %v5785 = vpop.permute.xlu0 %5784
    %v5787 = vmul.f32 %v5769, %v5785
    %5789 = vrot.lane.b32.xlu0 %v5443, 64
    %v5790 = vpop.permute.xlu0 %5789
    %v5792 = vsel %vm562, %v5787, %v5790
    %v5793 = vpack.c.bf16 %v5792, %v5792
    %5794 = vmatprep.subr.bf16.mxu0 %v4483
    %5795 = vmatpush1.bf16.msra.mxu0 %v4482
    %5796 = vmatprep.subr.bf16.mxu0 %v4481
    %5797 = vmatpush1.bf16.msra.mxu0 %v4480
    %5798 = vmatprep.subr.bf16.mxu0 %v4479
    %5799 = vmatpush1.bf16.msra.mxu0 %v4478
    %5800 = vmatprep.subr.bf16.mxu0 %v4477
    %5801 = vmatpush1.bf16.msra.mxu0 %v4476
    %5802 = vmatprep.subr.bf16.mxu0 %v4475
    %5803 = vmatpush1.bf16.msra.mxu0 %v4474
    %5804 = vmatprep.subr.bf16.mxu0 %v4473
    %5805 = vmatpush1.bf16.msra.mxu0 %v4472
    %5806 = vmatprep.subr.bf16.mxu0 %v4471
    %5807 = vmatpush1.bf16.msra.mxu0 %v4470
    %5808 = vmatprep.subr.bf16.mxu0 %v4469
    %5809 = vmatpush1.bf16.msra.mxu0 %v4468
    %5810 = vmatprep.subr.bf16.mxu0 0
    %5811 = vmatpush2.bf16.msra.mxu0 0
    %5812 = vmatprep.subr.bf16.mxu0 0
    %5813 = vmatpush2.bf16.msra.mxu0 0
    %5814 = vmatprep.subr.bf16.mxu0 0
    %5815 = vmatpush2.bf16.msra.mxu0 0
    %5816 = vmatprep.subr.bf16.mxu0 0
    %5817 = vmatpush2.bf16.msra.mxu0 0
    %5818 = vmatprep.subr.bf16.mxu0 0
    %5819 = vmatpush2.bf16.msra.mxu0 0
    %5820 = vmatprep.subr.bf16.mxu0 0
    %5821 = vmatpush2.bf16.msra.mxu0 0
    %5822 = vmatprep.subr.bf16.mxu0 0
    %5823 = vmatpush2.bf16.msra.mxu0 0
    %5824 = vmatprep.subr.bf16.mxu0 0
    %5825 = vmatpush2.bf16.msra.mxu0 0
    %5826 = vmatprep.mubr.bf16.mxu0 0
    %5827 = vmatmul.mubr.bf16.gmra.mxu0 %v5793
    %v5828 = vpop.f32.mrf.mxu0
    %v5829 = vadd.f32 %v4413, %v5828
    %v5830 = vpop.f32.mrf.mxu0
    %v5831 = vadd.f32 %v4417, %v5830
    %v5832 = vpop.f32.mrf.mxu0
    %v5833 = vpop.f32.mrf.mxu0
    %5834 = vdwg.mxu0
    %v5835 = vxor.u32 %v5829, 2147483648
    %v5836 = vxor.u32 %v5831, 2147483648
    %v5837 = vmul.f32 %v5835, 1.442695
    %v5838 = vpow.pop %v5837
    %v5839 = vmul.f32 %v5836, 1.442695
    %v5840 = vpow.pop %v5839
    %v5841 = vadd.f32 %v5838, 1.0
    %v5842 = vadd.f32 %v5840, 1.0
    %v5843 = vrcp.pop %v5841
    %v5844 = vmul.f32 1.0, %v5843
    %v5845 = vrcp.pop %v5842
    %v5846 = vmul.f32 1.0, %v5845
    %v5847 = vtanh.pop %v5831
    %v5848 = vmul.f32 %v5844, %v5437
    %5850 = vrot.lane.b32.xlu0 %v5847, 64
    %v5851 = vpop.permute.xlu0 %5850
    %v5853 = vmul.f32 %v5844, %v5851
    %5855 = vrot.lane.b32.xlu0 %v5853, 64
    %v5856 = vpop.permute.xlu0 %5855
    %v5858 = vadd.f32 %v5848, %v5856
    %v5859 = vtanh.pop %v5858
    %5861 = vrot.lane.b32.xlu0 %v5859, 64
    %v5862 = vpop.permute.xlu0 %5861
    %v5864 = vmul.f32 %v5846, %v5862
    %v5865 = vpack.c.bf16 %v5864, %v5864
    %v5867 = vsel %vm562, %v5865, 0
    %5869 = vmatprep.subr.bf16.mxu0 0
    %5870 = vmatpush1.bf16.msra.mxu0 0
    %5871 = vmatprep.subr.bf16.mxu0 0
    %5872 = vmatpush1.bf16.msra.mxu0 0
    %5873 = vmatprep.subr.bf16.mxu0 0
    %5874 = vmatpush1.bf16.msra.mxu0 0
    %5875 = vmatprep.subr.bf16.mxu0 0
    %5876 = vmatpush1.bf16.msra.mxu0 0
    %5877 = vmatprep.subr.bf16.mxu0 0
    %5878 = vmatpush1.bf16.msra.mxu0 %v4597
    %5879 = vmatprep.subr.bf16.mxu0 0
    %5880 = vmatpush1.bf16.msra.mxu0 %v4596
    %5881 = vmatprep.subr.bf16.mxu0 0
    %5882 = vmatpush1.bf16.msra.mxu0 %v4595
    %5883 = vmatprep.subr.bf16.mxu0 0
    %5884 = vmatpush1.bf16.msra.mxu0 %v4594
    %5885 = vmatprep.subr.bf16.mxu0 0
    %5886 = vmatpush2.bf16.msra.mxu0 0
    %5887 = vmatprep.subr.bf16.mxu0 0
    %5888 = vmatpush2.bf16.msra.mxu0 0
    %5889 = vmatprep.subr.bf16.mxu0 0
    %5890 = vmatpush2.bf16.msra.mxu0 0
    %5891 = vmatprep.subr.bf16.mxu0 0
    %5892 = vmatpush2.bf16.msra.mxu0 0
    %5893 = vmatprep.subr.bf16.mxu0 0
    %5894 = vmatpush2.bf16.msra.mxu0 0
    %5895 = vmatprep.subr.bf16.mxu0 0
    %5896 = vmatpush2.bf16.msra.mxu0 0
    %5897 = vmatprep.subr.bf16.mxu0 0
    %5898 = vmatpush2.bf16.msra.mxu0 0
    %5899 = vmatprep.subr.bf16.mxu0 0
    %5900 = vmatpush2.bf16.msra.mxu0 0
    %5901 = vmatprep.mubr.bf16.mxu0 0
    %5902 = vmatmul.mubr.bf16.gmra.mxu0 %v5867
    %v5903 = vpop.f32.mrf.mxu0
    %v5904 = vadd.f32 %v4576, %v5903
    %v5905 = vpop.f32.mrf.mxu0
    %v5906 = vpop.f32.mrf.mxu0
    %v5907 = vpop.f32.mrf.mxu0
    %5908 = vdwg.mxu0
    %s5909 = scalar_lea.vmem %s10, 8
    %5910 = vst [vmem:[%s5909] sm:$0x3] %v5904
    %v5911 = vsel %vm4647, %v5904, -inf
    %5912 = vmax.xlane.f32.xlu0 %v5911
    %v5913 = vpop.xlane.xlu0 %5912
    %vm5914 = vcmp.eq.f32.partialorder %v5904, %v5913
    %v5915 = vsel %vm5914, %v109, 128
    %v5916 = vsel %vm4647, %v5915, 2147483647
    %v5917 = vand.u32 %v5916, 65535
    %v5918 = vshra.s32 %v5916, 16
    %v5919 = vcvt.s32.f32 %v5917
    %v5920 = vcvt.s32.f32 %v5918
    %5921 = vmin.xlane.f32.xlu0 %v5920
    %v5922 = vpop.xlane.xlu0 %5921
    %vm5923 = vcmp.eq.f32.partialorder %v5920, %v5922
    %v5924 = vsel %vm5923, %v5919, inf
    %5925 = vmin.xlane.f32.xlu0 %v5924
    %v5926 = vpop.xlane.xlu0 %5925
    %v5927 = vcvt.f32.s32 %v5926
    %v5928 = vcvt.f32.s32 %v5922
    %v5929 = vshll.u32 %v5928, 16
    %v5930 = vadd.s32 %v5929, %v5927
    %vm5931 = vcmp.eq.s32.totalorder %v109, %v5930
    %v5932 = vsel %vm5931, 1, 0
    %v5933 = vcvt.s32.f32 %v5932
    %v5934 = vpack.c.bf16 %v5933, %v5933
    %5935 = vmatprep.subr.bf16.mxu0 0
    %5936 = vmatpush1.bf16.msra.mxu0 %v161
    %5937 = vmatprep.subr.bf16.mxu0 0
    %5938 = vmatpush1.bf16.msra.mxu0 %v160
    %5939 = vmatprep.subr.bf16.mxu0 0
    %5940 = vmatpush1.bf16.msra.mxu0 %v159
    %5941 = vmatprep.subr.bf16.mxu0 0
    %5942 = vmatpush1.bf16.msra.mxu0 %v158
    %5943 = vmatprep.subr.bf16.mxu0 0
    %5944 = vmatpush1.bf16.msra.mxu0 %v157
    %5945 = vmatprep.subr.bf16.mxu0 0
    %5946 = vmatpush1.bf16.msra.mxu0 %v156
    %5947 = vmatprep.subr.bf16.mxu0 0
    %5948 = vmatpush1.bf16.msra.mxu0 %v155
    %5949 = vmatprep.subr.bf16.mxu0 0
    %5950 = vmatpush1.bf16.msra.mxu0 %v154
    %5951 = vmatprep.subr.bf16.mxu0 0
    %5952 = vmatpush2.bf16.msra.mxu0 0
    %5953 = vmatprep.subr.bf16.mxu0 0
    %5954 = vmatpush2.bf16.msra.mxu0 0
    %5955 = vmatprep.subr.bf16.mxu0 0
    %5956 = vmatpush2.bf16.msra.mxu0 0
    %5957 = vmatprep.subr.bf16.mxu0 0
    %5958 = vmatpush2.bf16.msra.mxu0 0
    %5959 = vmatprep.subr.bf16.mxu0 0
    %5960 = vmatpush2.bf16.msra.mxu0 0
    %5961 = vmatprep.subr.bf16.mxu0 0
    %5962 = vmatpush2.bf16.msra.mxu0 0
    %5963 = vmatprep.subr.bf16.mxu0 0
    %5964 = vmatpush2.bf16.msra.mxu0 0
    %5965 = vmatprep.subr.bf16.mxu0 0
    %5966 = vmatpush2.bf16.msra.mxu0 0
    %5967 = vmatprep.mubr.bf16.mxu0 0
    %5968 = vmatmul.mubr.bf16.gmra.mxu0 %v5934
    %v5969 = vpop.f32.mrf.mxu0
    %v5970 = vadd.f32 0.0, %v5969
    %v5971 = vpop.f32.mrf.mxu0
    %v5972 = vpop.f32.mrf.mxu0
    %v5973 = vpop.f32.mrf.mxu0
    %5974 = vdwg.mxu0
    %5976 = vrot.lane.b32.xlu0 %v5633, 32
    %v5977 = vpop.permute.xlu0 %5976
    %v5979 = vsel %vm560, %v5970, %v5977
    %v5980 = vpack.c.bf16 %v5979, %v5979
    %v5982 = vsel %vm3992, %v5980, 0
    %5984 = vmatprep.subr.bf16.mxu0 0
    %5985 = vmatpush1.bf16.msra.mxu0 0
    %5986 = vmatprep.subr.bf16.mxu0 0
    %5987 = vmatpush1.bf16.msra.mxu0 0
    %5988 = vmatprep.subr.bf16.mxu0 %v3979
    %5989 = vmatpush1.bf16.msra.mxu0 %v3978
    %5990 = vmatprep.subr.bf16.mxu0 %v3977
    %5991 = vmatpush1.bf16.msra.mxu0 %v3976
    %5992 = vmatprep.subr.bf16.mxu0 %v3975
    %5993 = vmatpush1.bf16.msra.mxu0 %v3974
    %5994 = vmatprep.subr.bf16.mxu0 %v3973
    %5995 = vmatpush1.bf16.msra.mxu0 %v3972
    %5996 = vmatprep.subr.bf16.mxu0 %v3971
    %5997 = vmatpush1.bf16.msra.mxu0 %v3970
    %5998 = vmatprep.subr.bf16.mxu0 %v3969
    %5999 = vmatpush1.bf16.msra.mxu0 %v3968
    %6000 = vmatprep.subr.bf16.mxu0 0
    %6001 = vmatpush2.bf16.msra.mxu0 0
    %6002 = vmatprep.subr.bf16.mxu0 0
    %6003 = vmatpush2.bf16.msra.mxu0 0
    %6004 = vmatprep.subr.bf16.mxu0 0
    %6005 = vmatpush2.bf16.msra.mxu0 0
    %6006 = vmatprep.subr.bf16.mxu0 0
    %6007 = vmatpush2.bf16.msra.mxu0 0
    %6008 = vmatprep.subr.bf16.mxu0 0
    %6009 = vmatpush2.bf16.msra.mxu0 0
    %6010 = vmatprep.subr.bf16.mxu0 0
    %6011 = vmatpush2.bf16.msra.mxu0 0
    %6012 = vmatprep.subr.bf16.mxu0 0
    %6013 = vmatpush2.bf16.msra.mxu0 0
    %6014 = vmatprep.subr.bf16.mxu0 0
    %6015 = vmatpush2.bf16.msra.mxu0 0
    %6016 = vmatprep.mubr.bf16.mxu0 0
    %6017 = vmatmul.mubr.bf16.gmra.mxu0 %v5982
    %v6018 = vpop.f32.mrf.mxu0
    %v6019 = vadd.f32 %v3925, %v6018
    %v6020 = vpop.f32.mrf.mxu0
    %v6021 = vadd.f32 %v3929, %v6020
    %v6022 = vpop.f32.mrf.mxu0
    %v6023 = vpop.f32.mrf.mxu0
    %6024 = vdwg.mxu0
    %v6025 = vxor.u32 %v6019, 2147483648
    %v6026 = vxor.u32 %v6021, 2147483648
    %v6027 = vmul.f32 %v6025, 1.442695
    %v6028 = vpow.pop %v6027
    %v6029 = vmul.f32 %v6026, 1.442695
    %v6030 = vpow.pop %v6029
    %v6031 = vadd.f32 %v6028, 1.0
    %v6032 = vadd.f32 %v6030, 1.0
    %v6033 = vrcp.pop %v6031
    %v6034 = vmul.f32 1.0, %v6033
    %v6035 = vrcp.pop %v6032
    %v6036 = vmul.f32 1.0, %v6035
    %v6037 = vtanh.pop %v6021
    %v6038 = vmul.f32 %v6034, %v5627
    %6040 = vrot.lane.b32.xlu0 %v6037, 64
    %v6041 = vpop.permute.xlu0 %6040
    %v6043 = vmul.f32 %v6034, %v6041
    %6045 = vrot.lane.b32.xlu0 %v6043, 64
    %v6046 = vpop.permute.xlu0 %6045
    %v6048 = vadd.f32 %v6038, %v6046
    %v6049 = vtanh.pop %v6048
    %6051 = vrot.lane.b32.xlu0 %v6049, 64
    %v6052 = vpop.permute.xlu0 %6051
    %v6054 = vmul.f32 %v6036, %v6052
    %6056 = vrot.lane.b32.xlu0 %v5710, 64
    %v6057 = vpop.permute.xlu0 %6056
    %v6059 = vsel %vm562, %v6054, %v6057
    %v6060 = vpack.c.bf16 %v6059, %v6059
    %6061 = vmatprep.subr.bf16.mxu0 %v4147
    %6062 = vmatpush1.bf16.msra.mxu0 %v4146
    %6063 = vmatprep.subr.bf16.mxu0 %v4145
    %6064 = vmatpush1.bf16.msra.mxu0 %v4144
    %6065 = vmatprep.subr.bf16.mxu0 %v4143
    %6066 = vmatpush1.bf16.msra.mxu0 %v4142
    %6067 = vmatprep.subr.bf16.mxu0 %v4141
    %6068 = vmatpush1.bf16.msra.mxu0 %v4140
    %6069 = vmatprep.subr.bf16.mxu0 %v4139
    %6070 = vmatpush1.bf16.msra.mxu0 %v4138
    %6071 = vmatprep.subr.bf16.mxu0 %v4137
    %6072 = vmatpush1.bf16.msra.mxu0 %v4136
    %6073 = vmatprep.subr.bf16.mxu0 %v4135
    %6074 = vmatpush1.bf16.msra.mxu0 %v4134
    %6075 = vmatprep.subr.bf16.mxu0 %v4133
    %6076 = vmatpush1.bf16.msra.mxu0 %v4132
    %6077 = vmatprep.subr.bf16.mxu0 0
    %6078 = vmatpush2.bf16.msra.mxu0 0
    %6079 = vmatprep.subr.bf16.mxu0 0
    %6080 = vmatpush2.bf16.msra.mxu0 0
    %6081 = vmatprep.subr.bf16.mxu0 0
    %6082 = vmatpush2.bf16.msra.mxu0 0
    %6083 = vmatprep.subr.bf16.mxu0 0
    %6084 = vmatpush2.bf16.msra.mxu0 0
    %6085 = vmatprep.subr.bf16.mxu0 0
    %6086 = vmatpush2.bf16.msra.mxu0 0
    %6087 = vmatprep.subr.bf16.mxu0 0
    %6088 = vmatpush2.bf16.msra.mxu0 0
    %6089 = vmatprep.subr.bf16.mxu0 0
    %6090 = vmatpush2.bf16.msra.mxu0 0
    %6091 = vmatprep.subr.bf16.mxu0 0
    %6092 = vmatpush2.bf16.msra.mxu0 0
    %6093 = vmatprep.mubr.bf16.mxu0 0
    %6094 = vmatmul.mubr.bf16.gmra.mxu0 %v6060
    %v6095 = vpop.f32.mrf.mxu0
    %v6096 = vadd.f32 %v4077, %v6095
    %v6097 = vpop.f32.mrf.mxu0
    %v6098 = vadd.f32 %v4081, %v6097
    %v6099 = vpop.f32.mrf.mxu0
    %v6100 = vpop.f32.mrf.mxu0
    %6101 = vdwg.mxu0
    %v6102 = vxor.u32 %v6096, 2147483648
    %v6103 = vxor.u32 %v6098, 2147483648
    %v6104 = vmul.f32 %v6102, 1.442695
    %v6105 = vpow.pop %v6104
    %v6106 = vmul.f32 %v6103, 1.442695
    %v6107 = vpow.pop %v6106
    %v6108 = vadd.f32 %v6105, 1.0
    %v6109 = vadd.f32 %v6107, 1.0
    %v6110 = vrcp.pop %v6108
    %v6111 = vmul.f32 1.0, %v6110
    %v6112 = vrcp.pop %v6109
    %v6113 = vmul.f32 1.0, %v6112
    %v6114 = vtanh.pop %v6098
    %v6115 = vmul.f32 %v6111, %v5704
    %6117 = vrot.lane.b32.xlu0 %v6114, 64
    %v6118 = vpop.permute.xlu0 %6117
    %v6120 = vmul.f32 %v6111, %v6118
    %6122 = vrot.lane.b32.xlu0 %v6120, 64
    %v6123 = vpop.permute.xlu0 %6122
    %v6125 = vadd.f32 %v6115, %v6123
    %v6126 = vtanh.pop %v6125
    %6128 = vrot.lane.b32.xlu0 %v6126, 64
    %v6129 = vpop.permute.xlu0 %6128
    %v6131 = vmul.f32 %v6113, %v6129
    %6133 = vrot.lane.b32.xlu0 %v5787, 64
    %v6134 = vpop.permute.xlu0 %6133
    %v6136 = vsel %vm562, %v6131, %v6134
    %v6137 = vpack.c.bf16 %v6136, %v6136
    %6138 = vmatprep.subr.bf16.mxu0 %v4315
    %6139 = vmatpush1.bf16.msra.mxu0 %v4314
    %6140 = vmatprep.subr.bf16.mxu0 %v4313
    %6141 = vmatpush1.bf16.msra.mxu0 %v4312
    %6142 = vmatprep.subr.bf16.mxu0 %v4311
    %6143 = vmatpush1.bf16.msra.mxu0 %v4310
    %6144 = vmatprep.subr.bf16.mxu0 %v4309
    %6145 = vmatpush1.bf16.msra.mxu0 %v4308
    %6146 = vmatprep.subr.bf16.mxu0 %v4307
    %6147 = vmatpush1.bf16.msra.mxu0 %v4306
    %6148 = vmatprep.subr.bf16.mxu0 %v4305
    %6149 = vmatpush1.bf16.msra.mxu0 %v4304
    %6150 = vmatprep.subr.bf16.mxu0 %v4303
    %6151 = vmatpush1.bf16.msra.mxu0 %v4302
    %6152 = vmatprep.subr.bf16.mxu0 %v4301
    %6153 = vmatpush1.bf16.msra.mxu0 %v4300
    %6154 = vmatprep.subr.bf16.mxu0 0
    %6155 = vmatpush2.bf16.msra.mxu0 0
    %6156 = vmatprep.subr.bf16.mxu0 0
    %6157 = vmatpush2.bf16.msra.mxu0 0
    %6158 = vmatprep.subr.bf16.mxu0 0
    %6159 = vmatpush2.bf16.msra.mxu0 0
    %6160 = vmatprep.subr.bf16.mxu0 0
    %6161 = vmatpush2.bf16.msra.mxu0 0
    %6162 = vmatprep.subr.bf16.mxu0 0
    %6163 = vmatpush2.bf16.msra.mxu0 0
    %6164 = vmatprep.subr.bf16.mxu0 0
    %6165 = vmatpush2.bf16.msra.mxu0 0
    %6166 = vmatprep.subr.bf16.mxu0 0
    %6167 = vmatpush2.bf16.msra.mxu0 0
    %6168 = vmatprep.subr.bf16.mxu0 0
    %6169 = vmatpush2.bf16.msra.mxu0 0
    %6170 = vmatprep.mubr.bf16.mxu0 0
    %6171 = vmatmul.mubr.bf16.gmra.mxu0 %v6137
    %v6172 = vpop.f32.mrf.mxu0
    %v6173 = vadd.f32 %v4245, %v6172
    %v6174 = vpop.f32.mrf.mxu0
    %v6175 = vadd.f32 %v4249, %v6174
    %v6176 = vpop.f32.mrf.mxu0
    %v6177 = vpop.f32.mrf.mxu0
    %6178 = vdwg.mxu0
    %v6179 = vxor.u32 %v6173, 2147483648
    %v6180 = vxor.u32 %v6175, 2147483648
    %v6181 = vmul.f32 %v6179, 1.442695
    %v6182 = vpow.pop %v6181
    %v6183 = vmul.f32 %v6180, 1.442695
    %v6184 = vpow.pop %v6183
    %v6185 = vadd.f32 %v6182, 1.0
    %v6186 = vadd.f32 %v6184, 1.0
    %v6187 = vrcp.pop %v6185
    %v6188 = vmul.f32 1.0, %v6187
    %v6189 = vrcp.pop %v6186
    %v6190 = vmul.f32 1.0, %v6189
    %v6191 = vtanh.pop %v6175
    %v6192 = vmul.f32 %v6188, %v5781
    %6194 = vrot.lane.b32.xlu0 %v6191, 64
    %v6195 = vpop.permute.xlu0 %6194
    %v6197 = vmul.f32 %v6188, %v6195
    %6199 = vrot.lane.b32.xlu0 %v6197, 64
    %v6200 = vpop.permute.xlu0 %6199
    %v6202 = vadd.f32 %v6192, %v6200
    %v6203 = vtanh.pop %v6202
    %6205 = vrot.lane.b32.xlu0 %v6203, 64
    %v6206 = vpop.permute.xlu0 %6205
    %v6208 = vmul.f32 %v6190, %v6206
    %6210 = vrot.lane.b32.xlu0 %v5864, 64
    %v6211 = vpop.permute.xlu0 %6210
    %v6213 = vsel %vm562, %v6208, %v6211
    %v6214 = vpack.c.bf16 %v6213, %v6213
    %6215 = vmatprep.subr.bf16.mxu0 %v4483
    %6216 = vmatpush1.bf16.msra.mxu0 %v4482
    %6217 = vmatprep.subr.bf16.mxu0 %v4481
    %6218 = vmatpush1.bf16.msra.mxu0 %v4480
    %6219 = vmatprep.subr.bf16.mxu0 %v4479
    %6220 = vmatpush1.bf16.msra.mxu0 %v4478
    %6221 = vmatprep.subr.bf16.mxu0 %v4477
    %6222 = vmatpush1.bf16.msra.mxu0 %v4476
    %6223 = vmatprep.subr.bf16.mxu0 %v4475
    %6224 = vmatpush1.bf16.msra.mxu0 %v4474
    %6225 = vmatprep.subr.bf16.mxu0 %v4473
    %6226 = vmatpush1.bf16.msra.mxu0 %v4472
    %6227 = vmatprep.subr.bf16.mxu0 %v4471
    %6228 = vmatpush1.bf16.msra.mxu0 %v4470
    %6229 = vmatprep.subr.bf16.mxu0 %v4469
    %6230 = vmatpush1.bf16.msra.mxu0 %v4468
    %6231 = vmatprep.subr.bf16.mxu0 0
    %6232 = vmatpush2.bf16.msra.mxu0 0
    %6233 = vmatprep.subr.bf16.mxu0 0
    %6234 = vmatpush2.bf16.msra.mxu0 0
    %6235 = vmatprep.subr.bf16.mxu0 0
    %6236 = vmatpush2.bf16.msra.mxu0 0
    %6237 = vmatprep.subr.bf16.mxu0 0
    %6238 = vmatpush2.bf16.msra.mxu0 0
    %6239 = vmatprep.subr.bf16.mxu0 0
    %6240 = vmatpush2.bf16.msra.mxu0 0
    %6241 = vmatprep.subr.bf16.mxu0 0
    %6242 = vmatpush2.bf16.msra.mxu0 0
    %6243 = vmatprep.subr.bf16.mxu0 0
    %6244 = vmatpush2.bf16.msra.mxu0 0
    %6245 = vmatprep.subr.bf16.mxu0 0
    %6246 = vmatpush2.bf16.msra.mxu0 0
    %6247 = vmatprep.mubr.bf16.mxu0 0
    %6248 = vmatmul.mubr.bf16.gmra.mxu0 %v6214
    %v6249 = vpop.f32.mrf.mxu0
    %v6250 = vadd.f32 %v4413, %v6249
    %v6251 = vpop.f32.mrf.mxu0
    %v6252 = vadd.f32 %v4417, %v6251
    %v6253 = vpop.f32.mrf.mxu0
    %v6254 = vpop.f32.mrf.mxu0
    %6255 = vdwg.mxu0
    %v6256 = vxor.u32 %v6250, 2147483648
    %v6257 = vxor.u32 %v6252, 2147483648
    %v6258 = vmul.f32 %v6256, 1.442695
    %v6259 = vpow.pop %v6258
    %v6260 = vmul.f32 %v6257, 1.442695
    %v6261 = vpow.pop %v6260
    %v6262 = vadd.f32 %v6259, 1.0
    %v6263 = vadd.f32 %v6261, 1.0
    %v6264 = vrcp.pop %v6262
    %v6265 = vmul.f32 1.0, %v6264
    %v6266 = vrcp.pop %v6263
    %v6267 = vmul.f32 1.0, %v6266
    %v6268 = vtanh.pop %v6252
    %v6269 = vmul.f32 %v6265, %v5858
    %6271 = vrot.lane.b32.xlu0 %v6268, 64
    %v6272 = vpop.permute.xlu0 %6271
    %v6274 = vmul.f32 %v6265, %v6272
    %6276 = vrot.lane.b32.xlu0 %v6274, 64
    %v6277 = vpop.permute.xlu0 %6276
    %v6279 = vadd.f32 %v6269, %v6277
    %v6280 = vtanh.pop %v6279
    %6282 = vrot.lane.b32.xlu0 %v6280, 64
    %v6283 = vpop.permute.xlu0 %6282
    %v6285 = vmul.f32 %v6267, %v6283
    %v6286 = vpack.c.bf16 %v6285, %v6285
    %v6288 = vsel %vm562, %v6286, 0
    %6290 = vmatprep.subr.bf16.mxu0 0
    %6291 = vmatpush1.bf16.msra.mxu0 0
    %6292 = vmatprep.subr.bf16.mxu0 0
    %6293 = vmatpush1.bf16.msra.mxu0 0
    %6294 = vmatprep.subr.bf16.mxu0 0
    %6295 = vmatpush1.bf16.msra.mxu0 0
    %6296 = vmatprep.subr.bf16.mxu0 0
    %6297 = vmatpush1.bf16.msra.mxu0 0
    %6298 = vmatprep.subr.bf16.mxu0 0
    %6299 = vmatpush1.bf16.msra.mxu0 %v4597
    %6300 = vmatprep.subr.bf16.mxu0 0
    %6301 = vmatpush1.bf16.msra.mxu0 %v4596
    %6302 = vmatprep.subr.bf16.mxu0 0
    %6303 = vmatpush1.bf16.msra.mxu0 %v4595
    %6304 = vmatprep.subr.bf16.mxu0 0
    %6305 = vmatpush1.bf16.msra.mxu0 %v4594
    %6306 = vmatprep.subr.bf16.mxu0 0
    %6307 = vmatpush2.bf16.msra.mxu0 0
    %6308 = vmatprep.subr.bf16.mxu0 0
    %6309 = vmatpush2.bf16.msra.mxu0 0
    %6310 = vmatprep.subr.bf16.mxu0 0
    %6311 = vmatpush2.bf16.msra.mxu0 0
    %6312 = vmatprep.subr.bf16.mxu0 0
    %6313 = vmatpush2.bf16.msra.mxu0 0
    %6314 = vmatprep.subr.bf16.mxu0 0
    %6315 = vmatpush2.bf16.msra.mxu0 0
    %6316 = vmatprep.subr.bf16.mxu0 0
    %6317 = vmatpush2.bf16.msra.mxu0 0
    %6318 = vmatprep.subr.bf16.mxu0 0
    %6319 = vmatpush2.bf16.msra.mxu0 0
    %6320 = vmatprep.subr.bf16.mxu0 0
    %6321 = vmatpush2.bf16.msra.mxu0 0
    %6322 = vmatprep.mubr.bf16.mxu0 0
    %6323 = vmatmul.mubr.bf16.gmra.mxu0 %v6288
    %v6324 = vpop.f32.mrf.mxu0
    %v6325 = vadd.f32 %v4576, %v6324
    %v6326 = vpop.f32.mrf.mxu0
    %v6327 = vpop.f32.mrf.mxu0
    %v6328 = vpop.f32.mrf.mxu0
    %6329 = vdwg.mxu0
    %s6330 = scalar_lea.vmem %s10, 10
    %6331 = vst [vmem:[%s6330] sm:$0x3] %v6325
    %v6332 = vsel %vm4647, %v6325, -inf
    %6333 = vmax.xlane.f32.xlu0 %v6332
    %v6334 = vpop.xlane.xlu0 %6333
    %vm6335 = vcmp.eq.f32.partialorder %v6325, %v6334
    %v6336 = vsel %vm6335, %v109, 128
    %v6337 = vsel %vm4647, %v6336, 2147483647
    %v6338 = vand.u32 %v6337, 65535
    %v6339 = vshra.s32 %v6337, 16
    %v6340 = vcvt.s32.f32 %v6338
    %v6341 = vcvt.s32.f32 %v6339
    %6342 = vmin.xlane.f32.xlu0 %v6341
    %v6343 = vpop.xlane.xlu0 %6342
    %vm6344 = vcmp.eq.f32.partialorder %v6341, %v6343
    %v6345 = vsel %vm6344, %v6340, inf
    %6346 = vmin.xlane.f32.xlu0 %v6345
    %v6347 = vpop.xlane.xlu0 %6346
    %v6348 = vcvt.f32.s32 %v6347
    %v6349 = vcvt.f32.s32 %v6343
    %v6350 = vshll.u32 %v6349, 16
    %v6351 = vadd.s32 %v6350, %v6348
    %vm6352 = vcmp.eq.s32.totalorder %v109, %v6351
    %v6353 = vsel %vm6352, 1, 0
    %v6354 = vcvt.s32.f32 %v6353
    %v6355 = vpack.c.bf16 %v6354, %v6354
    %6356 = vmatprep.subr.bf16.mxu0 0
    %6357 = vmatpush1.bf16.msra.mxu0 %v161
    %6358 = vmatprep.subr.bf16.mxu0 0
    %6359 = vmatpush1.bf16.msra.mxu0 %v160
    %6360 = vmatprep.subr.bf16.mxu0 0
    %6361 = vmatpush1.bf16.msra.mxu0 %v159
    %6362 = vmatprep.subr.bf16.mxu0 0
    %6363 = vmatpush1.bf16.msra.mxu0 %v158
    %6364 = vmatprep.subr.bf16.mxu0 0
    %6365 = vmatpush1.bf16.msra.mxu0 %v157
    %6366 = vmatprep.subr.bf16.mxu0 0
    %6367 = vmatpush1.bf16.msra.mxu0 %v156
    %6368 = vmatprep.subr.bf16.mxu0 0
    %6369 = vmatpush1.bf16.msra.mxu0 %v155
    %6370 = vmatprep.subr.bf16.mxu0 0
    %6371 = vmatpush1.bf16.msra.mxu0 %v154
    %6372 = vmatprep.subr.bf16.mxu0 0
    %6373 = vmatpush2.bf16.msra.mxu0 0
    %6374 = vmatprep.subr.bf16.mxu0 0
    %6375 = vmatpush2.bf16.msra.mxu0 0
    %6376 = vmatprep.subr.bf16.mxu0 0
    %6377 = vmatpush2.bf16.msra.mxu0 0
    %6378 = vmatprep.subr.bf16.mxu0 0
    %6379 = vmatpush2.bf16.msra.mxu0 0
    %6380 = vmatprep.subr.bf16.mxu0 0
    %6381 = vmatpush2.bf16.msra.mxu0 0
    %6382 = vmatprep.subr.bf16.mxu0 0
    %6383 = vmatpush2.bf16.msra.mxu0 0
    %6384 = vmatprep.subr.bf16.mxu0 0
    %6385 = vmatpush2.bf16.msra.mxu0 0
    %6386 = vmatprep.subr.bf16.mxu0 0
    %6387 = vmatpush2.bf16.msra.mxu0 0
    %6388 = vmatprep.mubr.bf16.mxu0 0
    %6389 = vmatmul.mubr.bf16.gmra.mxu0 %v6355
    %v6390 = vpop.f32.mrf.mxu0
    %v6391 = vadd.f32 0.0, %v6390
    %v6392 = vpop.f32.mrf.mxu0
    %v6393 = vpop.f32.mrf.mxu0
    %v6394 = vpop.f32.mrf.mxu0
    %6395 = vdwg.mxu0
    %6397 = vrot.lane.b32.xlu0 %v6054, 32
    %v6398 = vpop.permute.xlu0 %6397
    %v6400 = vsel %vm560, %v6391, %v6398
    %v6401 = vpack.c.bf16 %v6400, %v6400
    %v6403 = vsel %vm3992, %v6401, 0
    %6405 = vmatprep.subr.bf16.mxu0 0
    %6406 = vmatpush1.bf16.msra.mxu0 0
    %6407 = vmatprep.subr.bf16.mxu0 0
    %6408 = vmatpush1.bf16.msra.mxu0 0
    %6409 = vmatprep.subr.bf16.mxu0 %v3979
    %6410 = vmatpush1.bf16.msra.mxu0 %v3978
    %6411 = vmatprep.subr.bf16.mxu0 %v3977
    %6412 = vmatpush1.bf16.msra.mxu0 %v3976
    %6413 = vmatprep.subr.bf16.mxu0 %v3975
    %6414 = vmatpush1.bf16.msra.mxu0 %v3974
    %6415 = vmatprep.subr.bf16.mxu0 %v3973
    %6416 = vmatpush1.bf16.msra.mxu0 %v3972
    %6417 = vmatprep.subr.bf16.mxu0 %v3971
    %6418 = vmatpush1.bf16.msra.mxu0 %v3970
    %6419 = vmatprep.subr.bf16.mxu0 %v3969
    %6420 = vmatpush1.bf16.msra.mxu0 %v3968
    %6421 = vmatprep.subr.bf16.mxu0 0
    %6422 = vmatpush2.bf16.msra.mxu0 0
    %6423 = vmatprep.subr.bf16.mxu0 0
    %6424 = vmatpush2.bf16.msra.mxu0 0
    %6425 = vmatprep.subr.bf16.mxu0 0
    %6426 = vmatpush2.bf16.msra.mxu0 0
    %6427 = vmatprep.subr.bf16.mxu0 0
    %6428 = vmatpush2.bf16.msra.mxu0 0
    %6429 = vmatprep.subr.bf16.mxu0 0
    %6430 = vmatpush2.bf16.msra.mxu0 0
    %6431 = vmatprep.subr.bf16.mxu0 0
    %6432 = vmatpush2.bf16.msra.mxu0 0
    %6433 = vmatprep.subr.bf16.mxu0 0
    %6434 = vmatpush2.bf16.msra.mxu0 0
    %6435 = vmatprep.subr.bf16.mxu0 0
    %6436 = vmatpush2.bf16.msra.mxu0 0
    %6437 = vmatprep.mubr.bf16.mxu0 0
    %6438 = vmatmul.mubr.bf16.gmra.mxu0 %v6403
    %v6439 = vpop.f32.mrf.mxu0
    %v6440 = vadd.f32 %v3925, %v6439
    %v6441 = vpop.f32.mrf.mxu0
    %v6442 = vadd.f32 %v3929, %v6441
    %v6443 = vpop.f32.mrf.mxu0
    %v6444 = vpop.f32.mrf.mxu0
    %6445 = vdwg.mxu0
    %v6446 = vxor.u32 %v6440, 2147483648
    %v6447 = vxor.u32 %v6442, 2147483648
    %v6448 = vmul.f32 %v6446, 1.442695
    %v6449 = vpow.pop %v6448
    %v6450 = vmul.f32 %v6447, 1.442695
    %v6451 = vpow.pop %v6450
    %v6452 = vadd.f32 %v6449, 1.0
    %v6453 = vadd.f32 %v6451, 1.0
    %v6454 = vrcp.pop %v6452
    %v6455 = vmul.f32 1.0, %v6454
    %v6456 = vrcp.pop %v6453
    %v6457 = vmul.f32 1.0, %v6456
    %v6458 = vtanh.pop %v6442
    %v6459 = vmul.f32 %v6455, %v6048
    %6461 = vrot.lane.b32.xlu0 %v6458, 64
    %v6462 = vpop.permute.xlu0 %6461
    %v6464 = vmul.f32 %v6455, %v6462
    %6466 = vrot.lane.b32.xlu0 %v6464, 64
    %v6467 = vpop.permute.xlu0 %6466
    %v6469 = vadd.f32 %v6459, %v6467
    %v6470 = vtanh.pop %v6469
    %6472 = vrot.lane.b32.xlu0 %v6470, 64
    %v6473 = vpop.permute.xlu0 %6472
    %v6475 = vmul.f32 %v6457, %v6473
    %6477 = vrot.lane.b32.xlu0 %v6131, 64
    %v6478 = vpop.permute.xlu0 %6477
    %v6480 = vsel %vm562, %v6475, %v6478
    %v6481 = vpack.c.bf16 %v6480, %v6480
    %6482 = vmatprep.subr.bf16.mxu0 %v4147
    %6483 = vmatpush1.bf16.msra.mxu0 %v4146
    %6484 = vmatprep.subr.bf16.mxu0 %v4145
    %6485 = vmatpush1.bf16.msra.mxu0 %v4144
    %6486 = vmatprep.subr.bf16.mxu0 %v4143
    %6487 = vmatpush1.bf16.msra.mxu0 %v4142
    %6488 = vmatprep.subr.bf16.mxu0 %v4141
    %6489 = vmatpush1.bf16.msra.mxu0 %v4140
    %6490 = vmatprep.subr.bf16.mxu0 %v4139
    %6491 = vmatpush1.bf16.msra.mxu0 %v4138
    %6492 = vmatprep.subr.bf16.mxu0 %v4137
    %6493 = vmatpush1.bf16.msra.mxu0 %v4136
    %6494 = vmatprep.subr.bf16.mxu0 %v4135
    %6495 = vmatpush1.bf16.msra.mxu0 %v4134
    %6496 = vmatprep.subr.bf16.mxu0 %v4133
    %6497 = vmatpush1.bf16.msra.mxu0 %v4132
    %6498 = vmatprep.subr.bf16.mxu0 0
    %6499 = vmatpush2.bf16.msra.mxu0 0
    %6500 = vmatprep.subr.bf16.mxu0 0
    %6501 = vmatpush2.bf16.msra.mxu0 0
    %6502 = vmatprep.subr.bf16.mxu0 0
    %6503 = vmatpush2.bf16.msra.mxu0 0
    %6504 = vmatprep.subr.bf16.mxu0 0
    %6505 = vmatpush2.bf16.msra.mxu0 0
    %6506 = vmatprep.subr.bf16.mxu0 0
    %6507 = vmatpush2.bf16.msra.mxu0 0
    %6508 = vmatprep.subr.bf16.mxu0 0
    %6509 = vmatpush2.bf16.msra.mxu0 0
    %6510 = vmatprep.subr.bf16.mxu0 0
    %6511 = vmatpush2.bf16.msra.mxu0 0
    %6512 = vmatprep.subr.bf16.mxu0 0
    %6513 = vmatpush2.bf16.msra.mxu0 0
    %6514 = vmatprep.mubr.bf16.mxu0 0
    %6515 = vmatmul.mubr.bf16.gmra.mxu0 %v6481
    %v6516 = vpop.f32.mrf.mxu0
    %v6517 = vadd.f32 %v4077, %v6516
    %v6518 = vpop.f32.mrf.mxu0
    %v6519 = vadd.f32 %v4081, %v6518
    %v6520 = vpop.f32.mrf.mxu0
    %v6521 = vpop.f32.mrf.mxu0
    %6522 = vdwg.mxu0
    %v6523 = vxor.u32 %v6517, 2147483648
    %v6524 = vxor.u32 %v6519, 2147483648
    %v6525 = vmul.f32 %v6523, 1.442695
    %v6526 = vpow.pop %v6525
    %v6527 = vmul.f32 %v6524, 1.442695
    %v6528 = vpow.pop %v6527
    %v6529 = vadd.f32 %v6526, 1.0
    %v6530 = vadd.f32 %v6528, 1.0
    %v6531 = vrcp.pop %v6529
    %v6532 = vmul.f32 1.0, %v6531
    %v6533 = vrcp.pop %v6530
    %v6534 = vmul.f32 1.0, %v6533
    %v6535 = vtanh.pop %v6519
    %v6536 = vmul.f32 %v6532, %v6125
    %6538 = vrot.lane.b32.xlu0 %v6535, 64
    %v6539 = vpop.permute.xlu0 %6538
    %v6541 = vmul.f32 %v6532, %v6539
    %6543 = vrot.lane.b32.xlu0 %v6541, 64
    %v6544 = vpop.permute.xlu0 %6543
    %v6546 = vadd.f32 %v6536, %v6544
    %v6547 = vtanh.pop %v6546
    %6549 = vrot.lane.b32.xlu0 %v6547, 64
    %v6550 = vpop.permute.xlu0 %6549
    %v6552 = vmul.f32 %v6534, %v6550
    %6554 = vrot.lane.b32.xlu0 %v6208, 64
    %v6555 = vpop.permute.xlu0 %6554
    %v6557 = vsel %vm562, %v6552, %v6555
    %v6558 = vpack.c.bf16 %v6557, %v6557
    %6559 = vmatprep.subr.bf16.mxu0 %v4315
    %6560 = vmatpush1.bf16.msra.mxu0 %v4314
    %6561 = vmatprep.subr.bf16.mxu0 %v4313
    %6562 = vmatpush1.bf16.msra.mxu0 %v4312
    %6563 = vmatprep.subr.bf16.mxu0 %v4311
    %6564 = vmatpush1.bf16.msra.mxu0 %v4310
    %6565 = vmatprep.subr.bf16.mxu0 %v4309
    %6566 = vmatpush1.bf16.msra.mxu0 %v4308
    %6567 = vmatprep.subr.bf16.mxu0 %v4307
    %6568 = vmatpush1.bf16.msra.mxu0 %v4306
    %6569 = vmatprep.subr.bf16.mxu0 %v4305
    %6570 = vmatpush1.bf16.msra.mxu0 %v4304
    %6571 = vmatprep.subr.bf16.mxu0 %v4303
    %6572 = vmatpush1.bf16.msra.mxu0 %v4302
    %6573 = vmatprep.subr.bf16.mxu0 %v4301
    %6574 = vmatpush1.bf16.msra.mxu0 %v4300
    %6575 = vmatprep.subr.bf16.mxu0 0
    %6576 = vmatpush2.bf16.msra.mxu0 0
    %6577 = vmatprep.subr.bf16.mxu0 0
    %6578 = vmatpush2.bf16.msra.mxu0 0
    %6579 = vmatprep.subr.bf16.mxu0 0
    %6580 = vmatpush2.bf16.msra.mxu0 0
    %6581 = vmatprep.subr.bf16.mxu0 0
    %6582 = vmatpush2.bf16.msra.mxu0 0
    %6583 = vmatprep.subr.bf16.mxu0 0
    %6584 = vmatpush2.bf16.msra.mxu0 0
    %6585 = vmatprep.subr.bf16.mxu0 0
    %6586 = vmatpush2.bf16.msra.mxu0 0
    %6587 = vmatprep.subr.bf16.mxu0 0
    %6588 = vmatpush2.bf16.msra.mxu0 0
    %6589 = vmatprep.subr.bf16.mxu0 0
    %6590 = vmatpush2.bf16.msra.mxu0 0
    %6591 = vmatprep.mubr.bf16.mxu0 0
    %6592 = vmatmul.mubr.bf16.gmra.mxu0 %v6558
    %v6593 = vpop.f32.mrf.mxu0
    %v6594 = vadd.f32 %v4245, %v6593
    %v6595 = vpop.f32.mrf.mxu0
    %v6596 = vadd.f32 %v4249, %v6595
    %v6597 = vpop.f32.mrf.mxu0
    %v6598 = vpop.f32.mrf.mxu0
    %6599 = vdwg.mxu0
    %v6600 = vxor.u32 %v6594, 2147483648
    %v6601 = vxor.u32 %v6596, 2147483648
    %v6602 = vmul.f32 %v6600, 1.442695
    %v6603 = vpow.pop %v6602
    %v6604 = vmul.f32 %v6601, 1.442695
    %v6605 = vpow.pop %v6604
    %v6606 = vadd.f32 %v6603, 1.0
    %v6607 = vadd.f32 %v6605, 1.0
    %v6608 = vrcp.pop %v6606
    %v6609 = vmul.f32 1.0, %v6608
    %v6610 = vrcp.pop %v6607
    %v6611 = vmul.f32 1.0, %v6610
    %v6612 = vtanh.pop %v6596
    %v6613 = vmul.f32 %v6609, %v6202
    %6615 = vrot.lane.b32.xlu0 %v6612, 64
    %v6616 = vpop.permute.xlu0 %6615
    %v6618 = vmul.f32 %v6609, %v6616
    %6620 = vrot.lane.b32.xlu0 %v6618, 64
    %v6621 = vpop.permute.xlu0 %6620
    %v6623 = vadd.f32 %v6613, %v6621
    %v6624 = vtanh.pop %v6623
    %6626 = vrot.lane.b32.xlu0 %v6624, 64
    %v6627 = vpop.permute.xlu0 %6626
    %v6629 = vmul.f32 %v6611, %v6627
    %6631 = vrot.lane.b32.xlu0 %v6285, 64
    %v6632 = vpop.permute.xlu0 %6631
    %v6634 = vsel %vm562, %v6629, %v6632
    %v6635 = vpack.c.bf16 %v6634, %v6634
    %6636 = vmatprep.subr.bf16.mxu0 %v4483
    %6637 = vmatpush1.bf16.msra.mxu0 %v4482
    %6638 = vmatprep.subr.bf16.mxu0 %v4481
    %6639 = vmatpush1.bf16.msra.mxu0 %v4480
    %6640 = vmatprep.subr.bf16.mxu0 %v4479
    %6641 = vmatpush1.bf16.msra.mxu0 %v4478
    %6642 = vmatprep.subr.bf16.mxu0 %v4477
    %6643 = vmatpush1.bf16.msra.mxu0 %v4476
    %6644 = vmatprep.subr.bf16.mxu0 %v4475
    %6645 = vmatpush1.bf16.msra.mxu0 %v4474
    %6646 = vmatprep.subr.bf16.mxu0 %v4473
    %6647 = vmatpush1.bf16.msra.mxu0 %v4472
    %6648 = vmatprep.subr.bf16.mxu0 %v4471
    %6649 = vmatpush1.bf16.msra.mxu0 %v4470
    %6650 = vmatprep.subr.bf16.mxu0 %v4469
    %6651 = vmatpush1.bf16.msra.mxu0 %v4468
    %6652 = vmatprep.subr.bf16.mxu0 0
    %6653 = vmatpush2.bf16.msra.mxu0 0
    %6654 = vmatprep.subr.bf16.mxu0 0
    %6655 = vmatpush2.bf16.msra.mxu0 0
    %6656 = vmatprep.subr.bf16.mxu0 0
    %6657 = vmatpush2.bf16.msra.mxu0 0
    %6658 = vmatprep.subr.bf16.mxu0 0
    %6659 = vmatpush2.bf16.msra.mxu0 0
    %6660 = vmatprep.subr.bf16.mxu0 0
    %6661 = vmatpush2.bf16.msra.mxu0 0
    %6662 = vmatprep.subr.bf16.mxu0 0
    %6663 = vmatpush2.bf16.msra.mxu0 0
    %6664 = vmatprep.subr.bf16.mxu0 0
    %6665 = vmatpush2.bf16.msra.mxu0 0
    %6666 = vmatprep.subr.bf16.mxu0 0
    %6667 = vmatpush2.bf16.msra.mxu0 0
    %6668 = vmatprep.mubr.bf16.mxu0 0
    %6669 = vmatmul.mubr.bf16.gmra.mxu0 %v6635
    %v6670 = vpop.f32.mrf.mxu0
    %v6671 = vadd.f32 %v4413, %v6670
    %v6672 = vpop.f32.mrf.mxu0
    %v6673 = vadd.f32 %v4417, %v6672
    %v6674 = vpop.f32.mrf.mxu0
    %v6675 = vpop.f32.mrf.mxu0
    %6676 = vdwg.mxu0
    %v6677 = vxor.u32 %v6671, 2147483648
    %v6678 = vxor.u32 %v6673, 2147483648
    %v6679 = vmul.f32 %v6677, 1.442695
    %v6680 = vpow.pop %v6679
    %v6681 = vmul.f32 %v6678, 1.442695
    %v6682 = vpow.pop %v6681
    %v6683 = vadd.f32 %v6680, 1.0
    %v6684 = vadd.f32 %v6682, 1.0
    %v6685 = vrcp.pop %v6683
    %v6686 = vmul.f32 1.0, %v6685
    %v6687 = vrcp.pop %v6684
    %v6688 = vmul.f32 1.0, %v6687
    %v6689 = vtanh.pop %v6673
    %v6690 = vmul.f32 %v6686, %v6279
    %6692 = vrot.lane.b32.xlu0 %v6689, 64
    %v6693 = vpop.permute.xlu0 %6692
    %v6695 = vmul.f32 %v6686, %v6693
    %6697 = vrot.lane.b32.xlu0 %v6695, 64
    %v6698 = vpop.permute.xlu0 %6697
    %v6700 = vadd.f32 %v6690, %v6698
    %v6701 = vtanh.pop %v6700
    %6703 = vrot.lane.b32.xlu0 %v6701, 64
    %v6704 = vpop.permute.xlu0 %6703
    %v6706 = vmul.f32 %v6688, %v6704
    %v6707 = vpack.c.bf16 %v6706, %v6706
    %v6709 = vsel %vm562, %v6707, 0
    %6711 = vmatprep.subr.bf16.mxu0 0
    %6712 = vmatpush1.bf16.msra.mxu0 0
    %6713 = vmatprep.subr.bf16.mxu0 0
    %6714 = vmatpush1.bf16.msra.mxu0 0
    %6715 = vmatprep.subr.bf16.mxu0 0
    %6716 = vmatpush1.bf16.msra.mxu0 0
    %6717 = vmatprep.subr.bf16.mxu0 0
    %6718 = vmatpush1.bf16.msra.mxu0 0
    %6719 = vmatprep.subr.bf16.mxu0 0
    %6720 = vmatpush1.bf16.msra.mxu0 %v4597
    %6721 = vmatprep.subr.bf16.mxu0 0
    %6722 = vmatpush1.bf16.msra.mxu0 %v4596
    %6723 = vmatprep.subr.bf16.mxu0 0
    %6724 = vmatpush1.bf16.msra.mxu0 %v4595
    %6725 = vmatprep.subr.bf16.mxu0 0
    %6726 = vmatpush1.bf16.msra.mxu0 %v4594
    %6727 = vmatprep.subr.bf16.mxu0 0
    %6728 = vmatpush2.bf16.msra.mxu0 0
    %6729 = vmatprep.subr.bf16.mxu0 0
    %6730 = vmatpush2.bf16.msra.mxu0 0
    %6731 = vmatprep.subr.bf16.mxu0 0
    %6732 = vmatpush2.bf16.msra.mxu0 0
    %6733 = vmatprep.subr.bf16.mxu0 0
    %6734 = vmatpush2.bf16.msra.mxu0 0
    %6735 = vmatprep.subr.bf16.mxu0 0
    %6736 = vmatpush2.bf16.msra.mxu0 0
    %6737 = vmatprep.subr.bf16.mxu0 0
    %6738 = vmatpush2.bf16.msra.mxu0 0
    %6739 = vmatprep.subr.bf16.mxu0 0
    %6740 = vmatpush2.bf16.msra.mxu0 0
    %6741 = vmatprep.subr.bf16.mxu0 0
    %6742 = vmatpush2.bf16.msra.mxu0 0
    %6743 = vmatprep.mubr.bf16.mxu0 0
    %6744 = vmatmul.mubr.bf16.gmra.mxu0 %v6709
    %v6745 = vpop.f32.mrf.mxu0
    %v6746 = vadd.f32 %v4576, %v6745
    %v6747 = vpop.f32.mrf.mxu0
    %v6748 = vpop.f32.mrf.mxu0
    %v6749 = vpop.f32.mrf.mxu0
    %6750 = vdwg.mxu0
    %s6751 = scalar_lea.vmem %s10, 12
    %6752 = vst [vmem:[%s6751] sm:$0x3] %v6746
    %v6753 = vsel %vm4647, %v6746, -inf
    %6754 = vmax.xlane.f32.xlu0 %v6753
    %v6755 = vpop.xlane.xlu0 %6754
    %vm6756 = vcmp.eq.f32.partialorder %v6746, %v6755
    %v6757 = vsel %vm6756, %v109, 128
    %v6758 = vsel %vm4647, %v6757, 2147483647
    %v6759 = vand.u32 %v6758, 65535
    %v6760 = vshra.s32 %v6758, 16
    %v6761 = vcvt.s32.f32 %v6759
    %v6762 = vcvt.s32.f32 %v6760
    %6763 = vmin.xlane.f32.xlu0 %v6762
    %v6764 = vpop.xlane.xlu0 %6763
    %vm6765 = vcmp.eq.f32.partialorder %v6762, %v6764
    %v6766 = vsel %vm6765, %v6761, inf
    %6767 = vmin.xlane.f32.xlu0 %v6766
    %v6768 = vpop.xlane.xlu0 %6767
    %v6769 = vcvt.f32.s32 %v6768
    %v6770 = vcvt.f32.s32 %v6764
    %v6771 = vshll.u32 %v6770, 16
    %v6772 = vadd.s32 %v6771, %v6769
    %vm6773 = vcmp.eq.s32.totalorder %v109, %v6772
    %v6774 = vsel %vm6773, 1, 0
    %v6775 = vcvt.s32.f32 %v6774
    %v6776 = vpack.c.bf16 %v6775, %v6775
    %6777 = vmatprep.subr.bf16.mxu0 0
    %6778 = vmatpush1.bf16.msra.mxu0 %v161
    %6779 = vmatprep.subr.bf16.mxu0 0
    %6780 = vmatpush1.bf16.msra.mxu0 %v160
    %6781 = vmatprep.subr.bf16.mxu0 0
    %6782 = vmatpush1.bf16.msra.mxu0 %v159
    %6783 = vmatprep.subr.bf16.mxu0 0
    %6784 = vmatpush1.bf16.msra.mxu0 %v158
    %6785 = vmatprep.subr.bf16.mxu0 0
    %6786 = vmatpush1.bf16.msra.mxu0 %v157
    %6787 = vmatprep.subr.bf16.mxu0 0
    %6788 = vmatpush1.bf16.msra.mxu0 %v156
    %6789 = vmatprep.subr.bf16.mxu0 0
    %6790 = vmatpush1.bf16.msra.mxu0 %v155
    %6791 = vmatprep.subr.bf16.mxu0 0
    %6792 = vmatpush1.bf16.msra.mxu0 %v154
    %6793 = vmatprep.subr.bf16.mxu0 0
    %6794 = vmatpush2.bf16.msra.mxu0 0
    %6795 = vmatprep.subr.bf16.mxu0 0
    %6796 = vmatpush2.bf16.msra.mxu0 0
    %6797 = vmatprep.subr.bf16.mxu0 0
    %6798 = vmatpush2.bf16.msra.mxu0 0
    %6799 = vmatprep.subr.bf16.mxu0 0
    %6800 = vmatpush2.bf16.msra.mxu0 0
    %6801 = vmatprep.subr.bf16.mxu0 0
    %6802 = vmatpush2.bf16.msra.mxu0 0
    %6803 = vmatprep.subr.bf16.mxu0 0
    %6804 = vmatpush2.bf16.msra.mxu0 0
    %6805 = vmatprep.subr.bf16.mxu0 0
    %6806 = vmatpush2.bf16.msra.mxu0 0
    %6807 = vmatprep.subr.bf16.mxu0 0
    %6808 = vmatpush2.bf16.msra.mxu0 0
    %6809 = vmatprep.mubr.bf16.mxu0 0
    %6810 = vmatmul.mubr.bf16.gmra.mxu0 %v6776
    %v6811 = vpop.f32.mrf.mxu0
    %v6812 = vadd.f32 0.0, %v6811
    %v6813 = vpop.f32.mrf.mxu0
    %v6814 = vpop.f32.mrf.mxu0
    %v6815 = vpop.f32.mrf.mxu0
    %6816 = vdwg.mxu0
    %6818 = vrot.lane.b32.xlu0 %v6475, 32
    %v6819 = vpop.permute.xlu0 %6818
    %v6821 = vsel %vm560, %v6812, %v6819
    %v6822 = vpack.c.bf16 %v6821, %v6821
    %v6824 = vsel %vm3992, %v6822, 0
    %6826 = vmatprep.subr.bf16.mxu0 0
    %6827 = vmatpush1.bf16.msra.mxu0 0
    %6828 = vmatprep.subr.bf16.mxu0 0
    %6829 = vmatpush1.bf16.msra.mxu0 0
    %6830 = vmatprep.subr.bf16.mxu0 %v3979
    %6831 = vmatpush1.bf16.msra.mxu0 %v3978
    %6832 = vmatprep.subr.bf16.mxu0 %v3977
    %6833 = vmatpush1.bf16.msra.mxu0 %v3976
    %6834 = vmatprep.subr.bf16.mxu0 %v3975
    %6835 = vmatpush1.bf16.msra.mxu0 %v3974
    %6836 = vmatprep.subr.bf16.mxu0 %v3973
    %6837 = vmatpush1.bf16.msra.mxu0 %v3972
    %6838 = vmatprep.subr.bf16.mxu0 %v3971
    %6839 = vmatpush1.bf16.msra.mxu0 %v3970
    %6840 = vmatprep.subr.bf16.mxu0 %v3969
    %6841 = vmatpush1.bf16.msra.mxu0 %v3968
    %6842 = vmatprep.subr.bf16.mxu0 0
    %6843 = vmatpush2.bf16.msra.mxu0 0
    %6844 = vmatprep.subr.bf16.mxu0 0
    %6845 = vmatpush2.bf16.msra.mxu0 0
    %6846 = vmatprep.subr.bf16.mxu0 0
    %6847 = vmatpush2.bf16.msra.mxu0 0
    %6848 = vmatprep.subr.bf16.mxu0 0
    %6849 = vmatpush2.bf16.msra.mxu0 0
    %6850 = vmatprep.subr.bf16.mxu0 0
    %6851 = vmatpush2.bf16.msra.mxu0 0
    %6852 = vmatprep.subr.bf16.mxu0 0
    %6853 = vmatpush2.bf16.msra.mxu0 0
    %6854 = vmatprep.subr.bf16.mxu0 0
    %6855 = vmatpush2.bf16.msra.mxu0 0
    %6856 = vmatprep.subr.bf16.mxu0 0
    %6857 = vmatpush2.bf16.msra.mxu0 0
    %6858 = vmatprep.mubr.bf16.mxu0 0
    %6859 = vmatmul.mubr.bf16.gmra.mxu0 %v6824
    %v6860 = vpop.f32.mrf.mxu0
    %v6861 = vadd.f32 %v3925, %v6860
    %v6862 = vpop.f32.mrf.mxu0
    %v6863 = vadd.f32 %v3929, %v6862
    %v6864 = vpop.f32.mrf.mxu0
    %v6865 = vpop.f32.mrf.mxu0
    %6866 = vdwg.mxu0
    %v6867 = vxor.u32 %v6861, 2147483648
    %v6868 = vxor.u32 %v6863, 2147483648
    %v6869 = vmul.f32 %v6867, 1.442695
    %v6870 = vpow.pop %v6869
    %v6871 = vmul.f32 %v6868, 1.442695
    %v6872 = vpow.pop %v6871
    %v6873 = vadd.f32 %v6870, 1.0
    %v6874 = vadd.f32 %v6872, 1.0
    %v6875 = vrcp.pop %v6873
    %v6876 = vmul.f32 1.0, %v6875
    %v6877 = vrcp.pop %v6874
    %v6878 = vmul.f32 1.0, %v6877
    %v6879 = vtanh.pop %v6863
    %v6880 = vmul.f32 %v6876, %v6469
    %6882 = vrot.lane.b32.xlu0 %v6879, 64
    %v6883 = vpop.permute.xlu0 %6882
    %v6885 = vmul.f32 %v6876, %v6883
    %6887 = vrot.lane.b32.xlu0 %v6885, 64
    %v6888 = vpop.permute.xlu0 %6887
    %v6890 = vadd.f32 %v6880, %v6888
    %v6891 = vtanh.pop %v6890
    %6893 = vrot.lane.b32.xlu0 %v6891, 64
    %v6894 = vpop.permute.xlu0 %6893
    %v6896 = vmul.f32 %v6878, %v6894
    %6898 = vrot.lane.b32.xlu0 %v6552, 64
    %v6899 = vpop.permute.xlu0 %6898
    %v6901 = vsel %vm562, %v6896, %v6899
    %v6902 = vpack.c.bf16 %v6901, %v6901
    %6903 = vmatprep.subr.bf16.mxu0 %v4147
    %6904 = vmatpush1.bf16.msra.mxu0 %v4146
    %6905 = vmatprep.subr.bf16.mxu0 %v4145
    %6906 = vmatpush1.bf16.msra.mxu0 %v4144
    %6907 = vmatprep.subr.bf16.mxu0 %v4143
    %6908 = vmatpush1.bf16.msra.mxu0 %v4142
    %6909 = vmatprep.subr.bf16.mxu0 %v4141
    %6910 = vmatpush1.bf16.msra.mxu0 %v4140
    %6911 = vmatprep.subr.bf16.mxu0 %v4139
    %6912 = vmatpush1.bf16.msra.mxu0 %v4138
    %6913 = vmatprep.subr.bf16.mxu0 %v4137
    %6914 = vmatpush1.bf16.msra.mxu0 %v4136
    %6915 = vmatprep.subr.bf16.mxu0 %v4135
    %6916 = vmatpush1.bf16.msra.mxu0 %v4134
    %6917 = vmatprep.subr.bf16.mxu0 %v4133
    %6918 = vmatpush1.bf16.msra.mxu0 %v4132
    %6919 = vmatprep.subr.bf16.mxu0 0
    %6920 = vmatpush2.bf16.msra.mxu0 0
    %6921 = vmatprep.subr.bf16.mxu0 0
    %6922 = vmatpush2.bf16.msra.mxu0 0
    %6923 = vmatprep.subr.bf16.mxu0 0
    %6924 = vmatpush2.bf16.msra.mxu0 0
    %6925 = vmatprep.subr.bf16.mxu0 0
    %6926 = vmatpush2.bf16.msra.mxu0 0
    %6927 = vmatprep.subr.bf16.mxu0 0
    %6928 = vmatpush2.bf16.msra.mxu0 0
    %6929 = vmatprep.subr.bf16.mxu0 0
    %6930 = vmatpush2.bf16.msra.mxu0 0
    %6931 = vmatprep.subr.bf16.mxu0 0
    %6932 = vmatpush2.bf16.msra.mxu0 0
    %6933 = vmatprep.subr.bf16.mxu0 0
    %6934 = vmatpush2.bf16.msra.mxu0 0
    %6935 = vmatprep.mubr.bf16.mxu0 0
    %6936 = vmatmul.mubr.bf16.gmra.mxu0 %v6902
    %v6937 = vpop.f32.mrf.mxu0
    %v6938 = vadd.f32 %v4077, %v6937
    %v6939 = vpop.f32.mrf.mxu0
    %v6940 = vadd.f32 %v4081, %v6939
    %v6941 = vpop.f32.mrf.mxu0
    %v6942 = vpop.f32.mrf.mxu0
    %6943 = vdwg.mxu0
    %v6944 = vxor.u32 %v6938, 2147483648
    %v6945 = vxor.u32 %v6940, 2147483648
    %v6946 = vmul.f32 %v6944, 1.442695
    %v6947 = vpow.pop %v6946
    %v6948 = vmul.f32 %v6945, 1.442695
    %v6949 = vpow.pop %v6948
    %v6950 = vadd.f32 %v6947, 1.0
    %v6951 = vadd.f32 %v6949, 1.0
    %v6952 = vrcp.pop %v6950
    %v6953 = vmul.f32 1.0, %v6952
    %v6954 = vrcp.pop %v6951
    %v6955 = vmul.f32 1.0, %v6954
    %v6956 = vtanh.pop %v6940
    %v6957 = vmul.f32 %v6953, %v6546
    %6959 = vrot.lane.b32.xlu0 %v6956, 64
    %v6960 = vpop.permute.xlu0 %6959
    %v6962 = vmul.f32 %v6953, %v6960
    %6964 = vrot.lane.b32.xlu0 %v6962, 64
    %v6965 = vpop.permute.xlu0 %6964
    %v6967 = vadd.f32 %v6957, %v6965
    %v6968 = vtanh.pop %v6967
    %6970 = vrot.lane.b32.xlu0 %v6968, 64
    %v6971 = vpop.permute.xlu0 %6970
    %v6973 = vmul.f32 %v6955, %v6971
    %6975 = vrot.lane.b32.xlu0 %v6629, 64
    %v6976 = vpop.permute.xlu0 %6975
    %v6978 = vsel %vm562, %v6973, %v6976
    %v6979 = vpack.c.bf16 %v6978, %v6978
    %6980 = vmatprep.subr.bf16.mxu0 %v4315
    %6981 = vmatpush1.bf16.msra.mxu0 %v4314
    %6982 = vmatprep.subr.bf16.mxu0 %v4313
    %6983 = vmatpush1.bf16.msra.mxu0 %v4312
    %6984 = vmatprep.subr.bf16.mxu0 %v4311
    %6985 = vmatpush1.bf16.msra.mxu0 %v4310
    %6986 = vmatprep.subr.bf16.mxu0 %v4309
    %6987 = vmatpush1.bf16.msra.mxu0 %v4308
    %6988 = vmatprep.subr.bf16.mxu0 %v4307
    %6989 = vmatpush1.bf16.msra.mxu0 %v4306
    %6990 = vmatprep.subr.bf16.mxu0 %v4305
    %6991 = vmatpush1.bf16.msra.mxu0 %v4304
    %6992 = vmatprep.subr.bf16.mxu0 %v4303
    %6993 = vmatpush1.bf16.msra.mxu0 %v4302
    %6994 = vmatprep.subr.bf16.mxu0 %v4301
    %6995 = vmatpush1.bf16.msra.mxu0 %v4300
    %6996 = vmatprep.subr.bf16.mxu0 0
    %6997 = vmatpush2.bf16.msra.mxu0 0
    %6998 = vmatprep.subr.bf16.mxu0 0
    %6999 = vmatpush2.bf16.msra.mxu0 0
    %7000 = vmatprep.subr.bf16.mxu0 0
    %7001 = vmatpush2.bf16.msra.mxu0 0
    %7002 = vmatprep.subr.bf16.mxu0 0
    %7003 = vmatpush2.bf16.msra.mxu0 0
    %7004 = vmatprep.subr.bf16.mxu0 0
    %7005 = vmatpush2.bf16.msra.mxu0 0
    %7006 = vmatprep.subr.bf16.mxu0 0
    %7007 = vmatpush2.bf16.msra.mxu0 0
    %7008 = vmatprep.subr.bf16.mxu0 0
    %7009 = vmatpush2.bf16.msra.mxu0 0
    %7010 = vmatprep.subr.bf16.mxu0 0
    %7011 = vmatpush2.bf16.msra.mxu0 0
    %7012 = vmatprep.mubr.bf16.mxu0 0
    %7013 = vmatmul.mubr.bf16.gmra.mxu0 %v6979
    %v7014 = vpop.f32.mrf.mxu0
    %v7015 = vadd.f32 %v4245, %v7014
    %v7016 = vpop.f32.mrf.mxu0
    %v7017 = vadd.f32 %v4249, %v7016
    %v7018 = vpop.f32.mrf.mxu0
    %v7019 = vpop.f32.mrf.mxu0
    %7020 = vdwg.mxu0
    %v7021 = vxor.u32 %v7015, 2147483648
    %v7022 = vxor.u32 %v7017, 2147483648
    %v7023 = vmul.f32 %v7021, 1.442695
    %v7024 = vpow.pop %v7023
    %v7025 = vmul.f32 %v7022, 1.442695
    %v7026 = vpow.pop %v7025
    %v7027 = vadd.f32 %v7024, 1.0
    %v7028 = vadd.f32 %v7026, 1.0
    %v7029 = vrcp.pop %v7027
    %v7030 = vmul.f32 1.0, %v7029
    %v7031 = vrcp.pop %v7028
    %v7032 = vmul.f32 1.0, %v7031
    %v7033 = vtanh.pop %v7017
    %v7034 = vmul.f32 %v7030, %v6623
    %7036 = vrot.lane.b32.xlu0 %v7033, 64
    %v7037 = vpop.permute.xlu0 %7036
    %v7039 = vmul.f32 %v7030, %v7037
    %7041 = vrot.lane.b32.xlu0 %v7039, 64
    %v7042 = vpop.permute.xlu0 %7041
    %v7044 = vadd.f32 %v7034, %v7042
    %v7045 = vtanh.pop %v7044
    %7047 = vrot.lane.b32.xlu0 %v7045, 64
    %v7048 = vpop.permute.xlu0 %7047
    %v7050 = vmul.f32 %v7032, %v7048
    %7052 = vrot.lane.b32.xlu0 %v6706, 64
    %v7053 = vpop.permute.xlu0 %7052
    %v7055 = vsel %vm562, %v7050, %v7053
    %v7056 = vpack.c.bf16 %v7055, %v7055
    %7057 = vmatprep.subr.bf16.mxu0 %v4483
    %7058 = vmatpush1.bf16.msra.mxu0 %v4482
    %7059 = vmatprep.subr.bf16.mxu0 %v4481
    %7060 = vmatpush1.bf16.msra.mxu0 %v4480
    %7061 = vmatprep.subr.bf16.mxu0 %v4479
    %7062 = vmatpush1.bf16.msra.mxu0 %v4478
    %7063 = vmatprep.subr.bf16.mxu0 %v4477
    %7064 = vmatpush1.bf16.msra.mxu0 %v4476
    %7065 = vmatprep.subr.bf16.mxu0 %v4475
    %7066 = vmatpush1.bf16.msra.mxu0 %v4474
    %7067 = vmatprep.subr.bf16.mxu0 %v4473
    %7068 = vmatpush1.bf16.msra.mxu0 %v4472
    %7069 = vmatprep.subr.bf16.mxu0 %v4471
    %7070 = vmatpush1.bf16.msra.mxu0 %v4470
    %7071 = vmatprep.subr.bf16.mxu0 %v4469
    %7072 = vmatpush1.bf16.msra.mxu0 %v4468
    %7073 = vmatprep.subr.bf16.mxu0 0
    %7074 = vmatpush2.bf16.msra.mxu0 0
    %7075 = vmatprep.subr.bf16.mxu0 0
    %7076 = vmatpush2.bf16.msra.mxu0 0
    %7077 = vmatprep.subr.bf16.mxu0 0
    %7078 = vmatpush2.bf16.msra.mxu0 0
    %7079 = vmatprep.subr.bf16.mxu0 0
    %7080 = vmatpush2.bf16.msra.mxu0 0
    %7081 = vmatprep.subr.bf16.mxu0 0
    %7082 = vmatpush2.bf16.msra.mxu0 0
    %7083 = vmatprep.subr.bf16.mxu0 0
    %7084 = vmatpush2.bf16.msra.mxu0 0
    %7085 = vmatprep.subr.bf16.mxu0 0
    %7086 = vmatpush2.bf16.msra.mxu0 0
    %7087 = vmatprep.subr.bf16.mxu0 0
    %7088 = vmatpush2.bf16.msra.mxu0 0
    %7089 = vmatprep.mubr.bf16.mxu0 0
    %7090 = vmatmul.mubr.bf16.gmra.mxu0 %v7056
    %v7091 = vpop.f32.mrf.mxu0
    %v7092 = vadd.f32 %v4413, %v7091
    %v7093 = vpop.f32.mrf.mxu0
    %v7094 = vadd.f32 %v4417, %v7093
    %v7095 = vpop.f32.mrf.mxu0
    %v7096 = vpop.f32.mrf.mxu0
    %7097 = vdwg.mxu0
    %v7098 = vxor.u32 %v7092, 2147483648
    %v7099 = vxor.u32 %v7094, 2147483648
    %v7100 = vmul.f32 %v7098, 1.442695
    %v7101 = vpow.pop %v7100
    %v7102 = vmul.f32 %v7099, 1.442695
    %v7103 = vpow.pop %v7102
    %v7104 = vadd.f32 %v7101, 1.0
    %v7105 = vadd.f32 %v7103, 1.0
    %v7106 = vrcp.pop %v7104
    %v7107 = vmul.f32 1.0, %v7106
    %v7108 = vrcp.pop %v7105
    %v7109 = vmul.f32 1.0, %v7108
    %v7110 = vtanh.pop %v7094
    %v7111 = vmul.f32 %v7107, %v6700
    %7113 = vrot.lane.b32.xlu0 %v7110, 64
    %v7114 = vpop.permute.xlu0 %7113
    %v7116 = vmul.f32 %v7107, %v7114
    %7118 = vrot.lane.b32.xlu0 %v7116, 64
    %v7119 = vpop.permute.xlu0 %7118
    %v7121 = vadd.f32 %v7111, %v7119
    %v7122 = vtanh.pop %v7121
    %7124 = vrot.lane.b32.xlu0 %v7122, 64
    %v7125 = vpop.permute.xlu0 %7124
    %v7127 = vmul.f32 %v7109, %v7125
    %v7128 = vpack.c.bf16 %v7127, %v7127
    %v7130 = vsel %vm562, %v7128, 0
    %7132 = vmatprep.subr.bf16.mxu0 0
    %7133 = vmatpush1.bf16.msra.mxu0 0
    %7134 = vmatprep.subr.bf16.mxu0 0
    %7135 = vmatpush1.bf16.msra.mxu0 0
    %7136 = vmatprep.subr.bf16.mxu0 0
    %7137 = vmatpush1.bf16.msra.mxu0 0
    %7138 = vmatprep.subr.bf16.mxu0 0
    %7139 = vmatpush1.bf16.msra.mxu0 0
    %7140 = vmatprep.subr.bf16.mxu0 0
    %7141 = vmatpush1.bf16.msra.mxu0 %v4597
    %7142 = vmatprep.subr.bf16.mxu0 0
    %7143 = vmatpush1.bf16.msra.mxu0 %v4596
    %7144 = vmatprep.subr.bf16.mxu0 0
    %7145 = vmatpush1.bf16.msra.mxu0 %v4595
    %7146 = vmatprep.subr.bf16.mxu0 0
    %7147 = vmatpush1.bf16.msra.mxu0 %v4594
    %7148 = vmatprep.subr.bf16.mxu0 0
    %7149 = vmatpush2.bf16.msra.mxu0 0
    %7150 = vmatprep.subr.bf16.mxu0 0
    %7151 = vmatpush2.bf16.msra.mxu0 0
    %7152 = vmatprep.subr.bf16.mxu0 0
    %7153 = vmatpush2.bf16.msra.mxu0 0
    %7154 = vmatprep.subr.bf16.mxu0 0
    %7155 = vmatpush2.bf16.msra.mxu0 0
    %7156 = vmatprep.subr.bf16.mxu0 0
    %7157 = vmatpush2.bf16.msra.mxu0 0
    %7158 = vmatprep.subr.bf16.mxu0 0
    %7159 = vmatpush2.bf16.msra.mxu0 0
    %7160 = vmatprep.subr.bf16.mxu0 0
    %7161 = vmatpush2.bf16.msra.mxu0 0
    %7162 = vmatprep.subr.bf16.mxu0 0
    %7163 = vmatpush2.bf16.msra.mxu0 0
    %7164 = vmatprep.mubr.bf16.mxu0 0
    %7165 = vmatmul.mubr.bf16.gmra.mxu0 %v7130
    %v7166 = vpop.f32.mrf.mxu0
    %v7167 = vadd.f32 %v4576, %v7166
    %v7168 = vpop.f32.mrf.mxu0
    %v7169 = vpop.f32.mrf.mxu0
    %v7170 = vpop.f32.mrf.mxu0
    %7171 = vdwg.mxu0
    %s7172 = scalar_lea.vmem %s10, 14
    %7173 = vst [vmem:[%s7172] sm:$0x3] %v7167
    // Predicated region
    $region58: #{tran_lstm_forward.1} parent=1 // pred_check
      _
    $region59: #{tran_lstm_forward.1} parent=1 // pred_check_branch
      %7175 = sbr.rel (0) target = $region61
    $region60: #{tran_lstm_forward.1} parent=1 // pred_region
      _
    $region61: #{tran_lstm_forward.1} parent=1 // pred_fallthru
      _
    // Predicated region
    $region62: #{tran_lstm_forward.1} parent=1 // pred_check
      _
    $region63: #{tran_lstm_forward.1} parent=1 // pred_check_branch
      %7177 = sbr.rel (0) target = $region65
    $region64: #{tran_lstm_forward.1} parent=1 // pred_region
      _
    $region65: #{tran_lstm_forward.1} parent=1 // pred_fallthru
      _
    %7178 = vsyncpa [#allocation5], 1
    %7179 = vsyncpa [#allocation7], 1
    %7180 = vsyncpa [#allocation10], 1

</llo_original>
